<compile_context>
chip_gen: v5e
topology: v5e:2x2
jax: 0.10.0
libtpu: 0.0.40
codegen_flags: <defaults>
</compile_context>

<pallas_src>
import functools

import jax
import jax.numpy as jnp
from jax.experimental import pallas as pl
from jax.experimental.pallas import tpu as pltpu

BN_EPS = 1e-5
BN_SCALE = (1.0 + BN_EPS) ** -0.5  # eval-mode BN with default running stats


# ----------------------------------------------------------------------------
# Pallas kernels
# ----------------------------------------------------------------------------
def _conv3x3s2_kernel(xe_ref, xo_ref, w_ref, b_ref, o_ref, *, out_h, out_w, act):
    """Fused 3x3 / stride-2 / pad-1 conv (+ folded BN, optional ReLU6).

    xe_ref/xo_ref: even/odd-column phases of the padded input (1, H+2, Wp, Cin).
    Stride-2 taps become contiguous slices of a phase -> no strided access,
    no im2col blow-up.  Accumulation is 9 bf16 matmuls per output row, f32 acc.
    """
    w = w_ref[...]          # (3, 3, Cin, Cout) bf16
    bias = b_ref[...]       # (1, Cout) f32
    cout = w.shape[-1]
    for ho in range(out_h):
        acc = jnp.zeros((out_w, cout), jnp.float32)
        for kh in range(3):
            re = xe_ref[0, 2 * ho + kh].astype(jnp.bfloat16)   # (We, Cin)
            ro = xo_ref[0, 2 * ho + kh].astype(jnp.bfloat16)   # (Wo, Cin)
            taps = ((re, 0), (ro, 0), (re, 1))                 # kw -> (phase, col off)
            for kw in range(3):
                src, off = taps[kw]
                acc = acc + jnp.dot(src[off:off + out_w, :], w[kh, kw],
                                    preferred_element_type=jnp.float32)
        acc = acc + bias
        if act == "relu6":
            acc = jnp.clip(acc, 0.0, 6.0)
        o_ref[0, ho] = acc.astype(o_ref.dtype)


def _starblock_kernel(xp_ref, x_ref, dw1w_ref, dw1b_ref, w12_ref, b12_ref,
                      wg_ref, dw2w_ref, dw2b_ref, o_ref, zpad,
                      *, H, W, C, HID):
    """Fully fused StarBlock for one batch element (all intermediates in VMEM).

    dwconv7(BN folded) -> [relu6(x@W1+b1) * (x@W2+b2)] @ Wg(BN folded)
    -> dwconv7 (+bias) -> + residual.
    """
    # ---- depthwise 7x7 #1 (VPU, f32); W-axis (sublane) shift hoisted per kw --
    xp = xp_ref[0]                         # (H+6, W+6, C)
    w1 = dw1w_ref[...]                     # (7, 7, C)
    acc1 = jnp.zeros((H, W, C), jnp.float32)
    for kw in range(7):
        xw = xp[:, kw:kw + W, :]           # one sublane realignment per kw
        for kh in range(7):
            acc1 = acc1 + xw[kh:kh + H, :, :] * w1[kh, kw, :]
    y = acc1 + dw1b_ref[...]               # (H, W, C)

    # ---- pointwise star MLP (MXU, bf16 in / f32 acc), fused f1|f2, fused g ---
    w12 = w12_ref[...]                     # (C, 2*HID) bf16   (HID padded to 128k)
    b12 = b12_ref[...]                     # (1, 2*HID) f32
    wg = wg_ref[...]                       # (HID, C)   bf16
    zpad[...] = jnp.zeros_like(zpad)       # zero halo for dwconv2 (pad=3)
    for h in range(H):                     # static, small-H row loop (2D MXU dots)
        row = y[h].astype(jnp.bfloat16)                                   # (W, C)
        t = jnp.dot(row, w12, preferred_element_type=jnp.float32) + b12   # (W, 2*HID)
        t1 = t[:, :HID]
        t2 = t[:, HID:]
        s = (jnp.clip(t1, 0.0, 6.0) * t2).astype(jnp.bfloat16)            # (W, HID)
        z = jnp.dot(s, wg, preferred_element_type=jnp.float32)            # (W, C)
        zpad[h + 3, pl.ds(3, W), :] = z

    # ---- depthwise 7x7 #2 (f32) + bias + residual add (epilogue) -------------
    zp = zpad[...]                         # (H+6, W+6, C)
    w2 = dw2w_ref[...]
    acc2 = jnp.zeros((H, W, C), jnp.float32)
    for kw in range(7):
        zw = zp[:, kw:kw + W, :]
        for kh in range(7):
            acc2 = acc2 + zw[kh:kh + H, :, :] * w2[kh, kw, :]
    out = x_ref[0] + acc2 + dw2b_ref[...]
    o_ref[0] = out.astype(o_ref.dtype)


def _pool_head_kernel(x_ref, w_ref, b_ref, o_ref, *, scale):
    """Fused final BatchNorm (eval) + global avg-pool + linear head."""
    x = x_ref[...]                               # (B, H*W, C)
    pooled = jnp.sum(x, axis=1) * scale          # (B, C)
    o_ref[...] = (jnp.dot(pooled, w_ref[...], preferred_element_type=jnp.float32)
                  + b_ref[...]).astype(o_ref.dtype)


# ----------------------------------------------------------------------------
# Wrappers
# ----------------------------------------------------------------------------
def conv3x3_s2(x, w, b, act="none"):
    """3x3 / stride-2 / pad-1 conv.  x: (B,H,W,Cin) f32, w: (3,3,Cin,Cout) bf16."""
    bsz, h, wd, cin = x.shape
    cout = w.shape[-1]
    ho = (h + 2 - 3) // 2 + 1
    wo = (wd + 2 - 3) // 2 + 1
    xp = jnp.pad(x, ((0, 0), (1, 1), (1, 1), (0, 0)))
    # Polyphase column split (total HBM traffic ~= input size, not 9x im2col).
    xe = xp[:, :, 0::2, :]
    xo = xp[:, :, 1::2, :]
    we, woc = xe.shape[2], xo.shape[2]

    kern = functools.partial(_conv3x3s2_kernel, out_h=ho, out_w=wo, act=act)
    flops = 2 * bsz * ho * wo * 9 * cin * cout
    bytes_acc = (xe.size + xo.size) * 4 + w.size * 2 + cout * 4 + bsz * ho * wo * cout * 4
    return pl.pallas_call(
        kern,
        out_shape=jax.ShapeDtypeStruct((bsz, ho, wo, cout), jnp.float32),
        grid=(bsz,),
        in_specs=[pl.BlockSpec((1, h + 2, we, cin), lambda i: (i, 0, 0, 0)),
                  pl.BlockSpec((1, h + 2, woc, cin), lambda i: (i, 0, 0, 0)),
                  pl.BlockSpec((3, 3, cin, cout), lambda i: (0, 0, 0, 0)),
                  pl.BlockSpec((1, cout), lambda i: (0, 0))],
        out_specs=pl.BlockSpec((1, ho, wo, cout), lambda i: (i, 0, 0, 0)),
        compiler_params=pltpu.CompilerParams(dimension_semantics=("parallel",)),
        cost_estimate=pl.CostEstimate(flops=int(flops), transcendentals=0,
                                      bytes_accessed=int(bytes_acc)),
    )(xe, xo, w, b.reshape(1, cout))


def starblock(x, blk):
    """One fused StarBlock (n=1).  x: (B,H,W,C) f32."""
    bsz, h, wd, c = x.shape
    hid_p = blk["wg"].shape[0]
    xp = jnp.pad(x, ((0, 0), (3, 3), (3, 3), (0, 0)))

    kern = functools.partial(_starblock_kernel, H=h, W=wd, C=c, HID=hid_p)
    flops = bsz * h * wd * (2 * 49 * c * 2 + 2 * c * 2 * hid_p + 2 * hid_p * c)
    bytes_acc = (xp.size * 4 + 2 * x.size * 4
                 + 2 * (49 * c) * 4                      # two depthwise weights
                 + (c * 2 * hid_p + hid_p * c) * 2       # bf16 MXU weights
                 + (2 * hid_p + 2 * c) * 4)              # biases
    return pl.pallas_call(
        kern,
        out_shape=jax.ShapeDtypeStruct((bsz, h, wd, c), jnp.float32),
        grid=(bsz,),
        in_specs=[
            pl.BlockSpec((1, h + 6, wd + 6, c), lambda i: (i, 0, 0, 0)),  # padded x
            pl.BlockSpec((1, h, wd, c), lambda i: (i, 0, 0, 0)),          # residual
            pl.BlockSpec((7, 7, c), lambda i: (0, 0, 0)),                 # dw1 w
            pl.BlockSpec((1, 1, c), lambda i: (0, 0, 0)),                 # dw1 b
            pl.BlockSpec((c, 2 * hid_p), lambda i: (0, 0)),               # [f1|f2] w
            pl.BlockSpec((1, 2 * hid_p), lambda i: (0, 0)),               # [b1|b2]
            pl.BlockSpec((hid_p, c), lambda i: (0, 0)),                   # g w (BN folded)
            pl.BlockSpec((7, 7, c), lambda i: (0, 0, 0)),                 # dw2 w
            pl.BlockSpec((1, 1, c), lambda i: (0, 0, 0)),                 # dw2 b
        ],
        out_specs=pl.BlockSpec((1, h, wd, c), lambda i: (i, 0, 0, 0)),
        scratch_shapes=[pltpu.VMEM((h + 6, wd + 6, c), jnp.float32)],
        compiler_params=pltpu.CompilerParams(dimension_semantics=("parallel",)),
        cost_estimate=pl.CostEstimate(flops=int(flops), transcendentals=0,
                                      bytes_accessed=int(bytes_acc)),
    )(xp, x, blk["dw_w"], blk["dw_b"].reshape(1, 1, c), blk["w12"],
      blk["b12"].reshape(1, 2 * hid_p), blk["wg"], blk["dw2_w"],
      blk["dw2_b"].reshape(1, 1, c))


def pool_head(x, w, b):
    """Final BN (eval) + global average pool + linear head (tiny, single block)."""
    bsz, h, wd, c = x.shape
    n = w.shape[1]
    xr = x.reshape(bsz, h * wd, c)
    kern = functools.partial(_pool_head_kernel, scale=BN_SCALE / float(h * wd))
    return pl.pallas_call(
        kern,
        out_shape=jax.ShapeDtypeStruct((bsz, n), jnp.float32),
        grid=(1,),
        in_specs=[pl.BlockSpec((bsz, h * wd, c), lambda i: (0, 0, 0)),
                  pl.BlockSpec((c, n), lambda i: (0, 0)),
                  pl.BlockSpec((1, n), lambda i: (0, 0))],
        out_specs=pl.BlockSpec((bsz, n), lambda i: (0, 0)),
    )(xr, w, b.reshape(1, n))


# ----------------------------------------------------------------------------
# Parameter construction (deterministic, synthetic; BN folded for eval mode)
# ----------------------------------------------------------------------------
def init_params(key, base_dim=16, depths=(1, 1, 1, 1), mlp_ratio=4, num_classes=16):
    keys = iter(jax.random.split(key, 512))

    def conv_w(cin, cout, k):
        std = (2.0 / (cout * k * k)) ** 0.5        # kaiming-normal, fan_out
        return jax.random.normal(next(keys), (k, k, cin, cout), jnp.float32) * std

    def depthwise_w(c, k=7):
        std = (2.0 / (c * k * k)) ** 0.5
        return jax.random.normal(next(keys), (k, k, c), jnp.float32) * std

    def small_bias(n):
        return jax.random.normal(next(keys), (n,), jnp.float32) * 0.01

    def pad_cols(w, n):
        return jnp.pad(w, ((0, 0), (0, n - w.shape[1])))

    params = {
        "stem_w": (conv_w(3, 32, 3) * BN_SCALE).astype(jnp.bfloat16),
        "stem_b": jnp.zeros((32,), jnp.float32),
        "stages": [],
    }
    in_c = 32
    for si in range(4):
        dim = base_dim * (2 ** si)
        hid = mlp_ratio * dim
        hid_p = ((hid + 127) // 128) * 128 if hid > 128 else 128   # lane-align split
        stage = {
            "down_w": (conv_w(in_c, dim, 3) * BN_SCALE).astype(jnp.bfloat16),
            "down_b": jnp.zeros((dim,), jnp.float32),
            "blocks": [],
        }
        for _ in range(depths[si]):
            f1 = conv_w(dim, hid, 1).reshape(dim, hid)
            f2 = conv_w(dim, hid, 1).reshape(dim, hid)
            b1, b2 = small_bias(hid), small_bias(hid)
            g = conv_w(hid, dim, 1).reshape(hid, dim) * BN_SCALE
            # Fused [f1|f2] weight, hidden padded to hid_p with zero columns; the
            # matching wg rows are zero so the padding is mathematically inert.
            w12 = jnp.concatenate([pad_cols(f1, hid_p), pad_cols(f2, hid_p)], axis=1)
            b12 = jnp.concatenate([jnp.pad(b1, (0, hid_p - hid)),
                                   jnp.pad(b2, (0, hid_p - hid))])
            wg = jnp.pad(g, ((0, hid_p - hid), (0, 0)))
            blk = {
                "dw_w": depthwise_w(dim) * BN_SCALE,       # dwconv (BN folded)
                "dw_b": jnp.zeros((dim,), jnp.float32),
                "w12": w12.astype(jnp.bfloat16),
                "b12": b12,
                "wg": wg.astype(jnp.bfloat16),             # g (BN folded)
                "dw2_w": depthwise_w(dim),                 # dwconv2 (no BN, has bias)
                "dw2_b": small_bias(dim),
            }
            stage["blocks"].append(blk)
        params["stages"].append(stage)
        in_c = dim

    params["head_w"] = jax.random.normal(next(keys), (in_c, num_classes),
                                         jnp.float32) * 0.01
    params["head_b"] = jnp.zeros((num_classes,), jnp.float32)
    return params


# ----------------------------------------------------------------------------
# Forward pass
# ----------------------------------------------------------------------------
def starnet_forward(x_nchw, params):
    # NCHW (PyTorch) -> NHWC (kernel layout)
    x = jnp.transpose(x_nchw, (0, 2, 3, 1)).astype(jnp.float32)
    x = conv3x3_s2(x, params["stem_w"], params["stem_b"], act="relu6")      # stem
    for stage in params["stages"]:
        x = conv3x3_s2(x, stage["down_w"], stage["down_b"], act="none")     # downsampler
        for blk in stage["blocks"]:
            x = starblock(x, blk)                                           # fused block
    return pool_head(x, params["head_w"], params["head_b"])                 # norm+pool+head


# ----------------------------------------------------------------------------
if __name__ == "__main__":
    key = jax.random.PRNGKey(0)
    k_param, k_input = jax.random.split(key)

    base_dim = 16
    depths = (1, 1, 1, 1)
    mlp_ratio = 4
    num_classes = 16

    params = init_params(k_param, base_dim=base_dim, depths=depths,
                         mlp_ratio=mlp_ratio, num_classes=num_classes)

    x = jax.random.normal(k_input, (2, 3, 32, 32), jnp.float32)  # NCHW input

    out = starnet_forward(x, params)
    out = jax.block_until_ready(out)

    assert out.shape == (2, num_classes), out.shape
    assert bool(jnp.all(jnp.isfinite(out)))
    print("KERNEL_OK")
</pallas_src>

<mosaic_0001>
module attributes {stable_mosaic.version = 11 : i64} {
  func.func @_conv3x3s2_kernel(%arg0: i32, %arg1: memref<1x34x17x3xf32, #tpu.memory_space<vmem>>, %arg2: memref<1x34x17x3xf32, #tpu.memory_space<vmem>>, %arg3: memref<3x3x3x32xbf16, #tpu.memory_space<vmem>>, %arg4: memref<1x32xf32, #tpu.memory_space<vmem>>, %arg5: memref<1x16x16x32xf32, #tpu.memory_space<vmem>>) attributes {dimension_semantics = [#tpu.dimension_semantics<parallel>], iteration_bounds = array<i64: 2>, scalar_prefetch = 0 : i64, scratch_operands = 0 : i64, tpu.core_type = #tpu.core_type<tc>, window_params = [{transform_indices = @transform_0, window_bounds = array<i64: 1, 34, 17, 3>}, {transform_indices = @transform_1, window_bounds = array<i64: 1, 34, 17, 3>}, {pipeline_mode = #tpu.pipeline_mode<synchronous>, transform_indices = @transform_2, window_bounds = array<i64: 3, 3, 3, 32>}, {pipeline_mode = #tpu.pipeline_mode<synchronous>, transform_indices = @transform_3, window_bounds = array<i64: 1, 32>}, {transform_indices = @transform_4, window_bounds = array<i64: 1, 16, 16, 32>}]} {
    %c0 = arith.constant 0 : index
    %c0_0 = arith.constant 0 : index
    %c0_1 = arith.constant 0 : index
    %c0_2 = arith.constant 0 : index
    %0 = vector.load %arg3[%c0, %c0_0, %c0_1, %c0_2] : memref<3x3x3x32xbf16, #tpu.memory_space<vmem>>, vector<3x3x3x32xbf16>
    %c0_3 = arith.constant 0 : index
    %c0_4 = arith.constant 0 : index
    %1 = vector.load %arg4[%c0_3, %c0_4] : memref<1x32xf32, #tpu.memory_space<vmem>>, vector<1x32xf32>
    %cst = arith.constant 0.000000e+00 : f32
    %2 = vector.broadcast %cst : f32 to vector<16x32xf32>
    %c0_5 = arith.constant 0 : index
    %c0_6 = arith.constant 0 : index
    %c0_7 = arith.constant 0 : index
    %c0_8 = arith.constant 0 : index
    %3 = vector.load %arg1[%c0_5, %c0_6, %c0_7, %c0_8] : memref<1x34x17x3xf32, #tpu.memory_space<vmem>>, vector<1x1x17x3xf32>
    %4 = vector.shape_cast %3 : vector<1x1x17x3xf32> to vector<17x3xf32>
    %5 = arith.truncf %4 : vector<17x3xf32> to vector<17x3xbf16>
    %c0_9 = arith.constant 0 : index
    %c0_10 = arith.constant 0 : index
    %c0_11 = arith.constant 0 : index
    %c0_12 = arith.constant 0 : index
    %6 = vector.load %arg2[%c0_9, %c0_10, %c0_11, %c0_12] : memref<1x34x17x3xf32, #tpu.memory_space<vmem>>, vector<1x1x17x3xf32>
    %7 = vector.shape_cast %6 : vector<1x1x17x3xf32> to vector<17x3xf32>
    %8 = arith.truncf %7 : vector<17x3xf32> to vector<17x3xbf16>
    %9 = vector.extract_strided_slice %5 {offsets = [0, 0], sizes = [16, 3], strides = [1, 1]} : vector<17x3xbf16> to vector<16x3xbf16>
    %10 = vector.extract_strided_slice %0 {offsets = [0, 0, 0, 0], sizes = [1, 1, 3, 32], strides = [1, 1, 1, 1]} : vector<3x3x3x32xbf16> to vector<1x1x3x32xbf16>
    %11 = vector.shape_cast %10 : vector<1x1x3x32xbf16> to vector<3x32xbf16>
    %cst_13 = arith.constant dense<0.000000e+00> : vector<16x32xf32>
    %12 = tpu.matmul %9, %11, %cst_13 {dimension_numbers = #tpu.dot_dimension_numbers<[1], [0], [0], [1], [0, 0, 1, 1], [], []>} : vector<16x3xbf16>, vector<3x32xbf16>, vector<16x32xf32> -> vector<16x32xf32>
    %13 = arith.addf %2, %12 : vector<16x32xf32>
    %14 = vector.extract_strided_slice %8 {offsets = [0, 0], sizes = [16, 3], strides = [1, 1]} : vector<17x3xbf16> to vector<16x3xbf16>
    %15 = vector.extract_strided_slice %0 {offsets = [0, 1, 0, 0], sizes = [1, 1, 3, 32], strides = [1, 1, 1, 1]} : vector<3x3x3x32xbf16> to vector<1x1x3x32xbf16>
    %16 = vector.shape_cast %15 : vector<1x1x3x32xbf16> to vector<3x32xbf16>
    %cst_14 = arith.constant dense<0.000000e+00> : vector<16x32xf32>
    %17 = tpu.matmul %14, %16, %cst_14 {dimension_numbers = #tpu.dot_dimension_numbers<[1], [0], [0], [1], [0, 0, 1, 1], [], []>} : vector<16x3xbf16>, vector<3x32xbf16>, vector<16x32xf32> -> vector<16x32xf32>
    %18 = arith.addf %13, %17 : vector<16x32xf32>
    %19 = vector.extract_strided_slice %5 {offsets = [1, 0], sizes = [16, 3], strides = [1, 1]} : vector<17x3xbf16> to vector<16x3xbf16>
    %20 = vector.extract_strided_slice %0 {offsets = [0, 2, 0, 0], sizes = [1, 1, 3, 32], strides = [1, 1, 1, 1]} : vector<3x3x3x32xbf16> to vector<1x1x3x32xbf16>
    %21 = vector.shape_cast %20 : vector<1x1x3x32xbf16> to vector<3x32xbf16>
    %cst_15 = arith.constant dense<0.000000e+00> : vector<16x32xf32>
    %22 = tpu.matmul %19, %21, %cst_15 {dimension_numbers = #tpu.dot_dimension_numbers<[1], [0], [0], [1], [0, 0, 1, 1], [], []>} : vector<16x3xbf16>, vector<3x32xbf16>, vector<16x32xf32> -> vector<16x32xf32>
    %23 = arith.addf %18, %22 : vector<16x32xf32>
    %c0_16 = arith.constant 0 : index
    %c1 = arith.constant 1 : index
    %c0_17 = arith.constant 0 : index
    %c0_18 = arith.constant 0 : index
    %24 = vector.load %arg1[%c0_16, %c1, %c0_17, %c0_18] : memref<1x34x17x3xf32, #tpu.memory_space<vmem>>, vector<1x1x17x3xf32>
    %25 = vector.shape_cast %24 : vector<1x1x17x3xf32> to vector<17x3xf32>
    %26 = arith.truncf %25 : vector<17x3xf32> to vector<17x3xbf16>
    %c0_19 = arith.constant 0 : index
    %c1_20 = arith.constant 1 : index
    %c0_21 = arith.constant 0 : index
    %c0_22 = arith.constant 0 : index
    %27 = vector.load %arg2[%c0_19, %c1_20, %c0_21, %c0_22] : memref<1x34x17x3xf32, #tpu.memory_space<vmem>>, vector<1x1x17x3xf32>
    %28 = vector.shape_cast %27 : vector<1x1x17x3xf32> to vector<17x3xf32>
    %29 = arith.truncf %28 : vector<17x3xf32> to vector<17x3xbf16>
    %30 = vector.extract_strided_slice %26 {offsets = [0, 0], sizes = [16, 3], strides = [1, 1]} : vector<17x3xbf16> to vector<16x3xbf16>
    %31 = vector.extract_strided_slice %0 {offsets = [1, 0, 0, 0], sizes = [1, 1, 3, 32], strides = [1, 1, 1, 1]} : vector<3x3x3x32xbf16> to vector<1x1x3x32xbf16>
    %32 = vector.shape_cast %31 : vector<1x1x3x32xbf16> to vector<3x32xbf16>
    %cst_23 = arith.constant dense<0.000000e+00> : vector<16x32xf32>
    %33 = tpu.matmul %30, %32, %cst_23 {dimension_numbers = #tpu.dot_dimension_numbers<[1], [0], [0], [1], [0, 0, 1, 1], [], []>} : vector<16x3xbf16>, vector<3x32xbf16>, vector<16x32xf32> -> vector<16x32xf32>
    %34 = arith.addf %23, %33 : vector<16x32xf32>
    %35 = vector.extract_strided_slice %29 {offsets = [0, 0], sizes = [16, 3], strides = [1, 1]} : vector<17x3xbf16> to vector<16x3xbf16>
    %36 = vector.extract_strided_slice %0 {offsets = [1, 1, 0, 0], sizes = [1, 1, 3, 32], strides = [1, 1, 1, 1]} : vector<3x3x3x32xbf16> to vector<1x1x3x32xbf16>
    %37 = vector.shape_cast %36 : vector<1x1x3x32xbf16> to vector<3x32xbf16>
    %cst_24 = arith.constant dense<0.000000e+00> : vector<16x32xf32>
    %38 = tpu.matmul %35, %37, %cst_24 {dimension_numbers = #tpu.dot_dimension_numbers<[1], [0], [0], [1], [0, 0, 1, 1], [], []>} : vector<16x3xbf16>, vector<3x32xbf16>, vector<16x32xf32> -> vector<16x32xf32>
    %39 = arith.addf %34, %38 : vector<16x32xf32>
    %40 = vector.extract_strided_slice %26 {offsets = [1, 0], sizes = [16, 3], strides = [1, 1]} : vector<17x3xbf16> to vector<16x3xbf16>
    %41 = vector.extract_strided_slice %0 {offsets = [1, 2, 0, 0], sizes = [1, 1, 3, 32], strides = [1, 1, 1, 1]} : vector<3x3x3x32xbf16> to vector<1x1x3x32xbf16>
    %42 = vector.shape_cast %41 : vector<1x1x3x32xbf16> to vector<3x32xbf16>
    %cst_25 = arith.constant dense<0.000000e+00> : vector<16x32xf32>
    %43 = tpu.matmul %40, %42, %cst_25 {dimension_numbers = #tpu.dot_dimension_numbers<[1], [0], [0], [1], [0, 0, 1, 1], [], []>} : vector<16x3xbf16>, vector<3x32xbf16>, vector<16x32xf32> -> vector<16x32xf32>
    %44 = arith.addf %39, %43 : vector<16x32xf32>
    %c0_26 = arith.constant 0 : index
    %c2 = arith.constant 2 : index
    %c0_27 = arith.constant 0 : index
    %c0_28 = arith.constant 0 : index
    %45 = vector.load %arg1[%c0_26, %c2, %c0_27, %c0_28] : memref<1x34x17x3xf32, #tpu.memory_space<vmem>>, vector<1x1x17x3xf32>
    %46 = vector.shape_cast %45 : vector<1x1x17x3xf32> to vector<17x3xf32>
    %47 = arith.truncf %46 : vector<17x3xf32> to vector<17x3xbf16>
    %c0_29 = arith.constant 0 : index
    %c2_30 = arith.constant 2 : index
    %c0_31 = arith.constant 0 : index
    %c0_32 = arith.constant 0 : index
    %48 = vector.load %arg2[%c0_29, %c2_30, %c0_31, %c0_32] : memref<1x34x17x3xf32, #tpu.memory_space<vmem>>, vector<1x1x17x3xf32>
    %49 = vector.shape_cast %48 : vector<1x1x17x3xf32> to vector<17x3xf32>
    %50 = arith.truncf %49 : vector<17x3xf32> to vector<17x3xbf16>
    %51 = vector.extract_strided_slice %47 {offsets = [0, 0], sizes = [16, 3], strides = [1, 1]} : vector<17x3xbf16> to vector<16x3xbf16>
    %52 = vector.extract_strided_slice %0 {offsets = [2, 0, 0, 0], sizes = [1, 1, 3, 32], strides = [1, 1, 1, 1]} : vector<3x3x3x32xbf16> to vector<1x1x3x32xbf16>
    %53 = vector.shape_cast %52 : vector<1x1x3x32xbf16> to vector<3x32xbf16>
    %cst_33 = arith.constant dense<0.000000e+00> : vector<16x32xf32>
    %54 = tpu.matmul %51, %53, %cst_33 {dimension_numbers = #tpu.dot_dimension_numbers<[1], [0], [0], [1], [0, 0, 1, 1], [], []>} : vector<16x3xbf16>, vector<3x32xbf16>, vector<16x32xf32> -> vector<16x32xf32>
    %55 = arith.addf %44, %54 : vector<16x32xf32>
    %56 = vector.extract_strided_slice %50 {offsets = [0, 0], sizes = [16, 3], strides = [1, 1]} : vector<17x3xbf16> to vector<16x3xbf16>
    %57 = vector.extract_strided_slice %0 {offsets = [2, 1, 0, 0], sizes = [1, 1, 3, 32], strides = [1, 1, 1, 1]} : vector<3x3x3x32xbf16> to vector<1x1x3x32xbf16>
    %58 = vector.shape_cast %57 : vector<1x1x3x32xbf16> to vector<3x32xbf16>
    %cst_34 = arith.constant dense<0.000000e+00> : vector<16x32xf32>
    %59 = tpu.matmul %56, %58, %cst_34 {dimension_numbers = #tpu.dot_dimension_numbers<[1], [0], [0], [1], [0, 0, 1, 1], [], []>} : vector<16x3xbf16>, vector<3x32xbf16>, vector<16x32xf32> -> vector<16x32xf32>
    %60 = arith.addf %55, %59 : vector<16x32xf32>
    %61 = vector.extract_strided_slice %47 {offsets = [1, 0], sizes = [16, 3], strides = [1, 1]} : vector<17x3xbf16> to vector<16x3xbf16>
    %62 = vector.extract_strided_slice %0 {offsets = [2, 2, 0, 0], sizes = [1, 1, 3, 32], strides = [1, 1, 1, 1]} : vector<3x3x3x32xbf16> to vector<1x1x3x32xbf16>
    %63 = vector.shape_cast %62 : vector<1x1x3x32xbf16> to vector<3x32xbf16>
    %cst_35 = arith.constant dense<0.000000e+00> : vector<16x32xf32>
    %64 = tpu.matmul %61, %63, %cst_35 {dimension_numbers = #tpu.dot_dimension_numbers<[1], [0], [0], [1], [0, 0, 1, 1], [], []>} : vector<16x3xbf16>, vector<3x32xbf16>, vector<16x32xf32> -> vector<16x32xf32>
    %65 = arith.addf %60, %64 : vector<16x32xf32>
    %66 = vector.broadcast %1 : vector<1x32xf32> to vector<16x32xf32>
    %67 = arith.addf %65, %66 : vector<16x32xf32>
    %cst_36 = arith.constant 0.000000e+00 : f32
    %cst_37 = arith.constant 6.000000e+00 : f32
    %68 = vector.broadcast %cst_36 : f32 to vector<16x32xf32>
    %69 = arith.maximumf %68, %67 : vector<16x32xf32>
    %70 = vector.broadcast %cst_37 : f32 to vector<16x32xf32>
    %71 = arith.minimumf %70, %69 : vector<16x32xf32>
    %c0_38 = arith.constant 0 : index
    %c0_39 = arith.constant 0 : index
    %c0_40 = arith.constant 0 : index
    %c0_41 = arith.constant 0 : index
    %72 = vector.load %arg5[%c0_38, %c0_39, %c0_40, %c0_41] : memref<1x16x16x32xf32, #tpu.memory_space<vmem>>, vector<1x1x16x32xf32>
    %73 = vector.shape_cast %72 : vector<1x1x16x32xf32> to vector<16x32xf32>
    %74 = vector.shape_cast %71 : vector<16x32xf32> to vector<1x1x16x32xf32>
    tpu.vector_store %arg5[%c0_38, %c0_39, %c0_40, %c0_41], %74 {strides = array<i32>} : memref<1x16x16x32xf32, #tpu.memory_space<vmem>>, vector<1x1x16x32xf32>,
    %cst_42 = arith.constant 0.000000e+00 : f32
    %75 = vector.broadcast %cst_42 : f32 to vector<16x32xf32>
    %c0_43 = arith.constant 0 : index
    %c2_44 = arith.constant 2 : index
    %c0_45 = arith.constant 0 : index
    %c0_46 = arith.constant 0 : index
    %76 = vector.load %arg1[%c0_43, %c2_44, %c0_45, %c0_46] : memref<1x34x17x3xf32, #tpu.memory_space<vmem>>, vector<1x1x17x3xf32>
    %77 = vector.shape_cast %76 : vector<1x1x17x3xf32> to vector<17x3xf32>
    %78 = arith.truncf %77 : vector<17x3xf32> to vector<17x3xbf16>
    %c0_47 = arith.constant 0 : index
    %c2_48 = arith.constant 2 : index
    %c0_49 = arith.constant 0 : index
    %c0_50 = arith.constant 0 : index
    %79 = vector.load %arg2[%c0_47, %c2_48, %c0_49, %c0_50] : memref<1x34x17x3xf32, #tpu.memory_space<vmem>>, vector<1x1x17x3xf32>
    %80 = vector.shape_cast %79 : vector<1x1x17x3xf32> to vector<17x3xf32>
    %81 = arith.truncf %80 : vector<17x3xf32> to vector<17x3xbf16>
    %82 = vector.extract_strided_slice %78 {offsets = [0, 0], sizes = [16, 3], strides = [1, 1]} : vector<17x3xbf16> to vector<16x3xbf16>
    %83 = vector.extract_strided_slice %0 {offsets = [0, 0, 0, 0], sizes = [1, 1, 3, 32], strides = [1, 1, 1, 1]} : vector<3x3x3x32xbf16> to vector<1x1x3x32xbf16>
    %84 = vector.shape_cast %83 : vector<1x1x3x32xbf16> to vector<3x32xbf16>
    %cst_51 = arith.constant dense<0.000000e+00> : vector<16x32xf32>
    %85 = tpu.matmul %82, %84, %cst_51 {dimension_numbers = #tpu.dot_dimension_numbers<[1], [0], [0], [1], [0, 0, 1, 1], [], []>} : vector<16x3xbf16>, vector<3x32xbf16>, vector<16x32xf32> -> vector<16x32xf32>
    %86 = arith.addf %75, %85 : vector<16x32xf32>
    %87 = vector.extract_strided_slice %81 {offsets = [0, 0], sizes = [16, 3], strides = [1, 1]} : vector<17x3xbf16> to vector<16x3xbf16>
    %88 = vector.extract_strided_slice %0 {offsets = [0, 1, 0, 0], sizes = [1, 1, 3, 32], strides = [1, 1, 1, 1]} : vector<3x3x3x32xbf16> to vector<1x1x3x32xbf16>
    %89 = vector.shape_cast %88 : vector<1x1x3x32xbf16> to vector<3x32xbf16>
    %cst_52 = arith.constant dense<0.000000e+00> : vector<16x32xf32>
    %90 = tpu.matmul %87, %89, %cst_52 {dimension_numbers = #tpu.dot_dimension_numbers<[1], [0], [0], [1], [0, 0, 1, 1], [], []>} : vector<16x3xbf16>, vector<3x32xbf16>, vector<16x32xf32> -> vector<16x32xf32>
    %91 = arith.addf %86, %90 : vector<16x32xf32>
    %92 = vector.extract_strided_slice %78 {offsets = [1, 0], sizes = [16, 3], strides = [1, 1]} : vector<17x3xbf16> to vector<16x3xbf16>
    %93 = vector.extract_strided_slice %0 {offsets = [0, 2, 0, 0], sizes = [1, 1, 3, 32], strides = [1, 1, 1, 1]} : vector<3x3x3x32xbf16> to vector<1x1x3x32xbf16>
    %94 = vector.shape_cast %93 : vector<1x1x3x32xbf16> to vector<3x32xbf16>
    %cst_53 = arith.constant dense<0.000000e+00> : vector<16x32xf32>
    %95 = tpu.matmul %92, %94, %cst_53 {dimension_numbers = #tpu.dot_dimension_numbers<[1], [0], [0], [1], [0, 0, 1, 1], [], []>} : vector<16x3xbf16>, vector<3x32xbf16>, vector<16x32xf32> -> vector<16x32xf32>
    %96 = arith.addf %91, %95 : vector<16x32xf32>
    %c0_54 = arith.constant 0 : index
    %c3 = arith.constant 3 : index
    %c0_55 = arith.constant 0 : index
    %c0_56 = arith.constant 0 : index
    %97 = vector.load %arg1[%c0_54, %c3, %c0_55, %c0_56] : memref<1x34x17x3xf32, #tpu.memory_space<vmem>>, vector<1x1x17x3xf32>
    %98 = vector.shape_cast %97 : vector<1x1x17x3xf32> to vector<17x3xf32>
    %99 = arith.truncf %98 : vector<17x3xf32> to vector<17x3xbf16>
    %c0_57 = arith.constant 0 : index
    %c3_58 = arith.constant 3 : index
    %c0_59 = arith.constant 0 : index
    %c0_60 = arith.constant 0 : index
    %100 = vector.load %arg2[%c0_57, %c3_58, %c0_59, %c0_60] : memref<1x34x17x3xf32, #tpu.memory_space<vmem>>, vector<1x1x17x3xf32>
    %101 = vector.shape_cast %100 : vector<1x1x17x3xf32> to vector<17x3xf32>
    %102 = arith.truncf %101 : vector<17x3xf32> to vector<17x3xbf16>
    %103 = vector.extract_strided_slice %99 {offsets = [0, 0], sizes = [16, 3], strides = [1, 1]} : vector<17x3xbf16> to vector<16x3xbf16>
    %104 = vector.extract_strided_slice %0 {offsets = [1, 0, 0, 0], sizes = [1, 1, 3, 32], strides = [1, 1, 1, 1]} : vector<3x3x3x32xbf16> to vector<1x1x3x32xbf16>
    %105 = vector.shape_cast %104 : vector<1x1x3x32xbf16> to vector<3x32xbf16>
    %cst_61 = arith.constant dense<0.000000e+00> : vector<16x32xf32>
    %106 = tpu.matmul %103, %105, %cst_61 {dimension_numbers = #tpu.dot_dimension_numbers<[1], [0], [0], [1], [0, 0, 1, 1], [], []>} : vector<16x3xbf16>, vector<3x32xbf16>, vector<16x32xf32> -> vector<16x32xf32>
    %107 = arith.addf %96, %106 : vector<16x32xf32>
    %108 = vector.extract_strided_slice %102 {offsets = [0, 0], sizes = [16, 3], strides = [1, 1]} : vector<17x3xbf16> to vector<16x3xbf16>
    %109 = vector.extract_strided_slice %0 {offsets = [1, 1, 0, 0], sizes = [1, 1, 3, 32], strides = [1, 1, 1, 1]} : vector<3x3x3x32xbf16> to vector<1x1x3x32xbf16>
    %110 = vector.shape_cast %109 : vector<1x1x3x32xbf16> to vector<3x32xbf16>
    %cst_62 = arith.constant dense<0.000000e+00> : vector<16x32xf32>
    %111 = tpu.matmul %108, %110, %cst_62 {dimension_numbers = #tpu.dot_dimension_numbers<[1], [0], [0], [1], [0, 0, 1, 1], [], []>} : vector<16x3xbf16>, vector<3x32xbf16>, vector<16x32xf32> -> vector<16x32xf32>
    %112 = arith.addf %107, %111 : vector<16x32xf32>
    %113 = vector.extract_strided_slice %99 {offsets = [1, 0], sizes = [16, 3], strides = [1, 1]} : vector<17x3xbf16> to vector<16x3xbf16>
    %114 = vector.extract_strided_slice %0 {offsets = [1, 2, 0, 0], sizes = [1, 1, 3, 32], strides = [1, 1, 1, 1]} : vector<3x3x3x32xbf16> to vector<1x1x3x32xbf16>
    %115 = vector.shape_cast %114 : vector<1x1x3x32xbf16> to vector<3x32xbf16>
    %cst_63 = arith.constant dense<0.000000e+00> : vector<16x32xf32>
    %116 = tpu.matmul %113, %115, %cst_63 {dimension_numbers = #tpu.dot_dimension_numbers<[1], [0], [0], [1], [0, 0, 1, 1], [], []>} : vector<16x3xbf16>, vector<3x32xbf16>, vector<16x32xf32> -> vector<16x32xf32>
    %117 = arith.addf %112, %116 : vector<16x32xf32>
    %c0_64 = arith.constant 0 : index
    %c4 = arith.constant 4 : index
    %c0_65 = arith.constant 0 : index
    %c0_66 = arith.constant 0 : index
    %118 = vector.load %arg1[%c0_64, %c4, %c0_65, %c0_66] : memref<1x34x17x3xf32, #tpu.memory_space<vmem>>, vector<1x1x17x3xf32>
    %119 = vector.shape_cast %118 : vector<1x1x17x3xf32> to vector<17x3xf32>
    %120 = arith.truncf %119 : vector<17x3xf32> to vector<17x3xbf16>
    %c0_67 = arith.constant 0 : index
    %c4_68 = arith.constant 4 : index
    %c0_69 = arith.constant 0 : index
    %c0_70 = arith.constant 0 : index
    %121 = vector.load %arg2[%c0_67, %c4_68, %c0_69, %c0_70] : memref<1x34x17x3xf32, #tpu.memory_space<vmem>>, vector<1x1x17x3xf32>
    %122 = vector.shape_cast %121 : vector<1x1x17x3xf32> to vector<17x3xf32>
    %123 = arith.truncf %122 : vector<17x3xf32> to vector<17x3xbf16>
    %124 = vector.extract_strided_slice %120 {offsets = [0, 0], sizes = [16, 3], strides = [1, 1]} : vector<17x3xbf16> to vector<16x3xbf16>
    %125 = vector.extract_strided_slice %0 {offsets = [2, 0, 0, 0], sizes = [1, 1, 3, 32], strides = [1, 1, 1, 1]} : vector<3x3x3x32xbf16> to vector<1x1x3x32xbf16>
    %126 = vector.shape_cast %125 : vector<1x1x3x32xbf16> to vector<3x32xbf16>
    %cst_71 = arith.constant dense<0.000000e+00> : vector<16x32xf32>
    %127 = tpu.matmul %124, %126, %cst_71 {dimension_numbers = #tpu.dot_dimension_numbers<[1], [0], [0], [1], [0, 0, 1, 1], [], []>} : vector<16x3xbf16>, vector<3x32xbf16>, vector<16x32xf32> -> vector<16x32xf32>
    %128 = arith.addf %117, %127 : vector<16x32xf32>
    %129 = vector.extract_strided_slice %123 {offsets = [0, 0], sizes = [16, 3], strides = [1, 1]} : vector<17x3xbf16> to vector<16x3xbf16>
    %130 = vector.extract_strided_slice %0 {offsets = [2, 1, 0, 0], sizes = [1, 1, 3, 32], strides = [1, 1, 1, 1]} : vector<3x3x3x32xbf16> to vector<1x1x3x32xbf16>
    %131 = vector.shape_cast %130 : vector<1x1x3x32xbf16> to vector<3x32xbf16>
    %cst_72 = arith.constant dense<0.000000e+00> : vector<16x32xf32>
    %132 = tpu.matmul %129, %131, %cst_72 {dimension_numbers = #tpu.dot_dimension_numbers<[1], [0], [0], [1], [0, 0, 1, 1], [], []>} : vector<16x3xbf16>, vector<3x32xbf16>, vector<16x32xf32> -> vector<16x32xf32>
    %133 = arith.addf %128, %132 : vector<16x32xf32>
    %134 = vector.extract_strided_slice %120 {offsets = [1, 0], sizes = [16, 3], strides = [1, 1]} : vector<17x3xbf16> to vector<16x3xbf16>
    %135 = vector.extract_strided_slice %0 {offsets = [2, 2, 0, 0], sizes = [1, 1, 3, 32], strides = [1, 1, 1, 1]} : vector<3x3x3x32xbf16> to vector<1x1x3x32xbf16>
    %136 = vector.shape_cast %135 : vector<1x1x3x32xbf16> to vector<3x32xbf16>
    %cst_73 = arith.constant dense<0.000000e+00> : vector<16x32xf32>
    %137 = tpu.matmul %134, %136, %cst_73 {dimension_numbers = #tpu.dot_dimension_numbers<[1], [0], [0], [1], [0, 0, 1, 1], [], []>} : vector<16x3xbf16>, vector<3x32xbf16>, vector<16x32xf32> -> vector<16x32xf32>
    %138 = arith.addf %133, %137 : vector<16x32xf32>
    %139 = vector.broadcast %1 : vector<1x32xf32> to vector<16x32xf32>
    %140 = arith.addf %138, %139 : vector<16x32xf32>
    %cst_74 = arith.constant 0.000000e+00 : f32
    %cst_75 = arith.constant 6.000000e+00 : f32
    %141 = vector.broadcast %cst_74 : f32 to vector<16x32xf32>
    %142 = arith.maximumf %141, %140 : vector<16x32xf32>
    %143 = vector.broadcast %cst_75 : f32 to vector<16x32xf32>
    %144 = arith.minimumf %143, %142 : vector<16x32xf32>
    %c0_76 = arith.constant 0 : index
    %c1_77 = arith.constant 1 : index
    %c0_78 = arith.constant 0 : index
    %c0_79 = arith.constant 0 : index
    %145 = vector.load %arg5[%c0_76, %c1_77, %c0_78, %c0_79] : memref<1x16x16x32xf32, #tpu.memory_space<vmem>>, vector<1x1x16x32xf32>
    %146 = vector.shape_cast %145 : vector<1x1x16x32xf32> to vector<16x32xf32>
    %147 = vector.shape_cast %144 : vector<16x32xf32> to vector<1x1x16x32xf32>
    tpu.vector_store %arg5[%c0_76, %c1_77, %c0_78, %c0_79], %147 {strides = array<i32>} : memref<1x16x16x32xf32, #tpu.memory_space<vmem>>, vector<1x1x16x32xf32>,
    %cst_80 = arith.constant 0.000000e+00 : f32
    %148 = vector.broadcast %cst_80 : f32 to vector<16x32xf32>
    %c0_81 = arith.constant 0 : index
    %c4_82 = arith.constant 4 : index
    %c0_83 = arith.constant 0 : index
    %c0_84 = arith.constant 0 : index
    %149 = vector.load %arg1[%c0_81, %c4_82, %c0_83, %c0_84] : memref<1x34x17x3xf32, #tpu.memory_space<vmem>>, vector<1x1x17x3xf32>
    %150 = vector.shape_cast %149 : vector<1x1x17x3xf32> to vector<17x3xf32>
    %151 = arith.truncf %150 : vector<17x3xf32> to vector<17x3xbf16>
    %c0_85 = arith.constant 0 : index
    %c4_86 = arith.constant 4 : index
    %c0_87 = arith.constant 0 : index
    %c0_88 = arith.constant 0 : index
    %152 = vector.load %arg2[%c0_85, %c4_86, %c0_87, %c0_88] : memref<1x34x17x3xf32, #tpu.memory_space<vmem>>, vector<1x1x17x3xf32>
    %153 = vector.shape_cast %152 : vector<1x1x17x3xf32> to vector<17x3xf32>
    %154 = arith.truncf %153 : vector<17x3xf32> to vector<17x3xbf16>
    %155 = vector.extract_strided_slice %151 {offsets = [0, 0], sizes = [16, 3], strides = [1, 1]} : vector<17x3xbf16> to vector<16x3xbf16>
    %156 = vector.extract_strided_slice %0 {offsets = [0, 0, 0, 0], sizes = [1, 1, 3, 32], strides = [1, 1, 1, 1]} : vector<3x3x3x32xbf16> to vector<1x1x3x32xbf16>
    %157 = vector.shape_cast %156 : vector<1x1x3x32xbf16> to vector<3x32xbf16>
    %cst_89 = arith.constant dense<0.000000e+00> : vector<16x32xf32>
    %158 = tpu.matmul %155, %157, %cst_89 {dimension_numbers = #tpu.dot_dimension_numbers<[1], [0], [0], [1], [0, 0, 1, 1], [], []>} : vector<16x3xbf16>, vector<3x32xbf16>, vector<16x32xf32> -> vector<16x32xf32>
    %159 = arith.addf %148, %158 : vector<16x32xf32>
    %160 = vector.extract_strided_slice %154 {offsets = [0, 0], sizes = [16, 3], strides = [1, 1]} : vector<17x3xbf16> to vector<16x3xbf16>
    %161 = vector.extract_strided_slice %0 {offsets = [0, 1, 0, 0], sizes = [1, 1, 3, 32], strides = [1, 1, 1, 1]} : vector<3x3x3x32xbf16> to vector<1x1x3x32xbf16>
    %162 = vector.shape_cast %161 : vector<1x1x3x32xbf16> to vector<3x32xbf16>
    %cst_90 = arith.constant dense<0.000000e+00> : vector<16x32xf32>
    %163 = tpu.matmul %160, %162, %cst_90 {dimension_numbers = #tpu.dot_dimension_numbers<[1], [0], [0], [1], [0, 0, 1, 1], [], []>} : vector<16x3xbf16>, vector<3x32xbf16>, vector<16x32xf32> -> vector<16x32xf32>
    %164 = arith.addf %159, %163 : vector<16x32xf32>
    %165 = vector.extract_strided_slice %151 {offsets = [1, 0], sizes = [16, 3], strides = [1, 1]} : vector<17x3xbf16> to vector<16x3xbf16>
    %166 = vector.extract_strided_slice %0 {offsets = [0, 2, 0, 0], sizes = [1, 1, 3, 32], strides = [1, 1, 1, 1]} : vector<3x3x3x32xbf16> to vector<1x1x3x32xbf16>
    %167 = vector.shape_cast %166 : vector<1x1x3x32xbf16> to vector<3x32xbf16>
    %cst_91 = arith.constant dense<0.000000e+00> : vector<16x32xf32>
    %168 = tpu.matmul %165, %167, %cst_91 {dimension_numbers = #tpu.dot_dimension_numbers<[1], [0], [0], [1], [0, 0, 1, 1], [], []>} : vector<16x3xbf16>, vector<3x32xbf16>, vector<16x32xf32> -> vector<16x32xf32>
    %169 = arith.addf %164, %168 : vector<16x32xf32>
    %c0_92 = arith.constant 0 : index
    %c5 = arith.constant 5 : index
    %c0_93 = arith.constant 0 : index
    %c0_94 = arith.constant 0 : index
    %170 = vector.load %arg1[%c0_92, %c5, %c0_93, %c0_94] : memref<1x34x17x3xf32, #tpu.memory_space<vmem>>, vector<1x1x17x3xf32>
    %171 = vector.shape_cast %170 : vector<1x1x17x3xf32> to vector<17x3xf32>
    %172 = arith.truncf %171 : vector<17x3xf32> to vector<17x3xbf16>
    %c0_95 = arith.constant 0 : index
    %c5_96 = arith.constant 5 : index
    %c0_97 = arith.constant 0 : index
    %c0_98 = arith.constant 0 : index
    %173 = vector.load %arg2[%c0_95, %c5_96, %c0_97, %c0_98] : memref<1x34x17x3xf32, #tpu.memory_space<vmem>>, vector<1x1x17x3xf32>
    %174 = vector.shape_cast %173 : vector<1x1x17x3xf32> to vector<17x3xf32>
    %175 = arith.truncf %174 : vector<17x3xf32> to vector<17x3xbf16>
    %176 = vector.extract_strided_slice %172 {offsets = [0, 0], sizes = [16, 3], strides = [1, 1]} : vector<17x3xbf16> to vector<16x3xbf16>
    %177 = vector.extract_strided_slice %0 {offsets = [1, 0, 0, 0], sizes = [1, 1, 3, 32], strides = [1, 1, 1, 1]} : vector<3x3x3x32xbf16> to vector<1x1x3x32xbf16>
    %178 = vector.shape_cast %177 : vector<1x1x3x32xbf16> to vector<3x32xbf16>
    %cst_99 = arith.constant dense<0.000000e+00> : vector<16x32xf32>
    %179 = tpu.matmul %176, %178, %cst_99 {dimension_numbers = #tpu.dot_dimension_numbers<[1], [0], [0], [1], [0, 0, 1, 1], [], []>} : vector<16x3xbf16>, vector<3x32xbf16>, vector<16x32xf32> -> vector<16x32xf32>
    %180 = arith.addf %169, %179 : vector<16x32xf32>
    %181 = vector.extract_strided_slice %175 {offsets = [0, 0], sizes = [16, 3], strides = [1, 1]} : vector<17x3xbf16> to vector<16x3xbf16>
    %182 = vector.extract_strided_slice %0 {offsets = [1, 1, 0, 0], sizes = [1, 1, 3, 32], strides = [1, 1, 1, 1]} : vector<3x3x3x32xbf16> to vector<1x1x3x32xbf16>
    %183 = vector.shape_cast %182 : vector<1x1x3x32xbf16> to vector<3x32xbf16>
    %cst_100 = arith.constant dense<0.000000e+00> : vector<16x32xf32>
    %184 = tpu.matmul %181, %183, %cst_100 {dimension_numbers = #tpu.dot_dimension_numbers<[1], [0], [0], [1], [0, 0, 1, 1], [], []>} : vector<16x3xbf16>, vector<3x32xbf16>, vector<16x32xf32> -> vector<16x32xf32>
    %185 = arith.addf %180, %184 : vector<16x32xf32>
    %186 = vector.extract_strided_slice %172 {offsets = [1, 0], sizes = [16, 3], strides = [1, 1]} : vector<17x3xbf16> to vector<16x3xbf16>
    %187 = vector.extract_strided_slice %0 {offsets = [1, 2, 0, 0], sizes = [1, 1, 3, 32], strides = [1, 1, 1, 1]} : vector<3x3x3x32xbf16> to vector<1x1x3x32xbf16>
    %188 = vector.shape_cast %187 : vector<1x1x3x32xbf16> to vector<3x32xbf16>
    %cst_101 = arith.constant dense<0.000000e+00> : vector<16x32xf32>
    %189 = tpu.matmul %186, %188, %cst_101 {dimension_numbers = #tpu.dot_dimension_numbers<[1], [0], [0], [1], [0, 0, 1, 1], [], []>} : vector<16x3xbf16>, vector<3x32xbf16>, vector<16x32xf32> -> vector<16x32xf32>
    %190 = arith.addf %185, %189 : vector<16x32xf32>
    %c0_102 = arith.constant 0 : index
    %c6 = arith.constant 6 : index
    %c0_103 = arith.constant 0 : index
    %c0_104 = arith.constant 0 : index
    %191 = vector.load %arg1[%c0_102, %c6, %c0_103, %c0_104] : memref<1x34x17x3xf32, #tpu.memory_space<vmem>>, vector<1x1x17x3xf32>
    %192 = vector.shape_cast %191 : vector<1x1x17x3xf32> to vector<17x3xf32>
    %193 = arith.truncf %192 : vector<17x3xf32> to vector<17x3xbf16>
    %c0_105 = arith.constant 0 : index
    %c6_106 = arith.constant 6 : index
    %c0_107 = arith.constant 0 : index
    %c0_108 = arith.constant 0 : index
    %194 = vector.load %arg2[%c0_105, %c6_106, %c0_107, %c0_108] : memref<1x34x17x3xf32, #tpu.memory_space<vmem>>, vector<1x1x17x3xf32>
    %195 = vector.shape_cast %194 : vector<1x1x17x3xf32> to vector<17x3xf32>
    %196 = arith.truncf %195 : vector<17x3xf32> to vector<17x3xbf16>
    %197 = vector.extract_strided_slice %193 {offsets = [0, 0], sizes = [16, 3], strides = [1, 1]} : vector<17x3xbf16> to vector<16x3xbf16>
    %198 = vector.extract_strided_slice %0 {offsets = [2, 0, 0, 0], sizes = [1, 1, 3, 32], strides = [1, 1, 1, 1]} : vector<3x3x3x32xbf16> to vector<1x1x3x32xbf16>
    %199 = vector.shape_cast %198 : vector<1x1x3x32xbf16> to vector<3x32xbf16>
    %cst_109 = arith.constant dense<0.000000e+00> : vector<16x32xf32>
    %200 = tpu.matmul %197, %199, %cst_109 {dimension_numbers = #tpu.dot_dimension_numbers<[1], [0], [0], [1], [0, 0, 1, 1], [], []>} : vector<16x3xbf16>, vector<3x32xbf16>, vector<16x32xf32> -> vector<16x32xf32>
    %201 = arith.addf %190, %200 : vector<16x32xf32>
    %202 = vector.extract_strided_slice %196 {offsets = [0, 0], sizes = [16, 3], strides = [1, 1]} : vector<17x3xbf16> to vector<16x3xbf16>
    %203 = vector.extract_strided_slice %0 {offsets = [2, 1, 0, 0], sizes = [1, 1, 3, 32], strides = [1, 1, 1, 1]} : vector<3x3x3x32xbf16> to vector<1x1x3x32xbf16>
    %204 = vector.shape_cast %203 : vector<1x1x3x32xbf16> to vector<3x32xbf16>
    %cst_110 = arith.constant dense<0.000000e+00> : vector<16x32xf32>
    %205 = tpu.matmul %202, %204, %cst_110 {dimension_numbers = #tpu.dot_dimension_numbers<[1], [0], [0], [1], [0, 0, 1, 1], [], []>} : vector<16x3xbf16>, vector<3x32xbf16>, vector<16x32xf32> -> vector<16x32xf32>
    %206 = arith.addf %201, %205 : vector<16x32xf32>
    %207 = vector.extract_strided_slice %193 {offsets = [1, 0], sizes = [16, 3], strides = [1, 1]} : vector<17x3xbf16> to vector<16x3xbf16>
    %208 = vector.extract_strided_slice %0 {offsets = [2, 2, 0, 0], sizes = [1, 1, 3, 32], strides = [1, 1, 1, 1]} : vector<3x3x3x32xbf16> to vector<1x1x3x32xbf16>
    %209 = vector.shape_cast %208 : vector<1x1x3x32xbf16> to vector<3x32xbf16>
    %cst_111 = arith.constant dense<0.000000e+00> : vector<16x32xf32>
    %210 = tpu.matmul %207, %209, %cst_111 {dimension_numbers = #tpu.dot_dimension_numbers<[1], [0], [0], [1], [0, 0, 1, 1], [], []>} : vector<16x3xbf16>, vector<3x32xbf16>, vector<16x32xf32> -> vector<16x32xf32>
    %211 = arith.addf %206, %210 : vector<16x32xf32>
    %212 = vector.broadcast %1 : vector<1x32xf32> to vector<16x32xf32>
    %213 = arith.addf %211, %212 : vector<16x32xf32>
    %cst_112 = arith.constant 0.000000e+00 : f32
    %cst_113 = arith.constant 6.000000e+00 : f32
    %214 = vector.broadcast %cst_112 : f32 to vector<16x32xf32>
    %215 = arith.maximumf %214, %213 : vector<16x32xf32>
    %216 = vector.broadcast %cst_113 : f32 to vector<16x32xf32>
    %217 = arith.minimumf %216, %215 : vector<16x32xf32>
    %c0_114 = arith.constant 0 : index
    %c2_115 = arith.constant 2 : index
    %c0_116 = arith.constant 0 : index
    %c0_117 = arith.constant 0 : index
    %218 = vector.load %arg5[%c0_114, %c2_115, %c0_116, %c0_117] : memref<1x16x16x32xf32, #tpu.memory_space<vmem>>, vector<1x1x16x32xf32>
    %219 = vector.shape_cast %218 : vector<1x1x16x32xf32> to vector<16x32xf32>
    %220 = vector.shape_cast %217 : vector<16x32xf32> to vector<1x1x16x32xf32>
    tpu.vector_store %arg5[%c0_114, %c2_115, %c0_116, %c0_117], %220 {strides = array<i32>} : memref<1x16x16x32xf32, #tpu.memory_space<vmem>>, vector<1x1x16x32xf32>,
    %cst_118 = arith.constant 0.000000e+00 : f32
    %221 = vector.broadcast %cst_118 : f32 to vector<16x32xf32>
    %c0_119 = arith.constant 0 : index
    %c6_120 = arith.constant 6 : index
    %c0_121 = arith.constant 0 : index
    %c0_122 = arith.constant 0 : index
    %222 = vector.load %arg1[%c0_119, %c6_120, %c0_121, %c0_122] : memref<1x34x17x3xf32, #tpu.memory_space<vmem>>, vector<1x1x17x3xf32>
    %223 = vector.shape_cast %222 : vector<1x1x17x3xf32> to vector<17x3xf32>
    %224 = arith.truncf %223 : vector<17x3xf32> to vector<17x3xbf16>
    %c0_123 = arith.constant 0 : index
    %c6_124 = arith.constant 6 : index
    %c0_125 = arith.constant 0 : index
    %c0_126 = arith.constant 0 : index
    %225 = vector.load %arg2[%c0_123, %c6_124, %c0_125, %c0_126] : memref<1x34x17x3xf32, #tpu.memory_space<vmem>>, vector<1x1x17x3xf32>
    %226 = vector.shape_cast %225 : vector<1x1x17x3xf32> to vector<17x3xf32>
    %227 = arith.truncf %226 : vector<17x3xf32> to vector<17x3xbf16>
    %228 = vector.extract_strided_slice %224 {offsets = [0, 0], sizes = [16, 3], strides = [1, 1]} : vector<17x3xbf16> to vector<16x3xbf16>
    %229 = vector.extract_strided_slice %0 {offsets = [0, 0, 0, 0], sizes = [1, 1, 3, 32], strides = [1, 1, 1, 1]} : vector<3x3x3x32xbf16> to vector<1x1x3x32xbf16>
    %230 = vector.shape_cast %229 : vector<1x1x3x32xbf16> to vector<3x32xbf16>
    %cst_127 = arith.constant dense<0.000000e+00> : vector<16x32xf32>
    %231 = tpu.matmul %228, %230, %cst_127 {dimension_numbers = #tpu.dot_dimension_numbers<[1], [0], [0], [1], [0, 0, 1, 1], [], []>} : vector<16x3xbf16>, vector<3x32xbf16>, vector<16x32xf32> -> vector<16x32xf32>
    %232 = arith.addf %221, %231 : vector<16x32xf32>
    %233 = vector.extract_strided_slice %227 {offsets = [0, 0], sizes = [16, 3], strides = [1, 1]} : vector<17x3xbf16> to vector<16x3xbf16>
    %234 = vector.extract_strided_slice %0 {offsets = [0, 1, 0, 0], sizes = [1, 1, 3, 32], strides = [1, 1, 1, 1]} : vector<3x3x3x32xbf16> to vector<1x1x3x32xbf16>
    %235 = vector.shape_cast %234 : vector<1x1x3x32xbf16> to vector<3x32xbf16>
    %cst_128 = arith.constant dense<0.000000e+00> : vector<16x32xf32>
    %236 = tpu.matmul %233, %235, %cst_128 {dimension_numbers = #tpu.dot_dimension_numbers<[1], [0], [0], [1], [0, 0, 1, 1], [], []>} : vector<16x3xbf16>, vector<3x32xbf16>, vector<16x32xf32> -> vector<16x32xf32>
    %237 = arith.addf %232, %236 : vector<16x32xf32>
    %238 = vector.extract_strided_slice %224 {offsets = [1, 0], sizes = [16, 3], strides = [1, 1]} : vector<17x3xbf16> to vector<16x3xbf16>
    %239 = vector.extract_strided_slice %0 {offsets = [0, 2, 0, 0], sizes = [1, 1, 3, 32], strides = [1, 1, 1, 1]} : vector<3x3x3x32xbf16> to vector<1x1x3x32xbf16>
    %240 = vector.shape_cast %239 : vector<1x1x3x32xbf16> to vector<3x32xbf16>
    %cst_129 = arith.constant dense<0.000000e+00> : vector<16x32xf32>
    %241 = tpu.matmul %238, %240, %cst_129 {dimension_numbers = #tpu.dot_dimension_numbers<[1], [0], [0], [1], [0, 0, 1, 1], [], []>} : vector<16x3xbf16>, vector<3x32xbf16>, vector<16x32xf32> -> vector<16x32xf32>
    %242 = arith.addf %237, %241 : vector<16x32xf32>
    %c0_130 = arith.constant 0 : index
    %c7 = arith.constant 7 : index
    %c0_131 = arith.constant 0 : index
    %c0_132 = arith.constant 0 : index
    %243 = vector.load %arg1[%c0_130, %c7, %c0_131, %c0_132] : memref<1x34x17x3xf32, #tpu.memory_space<vmem>>, vector<1x1x17x3xf32>
    %244 = vector.shape_cast %243 : vector<1x1x17x3xf32> to vector<17x3xf32>
    %245 = arith.truncf %244 : vector<17x3xf32> to vector<17x3xbf16>
    %c0_133 = arith.constant 0 : index
    %c7_134 = arith.constant 7 : index
    %c0_135 = arith.constant 0 : index
    %c0_136 = arith.constant 0 : index
    %246 = vector.load %arg2[%c0_133, %c7_134, %c0_135, %c0_136] : memref<1x34x17x3xf32, #tpu.memory_space<vmem>>, vector<1x1x17x3xf32>
    %247 = vector.shape_cast %246 : vector<1x1x17x3xf32> to vector<17x3xf32>
    %248 = arith.truncf %247 : vector<17x3xf32> to vector<17x3xbf16>
    %249 = vector.extract_strided_slice %245 {offsets = [0, 0], sizes = [16, 3], strides = [1, 1]} : vector<17x3xbf16> to vector<16x3xbf16>
    %250 = vector.extract_strided_slice %0 {offsets = [1, 0, 0, 0], sizes = [1, 1, 3, 32], strides = [1, 1, 1, 1]} : vector<3x3x3x32xbf16> to vector<1x1x3x32xbf16>
    %251 = vector.shape_cast %250 : vector<1x1x3x32xbf16> to vector<3x32xbf16>
    %cst_137 = arith.constant dense<0.000000e+00> : vector<16x32xf32>
    %252 = tpu.matmul %249, %251, %cst_137 {dimension_numbers = #tpu.dot_dimension_numbers<[1], [0], [0], [1], [0, 0, 1, 1], [], []>} : vector<16x3xbf16>, vector<3x32xbf16>, vector<16x32xf32> -> vector<16x32xf32>
    %253 = arith.addf %242, %252 : vector<16x32xf32>
    %254 = vector.extract_strided_slice %248 {offsets = [0, 0], sizes = [16, 3], strides = [1, 1]} : vector<17x3xbf16> to vector<16x3xbf16>
    %255 = vector.extract_strided_slice %0 {offsets = [1, 1, 0, 0], sizes = [1, 1, 3, 32], strides = [1, 1, 1, 1]} : vector<3x3x3x32xbf16> to vector<1x1x3x32xbf16>
    %256 = vector.shape_cast %255 : vector<1x1x3x32xbf16> to vector<3x32xbf16>
    %cst_138 = arith.constant dense<0.000000e+00> : vector<16x32xf32>
    %257 = tpu.matmul %254, %256, %cst_138 {dimension_numbers = #tpu.dot_dimension_numbers<[1], [0], [0], [1], [0, 0, 1, 1], [], []>} : vector<16x3xbf16>, vector<3x32xbf16>, vector<16x32xf32> -> vector<16x32xf32>
    %258 = arith.addf %253, %257 : vector<16x32xf32>
    %259 = vector.extract_strided_slice %245 {offsets = [1, 0], sizes = [16, 3], strides = [1, 1]} : vector<17x3xbf16> to vector<16x3xbf16>
    %260 = vector.extract_strided_slice %0 {offsets = [1, 2, 0, 0], sizes = [1, 1, 3, 32], strides = [1, 1, 1, 1]} : vector<3x3x3x32xbf16> to vector<1x1x3x32xbf16>
    %261 = vector.shape_cast %260 : vector<1x1x3x32xbf16> to vector<3x32xbf16>
    %cst_139 = arith.constant dense<0.000000e+00> : vector<16x32xf32>
    %262 = tpu.matmul %259, %261, %cst_139 {dimension_numbers = #tpu.dot_dimension_numbers<[1], [0], [0], [1], [0, 0, 1, 1], [], []>} : vector<16x3xbf16>, vector<3x32xbf16>, vector<16x32xf32> -> vector<16x32xf32>
    %263 = arith.addf %258, %262 : vector<16x32xf32>
    %c0_140 = arith.constant 0 : index
    %c8 = arith.constant 8 : index
    %c0_141 = arith.constant 0 : index
    %c0_142 = arith.constant 0 : index
    %264 = vector.load %arg1[%c0_140, %c8, %c0_141, %c0_142] : memref<1x34x17x3xf32, #tpu.memory_space<vmem>>, vector<1x1x17x3xf32>
    %265 = vector.shape_cast %264 : vector<1x1x17x3xf32> to vector<17x3xf32>
    %266 = arith.truncf %265 : vector<17x3xf32> to vector<17x3xbf16>
    %c0_143 = arith.constant 0 : index
    %c8_144 = arith.constant 8 : index
    %c0_145 = arith.constant 0 : index
    %c0_146 = arith.constant 0 : index
    %267 = vector.load %arg2[%c0_143, %c8_144, %c0_145, %c0_146] : memref<1x34x17x3xf32, #tpu.memory_space<vmem>>, vector<1x1x17x3xf32>
    %268 = vector.shape_cast %267 : vector<1x1x17x3xf32> to vector<17x3xf32>
    %269 = arith.truncf %268 : vector<17x3xf32> to vector<17x3xbf16>
    %270 = vector.extract_strided_slice %266 {offsets = [0, 0], sizes = [16, 3], strides = [1, 1]} : vector<17x3xbf16> to vector<16x3xbf16>
    %271 = vector.extract_strided_slice %0 {offsets = [2, 0, 0, 0], sizes = [1, 1, 3, 32], strides = [1, 1, 1, 1]} : vector<3x3x3x32xbf16> to vector<1x1x3x32xbf16>
    %272 = vector.shape_cast %271 : vector<1x1x3x32xbf16> to vector<3x32xbf16>
    %cst_147 = arith.constant dense<0.000000e+00> : vector<16x32xf32>
    %273 = tpu.matmul %270, %272, %cst_147 {dimension_numbers = #tpu.dot_dimension_numbers<[1], [0], [0], [1], [0, 0, 1, 1], [], []>} : vector<16x3xbf16>, vector<3x32xbf16>, vector<16x32xf32> -> vector<16x32xf32>
    %274 = arith.addf %263, %273 : vector<16x32xf32>
    %275 = vector.extract_strided_slice %269 {offsets = [0, 0], sizes = [16, 3], strides = [1, 1]} : vector<17x3xbf16> to vector<16x3xbf16>
    %276 = vector.extract_strided_slice %0 {offsets = [2, 1, 0, 0], sizes = [1, 1, 3, 32], strides = [1, 1, 1, 1]} : vector<3x3x3x32xbf16> to vector<1x1x3x32xbf16>
    %277 = vector.shape_cast %276 : vector<1x1x3x32xbf16> to vector<3x32xbf16>
    %cst_148 = arith.constant dense<0.000000e+00> : vector<16x32xf32>
    %278 = tpu.matmul %275, %277, %cst_148 {dimension_numbers = #tpu.dot_dimension_numbers<[1], [0], [0], [1], [0, 0, 1, 1], [], []>} : vector<16x3xbf16>, vector<3x32xbf16>, vector<16x32xf32> -> vector<16x32xf32>
    %279 = arith.addf %274, %278 : vector<16x32xf32>
    %280 = vector.extract_strided_slice %266 {offsets = [1, 0], sizes = [16, 3], strides = [1, 1]} : vector<17x3xbf16> to vector<16x3xbf16>
    %281 = vector.extract_strided_slice %0 {offsets = [2, 2, 0, 0], sizes = [1, 1, 3, 32], strides = [1, 1, 1, 1]} : vector<3x3x3x32xbf16> to vector<1x1x3x32xbf16>
    %282 = vector.shape_cast %281 : vector<1x1x3x32xbf16> to vector<3x32xbf16>
    %cst_149 = arith.constant dense<0.000000e+00> : vector<16x32xf32>
    %283 = tpu.matmul %280, %282, %cst_149 {dimension_numbers = #tpu.dot_dimension_numbers<[1], [0], [0], [1], [0, 0, 1, 1], [], []>} : vector<16x3xbf16>, vector<3x32xbf16>, vector<16x32xf32> -> vector<16x32xf32>
    %284 = arith.addf %279, %283 : vector<16x32xf32>
    %285 = vector.broadcast %1 : vector<1x32xf32> to vector<16x32xf32>
    %286 = arith.addf %284, %285 : vector<16x32xf32>
    %cst_150 = arith.constant 0.000000e+00 : f32
    %cst_151 = arith.constant 6.000000e+00 : f32
    %287 = vector.broadcast %cst_150 : f32 to vector<16x32xf32>
    %288 = arith.maximumf %287, %286 : vector<16x32xf32>
    %289 = vector.broadcast %cst_151 : f32 to vector<16x32xf32>
    %290 = arith.minimumf %289, %288 : vector<16x32xf32>
    %c0_152 = arith.constant 0 : index
    %c3_153 = arith.constant 3 : index
    %c0_154 = arith.constant 0 : index
    %c0_155 = arith.constant 0 : index
    %291 = vector.load %arg5[%c0_152, %c3_153, %c0_154, %c0_155] : memref<1x16x16x32xf32, #tpu.memory_space<vmem>>, vector<1x1x16x32xf32>
    %292 = vector.shape_cast %291 : vector<1x1x16x32xf32> to vector<16x32xf32>
    %293 = vector.shape_cast %290 : vector<16x32xf32> to vector<1x1x16x32xf32>
    tpu.vector_store %arg5[%c0_152, %c3_153, %c0_154, %c0_155], %293 {strides = array<i32>} : memref<1x16x16x32xf32, #tpu.memory_space<vmem>>, vector<1x1x16x32xf32>,
    %cst_156 = arith.constant 0.000000e+00 : f32
    %294 = vector.broadcast %cst_156 : f32 to vector<16x32xf32>
    %c0_157 = arith.constant 0 : index
    %c8_158 = arith.constant 8 : index
    %c0_159 = arith.constant 0 : index
    %c0_160 = arith.constant 0 : index
    %295 = vector.load %arg1[%c0_157, %c8_158, %c0_159, %c0_160] : memref<1x34x17x3xf32, #tpu.memory_space<vmem>>, vector<1x1x17x3xf32>
    %296 = vector.shape_cast %295 : vector<1x1x17x3xf32> to vector<17x3xf32>
    %297 = arith.truncf %296 : vector<17x3xf32> to vector<17x3xbf16>
    %c0_161 = arith.constant 0 : index
    %c8_162 = arith.constant 8 : index
    %c0_163 = arith.constant 0 : index
    %c0_164 = arith.constant 0 : index
    %298 = vector.load %arg2[%c0_161, %c8_162, %c0_163, %c0_164] : memref<1x34x17x3xf32, #tpu.memory_space<vmem>>, vector<1x1x17x3xf32>
    %299 = vector.shape_cast %298 : vector<1x1x17x3xf32> to vector<17x3xf32>
    %300 = arith.truncf %299 : vector<17x3xf32> to vector<17x3xbf16>
    %301 = vector.extract_strided_slice %297 {offsets = [0, 0], sizes = [16, 3], strides = [1, 1]} : vector<17x3xbf16> to vector<16x3xbf16>
    %302 = vector.extract_strided_slice %0 {offsets = [0, 0, 0, 0], sizes = [1, 1, 3, 32], strides = [1, 1, 1, 1]} : vector<3x3x3x32xbf16> to vector<1x1x3x32xbf16>
    %303 = vector.shape_cast %302 : vector<1x1x3x32xbf16> to vector<3x32xbf16>
    %cst_165 = arith.constant dense<0.000000e+00> : vector<16x32xf32>
    %304 = tpu.matmul %301, %303, %cst_165 {dimension_numbers = #tpu.dot_dimension_numbers<[1], [0], [0], [1], [0, 0, 1, 1], [], []>} : vector<16x3xbf16>, vector<3x32xbf16>, vector<16x32xf32> -> vector<16x32xf32>
    %305 = arith.addf %294, %304 : vector<16x32xf32>
    %306 = vector.extract_strided_slice %300 {offsets = [0, 0], sizes = [16, 3], strides = [1, 1]} : vector<17x3xbf16> to vector<16x3xbf16>
    %307 = vector.extract_strided_slice %0 {offsets = [0, 1, 0, 0], sizes = [1, 1, 3, 32], strides = [1, 1, 1, 1]} : vector<3x3x3x32xbf16> to vector<1x1x3x32xbf16>
    %308 = vector.shape_cast %307 : vector<1x1x3x32xbf16> to vector<3x32xbf16>
    %cst_166 = arith.constant dense<0.000000e+00> : vector<16x32xf32>
    %309 = tpu.matmul %306, %308, %cst_166 {dimension_numbers = #tpu.dot_dimension_numbers<[1], [0], [0], [1], [0, 0, 1, 1], [], []>} : vector<16x3xbf16>, vector<3x32xbf16>, vector<16x32xf32> -> vector<16x32xf32>
    %310 = arith.addf %305, %309 : vector<16x32xf32>
    %311 = vector.extract_strided_slice %297 {offsets = [1, 0], sizes = [16, 3], strides = [1, 1]} : vector<17x3xbf16> to vector<16x3xbf16>
    %312 = vector.extract_strided_slice %0 {offsets = [0, 2, 0, 0], sizes = [1, 1, 3, 32], strides = [1, 1, 1, 1]} : vector<3x3x3x32xbf16> to vector<1x1x3x32xbf16>
    %313 = vector.shape_cast %312 : vector<1x1x3x32xbf16> to vector<3x32xbf16>
    %cst_167 = arith.constant dense<0.000000e+00> : vector<16x32xf32>
    %314 = tpu.matmul %311, %313, %cst_167 {dimension_numbers = #tpu.dot_dimension_numbers<[1], [0], [0], [1], [0, 0, 1, 1], [], []>} : vector<16x3xbf16>, vector<3x32xbf16>, vector<16x32xf32> -> vector<16x32xf32>
    %315 = arith.addf %310, %314 : vector<16x32xf32>
    %c0_168 = arith.constant 0 : index
    %c9 = arith.constant 9 : index
    %c0_169 = arith.constant 0 : index
    %c0_170 = arith.constant 0 : index
    %316 = vector.load %arg1[%c0_168, %c9, %c0_169, %c0_170] : memref<1x34x17x3xf32, #tpu.memory_space<vmem>>, vector<1x1x17x3xf32>
    %317 = vector.shape_cast %316 : vector<1x1x17x3xf32> to vector<17x3xf32>
    %318 = arith.truncf %317 : vector<17x3xf32> to vector<17x3xbf16>
    %c0_171 = arith.constant 0 : index
    %c9_172 = arith.constant 9 : index
    %c0_173 = arith.constant 0 : index
    %c0_174 = arith.constant 0 : index
    %319 = vector.load %arg2[%c0_171, %c9_172, %c0_173, %c0_174] : memref<1x34x17x3xf32, #tpu.memory_space<vmem>>, vector<1x1x17x3xf32>
    %320 = vector.shape_cast %319 : vector<1x1x17x3xf32> to vector<17x3xf32>
    %321 = arith.truncf %320 : vector<17x3xf32> to vector<17x3xbf16>
    %322 = vector.extract_strided_slice %318 {offsets = [0, 0], sizes = [16, 3], strides = [1, 1]} : vector<17x3xbf16> to vector<16x3xbf16>
    %323 = vector.extract_strided_slice %0 {offsets = [1, 0, 0, 0], sizes = [1, 1, 3, 32], strides = [1, 1, 1, 1]} : vector<3x3x3x32xbf16> to vector<1x1x3x32xbf16>
    %324 = vector.shape_cast %323 : vector<1x1x3x32xbf16> to vector<3x32xbf16>
    %cst_175 = arith.constant dense<0.000000e+00> : vector<16x32xf32>
    %325 = tpu.matmul %322, %324, %cst_175 {dimension_numbers = #tpu.dot_dimension_numbers<[1], [0], [0], [1], [0, 0, 1, 1], [], []>} : vector<16x3xbf16>, vector<3x32xbf16>, vector<16x32xf32> -> vector<16x32xf32>
    %326 = arith.addf %315, %325 : vector<16x32xf32>
    %327 = vector.extract_strided_slice %321 {offsets = [0, 0], sizes = [16, 3], strides = [1, 1]} : vector<17x3xbf16> to vector<16x3xbf16>
    %328 = vector.extract_strided_slice %0 {offsets = [1, 1, 0, 0], sizes = [1, 1, 3, 32], strides = [1, 1, 1, 1]} : vector<3x3x3x32xbf16> to vector<1x1x3x32xbf16>
    %329 = vector.shape_cast %328 : vector<1x1x3x32xbf16> to vector<3x32xbf16>
    %cst_176 = arith.constant dense<0.000000e+00> : vector<16x32xf32>
    %330 = tpu.matmul %327, %329, %cst_176 {dimension_numbers = #tpu.dot_dimension_numbers<[1], [0], [0], [1], [0, 0, 1, 1], [], []>} : vector<16x3xbf16>, vector<3x32xbf16>, vector<16x32xf32> -> vector<16x32xf32>
    %331 = arith.addf %326, %330 : vector<16x32xf32>
    %332 = vector.extract_strided_slice %318 {offsets = [1, 0], sizes = [16, 3], strides = [1, 1]} : vector<17x3xbf16> to vector<16x3xbf16>
    %333 = vector.extract_strided_slice %0 {offsets = [1, 2, 0, 0], sizes = [1, 1, 3, 32], strides = [1, 1, 1, 1]} : vector<3x3x3x32xbf16> to vector<1x1x3x32xbf16>
    %334 = vector.shape_cast %333 : vector<1x1x3x32xbf16> to vector<3x32xbf16>
    %cst_177 = arith.constant dense<0.000000e+00> : vector<16x32xf32>
    %335 = tpu.matmul %332, %334, %cst_177 {dimension_numbers = #tpu.dot_dimension_numbers<[1], [0], [0], [1], [0, 0, 1, 1], [], []>} : vector<16x3xbf16>, vector<3x32xbf16>, vector<16x32xf32> -> vector<16x32xf32>
    %336 = arith.addf %331, %335 : vector<16x32xf32>
    %c0_178 = arith.constant 0 : index
    %c10 = arith.constant 10 : index
    %c0_179 = arith.constant 0 : index
    %c0_180 = arith.constant 0 : index
    %337 = vector.load %arg1[%c0_178, %c10, %c0_179, %c0_180] : memref<1x34x17x3xf32, #tpu.memory_space<vmem>>, vector<1x1x17x3xf32>
    %338 = vector.shape_cast %337 : vector<1x1x17x3xf32> to vector<17x3xf32>
    %339 = arith.truncf %338 : vector<17x3xf32> to vector<17x3xbf16>
    %c0_181 = arith.constant 0 : index
    %c10_182 = arith.constant 10 : index
    %c0_183 = arith.constant 0 : index
    %c0_184 = arith.constant 0 : index
    %340 = vector.load %arg2[%c0_181, %c10_182, %c0_183, %c0_184] : memref<1x34x17x3xf32, #tpu.memory_space<vmem>>, vector<1x1x17x3xf32>
    %341 = vector.shape_cast %340 : vector<1x1x17x3xf32> to vector<17x3xf32>
    %342 = arith.truncf %341 : vector<17x3xf32> to vector<17x3xbf16>
    %343 = vector.extract_strided_slice %339 {offsets = [0, 0], sizes = [16, 3], strides = [1, 1]} : vector<17x3xbf16> to vector<16x3xbf16>
    %344 = vector.extract_strided_slice %0 {offsets = [2, 0, 0, 0], sizes = [1, 1, 3, 32], strides = [1, 1, 1, 1]} : vector<3x3x3x32xbf16> to vector<1x1x3x32xbf16>
    %345 = vector.shape_cast %344 : vector<1x1x3x32xbf16> to vector<3x32xbf16>
    %cst_185 = arith.constant dense<0.000000e+00> : vector<16x32xf32>
    %346 = tpu.matmul %343, %345, %cst_185 {dimension_numbers = #tpu.dot_dimension_numbers<[1], [0], [0], [1], [0, 0, 1, 1], [], []>} : vector<16x3xbf16>, vector<3x32xbf16>, vector<16x32xf32> -> vector<16x32xf32>
    %347 = arith.addf %336, %346 : vector<16x32xf32>
    %348 = vector.extract_strided_slice %342 {offsets = [0, 0], sizes = [16, 3], strides = [1, 1]} : vector<17x3xbf16> to vector<16x3xbf16>
    %349 = vector.extract_strided_slice %0 {offsets = [2, 1, 0, 0], sizes = [1, 1, 3, 32], strides = [1, 1, 1, 1]} : vector<3x3x3x32xbf16> to vector<1x1x3x32xbf16>
    %350 = vector.shape_cast %349 : vector<1x1x3x32xbf16> to vector<3x32xbf16>
    %cst_186 = arith.constant dense<0.000000e+00> : vector<16x32xf32>
    %351 = tpu.matmul %348, %350, %cst_186 {dimension_numbers = #tpu.dot_dimension_numbers<[1], [0], [0], [1], [0, 0, 1, 1], [], []>} : vector<16x3xbf16>, vector<3x32xbf16>, vector<16x32xf32> -> vector<16x32xf32>
    %352 = arith.addf %347, %351 : vector<16x32xf32>
    %353 = vector.extract_strided_slice %339 {offsets = [1, 0], sizes = [16, 3], strides = [1, 1]} : vector<17x3xbf16> to vector<16x3xbf16>
    %354 = vector.extract_strided_slice %0 {offsets = [2, 2, 0, 0], sizes = [1, 1, 3, 32], strides = [1, 1, 1, 1]} : vector<3x3x3x32xbf16> to vector<1x1x3x32xbf16>
    %355 = vector.shape_cast %354 : vector<1x1x3x32xbf16> to vector<3x32xbf16>
    %cst_187 = arith.constant dense<0.000000e+00> : vector<16x32xf32>
    %356 = tpu.matmul %353, %355, %cst_187 {dimension_numbers = #tpu.dot_dimension_numbers<[1], [0], [0], [1], [0, 0, 1, 1], [], []>} : vector<16x3xbf16>, vector<3x32xbf16>, vector<16x32xf32> -> vector<16x32xf32>
    %357 = arith.addf %352, %356 : vector<16x32xf32>
    %358 = vector.broadcast %1 : vector<1x32xf32> to vector<16x32xf32>
    %359 = arith.addf %357, %358 : vector<16x32xf32>
    %cst_188 = arith.constant 0.000000e+00 : f32
    %cst_189 = arith.constant 6.000000e+00 : f32
    %360 = vector.broadcast %cst_188 : f32 to vector<16x32xf32>
    %361 = arith.maximumf %360, %359 : vector<16x32xf32>
    %362 = vector.broadcast %cst_189 : f32 to vector<16x32xf32>
    %363 = arith.minimumf %362, %361 : vector<16x32xf32>
    %c0_190 = arith.constant 0 : index
    %c4_191 = arith.constant 4 : index
    %c0_192 = arith.constant 0 : index
    %c0_193 = arith.constant 0 : index
    %364 = vector.load %arg5[%c0_190, %c4_191, %c0_192, %c0_193] : memref<1x16x16x32xf32, #tpu.memory_space<vmem>>, vector<1x1x16x32xf32>
    %365 = vector.shape_cast %364 : vector<1x1x16x32xf32> to vector<16x32xf32>
    %366 = vector.shape_cast %363 : vector<16x32xf32> to vector<1x1x16x32xf32>
    tpu.vector_store %arg5[%c0_190, %c4_191, %c0_192, %c0_193], %366 {strides = array<i32>} : memref<1x16x16x32xf32, #tpu.memory_space<vmem>>, vector<1x1x16x32xf32>,
    %cst_194 = arith.constant 0.000000e+00 : f32
    %367 = vector.broadcast %cst_194 : f32 to vector<16x32xf32>
    %c0_195 = arith.constant 0 : index
    %c10_196 = arith.constant 10 : index
    %c0_197 = arith.constant 0 : index
    %c0_198 = arith.constant 0 : index
    %368 = vector.load %arg1[%c0_195, %c10_196, %c0_197, %c0_198] : memref<1x34x17x3xf32, #tpu.memory_space<vmem>>, vector<1x1x17x3xf32>
    %369 = vector.shape_cast %368 : vector<1x1x17x3xf32> to vector<17x3xf32>
    %370 = arith.truncf %369 : vector<17x3xf32> to vector<17x3xbf16>
    %c0_199 = arith.constant 0 : index
    %c10_200 = arith.constant 10 : index
    %c0_201 = arith.constant 0 : index
    %c0_202 = arith.constant 0 : index
    %371 = vector.load %arg2[%c0_199, %c10_200, %c0_201, %c0_202] : memref<1x34x17x3xf32, #tpu.memory_space<vmem>>, vector<1x1x17x3xf32>
    %372 = vector.shape_cast %371 : vector<1x1x17x3xf32> to vector<17x3xf32>
    %373 = arith.truncf %372 : vector<17x3xf32> to vector<17x3xbf16>
    %374 = vector.extract_strided_slice %370 {offsets = [0, 0], sizes = [16, 3], strides = [1, 1]} : vector<17x3xbf16> to vector<16x3xbf16>
    %375 = vector.extract_strided_slice %0 {offsets = [0, 0, 0, 0], sizes = [1, 1, 3, 32], strides = [1, 1, 1, 1]} : vector<3x3x3x32xbf16> to vector<1x1x3x32xbf16>
    %376 = vector.shape_cast %375 : vector<1x1x3x32xbf16> to vector<3x32xbf16>
    %cst_203 = arith.constant dense<0.000000e+00> : vector<16x32xf32>
    %377 = tpu.matmul %374, %376, %cst_203 {dimension_numbers = #tpu.dot_dimension_numbers<[1], [0], [0], [1], [0, 0, 1, 1], [], []>} : vector<16x3xbf16>, vector<3x32xbf16>, vector<16x32xf32> -> vector<16x32xf32>
    %378 = arith.addf %367, %377 : vector<16x32xf32>
    %379 = vector.extract_strided_slice %373 {offsets = [0, 0], sizes = [16, 3], strides = [1, 1]} : vector<17x3xbf16> to vector<16x3xbf16>
    %380 = vector.extract_strided_slice %0 {offsets = [0, 1, 0, 0], sizes = [1, 1, 3, 32], strides = [1, 1, 1, 1]} : vector<3x3x3x32xbf16> to vector<1x1x3x32xbf16>
    %381 = vector.shape_cast %380 : vector<1x1x3x32xbf16> to vector<3x32xbf16>
    %cst_204 = arith.constant dense<0.000000e+00> : vector<16x32xf32>
    %382 = tpu.matmul %379, %381, %cst_204 {dimension_numbers = #tpu.dot_dimension_numbers<[1], [0], [0], [1], [0, 0, 1, 1], [], []>} : vector<16x3xbf16>, vector<3x32xbf16>, vector<16x32xf32> -> vector<16x32xf32>
    %383 = arith.addf %378, %382 : vector<16x32xf32>
    %384 = vector.extract_strided_slice %370 {offsets = [1, 0], sizes = [16, 3], strides = [1, 1]} : vector<17x3xbf16> to vector<16x3xbf16>
    %385 = vector.extract_strided_slice %0 {offsets = [0, 2, 0, 0], sizes = [1, 1, 3, 32], strides = [1, 1, 1, 1]} : vector<3x3x3x32xbf16> to vector<1x1x3x32xbf16>
    %386 = vector.shape_cast %385 : vector<1x1x3x32xbf16> to vector<3x32xbf16>
    %cst_205 = arith.constant dense<0.000000e+00> : vector<16x32xf32>
    %387 = tpu.matmul %384, %386, %cst_205 {dimension_numbers = #tpu.dot_dimension_numbers<[1], [0], [0], [1], [0, 0, 1, 1], [], []>} : vector<16x3xbf16>, vector<3x32xbf16>, vector<16x32xf32> -> vector<16x32xf32>
    %388 = arith.addf %383, %387 : vector<16x32xf32>
    %c0_206 = arith.constant 0 : index
    %c11 = arith.constant 11 : index
    %c0_207 = arith.constant 0 : index
    %c0_208 = arith.constant 0 : index
    %389 = vector.load %arg1[%c0_206, %c11, %c0_207, %c0_208] : memref<1x34x17x3xf32, #tpu.memory_space<vmem>>, vector<1x1x17x3xf32>
    %390 = vector.shape_cast %389 : vector<1x1x17x3xf32> to vector<17x3xf32>
    %391 = arith.truncf %390 : vector<17x3xf32> to vector<17x3xbf16>
    %c0_209 = arith.constant 0 : index
    %c11_210 = arith.constant 11 : index
    %c0_211 = arith.constant 0 : index
    %c0_212 = arith.constant 0 : index
    %392 = vector.load %arg2[%c0_209, %c11_210, %c0_211, %c0_212] : memref<1x34x17x3xf32, #tpu.memory_space<vmem>>, vector<1x1x17x3xf32>
    %393 = vector.shape_cast %392 : vector<1x1x17x3xf32> to vector<17x3xf32>
    %394 = arith.truncf %393 : vector<17x3xf32> to vector<17x3xbf16>
    %395 = vector.extract_strided_slice %391 {offsets = [0, 0], sizes = [16, 3], strides = [1, 1]} : vector<17x3xbf16> to vector<16x3xbf16>
    %396 = vector.extract_strided_slice %0 {offsets = [1, 0, 0, 0], sizes = [1, 1, 3, 32], strides = [1, 1, 1, 1]} : vector<3x3x3x32xbf16> to vector<1x1x3x32xbf16>
    %397 = vector.shape_cast %396 : vector<1x1x3x32xbf16> to vector<3x32xbf16>
    %cst_213 = arith.constant dense<0.000000e+00> : vector<16x32xf32>
    %398 = tpu.matmul %395, %397, %cst_213 {dimension_numbers = #tpu.dot_dimension_numbers<[1], [0], [0], [1], [0, 0, 1, 1], [], []>} : vector<16x3xbf16>, vector<3x32xbf16>, vector<16x32xf32> -> vector<16x32xf32>
    %399 = arith.addf %388, %398 : vector<16x32xf32>
    %400 = vector.extract_strided_slice %394 {offsets = [0, 0], sizes = [16, 3], strides = [1, 1]} : vector<17x3xbf16> to vector<16x3xbf16>
    %401 = vector.extract_strided_slice %0 {offsets = [1, 1, 0, 0], sizes = [1, 1, 3, 32], strides = [1, 1, 1, 1]} : vector<3x3x3x32xbf16> to vector<1x1x3x32xbf16>
    %402 = vector.shape_cast %401 : vector<1x1x3x32xbf16> to vector<3x32xbf16>
    %cst_214 = arith.constant dense<0.000000e+00> : vector<16x32xf32>
    %403 = tpu.matmul %400, %402, %cst_214 {dimension_numbers = #tpu.dot_dimension_numbers<[1], [0], [0], [1], [0, 0, 1, 1], [], []>} : vector<16x3xbf16>, vector<3x32xbf16>, vector<16x32xf32> -> vector<16x32xf32>
    %404 = arith.addf %399, %403 : vector<16x32xf32>
    %405 = vector.extract_strided_slice %391 {offsets = [1, 0], sizes = [16, 3], strides = [1, 1]} : vector<17x3xbf16> to vector<16x3xbf16>
    %406 = vector.extract_strided_slice %0 {offsets = [1, 2, 0, 0], sizes = [1, 1, 3, 32], strides = [1, 1, 1, 1]} : vector<3x3x3x32xbf16> to vector<1x1x3x32xbf16>
    %407 = vector.shape_cast %406 : vector<1x1x3x32xbf16> to vector<3x32xbf16>
    %cst_215 = arith.constant dense<0.000000e+00> : vector<16x32xf32>
    %408 = tpu.matmul %405, %407, %cst_215 {dimension_numbers = #tpu.dot_dimension_numbers<[1], [0], [0], [1], [0, 0, 1, 1], [], []>} : vector<16x3xbf16>, vector<3x32xbf16>, vector<16x32xf32> -> vector<16x32xf32>
    %409 = arith.addf %404, %408 : vector<16x32xf32>
    %c0_216 = arith.constant 0 : index
    %c12 = arith.constant 12 : index
    %c0_217 = arith.constant 0 : index
    %c0_218 = arith.constant 0 : index
    %410 = vector.load %arg1[%c0_216, %c12, %c0_217, %c0_218] : memref<1x34x17x3xf32, #tpu.memory_space<vmem>>, vector<1x1x17x3xf32>
    %411 = vector.shape_cast %410 : vector<1x1x17x3xf32> to vector<17x3xf32>
    %412 = arith.truncf %411 : vector<17x3xf32> to vector<17x3xbf16>
    %c0_219 = arith.constant 0 : index
    %c12_220 = arith.constant 12 : index
    %c0_221 = arith.constant 0 : index
    %c0_222 = arith.constant 0 : index
    %413 = vector.load %arg2[%c0_219, %c12_220, %c0_221, %c0_222] : memref<1x34x17x3xf32, #tpu.memory_space<vmem>>, vector<1x1x17x3xf32>
    %414 = vector.shape_cast %413 : vector<1x1x17x3xf32> to vector<17x3xf32>
    %415 = arith.truncf %414 : vector<17x3xf32> to vector<17x3xbf16>
    %416 = vector.extract_strided_slice %412 {offsets = [0, 0], sizes = [16, 3], strides = [1, 1]} : vector<17x3xbf16> to vector<16x3xbf16>
    %417 = vector.extract_strided_slice %0 {offsets = [2, 0, 0, 0], sizes = [1, 1, 3, 32], strides = [1, 1, 1, 1]} : vector<3x3x3x32xbf16> to vector<1x1x3x32xbf16>
    %418 = vector.shape_cast %417 : vector<1x1x3x32xbf16> to vector<3x32xbf16>
    %cst_223 = arith.constant dense<0.000000e+00> : vector<16x32xf32>
    %419 = tpu.matmul %416, %418, %cst_223 {dimension_numbers = #tpu.dot_dimension_numbers<[1], [0], [0], [1], [0, 0, 1, 1], [], []>} : vector<16x3xbf16>, vector<3x32xbf16>, vector<16x32xf32> -> vector<16x32xf32>
    %420 = arith.addf %409, %419 : vector<16x32xf32>
    %421 = vector.extract_strided_slice %415 {offsets = [0, 0], sizes = [16, 3], strides = [1, 1]} : vector<17x3xbf16> to vector<16x3xbf16>
    %422 = vector.extract_strided_slice %0 {offsets = [2, 1, 0, 0], sizes = [1, 1, 3, 32], strides = [1, 1, 1, 1]} : vector<3x3x3x32xbf16> to vector<1x1x3x32xbf16>
    %423 = vector.shape_cast %422 : vector<1x1x3x32xbf16> to vector<3x32xbf16>
    %cst_224 = arith.constant dense<0.000000e+00> : vector<16x32xf32>
    %424 = tpu.matmul %421, %423, %cst_224 {dimension_numbers = #tpu.dot_dimension_numbers<[1], [0], [0], [1], [0, 0, 1, 1], [], []>} : vector<16x3xbf16>, vector<3x32xbf16>, vector<16x32xf32> -> vector<16x32xf32>
    %425 = arith.addf %420, %424 : vector<16x32xf32>
    %426 = vector.extract_strided_slice %412 {offsets = [1, 0], sizes = [16, 3], strides = [1, 1]} : vector<17x3xbf16> to vector<16x3xbf16>
    %427 = vector.extract_strided_slice %0 {offsets = [2, 2, 0, 0], sizes = [1, 1, 3, 32], strides = [1, 1, 1, 1]} : vector<3x3x3x32xbf16> to vector<1x1x3x32xbf16>
    %428 = vector.shape_cast %427 : vector<1x1x3x32xbf16> to vector<3x32xbf16>
    %cst_225 = arith.constant dense<0.000000e+00> : vector<16x32xf32>
    %429 = tpu.matmul %426, %428, %cst_225 {dimension_numbers = #tpu.dot_dimension_numbers<[1], [0], [0], [1], [0, 0, 1, 1], [], []>} : vector<16x3xbf16>, vector<3x32xbf16>, vector<16x32xf32> -> vector<16x32xf32>
    %430 = arith.addf %425, %429 : vector<16x32xf32>
    %431 = vector.broadcast %1 : vector<1x32xf32> to vector<16x32xf32>
    %432 = arith.addf %430, %431 : vector<16x32xf32>
    %cst_226 = arith.constant 0.000000e+00 : f32
    %cst_227 = arith.constant 6.000000e+00 : f32
    %433 = vector.broadcast %cst_226 : f32 to vector<16x32xf32>
    %434 = arith.maximumf %433, %432 : vector<16x32xf32>
    %435 = vector.broadcast %cst_227 : f32 to vector<16x32xf32>
    %436 = arith.minimumf %435, %434 : vector<16x32xf32>
    %c0_228 = arith.constant 0 : index
    %c5_229 = arith.constant 5 : index
    %c0_230 = arith.constant 0 : index
    %c0_231 = arith.constant 0 : index
    %437 = vector.load %arg5[%c0_228, %c5_229, %c0_230, %c0_231] : memref<1x16x16x32xf32, #tpu.memory_space<vmem>>, vector<1x1x16x32xf32>
    %438 = vector.shape_cast %437 : vector<1x1x16x32xf32> to vector<16x32xf32>
    %439 = vector.shape_cast %436 : vector<16x32xf32> to vector<1x1x16x32xf32>
    tpu.vector_store %arg5[%c0_228, %c5_229, %c0_230, %c0_231], %439 {strides = array<i32>} : memref<1x16x16x32xf32, #tpu.memory_space<vmem>>, vector<1x1x16x32xf32>,
    %cst_232 = arith.constant 0.000000e+00 : f32
    %440 = vector.broadcast %cst_232 : f32 to vector<16x32xf32>
    %c0_233 = arith.constant 0 : index
    %c12_234 = arith.constant 12 : index
    %c0_235 = arith.constant 0 : index
    %c0_236 = arith.constant 0 : index
    %441 = vector.load %arg1[%c0_233, %c12_234, %c0_235, %c0_236] : memref<1x34x17x3xf32, #tpu.memory_space<vmem>>, vector<1x1x17x3xf32>
    %442 = vector.shape_cast %441 : vector<1x1x17x3xf32> to vector<17x3xf32>
    %443 = arith.truncf %442 : vector<17x3xf32> to vector<17x3xbf16>
    %c0_237 = arith.constant 0 : index
    %c12_238 = arith.constant 12 : index
    %c0_239 = arith.constant 0 : index
    %c0_240 = arith.constant 0 : index
    %444 = vector.load %arg2[%c0_237, %c12_238, %c0_239, %c0_240] : memref<1x34x17x3xf32, #tpu.memory_space<vmem>>, vector<1x1x17x3xf32>
    %445 = vector.shape_cast %444 : vector<1x1x17x3xf32> to vector<17x3xf32>
    %446 = arith.truncf %445 : vector<17x3xf32> to vector<17x3xbf16>
    %447 = vector.extract_strided_slice %443 {offsets = [0, 0], sizes = [16, 3], strides = [1, 1]} : vector<17x3xbf16> to vector<16x3xbf16>
    %448 = vector.extract_strided_slice %0 {offsets = [0, 0, 0, 0], sizes = [1, 1, 3, 32], strides = [1, 1, 1, 1]} : vector<3x3x3x32xbf16> to vector<1x1x3x32xbf16>
    %449 = vector.shape_cast %448 : vector<1x1x3x32xbf16> to vector<3x32xbf16>
    %cst_241 = arith.constant dense<0.000000e+00> : vector<16x32xf32>
    %450 = tpu.matmul %447, %449, %cst_241 {dimension_numbers = #tpu.dot_dimension_numbers<[1], [0], [0], [1], [0, 0, 1, 1], [], []>} : vector<16x3xbf16>, vector<3x32xbf16>, vector<16x32xf32> -> vector<16x32xf32>
    %451 = arith.addf %440, %450 : vector<16x32xf32>
    %452 = vector.extract_strided_slice %446 {offsets = [0, 0], sizes = [16, 3], strides = [1, 1]} : vector<17x3xbf16> to vector<16x3xbf16>
    %453 = vector.extract_strided_slice %0 {offsets = [0, 1, 0, 0], sizes = [1, 1, 3, 32], strides = [1, 1, 1, 1]} : vector<3x3x3x32xbf16> to vector<1x1x3x32xbf16>
    %454 = vector.shape_cast %453 : vector<1x1x3x32xbf16> to vector<3x32xbf16>
    %cst_242 = arith.constant dense<0.000000e+00> : vector<16x32xf32>
    %455 = tpu.matmul %452, %454, %cst_242 {dimension_numbers = #tpu.dot_dimension_numbers<[1], [0], [0], [1], [0, 0, 1, 1], [], []>} : vector<16x3xbf16>, vector<3x32xbf16>, vector<16x32xf32> -> vector<16x32xf32>
    %456 = arith.addf %451, %455 : vector<16x32xf32>
    %457 = vector.extract_strided_slice %443 {offsets = [1, 0], sizes = [16, 3], strides = [1, 1]} : vector<17x3xbf16> to vector<16x3xbf16>
    %458 = vector.extract_strided_slice %0 {offsets = [0, 2, 0, 0], sizes = [1, 1, 3, 32], strides = [1, 1, 1, 1]} : vector<3x3x3x32xbf16> to vector<1x1x3x32xbf16>
    %459 = vector.shape_cast %458 : vector<1x1x3x32xbf16> to vector<3x32xbf16>
    %cst_243 = arith.constant dense<0.000000e+00> : vector<16x32xf32>
    %460 = tpu.matmul %457, %459, %cst_243 {dimension_numbers = #tpu.dot_dimension_numbers<[1], [0], [0], [1], [0, 0, 1, 1], [], []>} : vector<16x3xbf16>, vector<3x32xbf16>, vector<16x32xf32> -> vector<16x32xf32>
    %461 = arith.addf %456, %460 : vector<16x32xf32>
    %c0_244 = arith.constant 0 : index
    %c13 = arith.constant 13 : index
    %c0_245 = arith.constant 0 : index
    %c0_246 = arith.constant 0 : index
    %462 = vector.load %arg1[%c0_244, %c13, %c0_245, %c0_246] : memref<1x34x17x3xf32, #tpu.memory_space<vmem>>, vector<1x1x17x3xf32>
    %463 = vector.shape_cast %462 : vector<1x1x17x3xf32> to vector<17x3xf32>
    %464 = arith.truncf %463 : vector<17x3xf32> to vector<17x3xbf16>
    %c0_247 = arith.constant 0 : index
    %c13_248 = arith.constant 13 : index
    %c0_249 = arith.constant 0 : index
    %c0_250 = arith.constant 0 : index
    %465 = vector.load %arg2[%c0_247, %c13_248, %c0_249, %c0_250] : memref<1x34x17x3xf32, #tpu.memory_space<vmem>>, vector<1x1x17x3xf32>
    %466 = vector.shape_cast %465 : vector<1x1x17x3xf32> to vector<17x3xf32>
    %467 = arith.truncf %466 : vector<17x3xf32> to vector<17x3xbf16>
    %468 = vector.extract_strided_slice %464 {offsets = [0, 0], sizes = [16, 3], strides = [1, 1]} : vector<17x3xbf16> to vector<16x3xbf16>
    %469 = vector.extract_strided_slice %0 {offsets = [1, 0, 0, 0], sizes = [1, 1, 3, 32], strides = [1, 1, 1, 1]} : vector<3x3x3x32xbf16> to vector<1x1x3x32xbf16>
    %470 = vector.shape_cast %469 : vector<1x1x3x32xbf16> to vector<3x32xbf16>
    %cst_251 = arith.constant dense<0.000000e+00> : vector<16x32xf32>
    %471 = tpu.matmul %468, %470, %cst_251 {dimension_numbers = #tpu.dot_dimension_numbers<[1], [0], [0], [1], [0, 0, 1, 1], [], []>} : vector<16x3xbf16>, vector<3x32xbf16>, vector<16x32xf32> -> vector<16x32xf32>
    %472 = arith.addf %461, %471 : vector<16x32xf32>
    %473 = vector.extract_strided_slice %467 {offsets = [0, 0], sizes = [16, 3], strides = [1, 1]} : vector<17x3xbf16> to vector<16x3xbf16>
    %474 = vector.extract_strided_slice %0 {offsets = [1, 1, 0, 0], sizes = [1, 1, 3, 32], strides = [1, 1, 1, 1]} : vector<3x3x3x32xbf16> to vector<1x1x3x32xbf16>
    %475 = vector.shape_cast %474 : vector<1x1x3x32xbf16> to vector<3x32xbf16>
    %cst_252 = arith.constant dense<0.000000e+00> : vector<16x32xf32>
    %476 = tpu.matmul %473, %475, %cst_252 {dimension_numbers = #tpu.dot_dimension_numbers<[1], [0], [0], [1], [0, 0, 1, 1], [], []>} : vector<16x3xbf16>, vector<3x32xbf16>, vector<16x32xf32> -> vector<16x32xf32>
    %477 = arith.addf %472, %476 : vector<16x32xf32>
    %478 = vector.extract_strided_slice %464 {offsets = [1, 0], sizes = [16, 3], strides = [1, 1]} : vector<17x3xbf16> to vector<16x3xbf16>
    %479 = vector.extract_strided_slice %0 {offsets = [1, 2, 0, 0], sizes = [1, 1, 3, 32], strides = [1, 1, 1, 1]} : vector<3x3x3x32xbf16> to vector<1x1x3x32xbf16>
    %480 = vector.shape_cast %479 : vector<1x1x3x32xbf16> to vector<3x32xbf16>
    %cst_253 = arith.constant dense<0.000000e+00> : vector<16x32xf32>
    %481 = tpu.matmul %478, %480, %cst_253 {dimension_numbers = #tpu.dot_dimension_numbers<[1], [0], [0], [1], [0, 0, 1, 1], [], []>} : vector<16x3xbf16>, vector<3x32xbf16>, vector<16x32xf32> -> vector<16x32xf32>
    %482 = arith.addf %477, %481 : vector<16x32xf32>
    %c0_254 = arith.constant 0 : index
    %c14 = arith.constant 14 : index
    %c0_255 = arith.constant 0 : index
    %c0_256 = arith.constant 0 : index
    %483 = vector.load %arg1[%c0_254, %c14, %c0_255, %c0_256] : memref<1x34x17x3xf32, #tpu.memory_space<vmem>>, vector<1x1x17x3xf32>
    %484 = vector.shape_cast %483 : vector<1x1x17x3xf32> to vector<17x3xf32>
    %485 = arith.truncf %484 : vector<17x3xf32> to vector<17x3xbf16>
    %c0_257 = arith.constant 0 : index
    %c14_258 = arith.constant 14 : index
    %c0_259 = arith.constant 0 : index
    %c0_260 = arith.constant 0 : index
    %486 = vector.load %arg2[%c0_257, %c14_258, %c0_259, %c0_260] : memref<1x34x17x3xf32, #tpu.memory_space<vmem>>, vector<1x1x17x3xf32>
    %487 = vector.shape_cast %486 : vector<1x1x17x3xf32> to vector<17x3xf32>
    %488 = arith.truncf %487 : vector<17x3xf32> to vector<17x3xbf16>
    %489 = vector.extract_strided_slice %485 {offsets = [0, 0], sizes = [16, 3], strides = [1, 1]} : vector<17x3xbf16> to vector<16x3xbf16>
    %490 = vector.extract_strided_slice %0 {offsets = [2, 0, 0, 0], sizes = [1, 1, 3, 32], strides = [1, 1, 1, 1]} : vector<3x3x3x32xbf16> to vector<1x1x3x32xbf16>
    %491 = vector.shape_cast %490 : vector<1x1x3x32xbf16> to vector<3x32xbf16>
    %cst_261 = arith.constant dense<0.000000e+00> : vector<16x32xf32>
    %492 = tpu.matmul %489, %491, %cst_261 {dimension_numbers = #tpu.dot_dimension_numbers<[1], [0], [0], [1], [0, 0, 1, 1], [], []>} : vector<16x3xbf16>, vector<3x32xbf16>, vector<16x32xf32> -> vector<16x32xf32>
    %493 = arith.addf %482, %492 : vector<16x32xf32>
    %494 = vector.extract_strided_slice %488 {offsets = [0, 0], sizes = [16, 3], strides = [1, 1]} : vector<17x3xbf16> to vector<16x3xbf16>
    %495 = vector.extract_strided_slice %0 {offsets = [2, 1, 0, 0], sizes = [1, 1, 3, 32], strides = [1, 1, 1, 1]} : vector<3x3x3x32xbf16> to vector<1x1x3x32xbf16>
    %496 = vector.shape_cast %495 : vector<1x1x3x32xbf16> to vector<3x32xbf16>
    %cst_262 = arith.constant dense<0.000000e+00> : vector<16x32xf32>
    %497 = tpu.matmul %494, %496, %cst_262 {dimension_numbers = #tpu.dot_dimension_numbers<[1], [0], [0], [1], [0, 0, 1, 1], [], []>} : vector<16x3xbf16>, vector<3x32xbf16>, vector<16x32xf32> -> vector<16x32xf32>
    %498 = arith.addf %493, %497 : vector<16x32xf32>
    %499 = vector.extract_strided_slice %485 {offsets = [1, 0], sizes = [16, 3], strides = [1, 1]} : vector<17x3xbf16> to vector<16x3xbf16>
    %500 = vector.extract_strided_slice %0 {offsets = [2, 2, 0, 0], sizes = [1, 1, 3, 32], strides = [1, 1, 1, 1]} : vector<3x3x3x32xbf16> to vector<1x1x3x32xbf16>
    %501 = vector.shape_cast %500 : vector<1x1x3x32xbf16> to vector<3x32xbf16>
    %cst_263 = arith.constant dense<0.000000e+00> : vector<16x32xf32>
    %502 = tpu.matmul %499, %501, %cst_263 {dimension_numbers = #tpu.dot_dimension_numbers<[1], [0], [0], [1], [0, 0, 1, 1], [], []>} : vector<16x3xbf16>, vector<3x32xbf16>, vector<16x32xf32> -> vector<16x32xf32>
    %503 = arith.addf %498, %502 : vector<16x32xf32>
    %504 = vector.broadcast %1 : vector<1x32xf32> to vector<16x32xf32>
    %505 = arith.addf %503, %504 : vector<16x32xf32>
    %cst_264 = arith.constant 0.000000e+00 : f32
    %cst_265 = arith.constant 6.000000e+00 : f32
    %506 = vector.broadcast %cst_264 : f32 to vector<16x32xf32>
    %507 = arith.maximumf %506, %505 : vector<16x32xf32>
    %508 = vector.broadcast %cst_265 : f32 to vector<16x32xf32>
    %509 = arith.minimumf %508, %507 : vector<16x32xf32>
    %c0_266 = arith.constant 0 : index
    %c6_267 = arith.constant 6 : index
    %c0_268 = arith.constant 0 : index
    %c0_269 = arith.constant 0 : index
    %510 = vector.load %arg5[%c0_266, %c6_267, %c0_268, %c0_269] : memref<1x16x16x32xf32, #tpu.memory_space<vmem>>, vector<1x1x16x32xf32>
    %511 = vector.shape_cast %510 : vector<1x1x16x32xf32> to vector<16x32xf32>
    %512 = vector.shape_cast %509 : vector<16x32xf32> to vector<1x1x16x32xf32>
    tpu.vector_store %arg5[%c0_266, %c6_267, %c0_268, %c0_269], %512 {strides = array<i32>} : memref<1x16x16x32xf32, #tpu.memory_space<vmem>>, vector<1x1x16x32xf32>,
    %cst_270 = arith.constant 0.000000e+00 : f32
    %513 = vector.broadcast %cst_270 : f32 to vector<16x32xf32>
    %c0_271 = arith.constant 0 : index
    %c14_272 = arith.constant 14 : index
    %c0_273 = arith.constant 0 : index
    %c0_274 = arith.constant 0 : index
    %514 = vector.load %arg1[%c0_271, %c14_272, %c0_273, %c0_274] : memref<1x34x17x3xf32, #tpu.memory_space<vmem>>, vector<1x1x17x3xf32>
    %515 = vector.shape_cast %514 : vector<1x1x17x3xf32> to vector<17x3xf32>
    %516 = arith.truncf %515 : vector<17x3xf32> to vector<17x3xbf16>
    %c0_275 = arith.constant 0 : index
    %c14_276 = arith.constant 14 : index
    %c0_277 = arith.constant 0 : index
    %c0_278 = arith.constant 0 : index
    %517 = vector.load %arg2[%c0_275, %c14_276, %c0_277, %c0_278] : memref<1x34x17x3xf32, #tpu.memory_space<vmem>>, vector<1x1x17x3xf32>
    %518 = vector.shape_cast %517 : vector<1x1x17x3xf32> to vector<17x3xf32>
    %519 = arith.truncf %518 : vector<17x3xf32> to vector<17x3xbf16>
    %520 = vector.extract_strided_slice %516 {offsets = [0, 0], sizes = [16, 3], strides = [1, 1]} : vector<17x3xbf16> to vector<16x3xbf16>
    %521 = vector.extract_strided_slice %0 {offsets = [0, 0, 0, 0], sizes = [1, 1, 3, 32], strides = [1, 1, 1, 1]} : vector<3x3x3x32xbf16> to vector<1x1x3x32xbf16>
    %522 = vector.shape_cast %521 : vector<1x1x3x32xbf16> to vector<3x32xbf16>
    %cst_279 = arith.constant dense<0.000000e+00> : vector<16x32xf32>
    %523 = tpu.matmul %520, %522, %cst_279 {dimension_numbers = #tpu.dot_dimension_numbers<[1], [0], [0], [1], [0, 0, 1, 1], [], []>} : vector<16x3xbf16>, vector<3x32xbf16>, vector<16x32xf32> -> vector<16x32xf32>
    %524 = arith.addf %513, %523 : vector<16x32xf32>
    %525 = vector.extract_strided_slice %519 {offsets = [0, 0], sizes = [16, 3], strides = [1, 1]} : vector<17x3xbf16> to vector<16x3xbf16>
    %526 = vector.extract_strided_slice %0 {offsets = [0, 1, 0, 0], sizes = [1, 1, 3, 32], strides = [1, 1, 1, 1]} : vector<3x3x3x32xbf16> to vector<1x1x3x32xbf16>
    %527 = vector.shape_cast %526 : vector<1x1x3x32xbf16> to vector<3x32xbf16>
    %cst_280 = arith.constant dense<0.000000e+00> : vector<16x32xf32>
    %528 = tpu.matmul %525, %527, %cst_280 {dimension_numbers = #tpu.dot_dimension_numbers<[1], [0], [0], [1], [0, 0, 1, 1], [], []>} : vector<16x3xbf16>, vector<3x32xbf16>, vector<16x32xf32> -> vector<16x32xf32>
    %529 = arith.addf %524, %528 : vector<16x32xf32>
    %530 = vector.extract_strided_slice %516 {offsets = [1, 0], sizes = [16, 3], strides = [1, 1]} : vector<17x3xbf16> to vector<16x3xbf16>
    %531 = vector.extract_strided_slice %0 {offsets = [0, 2, 0, 0], sizes = [1, 1, 3, 32], strides = [1, 1, 1, 1]} : vector<3x3x3x32xbf16> to vector<1x1x3x32xbf16>
    %532 = vector.shape_cast %531 : vector<1x1x3x32xbf16> to vector<3x32xbf16>
    %cst_281 = arith.constant dense<0.000000e+00> : vector<16x32xf32>
    %533 = tpu.matmul %530, %532, %cst_281 {dimension_numbers = #tpu.dot_dimension_numbers<[1], [0], [0], [1], [0, 0, 1, 1], [], []>} : vector<16x3xbf16>, vector<3x32xbf16>, vector<16x32xf32> -> vector<16x32xf32>
    %534 = arith.addf %529, %533 : vector<16x32xf32>
    %c0_282 = arith.constant 0 : index
    %c15 = arith.constant 15 : index
    %c0_283 = arith.constant 0 : index
    %c0_284 = arith.constant 0 : index
    %535 = vector.load %arg1[%c0_282, %c15, %c0_283, %c0_284] : memref<1x34x17x3xf32, #tpu.memory_space<vmem>>, vector<1x1x17x3xf32>
    %536 = vector.shape_cast %535 : vector<1x1x17x3xf32> to vector<17x3xf32>
    %537 = arith.truncf %536 : vector<17x3xf32> to vector<17x3xbf16>
    %c0_285 = arith.constant 0 : index
    %c15_286 = arith.constant 15 : index
    %c0_287 = arith.constant 0 : index
    %c0_288 = arith.constant 0 : index
    %538 = vector.load %arg2[%c0_285, %c15_286, %c0_287, %c0_288] : memref<1x34x17x3xf32, #tpu.memory_space<vmem>>, vector<1x1x17x3xf32>
    %539 = vector.shape_cast %538 : vector<1x1x17x3xf32> to vector<17x3xf32>
    %540 = arith.truncf %539 : vector<17x3xf32> to vector<17x3xbf16>
    %541 = vector.extract_strided_slice %537 {offsets = [0, 0], sizes = [16, 3], strides = [1, 1]} : vector<17x3xbf16> to vector<16x3xbf16>
    %542 = vector.extract_strided_slice %0 {offsets = [1, 0, 0, 0], sizes = [1, 1, 3, 32], strides = [1, 1, 1, 1]} : vector<3x3x3x32xbf16> to vector<1x1x3x32xbf16>
    %543 = vector.shape_cast %542 : vector<1x1x3x32xbf16> to vector<3x32xbf16>
    %cst_289 = arith.constant dense<0.000000e+00> : vector<16x32xf32>
    %544 = tpu.matmul %541, %543, %cst_289 {dimension_numbers = #tpu.dot_dimension_numbers<[1], [0], [0], [1], [0, 0, 1, 1], [], []>} : vector<16x3xbf16>, vector<3x32xbf16>, vector<16x32xf32> -> vector<16x32xf32>
    %545 = arith.addf %534, %544 : vector<16x32xf32>
    %546 = vector.extract_strided_slice %540 {offsets = [0, 0], sizes = [16, 3], strides = [1, 1]} : vector<17x3xbf16> to vector<16x3xbf16>
    %547 = vector.extract_strided_slice %0 {offsets = [1, 1, 0, 0], sizes = [1, 1, 3, 32], strides = [1, 1, 1, 1]} : vector<3x3x3x32xbf16> to vector<1x1x3x32xbf16>
    %548 = vector.shape_cast %547 : vector<1x1x3x32xbf16> to vector<3x32xbf16>
    %cst_290 = arith.constant dense<0.000000e+00> : vector<16x32xf32>
    %549 = tpu.matmul %546, %548, %cst_290 {dimension_numbers = #tpu.dot_dimension_numbers<[1], [0], [0], [1], [0, 0, 1, 1], [], []>} : vector<16x3xbf16>, vector<3x32xbf16>, vector<16x32xf32> -> vector<16x32xf32>
    %550 = arith.addf %545, %549 : vector<16x32xf32>
    %551 = vector.extract_strided_slice %537 {offsets = [1, 0], sizes = [16, 3], strides = [1, 1]} : vector<17x3xbf16> to vector<16x3xbf16>
    %552 = vector.extract_strided_slice %0 {offsets = [1, 2, 0, 0], sizes = [1, 1, 3, 32], strides = [1, 1, 1, 1]} : vector<3x3x3x32xbf16> to vector<1x1x3x32xbf16>
    %553 = vector.shape_cast %552 : vector<1x1x3x32xbf16> to vector<3x32xbf16>
    %cst_291 = arith.constant dense<0.000000e+00> : vector<16x32xf32>
    %554 = tpu.matmul %551, %553, %cst_291 {dimension_numbers = #tpu.dot_dimension_numbers<[1], [0], [0], [1], [0, 0, 1, 1], [], []>} : vector<16x3xbf16>, vector<3x32xbf16>, vector<16x32xf32> -> vector<16x32xf32>
    %555 = arith.addf %550, %554 : vector<16x32xf32>
    %c0_292 = arith.constant 0 : index
    %c16 = arith.constant 16 : index
    %c0_293 = arith.constant 0 : index
    %c0_294 = arith.constant 0 : index
    %556 = vector.load %arg1[%c0_292, %c16, %c0_293, %c0_294] : memref<1x34x17x3xf32, #tpu.memory_space<vmem>>, vector<1x1x17x3xf32>
    %557 = vector.shape_cast %556 : vector<1x1x17x3xf32> to vector<17x3xf32>
    %558 = arith.truncf %557 : vector<17x3xf32> to vector<17x3xbf16>
    %c0_295 = arith.constant 0 : index
    %c16_296 = arith.constant 16 : index
    %c0_297 = arith.constant 0 : index
    %c0_298 = arith.constant 0 : index
    %559 = vector.load %arg2[%c0_295, %c16_296, %c0_297, %c0_298] : memref<1x34x17x3xf32, #tpu.memory_space<vmem>>, vector<1x1x17x3xf32>
    %560 = vector.shape_cast %559 : vector<1x1x17x3xf32> to vector<17x3xf32>
    %561 = arith.truncf %560 : vector<17x3xf32> to vector<17x3xbf16>
    %562 = vector.extract_strided_slice %558 {offsets = [0, 0], sizes = [16, 3], strides = [1, 1]} : vector<17x3xbf16> to vector<16x3xbf16>
    %563 = vector.extract_strided_slice %0 {offsets = [2, 0, 0, 0], sizes = [1, 1, 3, 32], strides = [1, 1, 1, 1]} : vector<3x3x3x32xbf16> to vector<1x1x3x32xbf16>
    %564 = vector.shape_cast %563 : vector<1x1x3x32xbf16> to vector<3x32xbf16>
    %cst_299 = arith.constant dense<0.000000e+00> : vector<16x32xf32>
    %565 = tpu.matmul %562, %564, %cst_299 {dimension_numbers = #tpu.dot_dimension_numbers<[1], [0], [0], [1], [0, 0, 1, 1], [], []>} : vector<16x3xbf16>, vector<3x32xbf16>, vector<16x32xf32> -> vector<16x32xf32>
    %566 = arith.addf %555, %565 : vector<16x32xf32>
    %567 = vector.extract_strided_slice %561 {offsets = [0, 0], sizes = [16, 3], strides = [1, 1]} : vector<17x3xbf16> to vector<16x3xbf16>
    %568 = vector.extract_strided_slice %0 {offsets = [2, 1, 0, 0], sizes = [1, 1, 3, 32], strides = [1, 1, 1, 1]} : vector<3x3x3x32xbf16> to vector<1x1x3x32xbf16>
    %569 = vector.shape_cast %568 : vector<1x1x3x32xbf16> to vector<3x32xbf16>
    %cst_300 = arith.constant dense<0.000000e+00> : vector<16x32xf32>
    %570 = tpu.matmul %567, %569, %cst_300 {dimension_numbers = #tpu.dot_dimension_numbers<[1], [0], [0], [1], [0, 0, 1, 1], [], []>} : vector<16x3xbf16>, vector<3x32xbf16>, vector<16x32xf32> -> vector<16x32xf32>
    %571 = arith.addf %566, %570 : vector<16x32xf32>
    %572 = vector.extract_strided_slice %558 {offsets = [1, 0], sizes = [16, 3], strides = [1, 1]} : vector<17x3xbf16> to vector<16x3xbf16>
    %573 = vector.extract_strided_slice %0 {offsets = [2, 2, 0, 0], sizes = [1, 1, 3, 32], strides = [1, 1, 1, 1]} : vector<3x3x3x32xbf16> to vector<1x1x3x32xbf16>
    %574 = vector.shape_cast %573 : vector<1x1x3x32xbf16> to vector<3x32xbf16>
    %cst_301 = arith.constant dense<0.000000e+00> : vector<16x32xf32>
    %575 = tpu.matmul %572, %574, %cst_301 {dimension_numbers = #tpu.dot_dimension_numbers<[1], [0], [0], [1], [0, 0, 1, 1], [], []>} : vector<16x3xbf16>, vector<3x32xbf16>, vector<16x32xf32> -> vector<16x32xf32>
    %576 = arith.addf %571, %575 : vector<16x32xf32>
    %577 = vector.broadcast %1 : vector<1x32xf32> to vector<16x32xf32>
    %578 = arith.addf %576, %577 : vector<16x32xf32>
    %cst_302 = arith.constant 0.000000e+00 : f32
    %cst_303 = arith.constant 6.000000e+00 : f32
    %579 = vector.broadcast %cst_302 : f32 to vector<16x32xf32>
    %580 = arith.maximumf %579, %578 : vector<16x32xf32>
    %581 = vector.broadcast %cst_303 : f32 to vector<16x32xf32>
    %582 = arith.minimumf %581, %580 : vector<16x32xf32>
    %c0_304 = arith.constant 0 : index
    %c7_305 = arith.constant 7 : index
    %c0_306 = arith.constant 0 : index
    %c0_307 = arith.constant 0 : index
    %583 = vector.load %arg5[%c0_304, %c7_305, %c0_306, %c0_307] : memref<1x16x16x32xf32, #tpu.memory_space<vmem>>, vector<1x1x16x32xf32>
    %584 = vector.shape_cast %583 : vector<1x1x16x32xf32> to vector<16x32xf32>
    %585 = vector.shape_cast %582 : vector<16x32xf32> to vector<1x1x16x32xf32>
    tpu.vector_store %arg5[%c0_304, %c7_305, %c0_306, %c0_307], %585 {strides = array<i32>} : memref<1x16x16x32xf32, #tpu.memory_space<vmem>>, vector<1x1x16x32xf32>,
    %cst_308 = arith.constant 0.000000e+00 : f32
    %586 = vector.broadcast %cst_308 : f32 to vector<16x32xf32>
    %c0_309 = arith.constant 0 : index
    %c16_310 = arith.constant 16 : index
    %c0_311 = arith.constant 0 : index
    %c0_312 = arith.constant 0 : index
    %587 = vector.load %arg1[%c0_309, %c16_310, %c0_311, %c0_312] : memref<1x34x17x3xf32, #tpu.memory_space<vmem>>, vector<1x1x17x3xf32>
    %588 = vector.shape_cast %587 : vector<1x1x17x3xf32> to vector<17x3xf32>
    %589 = arith.truncf %588 : vector<17x3xf32> to vector<17x3xbf16>
    %c0_313 = arith.constant 0 : index
    %c16_314 = arith.constant 16 : index
    %c0_315 = arith.constant 0 : index
    %c0_316 = arith.constant 0 : index
    %590 = vector.load %arg2[%c0_313, %c16_314, %c0_315, %c0_316] : memref<1x34x17x3xf32, #tpu.memory_space<vmem>>, vector<1x1x17x3xf32>
    %591 = vector.shape_cast %590 : vector<1x1x17x3xf32> to vector<17x3xf32>
    %592 = arith.truncf %591 : vector<17x3xf32> to vector<17x3xbf16>
    %593 = vector.extract_strided_slice %589 {offsets = [0, 0], sizes = [16, 3], strides = [1, 1]} : vector<17x3xbf16> to vector<16x3xbf16>
    %594 = vector.extract_strided_slice %0 {offsets = [0, 0, 0, 0], sizes = [1, 1, 3, 32], strides = [1, 1, 1, 1]} : vector<3x3x3x32xbf16> to vector<1x1x3x32xbf16>
    %595 = vector.shape_cast %594 : vector<1x1x3x32xbf16> to vector<3x32xbf16>
    %cst_317 = arith.constant dense<0.000000e+00> : vector<16x32xf32>
    %596 = tpu.matmul %593, %595, %cst_317 {dimension_numbers = #tpu.dot_dimension_numbers<[1], [0], [0], [1], [0, 0, 1, 1], [], []>} : vector<16x3xbf16>, vector<3x32xbf16>, vector<16x32xf32> -> vector<16x32xf32>
    %597 = arith.addf %586, %596 : vector<16x32xf32>
    %598 = vector.extract_strided_slice %592 {offsets = [0, 0], sizes = [16, 3], strides = [1, 1]} : vector<17x3xbf16> to vector<16x3xbf16>
    %599 = vector.extract_strided_slice %0 {offsets = [0, 1, 0, 0], sizes = [1, 1, 3, 32], strides = [1, 1, 1, 1]} : vector<3x3x3x32xbf16> to vector<1x1x3x32xbf16>
    %600 = vector.shape_cast %599 : vector<1x1x3x32xbf16> to vector<3x32xbf16>
    %cst_318 = arith.constant dense<0.000000e+00> : vector<16x32xf32>
    %601 = tpu.matmul %598, %600, %cst_318 {dimension_numbers = #tpu.dot_dimension_numbers<[1], [0], [0], [1], [0, 0, 1, 1], [], []>} : vector<16x3xbf16>, vector<3x32xbf16>, vector<16x32xf32> -> vector<16x32xf32>
    %602 = arith.addf %597, %601 : vector<16x32xf32>
    %603 = vector.extract_strided_slice %589 {offsets = [1, 0], sizes = [16, 3], strides = [1, 1]} : vector<17x3xbf16> to vector<16x3xbf16>
    %604 = vector.extract_strided_slice %0 {offsets = [0, 2, 0, 0], sizes = [1, 1, 3, 32], strides = [1, 1, 1, 1]} : vector<3x3x3x32xbf16> to vector<1x1x3x32xbf16>
    %605 = vector.shape_cast %604 : vector<1x1x3x32xbf16> to vector<3x32xbf16>
    %cst_319 = arith.constant dense<0.000000e+00> : vector<16x32xf32>
    %606 = tpu.matmul %603, %605, %cst_319 {dimension_numbers = #tpu.dot_dimension_numbers<[1], [0], [0], [1], [0, 0, 1, 1], [], []>} : vector<16x3xbf16>, vector<3x32xbf16>, vector<16x32xf32> -> vector<16x32xf32>
    %607 = arith.addf %602, %606 : vector<16x32xf32>
    %c0_320 = arith.constant 0 : index
    %c17 = arith.constant 17 : index
    %c0_321 = arith.constant 0 : index
    %c0_322 = arith.constant 0 : index
    %608 = vector.load %arg1[%c0_320, %c17, %c0_321, %c0_322] : memref<1x34x17x3xf32, #tpu.memory_space<vmem>>, vector<1x1x17x3xf32>
    %609 = vector.shape_cast %608 : vector<1x1x17x3xf32> to vector<17x3xf32>
    %610 = arith.truncf %609 : vector<17x3xf32> to vector<17x3xbf16>
    %c0_323 = arith.constant 0 : index
    %c17_324 = arith.constant 17 : index
    %c0_325 = arith.constant 0 : index
    %c0_326 = arith.constant 0 : index
    %611 = vector.load %arg2[%c0_323, %c17_324, %c0_325, %c0_326] : memref<1x34x17x3xf32, #tpu.memory_space<vmem>>, vector<1x1x17x3xf32>
    %612 = vector.shape_cast %611 : vector<1x1x17x3xf32> to vector<17x3xf32>
    %613 = arith.truncf %612 : vector<17x3xf32> to vector<17x3xbf16>
    %614 = vector.extract_strided_slice %610 {offsets = [0, 0], sizes = [16, 3], strides = [1, 1]} : vector<17x3xbf16> to vector<16x3xbf16>
    %615 = vector.extract_strided_slice %0 {offsets = [1, 0, 0, 0], sizes = [1, 1, 3, 32], strides = [1, 1, 1, 1]} : vector<3x3x3x32xbf16> to vector<1x1x3x32xbf16>
    %616 = vector.shape_cast %615 : vector<1x1x3x32xbf16> to vector<3x32xbf16>
    %cst_327 = arith.constant dense<0.000000e+00> : vector<16x32xf32>
    %617 = tpu.matmul %614, %616, %cst_327 {dimension_numbers = #tpu.dot_dimension_numbers<[1], [0], [0], [1], [0, 0, 1, 1], [], []>} : vector<16x3xbf16>, vector<3x32xbf16>, vector<16x32xf32> -> vector<16x32xf32>
    %618 = arith.addf %607, %617 : vector<16x32xf32>
    %619 = vector.extract_strided_slice %613 {offsets = [0, 0], sizes = [16, 3], strides = [1, 1]} : vector<17x3xbf16> to vector<16x3xbf16>
    %620 = vector.extract_strided_slice %0 {offsets = [1, 1, 0, 0], sizes = [1, 1, 3, 32], strides = [1, 1, 1, 1]} : vector<3x3x3x32xbf16> to vector<1x1x3x32xbf16>
    %621 = vector.shape_cast %620 : vector<1x1x3x32xbf16> to vector<3x32xbf16>
    %cst_328 = arith.constant dense<0.000000e+00> : vector<16x32xf32>
    %622 = tpu.matmul %619, %621, %cst_328 {dimension_numbers = #tpu.dot_dimension_numbers<[1], [0], [0], [1], [0, 0, 1, 1], [], []>} : vector<16x3xbf16>, vector<3x32xbf16>, vector<16x32xf32> -> vector<16x32xf32>
    %623 = arith.addf %618, %622 : vector<16x32xf32>
    %624 = vector.extract_strided_slice %610 {offsets = [1, 0], sizes = [16, 3], strides = [1, 1]} : vector<17x3xbf16> to vector<16x3xbf16>
    %625 = vector.extract_strided_slice %0 {offsets = [1, 2, 0, 0], sizes = [1, 1, 3, 32], strides = [1, 1, 1, 1]} : vector<3x3x3x32xbf16> to vector<1x1x3x32xbf16>
    %626 = vector.shape_cast %625 : vector<1x1x3x32xbf16> to vector<3x32xbf16>
    %cst_329 = arith.constant dense<0.000000e+00> : vector<16x32xf32>
    %627 = tpu.matmul %624, %626, %cst_329 {dimension_numbers = #tpu.dot_dimension_numbers<[1], [0], [0], [1], [0, 0, 1, 1], [], []>} : vector<16x3xbf16>, vector<3x32xbf16>, vector<16x32xf32> -> vector<16x32xf32>
    %628 = arith.addf %623, %627 : vector<16x32xf32>
    %c0_330 = arith.constant 0 : index
    %c18 = arith.constant 18 : index
    %c0_331 = arith.constant 0 : index
    %c0_332 = arith.constant 0 : index
    %629 = vector.load %arg1[%c0_330, %c18, %c0_331, %c0_332] : memref<1x34x17x3xf32, #tpu.memory_space<vmem>>, vector<1x1x17x3xf32>
    %630 = vector.shape_cast %629 : vector<1x1x17x3xf32> to vector<17x3xf32>
    %631 = arith.truncf %630 : vector<17x3xf32> to vector<17x3xbf16>
    %c0_333 = arith.constant 0 : index
    %c18_334 = arith.constant 18 : index
    %c0_335 = arith.constant 0 : index
    %c0_336 = arith.constant 0 : index
    %632 = vector.load %arg2[%c0_333, %c18_334, %c0_335, %c0_336] : memref<1x34x17x3xf32, #tpu.memory_space<vmem>>, vector<1x1x17x3xf32>
    %633 = vector.shape_cast %632 : vector<1x1x17x3xf32> to vector<17x3xf32>
    %634 = arith.truncf %633 : vector<17x3xf32> to vector<17x3xbf16>
    %635 = vector.extract_strided_slice %631 {offsets = [0, 0], sizes = [16, 3], strides = [1, 1]} : vector<17x3xbf16> to vector<16x3xbf16>
    %636 = vector.extract_strided_slice %0 {offsets = [2, 0, 0, 0], sizes = [1, 1, 3, 32], strides = [1, 1, 1, 1]} : vector<3x3x3x32xbf16> to vector<1x1x3x32xbf16>
    %637 = vector.shape_cast %636 : vector<1x1x3x32xbf16> to vector<3x32xbf16>
    %cst_337 = arith.constant dense<0.000000e+00> : vector<16x32xf32>
    %638 = tpu.matmul %635, %637, %cst_337 {dimension_numbers = #tpu.dot_dimension_numbers<[1], [0], [0], [1], [0, 0, 1, 1], [], []>} : vector<16x3xbf16>, vector<3x32xbf16>, vector<16x32xf32> -> vector<16x32xf32>
    %639 = arith.addf %628, %638 : vector<16x32xf32>
    %640 = vector.extract_strided_slice %634 {offsets = [0, 0], sizes = [16, 3], strides = [1, 1]} : vector<17x3xbf16> to vector<16x3xbf16>
    %641 = vector.extract_strided_slice %0 {offsets = [2, 1, 0, 0], sizes = [1, 1, 3, 32], strides = [1, 1, 1, 1]} : vector<3x3x3x32xbf16> to vector<1x1x3x32xbf16>
    %642 = vector.shape_cast %641 : vector<1x1x3x32xbf16> to vector<3x32xbf16>
    %cst_338 = arith.constant dense<0.000000e+00> : vector<16x32xf32>
    %643 = tpu.matmul %640, %642, %cst_338 {dimension_numbers = #tpu.dot_dimension_numbers<[1], [0], [0], [1], [0, 0, 1, 1], [], []>} : vector<16x3xbf16>, vector<3x32xbf16>, vector<16x32xf32> -> vector<16x32xf32>
    %644 = arith.addf %639, %643 : vector<16x32xf32>
    %645 = vector.extract_strided_slice %631 {offsets = [1, 0], sizes = [16, 3], strides = [1, 1]} : vector<17x3xbf16> to vector<16x3xbf16>
    %646 = vector.extract_strided_slice %0 {offsets = [2, 2, 0, 0], sizes = [1, 1, 3, 32], strides = [1, 1, 1, 1]} : vector<3x3x3x32xbf16> to vector<1x1x3x32xbf16>
    %647 = vector.shape_cast %646 : vector<1x1x3x32xbf16> to vector<3x32xbf16>
    %cst_339 = arith.constant dense<0.000000e+00> : vector<16x32xf32>
    %648 = tpu.matmul %645, %647, %cst_339 {dimension_numbers = #tpu.dot_dimension_numbers<[1], [0], [0], [1], [0, 0, 1, 1], [], []>} : vector<16x3xbf16>, vector<3x32xbf16>, vector<16x32xf32> -> vector<16x32xf32>
    %649 = arith.addf %644, %648 : vector<16x32xf32>
    %650 = vector.broadcast %1 : vector<1x32xf32> to vector<16x32xf32>
    %651 = arith.addf %649, %650 : vector<16x32xf32>
    %cst_340 = arith.constant 0.000000e+00 : f32
    %cst_341 = arith.constant 6.000000e+00 : f32
    %652 = vector.broadcast %cst_340 : f32 to vector<16x32xf32>
    %653 = arith.maximumf %652, %651 : vector<16x32xf32>
    %654 = vector.broadcast %cst_341 : f32 to vector<16x32xf32>
    %655 = arith.minimumf %654, %653 : vector<16x32xf32>
    %c0_342 = arith.constant 0 : index
    %c8_343 = arith.constant 8 : index
    %c0_344 = arith.constant 0 : index
    %c0_345 = arith.constant 0 : index
    %656 = vector.load %arg5[%c0_342, %c8_343, %c0_344, %c0_345] : memref<1x16x16x32xf32, #tpu.memory_space<vmem>>, vector<1x1x16x32xf32>
    %657 = vector.shape_cast %656 : vector<1x1x16x32xf32> to vector<16x32xf32>
    %658 = vector.shape_cast %655 : vector<16x32xf32> to vector<1x1x16x32xf32>
    tpu.vector_store %arg5[%c0_342, %c8_343, %c0_344, %c0_345], %658 {strides = array<i32>} : memref<1x16x16x32xf32, #tpu.memory_space<vmem>>, vector<1x1x16x32xf32>,
    %cst_346 = arith.constant 0.000000e+00 : f32
    %659 = vector.broadcast %cst_346 : f32 to vector<16x32xf32>
    %c0_347 = arith.constant 0 : index
    %c18_348 = arith.constant 18 : index
    %c0_349 = arith.constant 0 : index
    %c0_350 = arith.constant 0 : index
    %660 = vector.load %arg1[%c0_347, %c18_348, %c0_349, %c0_350] : memref<1x34x17x3xf32, #tpu.memory_space<vmem>>, vector<1x1x17x3xf32>
    %661 = vector.shape_cast %660 : vector<1x1x17x3xf32> to vector<17x3xf32>
    %662 = arith.truncf %661 : vector<17x3xf32> to vector<17x3xbf16>
    %c0_351 = arith.constant 0 : index
    %c18_352 = arith.constant 18 : index
    %c0_353 = arith.constant 0 : index
    %c0_354 = arith.constant 0 : index
    %663 = vector.load %arg2[%c0_351, %c18_352, %c0_353, %c0_354] : memref<1x34x17x3xf32, #tpu.memory_space<vmem>>, vector<1x1x17x3xf32>
    %664 = vector.shape_cast %663 : vector<1x1x17x3xf32> to vector<17x3xf32>
    %665 = arith.truncf %664 : vector<17x3xf32> to vector<17x3xbf16>
    %666 = vector.extract_strided_slice %662 {offsets = [0, 0], sizes = [16, 3], strides = [1, 1]} : vector<17x3xbf16> to vector<16x3xbf16>
    %667 = vector.extract_strided_slice %0 {offsets = [0, 0, 0, 0], sizes = [1, 1, 3, 32], strides = [1, 1, 1, 1]} : vector<3x3x3x32xbf16> to vector<1x1x3x32xbf16>
    %668 = vector.shape_cast %667 : vector<1x1x3x32xbf16> to vector<3x32xbf16>
    %cst_355 = arith.constant dense<0.000000e+00> : vector<16x32xf32>
    %669 = tpu.matmul %666, %668, %cst_355 {dimension_numbers = #tpu.dot_dimension_numbers<[1], [0], [0], [1], [0, 0, 1, 1], [], []>} : vector<16x3xbf16>, vector<3x32xbf16>, vector<16x32xf32> -> vector<16x32xf32>
    %670 = arith.addf %659, %669 : vector<16x32xf32>
    %671 = vector.extract_strided_slice %665 {offsets = [0, 0], sizes = [16, 3], strides = [1, 1]} : vector<17x3xbf16> to vector<16x3xbf16>
    %672 = vector.extract_strided_slice %0 {offsets = [0, 1, 0, 0], sizes = [1, 1, 3, 32], strides = [1, 1, 1, 1]} : vector<3x3x3x32xbf16> to vector<1x1x3x32xbf16>
    %673 = vector.shape_cast %672 : vector<1x1x3x32xbf16> to vector<3x32xbf16>
    %cst_356 = arith.constant dense<0.000000e+00> : vector<16x32xf32>
    %674 = tpu.matmul %671, %673, %cst_356 {dimension_numbers = #tpu.dot_dimension_numbers<[1], [0], [0], [1], [0, 0, 1, 1], [], []>} : vector<16x3xbf16>, vector<3x32xbf16>, vector<16x32xf32> -> vector<16x32xf32>
    %675 = arith.addf %670, %674 : vector<16x32xf32>
    %676 = vector.extract_strided_slice %662 {offsets = [1, 0], sizes = [16, 3], strides = [1, 1]} : vector<17x3xbf16> to vector<16x3xbf16>
    %677 = vector.extract_strided_slice %0 {offsets = [0, 2, 0, 0], sizes = [1, 1, 3, 32], strides = [1, 1, 1, 1]} : vector<3x3x3x32xbf16> to vector<1x1x3x32xbf16>
    %678 = vector.shape_cast %677 : vector<1x1x3x32xbf16> to vector<3x32xbf16>
    %cst_357 = arith.constant dense<0.000000e+00> : vector<16x32xf32>
    %679 = tpu.matmul %676, %678, %cst_357 {dimension_numbers = #tpu.dot_dimension_numbers<[1], [0], [0], [1], [0, 0, 1, 1], [], []>} : vector<16x3xbf16>, vector<3x32xbf16>, vector<16x32xf32> -> vector<16x32xf32>
    %680 = arith.addf %675, %679 : vector<16x32xf32>
    %c0_358 = arith.constant 0 : index
    %c19 = arith.constant 19 : index
    %c0_359 = arith.constant 0 : index
    %c0_360 = arith.constant 0 : index
    %681 = vector.load %arg1[%c0_358, %c19, %c0_359, %c0_360] : memref<1x34x17x3xf32, #tpu.memory_space<vmem>>, vector<1x1x17x3xf32>
    %682 = vector.shape_cast %681 : vector<1x1x17x3xf32> to vector<17x3xf32>
    %683 = arith.truncf %682 : vector<17x3xf32> to vector<17x3xbf16>
    %c0_361 = arith.constant 0 : index
    %c19_362 = arith.constant 19 : index
    %c0_363 = arith.constant 0 : index
    %c0_364 = arith.constant 0 : index
    %684 = vector.load %arg2[%c0_361, %c19_362, %c0_363, %c0_364] : memref<1x34x17x3xf32, #tpu.memory_space<vmem>>, vector<1x1x17x3xf32>
    %685 = vector.shape_cast %684 : vector<1x1x17x3xf32> to vector<17x3xf32>
    %686 = arith.truncf %685 : vector<17x3xf32> to vector<17x3xbf16>
    %687 = vector.extract_strided_slice %683 {offsets = [0, 0], sizes = [16, 3], strides = [1, 1]} : vector<17x3xbf16> to vector<16x3xbf16>
    %688 = vector.extract_strided_slice %0 {offsets = [1, 0, 0, 0], sizes = [1, 1, 3, 32], strides = [1, 1, 1, 1]} : vector<3x3x3x32xbf16> to vector<1x1x3x32xbf16>
    %689 = vector.shape_cast %688 : vector<1x1x3x32xbf16> to vector<3x32xbf16>
    %cst_365 = arith.constant dense<0.000000e+00> : vector<16x32xf32>
    %690 = tpu.matmul %687, %689, %cst_365 {dimension_numbers = #tpu.dot_dimension_numbers<[1], [0], [0], [1], [0, 0, 1, 1], [], []>} : vector<16x3xbf16>, vector<3x32xbf16>, vector<16x32xf32> -> vector<16x32xf32>
    %691 = arith.addf %680, %690 : vector<16x32xf32>
    %692 = vector.extract_strided_slice %686 {offsets = [0, 0], sizes = [16, 3], strides = [1, 1]} : vector<17x3xbf16> to vector<16x3xbf16>
    %693 = vector.extract_strided_slice %0 {offsets = [1, 1, 0, 0], sizes = [1, 1, 3, 32], strides = [1, 1, 1, 1]} : vector<3x3x3x32xbf16> to vector<1x1x3x32xbf16>
    %694 = vector.shape_cast %693 : vector<1x1x3x32xbf16> to vector<3x32xbf16>
    %cst_366 = arith.constant dense<0.000000e+00> : vector<16x32xf32>
    %695 = tpu.matmul %692, %694, %cst_366 {dimension_numbers = #tpu.dot_dimension_numbers<[1], [0], [0], [1], [0, 0, 1, 1], [], []>} : vector<16x3xbf16>, vector<3x32xbf16>, vector<16x32xf32> -> vector<16x32xf32>
    %696 = arith.addf %691, %695 : vector<16x32xf32>
    %697 = vector.extract_strided_slice %683 {offsets = [1, 0], sizes = [16, 3], strides = [1, 1]} : vector<17x3xbf16> to vector<16x3xbf16>
    %698 = vector.extract_strided_slice %0 {offsets = [1, 2, 0, 0], sizes = [1, 1, 3, 32], strides = [1, 1, 1, 1]} : vector<3x3x3x32xbf16> to vector<1x1x3x32xbf16>
    %699 = vector.shape_cast %698 : vector<1x1x3x32xbf16> to vector<3x32xbf16>
    %cst_367 = arith.constant dense<0.000000e+00> : vector<16x32xf32>
    %700 = tpu.matmul %697, %699, %cst_367 {dimension_numbers = #tpu.dot_dimension_numbers<[1], [0], [0], [1], [0, 0, 1, 1], [], []>} : vector<16x3xbf16>, vector<3x32xbf16>, vector<16x32xf32> -> vector<16x32xf32>
    %701 = arith.addf %696, %700 : vector<16x32xf32>
    %c0_368 = arith.constant 0 : index
    %c20 = arith.constant 20 : index
    %c0_369 = arith.constant 0 : index
    %c0_370 = arith.constant 0 : index
    %702 = vector.load %arg1[%c0_368, %c20, %c0_369, %c0_370] : memref<1x34x17x3xf32, #tpu.memory_space<vmem>>, vector<1x1x17x3xf32>
    %703 = vector.shape_cast %702 : vector<1x1x17x3xf32> to vector<17x3xf32>
    %704 = arith.truncf %703 : vector<17x3xf32> to vector<17x3xbf16>
    %c0_371 = arith.constant 0 : index
    %c20_372 = arith.constant 20 : index
    %c0_373 = arith.constant 0 : index
    %c0_374 = arith.constant 0 : index
    %705 = vector.load %arg2[%c0_371, %c20_372, %c0_373, %c0_374] : memref<1x34x17x3xf32, #tpu.memory_space<vmem>>, vector<1x1x17x3xf32>
    %706 = vector.shape_cast %705 : vector<1x1x17x3xf32> to vector<17x3xf32>
    %707 = arith.truncf %706 : vector<17x3xf32> to vector<17x3xbf16>
    %708 = vector.extract_strided_slice %704 {offsets = [0, 0], sizes = [16, 3], strides = [1, 1]} : vector<17x3xbf16> to vector<16x3xbf16>
    %709 = vector.extract_strided_slice %0 {offsets = [2, 0, 0, 0], sizes = [1, 1, 3, 32], strides = [1, 1, 1, 1]} : vector<3x3x3x32xbf16> to vector<1x1x3x32xbf16>
    %710 = vector.shape_cast %709 : vector<1x1x3x32xbf16> to vector<3x32xbf16>
    %cst_375 = arith.constant dense<0.000000e+00> : vector<16x32xf32>
    %711 = tpu.matmul %708, %710, %cst_375 {dimension_numbers = #tpu.dot_dimension_numbers<[1], [0], [0], [1], [0, 0, 1, 1], [], []>} : vector<16x3xbf16>, vector<3x32xbf16>, vector<16x32xf32> -> vector<16x32xf32>
    %712 = arith.addf %701, %711 : vector<16x32xf32>
    %713 = vector.extract_strided_slice %707 {offsets = [0, 0], sizes = [16, 3], strides = [1, 1]} : vector<17x3xbf16> to vector<16x3xbf16>
    %714 = vector.extract_strided_slice %0 {offsets = [2, 1, 0, 0], sizes = [1, 1, 3, 32], strides = [1, 1, 1, 1]} : vector<3x3x3x32xbf16> to vector<1x1x3x32xbf16>
    %715 = vector.shape_cast %714 : vector<1x1x3x32xbf16> to vector<3x32xbf16>
    %cst_376 = arith.constant dense<0.000000e+00> : vector<16x32xf32>
    %716 = tpu.matmul %713, %715, %cst_376 {dimension_numbers = #tpu.dot_dimension_numbers<[1], [0], [0], [1], [0, 0, 1, 1], [], []>} : vector<16x3xbf16>, vector<3x32xbf16>, vector<16x32xf32> -> vector<16x32xf32>
    %717 = arith.addf %712, %716 : vector<16x32xf32>
    %718 = vector.extract_strided_slice %704 {offsets = [1, 0], sizes = [16, 3], strides = [1, 1]} : vector<17x3xbf16> to vector<16x3xbf16>
    %719 = vector.extract_strided_slice %0 {offsets = [2, 2, 0, 0], sizes = [1, 1, 3, 32], strides = [1, 1, 1, 1]} : vector<3x3x3x32xbf16> to vector<1x1x3x32xbf16>
    %720 = vector.shape_cast %719 : vector<1x1x3x32xbf16> to vector<3x32xbf16>
    %cst_377 = arith.constant dense<0.000000e+00> : vector<16x32xf32>
    %721 = tpu.matmul %718, %720, %cst_377 {dimension_numbers = #tpu.dot_dimension_numbers<[1], [0], [0], [1], [0, 0, 1, 1], [], []>} : vector<16x3xbf16>, vector<3x32xbf16>, vector<16x32xf32> -> vector<16x32xf32>
    %722 = arith.addf %717, %721 : vector<16x32xf32>
    %723 = vector.broadcast %1 : vector<1x32xf32> to vector<16x32xf32>
    %724 = arith.addf %722, %723 : vector<16x32xf32>
    %cst_378 = arith.constant 0.000000e+00 : f32
    %cst_379 = arith.constant 6.000000e+00 : f32
    %725 = vector.broadcast %cst_378 : f32 to vector<16x32xf32>
    %726 = arith.maximumf %725, %724 : vector<16x32xf32>
    %727 = vector.broadcast %cst_379 : f32 to vector<16x32xf32>
    %728 = arith.minimumf %727, %726 : vector<16x32xf32>
    %c0_380 = arith.constant 0 : index
    %c9_381 = arith.constant 9 : index
    %c0_382 = arith.constant 0 : index
    %c0_383 = arith.constant 0 : index
    %729 = vector.load %arg5[%c0_380, %c9_381, %c0_382, %c0_383] : memref<1x16x16x32xf32, #tpu.memory_space<vmem>>, vector<1x1x16x32xf32>
    %730 = vector.shape_cast %729 : vector<1x1x16x32xf32> to vector<16x32xf32>
    %731 = vector.shape_cast %728 : vector<16x32xf32> to vector<1x1x16x32xf32>
    tpu.vector_store %arg5[%c0_380, %c9_381, %c0_382, %c0_383], %731 {strides = array<i32>} : memref<1x16x16x32xf32, #tpu.memory_space<vmem>>, vector<1x1x16x32xf32>,
    %cst_384 = arith.constant 0.000000e+00 : f32
    %732 = vector.broadcast %cst_384 : f32 to vector<16x32xf32>
    %c0_385 = arith.constant 0 : index
    %c20_386 = arith.constant 20 : index
    %c0_387 = arith.constant 0 : index
    %c0_388 = arith.constant 0 : index
    %733 = vector.load %arg1[%c0_385, %c20_386, %c0_387, %c0_388] : memref<1x34x17x3xf32, #tpu.memory_space<vmem>>, vector<1x1x17x3xf32>
    %734 = vector.shape_cast %733 : vector<1x1x17x3xf32> to vector<17x3xf32>
    %735 = arith.truncf %734 : vector<17x3xf32> to vector<17x3xbf16>
    %c0_389 = arith.constant 0 : index
    %c20_390 = arith.constant 20 : index
    %c0_391 = arith.constant 0 : index
    %c0_392 = arith.constant 0 : index
    %736 = vector.load %arg2[%c0_389, %c20_390, %c0_391, %c0_392] : memref<1x34x17x3xf32, #tpu.memory_space<vmem>>, vector<1x1x17x3xf32>
    %737 = vector.shape_cast %736 : vector<1x1x17x3xf32> to vector<17x3xf32>
    %738 = arith.truncf %737 : vector<17x3xf32> to vector<17x3xbf16>
    %739 = vector.extract_strided_slice %735 {offsets = [0, 0], sizes = [16, 3], strides = [1, 1]} : vector<17x3xbf16> to vector<16x3xbf16>
    %740 = vector.extract_strided_slice %0 {offsets = [0, 0, 0, 0], sizes = [1, 1, 3, 32], strides = [1, 1, 1, 1]} : vector<3x3x3x32xbf16> to vector<1x1x3x32xbf16>
    %741 = vector.shape_cast %740 : vector<1x1x3x32xbf16> to vector<3x32xbf16>
    %cst_393 = arith.constant dense<0.000000e+00> : vector<16x32xf32>
    %742 = tpu.matmul %739, %741, %cst_393 {dimension_numbers = #tpu.dot_dimension_numbers<[1], [0], [0], [1], [0, 0, 1, 1], [], []>} : vector<16x3xbf16>, vector<3x32xbf16>, vector<16x32xf32> -> vector<16x32xf32>
    %743 = arith.addf %732, %742 : vector<16x32xf32>
    %744 = vector.extract_strided_slice %738 {offsets = [0, 0], sizes = [16, 3], strides = [1, 1]} : vector<17x3xbf16> to vector<16x3xbf16>
    %745 = vector.extract_strided_slice %0 {offsets = [0, 1, 0, 0], sizes = [1, 1, 3, 32], strides = [1, 1, 1, 1]} : vector<3x3x3x32xbf16> to vector<1x1x3x32xbf16>
    %746 = vector.shape_cast %745 : vector<1x1x3x32xbf16> to vector<3x32xbf16>
    %cst_394 = arith.constant dense<0.000000e+00> : vector<16x32xf32>
    %747 = tpu.matmul %744, %746, %cst_394 {dimension_numbers = #tpu.dot_dimension_numbers<[1], [0], [0], [1], [0, 0, 1, 1], [], []>} : vector<16x3xbf16>, vector<3x32xbf16>, vector<16x32xf32> -> vector<16x32xf32>
    %748 = arith.addf %743, %747 : vector<16x32xf32>
    %749 = vector.extract_strided_slice %735 {offsets = [1, 0], sizes = [16, 3], strides = [1, 1]} : vector<17x3xbf16> to vector<16x3xbf16>
    %750 = vector.extract_strided_slice %0 {offsets = [0, 2, 0, 0], sizes = [1, 1, 3, 32], strides = [1, 1, 1, 1]} : vector<3x3x3x32xbf16> to vector<1x1x3x32xbf16>
    %751 = vector.shape_cast %750 : vector<1x1x3x32xbf16> to vector<3x32xbf16>
    %cst_395 = arith.constant dense<0.000000e+00> : vector<16x32xf32>
    %752 = tpu.matmul %749, %751, %cst_395 {dimension_numbers = #tpu.dot_dimension_numbers<[1], [0], [0], [1], [0, 0, 1, 1], [], []>} : vector<16x3xbf16>, vector<3x32xbf16>, vector<16x32xf32> -> vector<16x32xf32>
    %753 = arith.addf %748, %752 : vector<16x32xf32>
    %c0_396 = arith.constant 0 : index
    %c21 = arith.constant 21 : index
    %c0_397 = arith.constant 0 : index
    %c0_398 = arith.constant 0 : index
    %754 = vector.load %arg1[%c0_396, %c21, %c0_397, %c0_398] : memref<1x34x17x3xf32, #tpu.memory_space<vmem>>, vector<1x1x17x3xf32>
    %755 = vector.shape_cast %754 : vector<1x1x17x3xf32> to vector<17x3xf32>
    %756 = arith.truncf %755 : vector<17x3xf32> to vector<17x3xbf16>
    %c0_399 = arith.constant 0 : index
    %c21_400 = arith.constant 21 : index
    %c0_401 = arith.constant 0 : index
    %c0_402 = arith.constant 0 : index
    %757 = vector.load %arg2[%c0_399, %c21_400, %c0_401, %c0_402] : memref<1x34x17x3xf32, #tpu.memory_space<vmem>>, vector<1x1x17x3xf32>
    %758 = vector.shape_cast %757 : vector<1x1x17x3xf32> to vector<17x3xf32>
    %759 = arith.truncf %758 : vector<17x3xf32> to vector<17x3xbf16>
    %760 = vector.extract_strided_slice %756 {offsets = [0, 0], sizes = [16, 3], strides = [1, 1]} : vector<17x3xbf16> to vector<16x3xbf16>
    %761 = vector.extract_strided_slice %0 {offsets = [1, 0, 0, 0], sizes = [1, 1, 3, 32], strides = [1, 1, 1, 1]} : vector<3x3x3x32xbf16> to vector<1x1x3x32xbf16>
    %762 = vector.shape_cast %761 : vector<1x1x3x32xbf16> to vector<3x32xbf16>
    %cst_403 = arith.constant dense<0.000000e+00> : vector<16x32xf32>
    %763 = tpu.matmul %760, %762, %cst_403 {dimension_numbers = #tpu.dot_dimension_numbers<[1], [0], [0], [1], [0, 0, 1, 1], [], []>} : vector<16x3xbf16>, vector<3x32xbf16>, vector<16x32xf32> -> vector<16x32xf32>
    %764 = arith.addf %753, %763 : vector<16x32xf32>
    %765 = vector.extract_strided_slice %759 {offsets = [0, 0], sizes = [16, 3], strides = [1, 1]} : vector<17x3xbf16> to vector<16x3xbf16>
    %766 = vector.extract_strided_slice %0 {offsets = [1, 1, 0, 0], sizes = [1, 1, 3, 32], strides = [1, 1, 1, 1]} : vector<3x3x3x32xbf16> to vector<1x1x3x32xbf16>
    %767 = vector.shape_cast %766 : vector<1x1x3x32xbf16> to vector<3x32xbf16>
    %cst_404 = arith.constant dense<0.000000e+00> : vector<16x32xf32>
    %768 = tpu.matmul %765, %767, %cst_404 {dimension_numbers = #tpu.dot_dimension_numbers<[1], [0], [0], [1], [0, 0, 1, 1], [], []>} : vector<16x3xbf16>, vector<3x32xbf16>, vector<16x32xf32> -> vector<16x32xf32>
    %769 = arith.addf %764, %768 : vector<16x32xf32>
    %770 = vector.extract_strided_slice %756 {offsets = [1, 0], sizes = [16, 3], strides = [1, 1]} : vector<17x3xbf16> to vector<16x3xbf16>
    %771 = vector.extract_strided_slice %0 {offsets = [1, 2, 0, 0], sizes = [1, 1, 3, 32], strides = [1, 1, 1, 1]} : vector<3x3x3x32xbf16> to vector<1x1x3x32xbf16>
    %772 = vector.shape_cast %771 : vector<1x1x3x32xbf16> to vector<3x32xbf16>
    %cst_405 = arith.constant dense<0.000000e+00> : vector<16x32xf32>
    %773 = tpu.matmul %770, %772, %cst_405 {dimension_numbers = #tpu.dot_dimension_numbers<[1], [0], [0], [1], [0, 0, 1, 1], [], []>} : vector<16x3xbf16>, vector<3x32xbf16>, vector<16x32xf32> -> vector<16x32xf32>
    %774 = arith.addf %769, %773 : vector<16x32xf32>
    %c0_406 = arith.constant 0 : index
    %c22 = arith.constant 22 : index
    %c0_407 = arith.constant 0 : index
    %c0_408 = arith.constant 0 : index
    %775 = vector.load %arg1[%c0_406, %c22, %c0_407, %c0_408] : memref<1x34x17x3xf32, #tpu.memory_space<vmem>>, vector<1x1x17x3xf32>
    %776 = vector.shape_cast %775 : vector<1x1x17x3xf32> to vector<17x3xf32>
    %777 = arith.truncf %776 : vector<17x3xf32> to vector<17x3xbf16>
    %c0_409 = arith.constant 0 : index
    %c22_410 = arith.constant 22 : index
    %c0_411 = arith.constant 0 : index
    %c0_412 = arith.constant 0 : index
    %778 = vector.load %arg2[%c0_409, %c22_410, %c0_411, %c0_412] : memref<1x34x17x3xf32, #tpu.memory_space<vmem>>, vector<1x1x17x3xf32>
    %779 = vector.shape_cast %778 : vector<1x1x17x3xf32> to vector<17x3xf32>
    %780 = arith.truncf %779 : vector<17x3xf32> to vector<17x3xbf16>
    %781 = vector.extract_strided_slice %777 {offsets = [0, 0], sizes = [16, 3], strides = [1, 1]} : vector<17x3xbf16> to vector<16x3xbf16>
    %782 = vector.extract_strided_slice %0 {offsets = [2, 0, 0, 0], sizes = [1, 1, 3, 32], strides = [1, 1, 1, 1]} : vector<3x3x3x32xbf16> to vector<1x1x3x32xbf16>
    %783 = vector.shape_cast %782 : vector<1x1x3x32xbf16> to vector<3x32xbf16>
    %cst_413 = arith.constant dense<0.000000e+00> : vector<16x32xf32>
    %784 = tpu.matmul %781, %783, %cst_413 {dimension_numbers = #tpu.dot_dimension_numbers<[1], [0], [0], [1], [0, 0, 1, 1], [], []>} : vector<16x3xbf16>, vector<3x32xbf16>, vector<16x32xf32> -> vector<16x32xf32>
    %785 = arith.addf %774, %784 : vector<16x32xf32>
    %786 = vector.extract_strided_slice %780 {offsets = [0, 0], sizes = [16, 3], strides = [1, 1]} : vector<17x3xbf16> to vector<16x3xbf16>
    %787 = vector.extract_strided_slice %0 {offsets = [2, 1, 0, 0], sizes = [1, 1, 3, 32], strides = [1, 1, 1, 1]} : vector<3x3x3x32xbf16> to vector<1x1x3x32xbf16>
    %788 = vector.shape_cast %787 : vector<1x1x3x32xbf16> to vector<3x32xbf16>
    %cst_414 = arith.constant dense<0.000000e+00> : vector<16x32xf32>
    %789 = tpu.matmul %786, %788, %cst_414 {dimension_numbers = #tpu.dot_dimension_numbers<[1], [0], [0], [1], [0, 0, 1, 1], [], []>} : vector<16x3xbf16>, vector<3x32xbf16>, vector<16x32xf32> -> vector<16x32xf32>
    %790 = arith.addf %785, %789 : vector<16x32xf32>
    %791 = vector.extract_strided_slice %777 {offsets = [1, 0], sizes = [16, 3], strides = [1, 1]} : vector<17x3xbf16> to vector<16x3xbf16>
    %792 = vector.extract_strided_slice %0 {offsets = [2, 2, 0, 0], sizes = [1, 1, 3, 32], strides = [1, 1, 1, 1]} : vector<3x3x3x32xbf16> to vector<1x1x3x32xbf16>
    %793 = vector.shape_cast %792 : vector<1x1x3x32xbf16> to vector<3x32xbf16>
    %cst_415 = arith.constant dense<0.000000e+00> : vector<16x32xf32>
    %794 = tpu.matmul %791, %793, %cst_415 {dimension_numbers = #tpu.dot_dimension_numbers<[1], [0], [0], [1], [0, 0, 1, 1], [], []>} : vector<16x3xbf16>, vector<3x32xbf16>, vector<16x32xf32> -> vector<16x32xf32>
    %795 = arith.addf %790, %794 : vector<16x32xf32>
    %796 = vector.broadcast %1 : vector<1x32xf32> to vector<16x32xf32>
    %797 = arith.addf %795, %796 : vector<16x32xf32>
    %cst_416 = arith.constant 0.000000e+00 : f32
    %cst_417 = arith.constant 6.000000e+00 : f32
    %798 = vector.broadcast %cst_416 : f32 to vector<16x32xf32>
    %799 = arith.maximumf %798, %797 : vector<16x32xf32>
    %800 = vector.broadcast %cst_417 : f32 to vector<16x32xf32>
    %801 = arith.minimumf %800, %799 : vector<16x32xf32>
    %c0_418 = arith.constant 0 : index
    %c10_419 = arith.constant 10 : index
    %c0_420 = arith.constant 0 : index
    %c0_421 = arith.constant 0 : index
    %802 = vector.load %arg5[%c0_418, %c10_419, %c0_420, %c0_421] : memref<1x16x16x32xf32, #tpu.memory_space<vmem>>, vector<1x1x16x32xf32>
    %803 = vector.shape_cast %802 : vector<1x1x16x32xf32> to vector<16x32xf32>
    %804 = vector.shape_cast %801 : vector<16x32xf32> to vector<1x1x16x32xf32>
    tpu.vector_store %arg5[%c0_418, %c10_419, %c0_420, %c0_421], %804 {strides = array<i32>} : memref<1x16x16x32xf32, #tpu.memory_space<vmem>>, vector<1x1x16x32xf32>,
    %cst_422 = arith.constant 0.000000e+00 : f32
    %805 = vector.broadcast %cst_422 : f32 to vector<16x32xf32>
    %c0_423 = arith.constant 0 : index
    %c22_424 = arith.constant 22 : index
    %c0_425 = arith.constant 0 : index
    %c0_426 = arith.constant 0 : index
    %806 = vector.load %arg1[%c0_423, %c22_424, %c0_425, %c0_426] : memref<1x34x17x3xf32, #tpu.memory_space<vmem>>, vector<1x1x17x3xf32>
    %807 = vector.shape_cast %806 : vector<1x1x17x3xf32> to vector<17x3xf32>
    %808 = arith.truncf %807 : vector<17x3xf32> to vector<17x3xbf16>
    %c0_427 = arith.constant 0 : index
    %c22_428 = arith.constant 22 : index
    %c0_429 = arith.constant 0 : index
    %c0_430 = arith.constant 0 : index
    %809 = vector.load %arg2[%c0_427, %c22_428, %c0_429, %c0_430] : memref<1x34x17x3xf32, #tpu.memory_space<vmem>>, vector<1x1x17x3xf32>
    %810 = vector.shape_cast %809 : vector<1x1x17x3xf32> to vector<17x3xf32>
    %811 = arith.truncf %810 : vector<17x3xf32> to vector<17x3xbf16>
    %812 = vector.extract_strided_slice %808 {offsets = [0, 0], sizes = [16, 3], strides = [1, 1]} : vector<17x3xbf16> to vector<16x3xbf16>
    %813 = vector.extract_strided_slice %0 {offsets = [0, 0, 0, 0], sizes = [1, 1, 3, 32], strides = [1, 1, 1, 1]} : vector<3x3x3x32xbf16> to vector<1x1x3x32xbf16>
    %814 = vector.shape_cast %813 : vector<1x1x3x32xbf16> to vector<3x32xbf16>
    %cst_431 = arith.constant dense<0.000000e+00> : vector<16x32xf32>
    %815 = tpu.matmul %812, %814, %cst_431 {dimension_numbers = #tpu.dot_dimension_numbers<[1], [0], [0], [1], [0, 0, 1, 1], [], []>} : vector<16x3xbf16>, vector<3x32xbf16>, vector<16x32xf32> -> vector<16x32xf32>
    %816 = arith.addf %805, %815 : vector<16x32xf32>
    %817 = vector.extract_strided_slice %811 {offsets = [0, 0], sizes = [16, 3], strides = [1, 1]} : vector<17x3xbf16> to vector<16x3xbf16>
    %818 = vector.extract_strided_slice %0 {offsets = [0, 1, 0, 0], sizes = [1, 1, 3, 32], strides = [1, 1, 1, 1]} : vector<3x3x3x32xbf16> to vector<1x1x3x32xbf16>
    %819 = vector.shape_cast %818 : vector<1x1x3x32xbf16> to vector<3x32xbf16>
    %cst_432 = arith.constant dense<0.000000e+00> : vector<16x32xf32>
    %820 = tpu.matmul %817, %819, %cst_432 {dimension_numbers = #tpu.dot_dimension_numbers<[1], [0], [0], [1], [0, 0, 1, 1], [], []>} : vector<16x3xbf16>, vector<3x32xbf16>, vector<16x32xf32> -> vector<16x32xf32>
    %821 = arith.addf %816, %820 : vector<16x32xf32>
    %822 = vector.extract_strided_slice %808 {offsets = [1, 0], sizes = [16, 3], strides = [1, 1]} : vector<17x3xbf16> to vector<16x3xbf16>
    %823 = vector.extract_strided_slice %0 {offsets = [0, 2, 0, 0], sizes = [1, 1, 3, 32], strides = [1, 1, 1, 1]} : vector<3x3x3x32xbf16> to vector<1x1x3x32xbf16>
    %824 = vector.shape_cast %823 : vector<1x1x3x32xbf16> to vector<3x32xbf16>
    %cst_433 = arith.constant dense<0.000000e+00> : vector<16x32xf32>
    %825 = tpu.matmul %822, %824, %cst_433 {dimension_numbers = #tpu.dot_dimension_numbers<[1], [0], [0], [1], [0, 0, 1, 1], [], []>} : vector<16x3xbf16>, vector<3x32xbf16>, vector<16x32xf32> -> vector<16x32xf32>
    %826 = arith.addf %821, %825 : vector<16x32xf32>
    %c0_434 = arith.constant 0 : index
    %c23 = arith.constant 23 : index
    %c0_435 = arith.constant 0 : index
    %c0_436 = arith.constant 0 : index
    %827 = vector.load %arg1[%c0_434, %c23, %c0_435, %c0_436] : memref<1x34x17x3xf32, #tpu.memory_space<vmem>>, vector<1x1x17x3xf32>
    %828 = vector.shape_cast %827 : vector<1x1x17x3xf32> to vector<17x3xf32>
    %829 = arith.truncf %828 : vector<17x3xf32> to vector<17x3xbf16>
    %c0_437 = arith.constant 0 : index
    %c23_438 = arith.constant 23 : index
    %c0_439 = arith.constant 0 : index
    %c0_440 = arith.constant 0 : index
    %830 = vector.load %arg2[%c0_437, %c23_438, %c0_439, %c0_440] : memref<1x34x17x3xf32, #tpu.memory_space<vmem>>, vector<1x1x17x3xf32>
    %831 = vector.shape_cast %830 : vector<1x1x17x3xf32> to vector<17x3xf32>
    %832 = arith.truncf %831 : vector<17x3xf32> to vector<17x3xbf16>
    %833 = vector.extract_strided_slice %829 {offsets = [0, 0], sizes = [16, 3], strides = [1, 1]} : vector<17x3xbf16> to vector<16x3xbf16>
    %834 = vector.extract_strided_slice %0 {offsets = [1, 0, 0, 0], sizes = [1, 1, 3, 32], strides = [1, 1, 1, 1]} : vector<3x3x3x32xbf16> to vector<1x1x3x32xbf16>
    %835 = vector.shape_cast %834 : vector<1x1x3x32xbf16> to vector<3x32xbf16>
    %cst_441 = arith.constant dense<0.000000e+00> : vector<16x32xf32>
    %836 = tpu.matmul %833, %835, %cst_441 {dimension_numbers = #tpu.dot_dimension_numbers<[1], [0], [0], [1], [0, 0, 1, 1], [], []>} : vector<16x3xbf16>, vector<3x32xbf16>, vector<16x32xf32> -> vector<16x32xf32>
    %837 = arith.addf %826, %836 : vector<16x32xf32>
    %838 = vector.extract_strided_slice %832 {offsets = [0, 0], sizes = [16, 3], strides = [1, 1]} : vector<17x3xbf16> to vector<16x3xbf16>
    %839 = vector.extract_strided_slice %0 {offsets = [1, 1, 0, 0], sizes = [1, 1, 3, 32], strides = [1, 1, 1, 1]} : vector<3x3x3x32xbf16> to vector<1x1x3x32xbf16>
    %840 = vector.shape_cast %839 : vector<1x1x3x32xbf16> to vector<3x32xbf16>
    %cst_442 = arith.constant dense<0.000000e+00> : vector<16x32xf32>
    %841 = tpu.matmul %838, %840, %cst_442 {dimension_numbers = #tpu.dot_dimension_numbers<[1], [0], [0], [1], [0, 0, 1, 1], [], []>} : vector<16x3xbf16>, vector<3x32xbf16>, vector<16x32xf32> -> vector<16x32xf32>
    %842 = arith.addf %837, %841 : vector<16x32xf32>
    %843 = vector.extract_strided_slice %829 {offsets = [1, 0], sizes = [16, 3], strides = [1, 1]} : vector<17x3xbf16> to vector<16x3xbf16>
    %844 = vector.extract_strided_slice %0 {offsets = [1, 2, 0, 0], sizes = [1, 1, 3, 32], strides = [1, 1, 1, 1]} : vector<3x3x3x32xbf16> to vector<1x1x3x32xbf16>
    %845 = vector.shape_cast %844 : vector<1x1x3x32xbf16> to vector<3x32xbf16>
    %cst_443 = arith.constant dense<0.000000e+00> : vector<16x32xf32>
    %846 = tpu.matmul %843, %845, %cst_443 {dimension_numbers = #tpu.dot_dimension_numbers<[1], [0], [0], [1], [0, 0, 1, 1], [], []>} : vector<16x3xbf16>, vector<3x32xbf16>, vector<16x32xf32> -> vector<16x32xf32>
    %847 = arith.addf %842, %846 : vector<16x32xf32>
    %c0_444 = arith.constant 0 : index
    %c24 = arith.constant 24 : index
    %c0_445 = arith.constant 0 : index
    %c0_446 = arith.constant 0 : index
    %848 = vector.load %arg1[%c0_444, %c24, %c0_445, %c0_446] : memref<1x34x17x3xf32, #tpu.memory_space<vmem>>, vector<1x1x17x3xf32>
    %849 = vector.shape_cast %848 : vector<1x1x17x3xf32> to vector<17x3xf32>
    %850 = arith.truncf %849 : vector<17x3xf32> to vector<17x3xbf16>
    %c0_447 = arith.constant 0 : index
    %c24_448 = arith.constant 24 : index
    %c0_449 = arith.constant 0 : index
    %c0_450 = arith.constant 0 : index
    %851 = vector.load %arg2[%c0_447, %c24_448, %c0_449, %c0_450] : memref<1x34x17x3xf32, #tpu.memory_space<vmem>>, vector<1x1x17x3xf32>
    %852 = vector.shape_cast %851 : vector<1x1x17x3xf32> to vector<17x3xf32>
    %853 = arith.truncf %852 : vector<17x3xf32> to vector<17x3xbf16>
    %854 = vector.extract_strided_slice %850 {offsets = [0, 0], sizes = [16, 3], strides = [1, 1]} : vector<17x3xbf16> to vector<16x3xbf16>
    %855 = vector.extract_strided_slice %0 {offsets = [2, 0, 0, 0], sizes = [1, 1, 3, 32], strides = [1, 1, 1, 1]} : vector<3x3x3x32xbf16> to vector<1x1x3x32xbf16>
    %856 = vector.shape_cast %855 : vector<1x1x3x32xbf16> to vector<3x32xbf16>
    %cst_451 = arith.constant dense<0.000000e+00> : vector<16x32xf32>
    %857 = tpu.matmul %854, %856, %cst_451 {dimension_numbers = #tpu.dot_dimension_numbers<[1], [0], [0], [1], [0, 0, 1, 1], [], []>} : vector<16x3xbf16>, vector<3x32xbf16>, vector<16x32xf32> -> vector<16x32xf32>
    %858 = arith.addf %847, %857 : vector<16x32xf32>
    %859 = vector.extract_strided_slice %853 {offsets = [0, 0], sizes = [16, 3], strides = [1, 1]} : vector<17x3xbf16> to vector<16x3xbf16>
    %860 = vector.extract_strided_slice %0 {offsets = [2, 1, 0, 0], sizes = [1, 1, 3, 32], strides = [1, 1, 1, 1]} : vector<3x3x3x32xbf16> to vector<1x1x3x32xbf16>
    %861 = vector.shape_cast %860 : vector<1x1x3x32xbf16> to vector<3x32xbf16>
    %cst_452 = arith.constant dense<0.000000e+00> : vector<16x32xf32>
    %862 = tpu.matmul %859, %861, %cst_452 {dimension_numbers = #tpu.dot_dimension_numbers<[1], [0], [0], [1], [0, 0, 1, 1], [], []>} : vector<16x3xbf16>, vector<3x32xbf16>, vector<16x32xf32> -> vector<16x32xf32>
    %863 = arith.addf %858, %862 : vector<16x32xf32>
    %864 = vector.extract_strided_slice %850 {offsets = [1, 0], sizes = [16, 3], strides = [1, 1]} : vector<17x3xbf16> to vector<16x3xbf16>
    %865 = vector.extract_strided_slice %0 {offsets = [2, 2, 0, 0], sizes = [1, 1, 3, 32], strides = [1, 1, 1, 1]} : vector<3x3x3x32xbf16> to vector<1x1x3x32xbf16>
    %866 = vector.shape_cast %865 : vector<1x1x3x32xbf16> to vector<3x32xbf16>
    %cst_453 = arith.constant dense<0.000000e+00> : vector<16x32xf32>
    %867 = tpu.matmul %864, %866, %cst_453 {dimension_numbers = #tpu.dot_dimension_numbers<[1], [0], [0], [1], [0, 0, 1, 1], [], []>} : vector<16x3xbf16>, vector<3x32xbf16>, vector<16x32xf32> -> vector<16x32xf32>
    %868 = arith.addf %863, %867 : vector<16x32xf32>
    %869 = vector.broadcast %1 : vector<1x32xf32> to vector<16x32xf32>
    %870 = arith.addf %868, %869 : vector<16x32xf32>
    %cst_454 = arith.constant 0.000000e+00 : f32
    %cst_455 = arith.constant 6.000000e+00 : f32
    %871 = vector.broadcast %cst_454 : f32 to vector<16x32xf32>
    %872 = arith.maximumf %871, %870 : vector<16x32xf32>
    %873 = vector.broadcast %cst_455 : f32 to vector<16x32xf32>
    %874 = arith.minimumf %873, %872 : vector<16x32xf32>
    %c0_456 = arith.constant 0 : index
    %c11_457 = arith.constant 11 : index
    %c0_458 = arith.constant 0 : index
    %c0_459 = arith.constant 0 : index
    %875 = vector.load %arg5[%c0_456, %c11_457, %c0_458, %c0_459] : memref<1x16x16x32xf32, #tpu.memory_space<vmem>>, vector<1x1x16x32xf32>
    %876 = vector.shape_cast %875 : vector<1x1x16x32xf32> to vector<16x32xf32>
    %877 = vector.shape_cast %874 : vector<16x32xf32> to vector<1x1x16x32xf32>
    tpu.vector_store %arg5[%c0_456, %c11_457, %c0_458, %c0_459], %877 {strides = array<i32>} : memref<1x16x16x32xf32, #tpu.memory_space<vmem>>, vector<1x1x16x32xf32>,
    %cst_460 = arith.constant 0.000000e+00 : f32
    %878 = vector.broadcast %cst_460 : f32 to vector<16x32xf32>
    %c0_461 = arith.constant 0 : index
    %c24_462 = arith.constant 24 : index
    %c0_463 = arith.constant 0 : index
    %c0_464 = arith.constant 0 : index
    %879 = vector.load %arg1[%c0_461, %c24_462, %c0_463, %c0_464] : memref<1x34x17x3xf32, #tpu.memory_space<vmem>>, vector<1x1x17x3xf32>
    %880 = vector.shape_cast %879 : vector<1x1x17x3xf32> to vector<17x3xf32>
    %881 = arith.truncf %880 : vector<17x3xf32> to vector<17x3xbf16>
    %c0_465 = arith.constant 0 : index
    %c24_466 = arith.constant 24 : index
    %c0_467 = arith.constant 0 : index
    %c0_468 = arith.constant 0 : index
    %882 = vector.load %arg2[%c0_465, %c24_466, %c0_467, %c0_468] : memref<1x34x17x3xf32, #tpu.memory_space<vmem>>, vector<1x1x17x3xf32>
    %883 = vector.shape_cast %882 : vector<1x1x17x3xf32> to vector<17x3xf32>
    %884 = arith.truncf %883 : vector<17x3xf32> to vector<17x3xbf16>
    %885 = vector.extract_strided_slice %881 {offsets = [0, 0], sizes = [16, 3], strides = [1, 1]} : vector<17x3xbf16> to vector<16x3xbf16>
    %886 = vector.extract_strided_slice %0 {offsets = [0, 0, 0, 0], sizes = [1, 1, 3, 32], strides = [1, 1, 1, 1]} : vector<3x3x3x32xbf16> to vector<1x1x3x32xbf16>
    %887 = vector.shape_cast %886 : vector<1x1x3x32xbf16> to vector<3x32xbf16>
    %cst_469 = arith.constant dense<0.000000e+00> : vector<16x32xf32>
    %888 = tpu.matmul %885, %887, %cst_469 {dimension_numbers = #tpu.dot_dimension_numbers<[1], [0], [0], [1], [0, 0, 1, 1], [], []>} : vector<16x3xbf16>, vector<3x32xbf16>, vector<16x32xf32> -> vector<16x32xf32>
    %889 = arith.addf %878, %888 : vector<16x32xf32>
    %890 = vector.extract_strided_slice %884 {offsets = [0, 0], sizes = [16, 3], strides = [1, 1]} : vector<17x3xbf16> to vector<16x3xbf16>
    %891 = vector.extract_strided_slice %0 {offsets = [0, 1, 0, 0], sizes = [1, 1, 3, 32], strides = [1, 1, 1, 1]} : vector<3x3x3x32xbf16> to vector<1x1x3x32xbf16>
    %892 = vector.shape_cast %891 : vector<1x1x3x32xbf16> to vector<3x32xbf16>
    %cst_470 = arith.constant dense<0.000000e+00> : vector<16x32xf32>
    %893 = tpu.matmul %890, %892, %cst_470 {dimension_numbers = #tpu.dot_dimension_numbers<[1], [0], [0], [1], [0, 0, 1, 1], [], []>} : vector<16x3xbf16>, vector<3x32xbf16>, vector<16x32xf32> -> vector<16x32xf32>
    %894 = arith.addf %889, %893 : vector<16x32xf32>
    %895 = vector.extract_strided_slice %881 {offsets = [1, 0], sizes = [16, 3], strides = [1, 1]} : vector<17x3xbf16> to vector<16x3xbf16>
    %896 = vector.extract_strided_slice %0 {offsets = [0, 2, 0, 0], sizes = [1, 1, 3, 32], strides = [1, 1, 1, 1]} : vector<3x3x3x32xbf16> to vector<1x1x3x32xbf16>
    %897 = vector.shape_cast %896 : vector<1x1x3x32xbf16> to vector<3x32xbf16>
    %cst_471 = arith.constant dense<0.000000e+00> : vector<16x32xf32>
    %898 = tpu.matmul %895, %897, %cst_471 {dimension_numbers = #tpu.dot_dimension_numbers<[1], [0], [0], [1], [0, 0, 1, 1], [], []>} : vector<16x3xbf16>, vector<3x32xbf16>, vector<16x32xf32> -> vector<16x32xf32>
    %899 = arith.addf %894, %898 : vector<16x32xf32>
    %c0_472 = arith.constant 0 : index
    %c25 = arith.constant 25 : index
    %c0_473 = arith.constant 0 : index
    %c0_474 = arith.constant 0 : index
    %900 = vector.load %arg1[%c0_472, %c25, %c0_473, %c0_474] : memref<1x34x17x3xf32, #tpu.memory_space<vmem>>, vector<1x1x17x3xf32>
    %901 = vector.shape_cast %900 : vector<1x1x17x3xf32> to vector<17x3xf32>
    %902 = arith.truncf %901 : vector<17x3xf32> to vector<17x3xbf16>
    %c0_475 = arith.constant 0 : index
    %c25_476 = arith.constant 25 : index
    %c0_477 = arith.constant 0 : index
    %c0_478 = arith.constant 0 : index
    %903 = vector.load %arg2[%c0_475, %c25_476, %c0_477, %c0_478] : memref<1x34x17x3xf32, #tpu.memory_space<vmem>>, vector<1x1x17x3xf32>
    %904 = vector.shape_cast %903 : vector<1x1x17x3xf32> to vector<17x3xf32>
    %905 = arith.truncf %904 : vector<17x3xf32> to vector<17x3xbf16>
    %906 = vector.extract_strided_slice %902 {offsets = [0, 0], sizes = [16, 3], strides = [1, 1]} : vector<17x3xbf16> to vector<16x3xbf16>
    %907 = vector.extract_strided_slice %0 {offsets = [1, 0, 0, 0], sizes = [1, 1, 3, 32], strides = [1, 1, 1, 1]} : vector<3x3x3x32xbf16> to vector<1x1x3x32xbf16>
    %908 = vector.shape_cast %907 : vector<1x1x3x32xbf16> to vector<3x32xbf16>
    %cst_479 = arith.constant dense<0.000000e+00> : vector<16x32xf32>
    %909 = tpu.matmul %906, %908, %cst_479 {dimension_numbers = #tpu.dot_dimension_numbers<[1], [0], [0], [1], [0, 0, 1, 1], [], []>} : vector<16x3xbf16>, vector<3x32xbf16>, vector<16x32xf32> -> vector<16x32xf32>
    %910 = arith.addf %899, %909 : vector<16x32xf32>
    %911 = vector.extract_strided_slice %905 {offsets = [0, 0], sizes = [16, 3], strides = [1, 1]} : vector<17x3xbf16> to vector<16x3xbf16>
    %912 = vector.extract_strided_slice %0 {offsets = [1, 1, 0, 0], sizes = [1, 1, 3, 32], strides = [1, 1, 1, 1]} : vector<3x3x3x32xbf16> to vector<1x1x3x32xbf16>
    %913 = vector.shape_cast %912 : vector<1x1x3x32xbf16> to vector<3x32xbf16>
    %cst_480 = arith.constant dense<0.000000e+00> : vector<16x32xf32>
    %914 = tpu.matmul %911, %913, %cst_480 {dimension_numbers = #tpu.dot_dimension_numbers<[1], [0], [0], [1], [0, 0, 1, 1], [], []>} : vector<16x3xbf16>, vector<3x32xbf16>, vector<16x32xf32> -> vector<16x32xf32>
    %915 = arith.addf %910, %914 : vector<16x32xf32>
    %916 = vector.extract_strided_slice %902 {offsets = [1, 0], sizes = [16, 3], strides = [1, 1]} : vector<17x3xbf16> to vector<16x3xbf16>
    %917 = vector.extract_strided_slice %0 {offsets = [1, 2, 0, 0], sizes = [1, 1, 3, 32], strides = [1, 1, 1, 1]} : vector<3x3x3x32xbf16> to vector<1x1x3x32xbf16>
    %918 = vector.shape_cast %917 : vector<1x1x3x32xbf16> to vector<3x32xbf16>
    %cst_481 = arith.constant dense<0.000000e+00> : vector<16x32xf32>
    %919 = tpu.matmul %916, %918, %cst_481 {dimension_numbers = #tpu.dot_dimension_numbers<[1], [0], [0], [1], [0, 0, 1, 1], [], []>} : vector<16x3xbf16>, vector<3x32xbf16>, vector<16x32xf32> -> vector<16x32xf32>
    %920 = arith.addf %915, %919 : vector<16x32xf32>
    %c0_482 = arith.constant 0 : index
    %c26 = arith.constant 26 : index
    %c0_483 = arith.constant 0 : index
    %c0_484 = arith.constant 0 : index
    %921 = vector.load %arg1[%c0_482, %c26, %c0_483, %c0_484] : memref<1x34x17x3xf32, #tpu.memory_space<vmem>>, vector<1x1x17x3xf32>
    %922 = vector.shape_cast %921 : vector<1x1x17x3xf32> to vector<17x3xf32>
    %923 = arith.truncf %922 : vector<17x3xf32> to vector<17x3xbf16>
    %c0_485 = arith.constant 0 : index
    %c26_486 = arith.constant 26 : index
    %c0_487 = arith.constant 0 : index
    %c0_488 = arith.constant 0 : index
    %924 = vector.load %arg2[%c0_485, %c26_486, %c0_487, %c0_488] : memref<1x34x17x3xf32, #tpu.memory_space<vmem>>, vector<1x1x17x3xf32>
    %925 = vector.shape_cast %924 : vector<1x1x17x3xf32> to vector<17x3xf32>
    %926 = arith.truncf %925 : vector<17x3xf32> to vector<17x3xbf16>
    %927 = vector.extract_strided_slice %923 {offsets = [0, 0], sizes = [16, 3], strides = [1, 1]} : vector<17x3xbf16> to vector<16x3xbf16>
    %928 = vector.extract_strided_slice %0 {offsets = [2, 0, 0, 0], sizes = [1, 1, 3, 32], strides = [1, 1, 1, 1]} : vector<3x3x3x32xbf16> to vector<1x1x3x32xbf16>
    %929 = vector.shape_cast %928 : vector<1x1x3x32xbf16> to vector<3x32xbf16>
    %cst_489 = arith.constant dense<0.000000e+00> : vector<16x32xf32>
    %930 = tpu.matmul %927, %929, %cst_489 {dimension_numbers = #tpu.dot_dimension_numbers<[1], [0], [0], [1], [0, 0, 1, 1], [], []>} : vector<16x3xbf16>, vector<3x32xbf16>, vector<16x32xf32> -> vector<16x32xf32>
    %931 = arith.addf %920, %930 : vector<16x32xf32>
    %932 = vector.extract_strided_slice %926 {offsets = [0, 0], sizes = [16, 3], strides = [1, 1]} : vector<17x3xbf16> to vector<16x3xbf16>
    %933 = vector.extract_strided_slice %0 {offsets = [2, 1, 0, 0], sizes = [1, 1, 3, 32], strides = [1, 1, 1, 1]} : vector<3x3x3x32xbf16> to vector<1x1x3x32xbf16>
    %934 = vector.shape_cast %933 : vector<1x1x3x32xbf16> to vector<3x32xbf16>
    %cst_490 = arith.constant dense<0.000000e+00> : vector<16x32xf32>
    %935 = tpu.matmul %932, %934, %cst_490 {dimension_numbers = #tpu.dot_dimension_numbers<[1], [0], [0], [1], [0, 0, 1, 1], [], []>} : vector<16x3xbf16>, vector<3x32xbf16>, vector<16x32xf32> -> vector<16x32xf32>
    %936 = arith.addf %931, %935 : vector<16x32xf32>
    %937 = vector.extract_strided_slice %923 {offsets = [1, 0], sizes = [16, 3], strides = [1, 1]} : vector<17x3xbf16> to vector<16x3xbf16>
    %938 = vector.extract_strided_slice %0 {offsets = [2, 2, 0, 0], sizes = [1, 1, 3, 32], strides = [1, 1, 1, 1]} : vector<3x3x3x32xbf16> to vector<1x1x3x32xbf16>
    %939 = vector.shape_cast %938 : vector<1x1x3x32xbf16> to vector<3x32xbf16>
    %cst_491 = arith.constant dense<0.000000e+00> : vector<16x32xf32>
    %940 = tpu.matmul %937, %939, %cst_491 {dimension_numbers = #tpu.dot_dimension_numbers<[1], [0], [0], [1], [0, 0, 1, 1], [], []>} : vector<16x3xbf16>, vector<3x32xbf16>, vector<16x32xf32> -> vector<16x32xf32>
    %941 = arith.addf %936, %940 : vector<16x32xf32>
    %942 = vector.broadcast %1 : vector<1x32xf32> to vector<16x32xf32>
    %943 = arith.addf %941, %942 : vector<16x32xf32>
    %cst_492 = arith.constant 0.000000e+00 : f32
    %cst_493 = arith.constant 6.000000e+00 : f32
    %944 = vector.broadcast %cst_492 : f32 to vector<16x32xf32>
    %945 = arith.maximumf %944, %943 : vector<16x32xf32>
    %946 = vector.broadcast %cst_493 : f32 to vector<16x32xf32>
    %947 = arith.minimumf %946, %945 : vector<16x32xf32>
    %c0_494 = arith.constant 0 : index
    %c12_495 = arith.constant 12 : index
    %c0_496 = arith.constant 0 : index
    %c0_497 = arith.constant 0 : index
    %948 = vector.load %arg5[%c0_494, %c12_495, %c0_496, %c0_497] : memref<1x16x16x32xf32, #tpu.memory_space<vmem>>, vector<1x1x16x32xf32>
    %949 = vector.shape_cast %948 : vector<1x1x16x32xf32> to vector<16x32xf32>
    %950 = vector.shape_cast %947 : vector<16x32xf32> to vector<1x1x16x32xf32>
    tpu.vector_store %arg5[%c0_494, %c12_495, %c0_496, %c0_497], %950 {strides = array<i32>} : memref<1x16x16x32xf32, #tpu.memory_space<vmem>>, vector<1x1x16x32xf32>,
    %cst_498 = arith.constant 0.000000e+00 : f32
    %951 = vector.broadcast %cst_498 : f32 to vector<16x32xf32>
    %c0_499 = arith.constant 0 : index
    %c26_500 = arith.constant 26 : index
    %c0_501 = arith.constant 0 : index
    %c0_502 = arith.constant 0 : index
    %952 = vector.load %arg1[%c0_499, %c26_500, %c0_501, %c0_502] : memref<1x34x17x3xf32, #tpu.memory_space<vmem>>, vector<1x1x17x3xf32>
    %953 = vector.shape_cast %952 : vector<1x1x17x3xf32> to vector<17x3xf32>
    %954 = arith.truncf %953 : vector<17x3xf32> to vector<17x3xbf16>
    %c0_503 = arith.constant 0 : index
    %c26_504 = arith.constant 26 : index
    %c0_505 = arith.constant 0 : index
    %c0_506 = arith.constant 0 : index
    %955 = vector.load %arg2[%c0_503, %c26_504, %c0_505, %c0_506] : memref<1x34x17x3xf32, #tpu.memory_space<vmem>>, vector<1x1x17x3xf32>
    %956 = vector.shape_cast %955 : vector<1x1x17x3xf32> to vector<17x3xf32>
    %957 = arith.truncf %956 : vector<17x3xf32> to vector<17x3xbf16>
    %958 = vector.extract_strided_slice %954 {offsets = [0, 0], sizes = [16, 3], strides = [1, 1]} : vector<17x3xbf16> to vector<16x3xbf16>
    %959 = vector.extract_strided_slice %0 {offsets = [0, 0, 0, 0], sizes = [1, 1, 3, 32], strides = [1, 1, 1, 1]} : vector<3x3x3x32xbf16> to vector<1x1x3x32xbf16>
    %960 = vector.shape_cast %959 : vector<1x1x3x32xbf16> to vector<3x32xbf16>
    %cst_507 = arith.constant dense<0.000000e+00> : vector<16x32xf32>
    %961 = tpu.matmul %958, %960, %cst_507 {dimension_numbers = #tpu.dot_dimension_numbers<[1], [0], [0], [1], [0, 0, 1, 1], [], []>} : vector<16x3xbf16>, vector<3x32xbf16>, vector<16x32xf32> -> vector<16x32xf32>
    %962 = arith.addf %951, %961 : vector<16x32xf32>
    %963 = vector.extract_strided_slice %957 {offsets = [0, 0], sizes = [16, 3], strides = [1, 1]} : vector<17x3xbf16> to vector<16x3xbf16>
    %964 = vector.extract_strided_slice %0 {offsets = [0, 1, 0, 0], sizes = [1, 1, 3, 32], strides = [1, 1, 1, 1]} : vector<3x3x3x32xbf16> to vector<1x1x3x32xbf16>
    %965 = vector.shape_cast %964 : vector<1x1x3x32xbf16> to vector<3x32xbf16>
    %cst_508 = arith.constant dense<0.000000e+00> : vector<16x32xf32>
    %966 = tpu.matmul %963, %965, %cst_508 {dimension_numbers = #tpu.dot_dimension_numbers<[1], [0], [0], [1], [0, 0, 1, 1], [], []>} : vector<16x3xbf16>, vector<3x32xbf16>, vector<16x32xf32> -> vector<16x32xf32>
    %967 = arith.addf %962, %966 : vector<16x32xf32>
    %968 = vector.extract_strided_slice %954 {offsets = [1, 0], sizes = [16, 3], strides = [1, 1]} : vector<17x3xbf16> to vector<16x3xbf16>
    %969 = vector.extract_strided_slice %0 {offsets = [0, 2, 0, 0], sizes = [1, 1, 3, 32], strides = [1, 1, 1, 1]} : vector<3x3x3x32xbf16> to vector<1x1x3x32xbf16>
    %970 = vector.shape_cast %969 : vector<1x1x3x32xbf16> to vector<3x32xbf16>
    %cst_509 = arith.constant dense<0.000000e+00> : vector<16x32xf32>
    %971 = tpu.matmul %968, %970, %cst_509 {dimension_numbers = #tpu.dot_dimension_numbers<[1], [0], [0], [1], [0, 0, 1, 1], [], []>} : vector<16x3xbf16>, vector<3x32xbf16>, vector<16x32xf32> -> vector<16x32xf32>
    %972 = arith.addf %967, %971 : vector<16x32xf32>
    %c0_510 = arith.constant 0 : index
    %c27 = arith.constant 27 : index
    %c0_511 = arith.constant 0 : index
    %c0_512 = arith.constant 0 : index
    %973 = vector.load %arg1[%c0_510, %c27, %c0_511, %c0_512] : memref<1x34x17x3xf32, #tpu.memory_space<vmem>>, vector<1x1x17x3xf32>
    %974 = vector.shape_cast %973 : vector<1x1x17x3xf32> to vector<17x3xf32>
    %975 = arith.truncf %974 : vector<17x3xf32> to vector<17x3xbf16>
    %c0_513 = arith.constant 0 : index
    %c27_514 = arith.constant 27 : index
    %c0_515 = arith.constant 0 : index
    %c0_516 = arith.constant 0 : index
    %976 = vector.load %arg2[%c0_513, %c27_514, %c0_515, %c0_516] : memref<1x34x17x3xf32, #tpu.memory_space<vmem>>, vector<1x1x17x3xf32>
    %977 = vector.shape_cast %976 : vector<1x1x17x3xf32> to vector<17x3xf32>
    %978 = arith.truncf %977 : vector<17x3xf32> to vector<17x3xbf16>
    %979 = vector.extract_strided_slice %975 {offsets = [0, 0], sizes = [16, 3], strides = [1, 1]} : vector<17x3xbf16> to vector<16x3xbf16>
    %980 = vector.extract_strided_slice %0 {offsets = [1, 0, 0, 0], sizes = [1, 1, 3, 32], strides = [1, 1, 1, 1]} : vector<3x3x3x32xbf16> to vector<1x1x3x32xbf16>
    %981 = vector.shape_cast %980 : vector<1x1x3x32xbf16> to vector<3x32xbf16>
    %cst_517 = arith.constant dense<0.000000e+00> : vector<16x32xf32>
    %982 = tpu.matmul %979, %981, %cst_517 {dimension_numbers = #tpu.dot_dimension_numbers<[1], [0], [0], [1], [0, 0, 1, 1], [], []>} : vector<16x3xbf16>, vector<3x32xbf16>, vector<16x32xf32> -> vector<16x32xf32>
    %983 = arith.addf %972, %982 : vector<16x32xf32>
    %984 = vector.extract_strided_slice %978 {offsets = [0, 0], sizes = [16, 3], strides = [1, 1]} : vector<17x3xbf16> to vector<16x3xbf16>
    %985 = vector.extract_strided_slice %0 {offsets = [1, 1, 0, 0], sizes = [1, 1, 3, 32], strides = [1, 1, 1, 1]} : vector<3x3x3x32xbf16> to vector<1x1x3x32xbf16>
    %986 = vector.shape_cast %985 : vector<1x1x3x32xbf16> to vector<3x32xbf16>
    %cst_518 = arith.constant dense<0.000000e+00> : vector<16x32xf32>
    %987 = tpu.matmul %984, %986, %cst_518 {dimension_numbers = #tpu.dot_dimension_numbers<[1], [0], [0], [1], [0, 0, 1, 1], [], []>} : vector<16x3xbf16>, vector<3x32xbf16>, vector<16x32xf32> -> vector<16x32xf32>
    %988 = arith.addf %983, %987 : vector<16x32xf32>
    %989 = vector.extract_strided_slice %975 {offsets = [1, 0], sizes = [16, 3], strides = [1, 1]} : vector<17x3xbf16> to vector<16x3xbf16>
    %990 = vector.extract_strided_slice %0 {offsets = [1, 2, 0, 0], sizes = [1, 1, 3, 32], strides = [1, 1, 1, 1]} : vector<3x3x3x32xbf16> to vector<1x1x3x32xbf16>
    %991 = vector.shape_cast %990 : vector<1x1x3x32xbf16> to vector<3x32xbf16>
    %cst_519 = arith.constant dense<0.000000e+00> : vector<16x32xf32>
    %992 = tpu.matmul %989, %991, %cst_519 {dimension_numbers = #tpu.dot_dimension_numbers<[1], [0], [0], [1], [0, 0, 1, 1], [], []>} : vector<16x3xbf16>, vector<3x32xbf16>, vector<16x32xf32> -> vector<16x32xf32>
    %993 = arith.addf %988, %992 : vector<16x32xf32>
    %c0_520 = arith.constant 0 : index
    %c28 = arith.constant 28 : index
    %c0_521 = arith.constant 0 : index
    %c0_522 = arith.constant 0 : index
    %994 = vector.load %arg1[%c0_520, %c28, %c0_521, %c0_522] : memref<1x34x17x3xf32, #tpu.memory_space<vmem>>, vector<1x1x17x3xf32>
    %995 = vector.shape_cast %994 : vector<1x1x17x3xf32> to vector<17x3xf32>
    %996 = arith.truncf %995 : vector<17x3xf32> to vector<17x3xbf16>
    %c0_523 = arith.constant 0 : index
    %c28_524 = arith.constant 28 : index
    %c0_525 = arith.constant 0 : index
    %c0_526 = arith.constant 0 : index
    %997 = vector.load %arg2[%c0_523, %c28_524, %c0_525, %c0_526] : memref<1x34x17x3xf32, #tpu.memory_space<vmem>>, vector<1x1x17x3xf32>
    %998 = vector.shape_cast %997 : vector<1x1x17x3xf32> to vector<17x3xf32>
    %999 = arith.truncf %998 : vector<17x3xf32> to vector<17x3xbf16>
    %1000 = vector.extract_strided_slice %996 {offsets = [0, 0], sizes = [16, 3], strides = [1, 1]} : vector<17x3xbf16> to vector<16x3xbf16>
    %1001 = vector.extract_strided_slice %0 {offsets = [2, 0, 0, 0], sizes = [1, 1, 3, 32], strides = [1, 1, 1, 1]} : vector<3x3x3x32xbf16> to vector<1x1x3x32xbf16>
    %1002 = vector.shape_cast %1001 : vector<1x1x3x32xbf16> to vector<3x32xbf16>
    %cst_527 = arith.constant dense<0.000000e+00> : vector<16x32xf32>
    %1003 = tpu.matmul %1000, %1002, %cst_527 {dimension_numbers = #tpu.dot_dimension_numbers<[1], [0], [0], [1], [0, 0, 1, 1], [], []>} : vector<16x3xbf16>, vector<3x32xbf16>, vector<16x32xf32> -> vector<16x32xf32>
    %1004 = arith.addf %993, %1003 : vector<16x32xf32>
    %1005 = vector.extract_strided_slice %999 {offsets = [0, 0], sizes = [16, 3], strides = [1, 1]} : vector<17x3xbf16> to vector<16x3xbf16>
    %1006 = vector.extract_strided_slice %0 {offsets = [2, 1, 0, 0], sizes = [1, 1, 3, 32], strides = [1, 1, 1, 1]} : vector<3x3x3x32xbf16> to vector<1x1x3x32xbf16>
    %1007 = vector.shape_cast %1006 : vector<1x1x3x32xbf16> to vector<3x32xbf16>
    %cst_528 = arith.constant dense<0.000000e+00> : vector<16x32xf32>
    %1008 = tpu.matmul %1005, %1007, %cst_528 {dimension_numbers = #tpu.dot_dimension_numbers<[1], [0], [0], [1], [0, 0, 1, 1], [], []>} : vector<16x3xbf16>, vector<3x32xbf16>, vector<16x32xf32> -> vector<16x32xf32>
    %1009 = arith.addf %1004, %1008 : vector<16x32xf32>
    %1010 = vector.extract_strided_slice %996 {offsets = [1, 0], sizes = [16, 3], strides = [1, 1]} : vector<17x3xbf16> to vector<16x3xbf16>
    %1011 = vector.extract_strided_slice %0 {offsets = [2, 2, 0, 0], sizes = [1, 1, 3, 32], strides = [1, 1, 1, 1]} : vector<3x3x3x32xbf16> to vector<1x1x3x32xbf16>
    %1012 = vector.shape_cast %1011 : vector<1x1x3x32xbf16> to vector<3x32xbf16>
    %cst_529 = arith.constant dense<0.000000e+00> : vector<16x32xf32>
    %1013 = tpu.matmul %1010, %1012, %cst_529 {dimension_numbers = #tpu.dot_dimension_numbers<[1], [0], [0], [1], [0, 0, 1, 1], [], []>} : vector<16x3xbf16>, vector<3x32xbf16>, vector<16x32xf32> -> vector<16x32xf32>
    %1014 = arith.addf %1009, %1013 : vector<16x32xf32>
    %1015 = vector.broadcast %1 : vector<1x32xf32> to vector<16x32xf32>
    %1016 = arith.addf %1014, %1015 : vector<16x32xf32>
    %cst_530 = arith.constant 0.000000e+00 : f32
    %cst_531 = arith.constant 6.000000e+00 : f32
    %1017 = vector.broadcast %cst_530 : f32 to vector<16x32xf32>
    %1018 = arith.maximumf %1017, %1016 : vector<16x32xf32>
    %1019 = vector.broadcast %cst_531 : f32 to vector<16x32xf32>
    %1020 = arith.minimumf %1019, %1018 : vector<16x32xf32>
    %c0_532 = arith.constant 0 : index
    %c13_533 = arith.constant 13 : index
    %c0_534 = arith.constant 0 : index
    %c0_535 = arith.constant 0 : index
    %1021 = vector.load %arg5[%c0_532, %c13_533, %c0_534, %c0_535] : memref<1x16x16x32xf32, #tpu.memory_space<vmem>>, vector<1x1x16x32xf32>
    %1022 = vector.shape_cast %1021 : vector<1x1x16x32xf32> to vector<16x32xf32>
    %1023 = vector.shape_cast %1020 : vector<16x32xf32> to vector<1x1x16x32xf32>
    tpu.vector_store %arg5[%c0_532, %c13_533, %c0_534, %c0_535], %1023 {strides = array<i32>} : memref<1x16x16x32xf32, #tpu.memory_space<vmem>>, vector<1x1x16x32xf32>,
    %cst_536 = arith.constant 0.000000e+00 : f32
    %1024 = vector.broadcast %cst_536 : f32 to vector<16x32xf32>
    %c0_537 = arith.constant 0 : index
    %c28_538 = arith.constant 28 : index
    %c0_539 = arith.constant 0 : index
    %c0_540 = arith.constant 0 : index
    %1025 = vector.load %arg1[%c0_537, %c28_538, %c0_539, %c0_540] : memref<1x34x17x3xf32, #tpu.memory_space<vmem>>, vector<1x1x17x3xf32>
    %1026 = vector.shape_cast %1025 : vector<1x1x17x3xf32> to vector<17x3xf32>
    %1027 = arith.truncf %1026 : vector<17x3xf32> to vector<17x3xbf16>
    %c0_541 = arith.constant 0 : index
    %c28_542 = arith.constant 28 : index
    %c0_543 = arith.constant 0 : index
    %c0_544 = arith.constant 0 : index
    %1028 = vector.load %arg2[%c0_541, %c28_542, %c0_543, %c0_544] : memref<1x34x17x3xf32, #tpu.memory_space<vmem>>, vector<1x1x17x3xf32>
    %1029 = vector.shape_cast %1028 : vector<1x1x17x3xf32> to vector<17x3xf32>
    %1030 = arith.truncf %1029 : vector<17x3xf32> to vector<17x3xbf16>
    %1031 = vector.extract_strided_slice %1027 {offsets = [0, 0], sizes = [16, 3], strides = [1, 1]} : vector<17x3xbf16> to vector<16x3xbf16>
    %1032 = vector.extract_strided_slice %0 {offsets = [0, 0, 0, 0], sizes = [1, 1, 3, 32], strides = [1, 1, 1, 1]} : vector<3x3x3x32xbf16> to vector<1x1x3x32xbf16>
    %1033 = vector.shape_cast %1032 : vector<1x1x3x32xbf16> to vector<3x32xbf16>
    %cst_545 = arith.constant dense<0.000000e+00> : vector<16x32xf32>
    %1034 = tpu.matmul %1031, %1033, %cst_545 {dimension_numbers = #tpu.dot_dimension_numbers<[1], [0], [0], [1], [0, 0, 1, 1], [], []>} : vector<16x3xbf16>, vector<3x32xbf16>, vector<16x32xf32> -> vector<16x32xf32>
    %1035 = arith.addf %1024, %1034 : vector<16x32xf32>
    %1036 = vector.extract_strided_slice %1030 {offsets = [0, 0], sizes = [16, 3], strides = [1, 1]} : vector<17x3xbf16> to vector<16x3xbf16>
    %1037 = vector.extract_strided_slice %0 {offsets = [0, 1, 0, 0], sizes = [1, 1, 3, 32], strides = [1, 1, 1, 1]} : vector<3x3x3x32xbf16> to vector<1x1x3x32xbf16>
    %1038 = vector.shape_cast %1037 : vector<1x1x3x32xbf16> to vector<3x32xbf16>
    %cst_546 = arith.constant dense<0.000000e+00> : vector<16x32xf32>
    %1039 = tpu.matmul %1036, %1038, %cst_546 {dimension_numbers = #tpu.dot_dimension_numbers<[1], [0], [0], [1], [0, 0, 1, 1], [], []>} : vector<16x3xbf16>, vector<3x32xbf16>, vector<16x32xf32> -> vector<16x32xf32>
    %1040 = arith.addf %1035, %1039 : vector<16x32xf32>
    %1041 = vector.extract_strided_slice %1027 {offsets = [1, 0], sizes = [16, 3], strides = [1, 1]} : vector<17x3xbf16> to vector<16x3xbf16>
    %1042 = vector.extract_strided_slice %0 {offsets = [0, 2, 0, 0], sizes = [1, 1, 3, 32], strides = [1, 1, 1, 1]} : vector<3x3x3x32xbf16> to vector<1x1x3x32xbf16>
    %1043 = vector.shape_cast %1042 : vector<1x1x3x32xbf16> to vector<3x32xbf16>
    %cst_547 = arith.constant dense<0.000000e+00> : vector<16x32xf32>
    %1044 = tpu.matmul %1041, %1043, %cst_547 {dimension_numbers = #tpu.dot_dimension_numbers<[1], [0], [0], [1], [0, 0, 1, 1], [], []>} : vector<16x3xbf16>, vector<3x32xbf16>, vector<16x32xf32> -> vector<16x32xf32>
    %1045 = arith.addf %1040, %1044 : vector<16x32xf32>
    %c0_548 = arith.constant 0 : index
    %c29 = arith.constant 29 : index
    %c0_549 = arith.constant 0 : index
    %c0_550 = arith.constant 0 : index
    %1046 = vector.load %arg1[%c0_548, %c29, %c0_549, %c0_550] : memref<1x34x17x3xf32, #tpu.memory_space<vmem>>, vector<1x1x17x3xf32>
    %1047 = vector.shape_cast %1046 : vector<1x1x17x3xf32> to vector<17x3xf32>
    %1048 = arith.truncf %1047 : vector<17x3xf32> to vector<17x3xbf16>
    %c0_551 = arith.constant 0 : index
    %c29_552 = arith.constant 29 : index
    %c0_553 = arith.constant 0 : index
    %c0_554 = arith.constant 0 : index
    %1049 = vector.load %arg2[%c0_551, %c29_552, %c0_553, %c0_554] : memref<1x34x17x3xf32, #tpu.memory_space<vmem>>, vector<1x1x17x3xf32>
    %1050 = vector.shape_cast %1049 : vector<1x1x17x3xf32> to vector<17x3xf32>
    %1051 = arith.truncf %1050 : vector<17x3xf32> to vector<17x3xbf16>
    %1052 = vector.extract_strided_slice %1048 {offsets = [0, 0], sizes = [16, 3], strides = [1, 1]} : vector<17x3xbf16> to vector<16x3xbf16>
    %1053 = vector.extract_strided_slice %0 {offsets = [1, 0, 0, 0], sizes = [1, 1, 3, 32], strides = [1, 1, 1, 1]} : vector<3x3x3x32xbf16> to vector<1x1x3x32xbf16>
    %1054 = vector.shape_cast %1053 : vector<1x1x3x32xbf16> to vector<3x32xbf16>
    %cst_555 = arith.constant dense<0.000000e+00> : vector<16x32xf32>
    %1055 = tpu.matmul %1052, %1054, %cst_555 {dimension_numbers = #tpu.dot_dimension_numbers<[1], [0], [0], [1], [0, 0, 1, 1], [], []>} : vector<16x3xbf16>, vector<3x32xbf16>, vector<16x32xf32> -> vector<16x32xf32>
    %1056 = arith.addf %1045, %1055 : vector<16x32xf32>
    %1057 = vector.extract_strided_slice %1051 {offsets = [0, 0], sizes = [16, 3], strides = [1, 1]} : vector<17x3xbf16> to vector<16x3xbf16>
    %1058 = vector.extract_strided_slice %0 {offsets = [1, 1, 0, 0], sizes = [1, 1, 3, 32], strides = [1, 1, 1, 1]} : vector<3x3x3x32xbf16> to vector<1x1x3x32xbf16>
    %1059 = vector.shape_cast %1058 : vector<1x1x3x32xbf16> to vector<3x32xbf16>
    %cst_556 = arith.constant dense<0.000000e+00> : vector<16x32xf32>
    %1060 = tpu.matmul %1057, %1059, %cst_556 {dimension_numbers = #tpu.dot_dimension_numbers<[1], [0], [0], [1], [0, 0, 1, 1], [], []>} : vector<16x3xbf16>, vector<3x32xbf16>, vector<16x32xf32> -> vector<16x32xf32>
    %1061 = arith.addf %1056, %1060 : vector<16x32xf32>
    %1062 = vector.extract_strided_slice %1048 {offsets = [1, 0], sizes = [16, 3], strides = [1, 1]} : vector<17x3xbf16> to vector<16x3xbf16>
    %1063 = vector.extract_strided_slice %0 {offsets = [1, 2, 0, 0], sizes = [1, 1, 3, 32], strides = [1, 1, 1, 1]} : vector<3x3x3x32xbf16> to vector<1x1x3x32xbf16>
    %1064 = vector.shape_cast %1063 : vector<1x1x3x32xbf16> to vector<3x32xbf16>
    %cst_557 = arith.constant dense<0.000000e+00> : vector<16x32xf32>
    %1065 = tpu.matmul %1062, %1064, %cst_557 {dimension_numbers = #tpu.dot_dimension_numbers<[1], [0], [0], [1], [0, 0, 1, 1], [], []>} : vector<16x3xbf16>, vector<3x32xbf16>, vector<16x32xf32> -> vector<16x32xf32>
    %1066 = arith.addf %1061, %1065 : vector<16x32xf32>
    %c0_558 = arith.constant 0 : index
    %c30 = arith.constant 30 : index
    %c0_559 = arith.constant 0 : index
    %c0_560 = arith.constant 0 : index
    %1067 = vector.load %arg1[%c0_558, %c30, %c0_559, %c0_560] : memref<1x34x17x3xf32, #tpu.memory_space<vmem>>, vector<1x1x17x3xf32>
    %1068 = vector.shape_cast %1067 : vector<1x1x17x3xf32> to vector<17x3xf32>
    %1069 = arith.truncf %1068 : vector<17x3xf32> to vector<17x3xbf16>
    %c0_561 = arith.constant 0 : index
    %c30_562 = arith.constant 30 : index
    %c0_563 = arith.constant 0 : index
    %c0_564 = arith.constant 0 : index
    %1070 = vector.load %arg2[%c0_561, %c30_562, %c0_563, %c0_564] : memref<1x34x17x3xf32, #tpu.memory_space<vmem>>, vector<1x1x17x3xf32>
    %1071 = vector.shape_cast %1070 : vector<1x1x17x3xf32> to vector<17x3xf32>
    %1072 = arith.truncf %1071 : vector<17x3xf32> to vector<17x3xbf16>
    %1073 = vector.extract_strided_slice %1069 {offsets = [0, 0], sizes = [16, 3], strides = [1, 1]} : vector<17x3xbf16> to vector<16x3xbf16>
    %1074 = vector.extract_strided_slice %0 {offsets = [2, 0, 0, 0], sizes = [1, 1, 3, 32], strides = [1, 1, 1, 1]} : vector<3x3x3x32xbf16> to vector<1x1x3x32xbf16>
    %1075 = vector.shape_cast %1074 : vector<1x1x3x32xbf16> to vector<3x32xbf16>
    %cst_565 = arith.constant dense<0.000000e+00> : vector<16x32xf32>
    %1076 = tpu.matmul %1073, %1075, %cst_565 {dimension_numbers = #tpu.dot_dimension_numbers<[1], [0], [0], [1], [0, 0, 1, 1], [], []>} : vector<16x3xbf16>, vector<3x32xbf16>, vector<16x32xf32> -> vector<16x32xf32>
    %1077 = arith.addf %1066, %1076 : vector<16x32xf32>
    %1078 = vector.extract_strided_slice %1072 {offsets = [0, 0], sizes = [16, 3], strides = [1, 1]} : vector<17x3xbf16> to vector<16x3xbf16>
    %1079 = vector.extract_strided_slice %0 {offsets = [2, 1, 0, 0], sizes = [1, 1, 3, 32], strides = [1, 1, 1, 1]} : vector<3x3x3x32xbf16> to vector<1x1x3x32xbf16>
    %1080 = vector.shape_cast %1079 : vector<1x1x3x32xbf16> to vector<3x32xbf16>
    %cst_566 = arith.constant dense<0.000000e+00> : vector<16x32xf32>
    %1081 = tpu.matmul %1078, %1080, %cst_566 {dimension_numbers = #tpu.dot_dimension_numbers<[1], [0], [0], [1], [0, 0, 1, 1], [], []>} : vector<16x3xbf16>, vector<3x32xbf16>, vector<16x32xf32> -> vector<16x32xf32>
    %1082 = arith.addf %1077, %1081 : vector<16x32xf32>
    %1083 = vector.extract_strided_slice %1069 {offsets = [1, 0], sizes = [16, 3], strides = [1, 1]} : vector<17x3xbf16> to vector<16x3xbf16>
    %1084 = vector.extract_strided_slice %0 {offsets = [2, 2, 0, 0], sizes = [1, 1, 3, 32], strides = [1, 1, 1, 1]} : vector<3x3x3x32xbf16> to vector<1x1x3x32xbf16>
    %1085 = vector.shape_cast %1084 : vector<1x1x3x32xbf16> to vector<3x32xbf16>
    %cst_567 = arith.constant dense<0.000000e+00> : vector<16x32xf32>
    %1086 = tpu.matmul %1083, %1085, %cst_567 {dimension_numbers = #tpu.dot_dimension_numbers<[1], [0], [0], [1], [0, 0, 1, 1], [], []>} : vector<16x3xbf16>, vector<3x32xbf16>, vector<16x32xf32> -> vector<16x32xf32>
    %1087 = arith.addf %1082, %1086 : vector<16x32xf32>
    %1088 = vector.broadcast %1 : vector<1x32xf32> to vector<16x32xf32>
    %1089 = arith.addf %1087, %1088 : vector<16x32xf32>
    %cst_568 = arith.constant 0.000000e+00 : f32
    %cst_569 = arith.constant 6.000000e+00 : f32
    %1090 = vector.broadcast %cst_568 : f32 to vector<16x32xf32>
    %1091 = arith.maximumf %1090, %1089 : vector<16x32xf32>
    %1092 = vector.broadcast %cst_569 : f32 to vector<16x32xf32>
    %1093 = arith.minimumf %1092, %1091 : vector<16x32xf32>
    %c0_570 = arith.constant 0 : index
    %c14_571 = arith.constant 14 : index
    %c0_572 = arith.constant 0 : index
    %c0_573 = arith.constant 0 : index
    %1094 = vector.load %arg5[%c0_570, %c14_571, %c0_572, %c0_573] : memref<1x16x16x32xf32, #tpu.memory_space<vmem>>, vector<1x1x16x32xf32>
    %1095 = vector.shape_cast %1094 : vector<1x1x16x32xf32> to vector<16x32xf32>
    %1096 = vector.shape_cast %1093 : vector<16x32xf32> to vector<1x1x16x32xf32>
    tpu.vector_store %arg5[%c0_570, %c14_571, %c0_572, %c0_573], %1096 {strides = array<i32>} : memref<1x16x16x32xf32, #tpu.memory_space<vmem>>, vector<1x1x16x32xf32>,
    %cst_574 = arith.constant 0.000000e+00 : f32
    %1097 = vector.broadcast %cst_574 : f32 to vector<16x32xf32>
    %c0_575 = arith.constant 0 : index
    %c30_576 = arith.constant 30 : index
    %c0_577 = arith.constant 0 : index
    %c0_578 = arith.constant 0 : index
    %1098 = vector.load %arg1[%c0_575, %c30_576, %c0_577, %c0_578] : memref<1x34x17x3xf32, #tpu.memory_space<vmem>>, vector<1x1x17x3xf32>
    %1099 = vector.shape_cast %1098 : vector<1x1x17x3xf32> to vector<17x3xf32>
    %1100 = arith.truncf %1099 : vector<17x3xf32> to vector<17x3xbf16>
    %c0_579 = arith.constant 0 : index
    %c30_580 = arith.constant 30 : index
    %c0_581 = arith.constant 0 : index
    %c0_582 = arith.constant 0 : index
    %1101 = vector.load %arg2[%c0_579, %c30_580, %c0_581, %c0_582] : memref<1x34x17x3xf32, #tpu.memory_space<vmem>>, vector<1x1x17x3xf32>
    %1102 = vector.shape_cast %1101 : vector<1x1x17x3xf32> to vector<17x3xf32>
    %1103 = arith.truncf %1102 : vector<17x3xf32> to vector<17x3xbf16>
    %1104 = vector.extract_strided_slice %1100 {offsets = [0, 0], sizes = [16, 3], strides = [1, 1]} : vector<17x3xbf16> to vector<16x3xbf16>
    %1105 = vector.extract_strided_slice %0 {offsets = [0, 0, 0, 0], sizes = [1, 1, 3, 32], strides = [1, 1, 1, 1]} : vector<3x3x3x32xbf16> to vector<1x1x3x32xbf16>
    %1106 = vector.shape_cast %1105 : vector<1x1x3x32xbf16> to vector<3x32xbf16>
    %cst_583 = arith.constant dense<0.000000e+00> : vector<16x32xf32>
    %1107 = tpu.matmul %1104, %1106, %cst_583 {dimension_numbers = #tpu.dot_dimension_numbers<[1], [0], [0], [1], [0, 0, 1, 1], [], []>} : vector<16x3xbf16>, vector<3x32xbf16>, vector<16x32xf32> -> vector<16x32xf32>
    %1108 = arith.addf %1097, %1107 : vector<16x32xf32>
    %1109 = vector.extract_strided_slice %1103 {offsets = [0, 0], sizes = [16, 3], strides = [1, 1]} : vector<17x3xbf16> to vector<16x3xbf16>
    %1110 = vector.extract_strided_slice %0 {offsets = [0, 1, 0, 0], sizes = [1, 1, 3, 32], strides = [1, 1, 1, 1]} : vector<3x3x3x32xbf16> to vector<1x1x3x32xbf16>
    %1111 = vector.shape_cast %1110 : vector<1x1x3x32xbf16> to vector<3x32xbf16>
    %cst_584 = arith.constant dense<0.000000e+00> : vector<16x32xf32>
    %1112 = tpu.matmul %1109, %1111, %cst_584 {dimension_numbers = #tpu.dot_dimension_numbers<[1], [0], [0], [1], [0, 0, 1, 1], [], []>} : vector<16x3xbf16>, vector<3x32xbf16>, vector<16x32xf32> -> vector<16x32xf32>
    %1113 = arith.addf %1108, %1112 : vector<16x32xf32>
    %1114 = vector.extract_strided_slice %1100 {offsets = [1, 0], sizes = [16, 3], strides = [1, 1]} : vector<17x3xbf16> to vector<16x3xbf16>
    %1115 = vector.extract_strided_slice %0 {offsets = [0, 2, 0, 0], sizes = [1, 1, 3, 32], strides = [1, 1, 1, 1]} : vector<3x3x3x32xbf16> to vector<1x1x3x32xbf16>
    %1116 = vector.shape_cast %1115 : vector<1x1x3x32xbf16> to vector<3x32xbf16>
    %cst_585 = arith.constant dense<0.000000e+00> : vector<16x32xf32>
    %1117 = tpu.matmul %1114, %1116, %cst_585 {dimension_numbers = #tpu.dot_dimension_numbers<[1], [0], [0], [1], [0, 0, 1, 1], [], []>} : vector<16x3xbf16>, vector<3x32xbf16>, vector<16x32xf32> -> vector<16x32xf32>
    %1118 = arith.addf %1113, %1117 : vector<16x32xf32>
    %c0_586 = arith.constant 0 : index
    %c31 = arith.constant 31 : index
    %c0_587 = arith.constant 0 : index
    %c0_588 = arith.constant 0 : index
    %1119 = vector.load %arg1[%c0_586, %c31, %c0_587, %c0_588] : memref<1x34x17x3xf32, #tpu.memory_space<vmem>>, vector<1x1x17x3xf32>
    %1120 = vector.shape_cast %1119 : vector<1x1x17x3xf32> to vector<17x3xf32>
    %1121 = arith.truncf %1120 : vector<17x3xf32> to vector<17x3xbf16>
    %c0_589 = arith.constant 0 : index
    %c31_590 = arith.constant 31 : index
    %c0_591 = arith.constant 0 : index
    %c0_592 = arith.constant 0 : index
    %1122 = vector.load %arg2[%c0_589, %c31_590, %c0_591, %c0_592] : memref<1x34x17x3xf32, #tpu.memory_space<vmem>>, vector<1x1x17x3xf32>
    %1123 = vector.shape_cast %1122 : vector<1x1x17x3xf32> to vector<17x3xf32>
    %1124 = arith.truncf %1123 : vector<17x3xf32> to vector<17x3xbf16>
    %1125 = vector.extract_strided_slice %1121 {offsets = [0, 0], sizes = [16, 3], strides = [1, 1]} : vector<17x3xbf16> to vector<16x3xbf16>
    %1126 = vector.extract_strided_slice %0 {offsets = [1, 0, 0, 0], sizes = [1, 1, 3, 32], strides = [1, 1, 1, 1]} : vector<3x3x3x32xbf16> to vector<1x1x3x32xbf16>
    %1127 = vector.shape_cast %1126 : vector<1x1x3x32xbf16> to vector<3x32xbf16>
    %cst_593 = arith.constant dense<0.000000e+00> : vector<16x32xf32>
    %1128 = tpu.matmul %1125, %1127, %cst_593 {dimension_numbers = #tpu.dot_dimension_numbers<[1], [0], [0], [1], [0, 0, 1, 1], [], []>} : vector<16x3xbf16>, vector<3x32xbf16>, vector<16x32xf32> -> vector<16x32xf32>
    %1129 = arith.addf %1118, %1128 : vector<16x32xf32>
    %1130 = vector.extract_strided_slice %1124 {offsets = [0, 0], sizes = [16, 3], strides = [1, 1]} : vector<17x3xbf16> to vector<16x3xbf16>
    %1131 = vector.extract_strided_slice %0 {offsets = [1, 1, 0, 0], sizes = [1, 1, 3, 32], strides = [1, 1, 1, 1]} : vector<3x3x3x32xbf16> to vector<1x1x3x32xbf16>
    %1132 = vector.shape_cast %1131 : vector<1x1x3x32xbf16> to vector<3x32xbf16>
    %cst_594 = arith.constant dense<0.000000e+00> : vector<16x32xf32>
    %1133 = tpu.matmul %1130, %1132, %cst_594 {dimension_numbers = #tpu.dot_dimension_numbers<[1], [0], [0], [1], [0, 0, 1, 1], [], []>} : vector<16x3xbf16>, vector<3x32xbf16>, vector<16x32xf32> -> vector<16x32xf32>
    %1134 = arith.addf %1129, %1133 : vector<16x32xf32>
    %1135 = vector.extract_strided_slice %1121 {offsets = [1, 0], sizes = [16, 3], strides = [1, 1]} : vector<17x3xbf16> to vector<16x3xbf16>
    %1136 = vector.extract_strided_slice %0 {offsets = [1, 2, 0, 0], sizes = [1, 1, 3, 32], strides = [1, 1, 1, 1]} : vector<3x3x3x32xbf16> to vector<1x1x3x32xbf16>
    %1137 = vector.shape_cast %1136 : vector<1x1x3x32xbf16> to vector<3x32xbf16>
    %cst_595 = arith.constant dense<0.000000e+00> : vector<16x32xf32>
    %1138 = tpu.matmul %1135, %1137, %cst_595 {dimension_numbers = #tpu.dot_dimension_numbers<[1], [0], [0], [1], [0, 0, 1, 1], [], []>} : vector<16x3xbf16>, vector<3x32xbf16>, vector<16x32xf32> -> vector<16x32xf32>
    %1139 = arith.addf %1134, %1138 : vector<16x32xf32>
    %c0_596 = arith.constant 0 : index
    %c32 = arith.constant 32 : index
    %c0_597 = arith.constant 0 : index
    %c0_598 = arith.constant 0 : index
    %1140 = vector.load %arg1[%c0_596, %c32, %c0_597, %c0_598] : memref<1x34x17x3xf32, #tpu.memory_space<vmem>>, vector<1x1x17x3xf32>
    %1141 = vector.shape_cast %1140 : vector<1x1x17x3xf32> to vector<17x3xf32>
    %1142 = arith.truncf %1141 : vector<17x3xf32> to vector<17x3xbf16>
    %c0_599 = arith.constant 0 : index
    %c32_600 = arith.constant 32 : index
    %c0_601 = arith.constant 0 : index
    %c0_602 = arith.constant 0 : index
    %1143 = vector.load %arg2[%c0_599, %c32_600, %c0_601, %c0_602] : memref<1x34x17x3xf32, #tpu.memory_space<vmem>>, vector<1x1x17x3xf32>
    %1144 = vector.shape_cast %1143 : vector<1x1x17x3xf32> to vector<17x3xf32>
    %1145 = arith.truncf %1144 : vector<17x3xf32> to vector<17x3xbf16>
    %1146 = vector.extract_strided_slice %1142 {offsets = [0, 0], sizes = [16, 3], strides = [1, 1]} : vector<17x3xbf16> to vector<16x3xbf16>
    %1147 = vector.extract_strided_slice %0 {offsets = [2, 0, 0, 0], sizes = [1, 1, 3, 32], strides = [1, 1, 1, 1]} : vector<3x3x3x32xbf16> to vector<1x1x3x32xbf16>
    %1148 = vector.shape_cast %1147 : vector<1x1x3x32xbf16> to vector<3x32xbf16>
    %cst_603 = arith.constant dense<0.000000e+00> : vector<16x32xf32>
    %1149 = tpu.matmul %1146, %1148, %cst_603 {dimension_numbers = #tpu.dot_dimension_numbers<[1], [0], [0], [1], [0, 0, 1, 1], [], []>} : vector<16x3xbf16>, vector<3x32xbf16>, vector<16x32xf32> -> vector<16x32xf32>
    %1150 = arith.addf %1139, %1149 : vector<16x32xf32>
    %1151 = vector.extract_strided_slice %1145 {offsets = [0, 0], sizes = [16, 3], strides = [1, 1]} : vector<17x3xbf16> to vector<16x3xbf16>
    %1152 = vector.extract_strided_slice %0 {offsets = [2, 1, 0, 0], sizes = [1, 1, 3, 32], strides = [1, 1, 1, 1]} : vector<3x3x3x32xbf16> to vector<1x1x3x32xbf16>
    %1153 = vector.shape_cast %1152 : vector<1x1x3x32xbf16> to vector<3x32xbf16>
    %cst_604 = arith.constant dense<0.000000e+00> : vector<16x32xf32>
    %1154 = tpu.matmul %1151, %1153, %cst_604 {dimension_numbers = #tpu.dot_dimension_numbers<[1], [0], [0], [1], [0, 0, 1, 1], [], []>} : vector<16x3xbf16>, vector<3x32xbf16>, vector<16x32xf32> -> vector<16x32xf32>
    %1155 = arith.addf %1150, %1154 : vector<16x32xf32>
    %1156 = vector.extract_strided_slice %1142 {offsets = [1, 0], sizes = [16, 3], strides = [1, 1]} : vector<17x3xbf16> to vector<16x3xbf16>
    %1157 = vector.extract_strided_slice %0 {offsets = [2, 2, 0, 0], sizes = [1, 1, 3, 32], strides = [1, 1, 1, 1]} : vector<3x3x3x32xbf16> to vector<1x1x3x32xbf16>
    %1158 = vector.shape_cast %1157 : vector<1x1x3x32xbf16> to vector<3x32xbf16>
    %cst_605 = arith.constant dense<0.000000e+00> : vector<16x32xf32>
    %1159 = tpu.matmul %1156, %1158, %cst_605 {dimension_numbers = #tpu.dot_dimension_numbers<[1], [0], [0], [1], [0, 0, 1, 1], [], []>} : vector<16x3xbf16>, vector<3x32xbf16>, vector<16x32xf32> -> vector<16x32xf32>
    %1160 = arith.addf %1155, %1159 : vector<16x32xf32>
    %1161 = vector.broadcast %1 : vector<1x32xf32> to vector<16x32xf32>
    %1162 = arith.addf %1160, %1161 : vector<16x32xf32>
    %cst_606 = arith.constant 0.000000e+00 : f32
    %cst_607 = arith.constant 6.000000e+00 : f32
    %1163 = vector.broadcast %cst_606 : f32 to vector<16x32xf32>
    %1164 = arith.maximumf %1163, %1162 : vector<16x32xf32>
    %1165 = vector.broadcast %cst_607 : f32 to vector<16x32xf32>
    %1166 = arith.minimumf %1165, %1164 : vector<16x32xf32>
    %c0_608 = arith.constant 0 : index
    %c15_609 = arith.constant 15 : index
    %c0_610 = arith.constant 0 : index
    %c0_611 = arith.constant 0 : index
    %1167 = vector.load %arg5[%c0_608, %c15_609, %c0_610, %c0_611] : memref<1x16x16x32xf32, #tpu.memory_space<vmem>>, vector<1x1x16x32xf32>
    %1168 = vector.shape_cast %1167 : vector<1x1x16x32xf32> to vector<16x32xf32>
    %1169 = vector.shape_cast %1166 : vector<16x32xf32> to vector<1x1x16x32xf32>
    tpu.vector_store %arg5[%c0_608, %c15_609, %c0_610, %c0_611], %1169 {strides = array<i32>} : memref<1x16x16x32xf32, #tpu.memory_space<vmem>>, vector<1x1x16x32xf32>,
    return
  }
  func.func @transform_0(%arg0: i32) -> (i32, i32, i32, i32) {
    %c0_i32 = arith.constant 0 : i32
    %c0_i32_0 = arith.constant 0 : i32
    %c0_i32_1 = arith.constant 0 : i32
    %c0_i32_2 = arith.constant 0 : i32
    return %arg0, %c0_i32, %c0_i32_0, %c0_i32_1 : i32, i32, i32, i32
  }
  func.func @transform_1(%arg0: i32) -> (i32, i32, i32, i32) {
    %c0_i32 = arith.constant 0 : i32
    %c0_i32_0 = arith.constant 0 : i32
    %c0_i32_1 = arith.constant 0 : i32
    %c0_i32_2 = arith.constant 0 : i32
    return %arg0, %c0_i32, %c0_i32_0, %c0_i32_1 : i32, i32, i32, i32
  }
  func.func @transform_2(%arg0: i32) -> (i32, i32, i32, i32) {
    %c0_i32 = arith.constant 0 : i32
    %c0_i32_0 = arith.constant 0 : i32
    %c0_i32_1 = arith.constant 0 : i32
    %c0_i32_2 = arith.constant 0 : i32
    %c0_i32_3 = arith.constant 0 : i32
    return %c0_i32, %c0_i32_0, %c0_i32_1, %c0_i32_2 : i32, i32, i32, i32
  }
  func.func @transform_3(%arg0: i32) -> (i32, i32) {
    %c0_i32 = arith.constant 0 : i32
    %c0_i32_0 = arith.constant 0 : i32
    %c0_i32_1 = arith.constant 0 : i32
    return %c0_i32, %c0_i32_0 : i32, i32
  }
  func.func @transform_4(%arg0: i32) -> (i32, i32, i32, i32) {
    %c0_i32 = arith.constant 0 : i32
    %c0_i32_0 = arith.constant 0 : i32
    %c0_i32_1 = arith.constant 0 : i32
    %c0_i32_2 = arith.constant 0 : i32
    return %arg0, %c0_i32, %c0_i32_0, %c0_i32_1 : i32, i32, i32, i32
  }
}

</mosaic_0001>

<llo_original>
// kernel: tpu_custom_call.1
$region0: #{tpu_custom_call.1}
  #allocation0 [shape = 'u32[]', space=smem, size = 0x4, offset = 0x4, fixed_abs, tag = 'smem constant byte address 0x4 - core index']
  #allocation1 [shape = 'u32[72,128]{1,0:T(1,128)}', space=vmem, size = 0x9000, scoped, tag = 'internal scratch']
  %s0 = inlined_call_operand.vmem [shape: f32[2,34,17,3], index: 0, kind: input, shape index: {}]
  %s1 = inlined_call_operand.vmem [shape: f32[2,34,17,3], index: 1, kind: input, shape index: {}]
  %s2 = inlined_call_operand.vmem [shape: bf16[3,3,3,32], index: 2, kind: input, shape index: {}]
  %s3 = inlined_call_operand.vmem [shape: f32[1,32], index: 3, kind: input, shape index: {}]
  %s4 = inlined_call_operand.hbm [shape: f32[2,16,16,32], index: 4, kind: output, shape index: {}]
  %s5 = sld [smem:[#allocation0]]
  $region49: #{tpu_custom_call.1} parent=0
    _
  %s7 = ssub.s32 1, %s5
  %s8 = scalar_select 0, %s7, %s5
  $region1: #{tpu_custom_call.1} parent=0
    #allocation2 [shape = 'u8[262144]{0}', space=vmem, size = 0x40000, scoped, tag = 'output window, operand 0']
    #allocation3 [shape = 's32[2]{0}', space=sflag, size = 0x8, scoped, tag = 'scoped memory for tpu_custom_call.1']
    %9 = vsyncpa [#allocation3], 0
    %s10 = scalar_lea.sflag [#allocation3], 1
    %11 = vsyncpa %s10, 0
    loop: start=0, step=1, limit=4
    $region2: #{tpu_custom_call.1} parent=1 // loop_pre_header
      _
    $region3: #{tpu_custom_call.1} parent=1 // loop_header
      %s13 = sphi 0, %s17
      %p14 = scmp.ge.s32.totalorder %s13, 4
      %s23 = sphi 0, %s25
      %s26 = sphi 0, %s23
      %s27 = sphi 0, %s26
      %s43 = sphi 0, %s27
      %s49 = sphi 0, %s51
      %s52 = sphi 0, %s49
      %s53 = sphi 0, %s52
      %s69 = sphi 0, %s53
      %s73 = sphi 0, %s73
      %s75 = sphi 0, %s73
      %s76 = sphi 0, %s75
      %s90 = sphi 0, %s76
      %s94 = sphi 0, %s94
      %s96 = sphi 0, %s94
      %s97 = sphi 0, %s96
      %s111 = sphi 0, %s97
      %s117 = sphi 0, %s119
      %s120 = sphi 0, %s117
      %s121 = sphi 0, %s120
      %s137 = sphi 0, %s121
    $region4: #{tpu_custom_call.1} parent=1 // loop_header_branch
      %16 = sbr.rel (%p14) target = $region8
    $region5: #{tpu_custom_call.1} parent=1 // loop_body
      %s18 = ssub.s32 %s13, 1
      %s19 = ssub.s32 %s13, 2
      %s20 = sadd.s32 %s13, 1
      %s21 = ssub.s32 %s13, %s20
      %p22 = scmp.eq.s32.totalorder %s21, 0
      %s24 = sadd.s32 %s23, 1
      %s25 = scalar_select %p22, %s23, %s24
      %p28 = pneg %p22
      %p29 = scmp.eq.s32.totalorder %s13, 1
      %p30 = por %p28, %p29
      %p31 = scmp.ne.s32.totalorder %s23, %s26
      %p32 = scmp.eq.s32.totalorder %s13, 0
      %p33 = por %p31, %p32
      %p34 = scmp.ne.s32.totalorder %s23, %s26
      %p35 = scmp.eq.s32.totalorder %s18, 1
      %p36 = por %p34, %p35
      %p37 = scmp.ne.s32.totalorder %s26, %s27
      %p38 = scmp.eq.s32.totalorder %s18, 0
      %p39 = por %p37, %p38
      %p40 = scmp.ne.s32.totalorder %s26, %s27
      %p41 = scmp.eq.s32.totalorder %s19, 1
      %p42 = por %p40, %p41
      %p44 = scmp.ne.s32.totalorder %s27, %s43
      %p45 = scmp.eq.s32.totalorder %s19, 0
      %p46 = por %p44, %p45
      %s47 = ssub.s32 %s13, %s20
      %p48 = scmp.eq.s32.totalorder %s47, 0
      %s50 = sadd.s32 %s49, 1
      %s51 = scalar_select %p48, %s49, %s50
      %p54 = pneg %p48
      %p55 = scmp.eq.s32.totalorder %s13, 1
      %p56 = por %p54, %p55
      %p57 = scmp.ne.s32.totalorder %s49, %s52
      %p58 = scmp.eq.s32.totalorder %s13, 0
      %p59 = por %p57, %p58
      %p60 = scmp.ne.s32.totalorder %s49, %s52
      %p61 = scmp.eq.s32.totalorder %s18, 1
      %p62 = por %p60, %p61
      %p63 = scmp.ne.s32.totalorder %s52, %s53
      %p64 = scmp.eq.s32.totalorder %s18, 0
      %p65 = por %p63, %p64
      %p66 = scmp.ne.s32.totalorder %s52, %s53
      %p67 = scmp.eq.s32.totalorder %s19, 1
      %p68 = por %p66, %p67
      %p70 = scmp.ne.s32.totalorder %s53, %s69
      %p71 = scmp.eq.s32.totalorder %s19, 0
      %p72 = por %p70, %p71
      %s74 = sadd.s32 %s73, 1
      %p77 = scmp.eq.s32.totalorder %s13, 1
      %p78 = scmp.ne.s32.totalorder %s73, %s75
      %p79 = scmp.eq.s32.totalorder %s13, 0
      %p80 = por %p78, %p79
      %p81 = scmp.ne.s32.totalorder %s73, %s75
      %p82 = scmp.eq.s32.totalorder %s18, 1
      %p83 = por %p81, %p82
      %p84 = scmp.ne.s32.totalorder %s75, %s76
      %p85 = scmp.eq.s32.totalorder %s18, 0
      %p86 = por %p84, %p85
      %p87 = scmp.ne.s32.totalorder %s75, %s76
      %p88 = scmp.eq.s32.totalorder %s19, 1
      %p89 = por %p87, %p88
      %p91 = scmp.ne.s32.totalorder %s76, %s90
      %p92 = scmp.eq.s32.totalorder %s19, 0
      %p93 = por %p91, %p92
      %s95 = sadd.s32 %s94, 1
      %p98 = scmp.eq.s32.totalorder %s13, 1
      %p99 = scmp.ne.s32.totalorder %s94, %s96
      %p100 = scmp.eq.s32.totalorder %s13, 0
      %p101 = por %p99, %p100
      %p102 = scmp.ne.s32.totalorder %s94, %s96
      %p103 = scmp.eq.s32.totalorder %s18, 1
      %p104 = por %p102, %p103
      %p105 = scmp.ne.s32.totalorder %s96, %s97
      %p106 = scmp.eq.s32.totalorder %s18, 0
      %p107 = por %p105, %p106
      %p108 = scmp.ne.s32.totalorder %s96, %s97
      %p109 = scmp.eq.s32.totalorder %s19, 1
      %p110 = por %p108, %p109
      %p112 = scmp.ne.s32.totalorder %s97, %s111
      %p113 = scmp.eq.s32.totalorder %s19, 0
      %p114 = por %p112, %p113
      %s115 = ssub.s32 %s13, %s20
      %p116 = scmp.eq.s32.totalorder %s115, 0
      %s118 = sadd.s32 %s117, 1
      %s119 = scalar_select %p116, %s117, %s118
      %p122 = pneg %p116
      %p123 = scmp.eq.s32.totalorder %s13, 1
      %p124 = por %p122, %p123
      %p125 = scmp.ne.s32.totalorder %s117, %s120
      %p126 = scmp.eq.s32.totalorder %s13, 0
      %p127 = por %p125, %p126
      %p128 = scmp.ne.s32.totalorder %s117, %s120
      %p129 = scmp.eq.s32.totalorder %s18, 1
      %p130 = por %p128, %p129
      %p131 = scmp.ne.s32.totalorder %s120, %s121
      %p132 = scmp.eq.s32.totalorder %s18, 0
      %p133 = por %p131, %p132
      %p134 = scmp.ne.s32.totalorder %s120, %s121
      %p135 = scmp.eq.s32.totalorder %s19, 1
      %p136 = por %p134, %p135
      %p138 = scmp.ne.s32.totalorder %s121, %s137
      %p139 = scmp.eq.s32.totalorder %s19, 0
      %p140 = por %p138, %p139
      %p141 = scmp.le.s32.totalorder 1, %s13
      %p142 = scmp.lt.s32.totalorder %s13, 3
      %p143 = pnand %p141, %p142
      %p144 = pneg %p143
      // Predicated region
      $region9: #{tpu_custom_call.1} parent=5 // pred_check
        _
      $region10: #{tpu_custom_call.1} parent=5 // pred_check_branch
        %146 = sbr.rel (%p143) target = $region12
      $region11: #{tpu_custom_call.1} parent=5 // pred_region
        %s147 = ssub.s32 %s13, 1
        // Predicated region
        $region13: #{tpu_custom_call.1} parent=11 // pred_check
          %p148 = pneg %p86
        $region14: #{tpu_custom_call.1} parent=11 // pred_check_branch
          %150 = sbr.rel (%p148) target = $region16
        $region15: #{tpu_custom_call.1} parent=11 // pred_region
          _
        $region16: #{tpu_custom_call.1} parent=11 // pred_fallthru
          _
        // Predicated region
        $region17: #{tpu_custom_call.1} parent=11 // pred_check
          %p151 = pneg %p107
        $region18: #{tpu_custom_call.1} parent=11 // pred_check_branch
          %153 = sbr.rel (%p151) target = $region20
        $region19: #{tpu_custom_call.1} parent=11 // pred_region
          _
        $region20: #{tpu_custom_call.1} parent=11 // pred_fallthru
          _
      $region12: #{tpu_custom_call.1} parent=5 // pred_fallthru
        _
      %p154 = scmp.lt.s32.totalorder %s13, 2
      // Predicated region
      $region21: #{tpu_custom_call.1} parent=5 // pred_check
        %p155 = pneg %p154
      $region22: #{tpu_custom_call.1} parent=5 // pred_check_branch
        %157 = sbr.rel (%p155) target = $region24
      $region23: #{tpu_custom_call.1} parent=5 // pred_region
        // Predicated region
        $region25: #{tpu_custom_call.1} parent=23 // pred_check
          %p158 = pneg %p33
        $region26: #{tpu_custom_call.1} parent=23 // pred_check_branch
          %160 = sbr.rel (%p158) target = $region28
        $region27: #{tpu_custom_call.1} parent=23 // pred_region
          %p161 = scmp.lt.s32.totalorder %s13, 1
          %s162 = scalar_select %p161, %s13, 1
          %s163 = smul.addr %s162, 102
          %s164 = smul.addr %s163, 8
          %s165 = scalar_lea.vmem %s0, %s164
        $region28: #{tpu_custom_call.1} parent=23 // pred_fallthru
          _
        // Predicated region
        $region29: #{tpu_custom_call.1} parent=23 // pred_check
          %p166 = pneg %p59
        $region30: #{tpu_custom_call.1} parent=23 // pred_check_branch
          %168 = sbr.rel (%p166) target = $region32
        $region31: #{tpu_custom_call.1} parent=23 // pred_region
          %p169 = scmp.lt.s32.totalorder %s13, 1
          %s170 = scalar_select %p169, %s13, 1
          %s171 = smul.addr %s170, 102
          %s172 = smul.addr %s171, 8
          %s173 = scalar_lea.vmem %s1, %s172
        $region32: #{tpu_custom_call.1} parent=23 // pred_fallthru
          _
      $region24: #{tpu_custom_call.1} parent=5 // pred_fallthru
        _
      %p174 = scmp.le.s32.totalorder 1, %s13
      %p175 = scmp.lt.s32.totalorder %s13, 3
      %p176 = pnand %p174, %p175
      %p177 = pneg %p176
      // Predicated region
      $region33: #{tpu_custom_call.1} parent=5 // pred_check
        _
      $region34: #{tpu_custom_call.1} parent=5 // pred_check_branch
        %179 = sbr.rel (%p176) target = $region36
      $region35: #{tpu_custom_call.1} parent=5 // pred_region
        %s180 = ssub.s32 %s13, 1
        %p181 = scmp.lt.s32.totalorder %s18, 1
        %s182 = scalar_select %p181, %s18, 1
        %s183 = smul.addr %s182, 102
        %s184 = smul.addr %s183, 8
        %s185 = scalar_lea.vmem %s0, %s184
        %p186 = pneg %p39
        %p187 = pneg %p36
        %p188 = scmp.lt.s32.totalorder %s18, 1
        %s189 = scalar_select %p188, %s18, 1
        %s190 = smul.addr %s189, 102
        %s191 = smul.addr %s190, 8
        %s192 = scalar_lea.vmem %s1, %s191
        %p193 = pneg %p65
        %p194 = pneg %p62
        %p195 = pneg %p86
        %p196 = pneg %p83
        %p197 = pneg %p107
        %p198 = pneg %p104
        %p199 = pneg %p133
        %p200 = pneg %p130
        %s201 = sand.u32 %s120, 1
        %s202 = scalar_lea.sflag [#allocation3], %s201
        %s203 = sand.u32 %s120, 1
        %s204 = smul.addr %s203, 256
        %s205 = scalar_lea.vmem [#allocation2], %s204
        %p206 = scmp.lt.s32.totalorder %s18, 1
        %s207 = scalar_select %p206, %s18, 1
        %s208 = smul.addr %s207, 102
        %s209 = smul.addr %s208, 8
        %s210 = scalar_lea.vmem %s0, %s209
        %p211 = scmp.lt.s32.totalorder %s18, 1
        %s212 = scalar_select %p211, %s18, 1
        %s213 = smul.addr %s212, 102
        %s214 = smul.addr %s213, 8
        %s215 = scalar_lea.vmem %s1, %s214
        %v217 = vld [vmem:[%s2] sm:$0x3]
        %v218 = vld [vmem:[%s2 + $0x2] sm:$0x3]
        %v219 = vld [vmem:[%s2 + $0x4] sm:$0x3]
        %v220 = vld [vmem:[%s2 + $0x6] sm:$0x3]
        %v221 = vld [vmem:[%s2 + $0x8] sm:$0x3]
        %v222 = vld [vmem:[%s2 + $0xa] sm:$0x3]
        %v223 = vld [vmem:[%s2 + $0xc] sm:$0x3]
        %v224 = vld [vmem:[%s2 + $0xe] sm:$0x3]
        %v225 = vld [vmem:[%s2 + $0x10] sm:$0x3]
        %v226 = vld [vmem:[%s3] sm:$0x1]
        %v227 = vld [vmem:[%s210] sm:$0xff]
        %v228 = vld [vmem:[%s210 + $0x8] sm:$0xff]
        %v229 = vld [vmem:[%s210 + $0x10] sm:$0x1]
        %v230 = vpack.c.bf16 %v227, %v227
        %v231 = vpack.c.bf16 %v228, %v228
        %v232 = vpack.c.bf16 %v229, %v229
        %v233 = vld [vmem:[%s215] sm:$0xff]
        %v234 = vld [vmem:[%s215 + $0x8] sm:$0xff]
        %v235 = vpack.c.bf16 %v233, %v233
        %v236 = vpack.c.bf16 %v234, %v234
        %v239 = vunpack.c.l.b16 %v235
        %v240 = vunpack.c.l.b16 %v236
        %v241 = vpack.c.b16 %v240, %v239
        %vm242 = vcmask 23552
        %v244 = vsel %vm242, %v241, 0
        %vm246 = vcmask 1040384
        %vm247 = vcmask 1041408
        %v248 = vsel %vm246, 4294967295, 65535
        %v249 = vsel %vm247, %v248, 0
        %v251 = vand.u32 %v218, %v249
        %253 = vmatpush.bf16.msra.mxu0 0
        %254 = vmatpush.bf16.msra.mxu0 0
        %255 = vmatpush.bf16.msra.mxu0 0
        %256 = vmatpush.bf16.msra.mxu0 0
        %257 = vmatpush.bf16.msra.mxu0 0
        %258 = vmatpush.bf16.msra.mxu0 0
        %259 = vmatpush.bf16.msra.mxu0 0
        %260 = vmatpush.bf16.msra.mxu0 %v251
        %261 = vmatmul.bf16.gmra.mxu0 %v244
        %v262 = vpop.f32.mrf.mxu0
        %v263 = vadd.f32 0.0, %v262
        %v264 = vpop.f32.mrf.mxu0
        %v265 = vadd.f32 0.0, %v264
        %266 = vdwg.mxu0
        %v269 = vunpack.c.l.b16 %v230
        %v270 = vunpack.c.l.b16 %v231
        %v271 = vpack.c.b16 %v270, %v269
        %v273 = vsel %vm242, %v271, 0
        %v276 = vand.u32 %v217, %v249
        %278 = vmatpush.bf16.msra.mxu0 0
        %279 = vmatpush.bf16.msra.mxu0 0
        %280 = vmatpush.bf16.msra.mxu0 0
        %281 = vmatpush.bf16.msra.mxu0 0
        %282 = vmatpush.bf16.msra.mxu0 0
        %283 = vmatpush.bf16.msra.mxu0 0
        %284 = vmatpush.bf16.msra.mxu0 0
        %285 = vmatpush.bf16.msra.mxu0 %v276
        %286 = vmatmul.bf16.gmra.mxu0 %v273
        %v287 = vpop.f32.mrf.mxu0
        %v288 = vadd.f32 %v263, %v287
        %v289 = vpop.f32.mrf.mxu0
        %v290 = vadd.f32 %v265, %v289
        %291 = vdwg.mxu0
        %v293 = vunpack.c.l.b16 %v232
        %v294 = vpack.c.b16 %v293, %v293
        %vm295 = vsmask.f32 7424
        %v296 = vshrl.u32 %v271, 16
        %v298 = vshll.u32 %v271, 16
        %v300 = vrot.slane %v298, 1
        %v301 = vor.u32 %v296, %v300
        %v303 = vshll.u32 %v294, 16
        %v305 = vrot.slane %v303, 1
        %v306 = vsel %vm295, %v301, %v305
        %v308 = vsel %vm242, %v306, 0
        %v311 = vand.u32 %v219, %v249
        %313 = vmatpush.bf16.msra.mxu0 0
        %314 = vmatpush.bf16.msra.mxu0 0
        %315 = vmatpush.bf16.msra.mxu0 0
        %316 = vmatpush.bf16.msra.mxu0 0
        %317 = vmatpush.bf16.msra.mxu0 0
        %318 = vmatpush.bf16.msra.mxu0 0
        %319 = vmatpush.bf16.msra.mxu0 0
        %320 = vmatpush.bf16.msra.mxu0 %v311
        %321 = vmatmul.bf16.gmra.mxu0 %v308
        %v322 = vpop.f32.mrf.mxu0
        %v323 = vadd.f32 0.0, %v322
        %v324 = vpop.f32.mrf.mxu0
        %v325 = vadd.f32 0.0, %v324
        %326 = vdwg.mxu0
        %v327 = vadd.f32 %v288, %v323
        %v328 = vadd.f32 %v290, %v325
        %s329 = scalar_lea.vmem %s210, 24
        %v330 = vld [vmem:[%s329] sm:$0xff]
        %v331 = vld [vmem:[%s329 + $0x8] sm:$0xff]
        %v332 = vld [vmem:[%s329 + $0x10] sm:$0x1]
        %v333 = vpack.c.bf16 %v330, %v330
        %v334 = vpack.c.bf16 %v331, %v331
        %v335 = vpack.c.bf16 %v332, %v332
        %s336 = scalar_lea.vmem %s215, 24
        %v337 = vld [vmem:[%s336] sm:$0xff]
        %v338 = vld [vmem:[%s336 + $0x8] sm:$0xff]
        %v339 = vpack.c.bf16 %v337, %v337
        %v340 = vpack.c.bf16 %v338, %v338
        %v343 = vunpack.c.l.b16 %v333
        %v344 = vunpack.c.l.b16 %v334
        %v345 = vpack.c.b16 %v344, %v343
        %v347 = vsel %vm242, %v345, 0
        %v350 = vand.u32 %v220, %v249
        %352 = vmatpush.bf16.msra.mxu0 0
        %353 = vmatpush.bf16.msra.mxu0 0
        %354 = vmatpush.bf16.msra.mxu0 0
        %355 = vmatpush.bf16.msra.mxu0 0
        %356 = vmatpush.bf16.msra.mxu0 0
        %357 = vmatpush.bf16.msra.mxu0 0
        %358 = vmatpush.bf16.msra.mxu0 0
        %359 = vmatpush.bf16.msra.mxu0 %v350
        %360 = vmatmul.bf16.gmra.mxu0 %v347
        %v361 = vpop.f32.mrf.mxu0
        %v362 = vadd.f32 0.0, %v361
        %v363 = vpop.f32.mrf.mxu0
        %v364 = vadd.f32 0.0, %v363
        %365 = vdwg.mxu0
        %v366 = vadd.f32 %v327, %v362
        %v367 = vadd.f32 %v328, %v364
        %v370 = vunpack.c.l.b16 %v339
        %v371 = vunpack.c.l.b16 %v340
        %v372 = vpack.c.b16 %v371, %v370
        %v374 = vsel %vm242, %v372, 0
        %v377 = vand.u32 %v221, %v249
        %379 = vmatpush.bf16.msra.mxu0 0
        %380 = vmatpush.bf16.msra.mxu0 0
        %381 = vmatpush.bf16.msra.mxu0 0
        %382 = vmatpush.bf16.msra.mxu0 0
        %383 = vmatpush.bf16.msra.mxu0 0
        %384 = vmatpush.bf16.msra.mxu0 0
        %385 = vmatpush.bf16.msra.mxu0 0
        %386 = vmatpush.bf16.msra.mxu0 %v377
        %387 = vmatmul.bf16.gmra.mxu0 %v374
        %v388 = vpop.f32.mrf.mxu0
        %v389 = vadd.f32 0.0, %v388
        %v390 = vpop.f32.mrf.mxu0
        %v391 = vadd.f32 0.0, %v390
        %392 = vdwg.mxu0
        %v393 = vadd.f32 %v366, %v389
        %v394 = vadd.f32 %v367, %v391
        %v396 = vunpack.c.l.b16 %v335
        %v397 = vpack.c.b16 %v396, %v396
        %v398 = vshrl.u32 %v345, 16
        %v400 = vshll.u32 %v345, 16
        %v402 = vrot.slane %v400, 1
        %v403 = vor.u32 %v398, %v402
        %v405 = vshll.u32 %v397, 16
        %v407 = vrot.slane %v405, 1
        %v408 = vsel %vm295, %v403, %v407
        %v410 = vsel %vm242, %v408, 0
        %v413 = vand.u32 %v222, %v249
        %415 = vmatpush.bf16.msra.mxu0 0
        %416 = vmatpush.bf16.msra.mxu0 0
        %417 = vmatpush.bf16.msra.mxu0 0
        %418 = vmatpush.bf16.msra.mxu0 0
        %419 = vmatpush.bf16.msra.mxu0 0
        %420 = vmatpush.bf16.msra.mxu0 0
        %421 = vmatpush.bf16.msra.mxu0 0
        %422 = vmatpush.bf16.msra.mxu0 %v413
        %423 = vmatmul.bf16.gmra.mxu0 %v410
        %v424 = vpop.f32.mrf.mxu0
        %v425 = vadd.f32 0.0, %v424
        %v426 = vpop.f32.mrf.mxu0
        %v427 = vadd.f32 0.0, %v426
        %428 = vdwg.mxu0
        %v429 = vadd.f32 %v393, %v425
        %v430 = vadd.f32 %v394, %v427
        %s431 = scalar_lea.vmem %s210, 48
        %v432 = vld [vmem:[%s431] sm:$0xff]
        %v433 = vld [vmem:[%s431 + $0x8] sm:$0xff]
        %v434 = vld [vmem:[%s431 + $0x10] sm:$0x1]
        %v435 = vpack.c.bf16 %v432, %v432
        %v436 = vpack.c.bf16 %v433, %v433
        %v437 = vpack.c.bf16 %v434, %v434
        %s438 = scalar_lea.vmem %s215, 48
        %v439 = vld [vmem:[%s438] sm:$0xff]
        %v440 = vld [vmem:[%s438 + $0x8] sm:$0xff]
        %v441 = vpack.c.bf16 %v439, %v439
        %v442 = vpack.c.bf16 %v440, %v440
        %v445 = vunpack.c.l.b16 %v435
        %v446 = vunpack.c.l.b16 %v436
        %v447 = vpack.c.b16 %v446, %v445
        %v449 = vsel %vm242, %v447, 0
        %v452 = vand.u32 %v223, %v249
        %454 = vmatpush.bf16.msra.mxu0 0
        %455 = vmatpush.bf16.msra.mxu0 0
        %456 = vmatpush.bf16.msra.mxu0 0
        %457 = vmatpush.bf16.msra.mxu0 0
        %458 = vmatpush.bf16.msra.mxu0 0
        %459 = vmatpush.bf16.msra.mxu0 0
        %460 = vmatpush.bf16.msra.mxu0 0
        %461 = vmatpush.bf16.msra.mxu0 %v452
        %462 = vmatmul.bf16.gmra.mxu0 %v449
        %v463 = vpop.f32.mrf.mxu0
        %v464 = vadd.f32 0.0, %v463
        %v465 = vpop.f32.mrf.mxu0
        %v466 = vadd.f32 0.0, %v465
        %467 = vdwg.mxu0
        %v468 = vadd.f32 %v429, %v464
        %v469 = vadd.f32 %v430, %v466
        %v472 = vunpack.c.l.b16 %v441
        %v473 = vunpack.c.l.b16 %v442
        %v474 = vpack.c.b16 %v473, %v472
        %v476 = vsel %vm242, %v474, 0
        %v479 = vand.u32 %v224, %v249
        %481 = vmatpush.bf16.msra.mxu0 0
        %482 = vmatpush.bf16.msra.mxu0 0
        %483 = vmatpush.bf16.msra.mxu0 0
        %484 = vmatpush.bf16.msra.mxu0 0
        %485 = vmatpush.bf16.msra.mxu0 0
        %486 = vmatpush.bf16.msra.mxu0 0
        %487 = vmatpush.bf16.msra.mxu0 0
        %488 = vmatpush.bf16.msra.mxu0 %v479
        %489 = vmatmul.bf16.gmra.mxu0 %v476
        %v490 = vpop.f32.mrf.mxu0
        %v491 = vadd.f32 0.0, %v490
        %v492 = vpop.f32.mrf.mxu0
        %v493 = vadd.f32 0.0, %v492
        %494 = vdwg.mxu0
        %v495 = vadd.f32 %v468, %v491
        %v496 = vadd.f32 %v469, %v493
        %v498 = vunpack.c.l.b16 %v437
        %v499 = vpack.c.b16 %v498, %v498
        %v500 = vshrl.u32 %v447, 16
        %v502 = vshll.u32 %v447, 16
        %v504 = vrot.slane %v502, 1
        %v505 = vor.u32 %v500, %v504
        %v507 = vshll.u32 %v499, 16
        %v509 = vrot.slane %v507, 1
        %v510 = vsel %vm295, %v505, %v509
        %v512 = vsel %vm242, %v510, 0
        %v515 = vand.u32 %v225, %v249
        %517 = vmatpush.bf16.msra.mxu0 0
        %518 = vmatpush.bf16.msra.mxu0 0
        %519 = vmatpush.bf16.msra.mxu0 0
        %520 = vmatpush.bf16.msra.mxu0 0
        %521 = vmatpush.bf16.msra.mxu0 0
        %522 = vmatpush.bf16.msra.mxu0 0
        %523 = vmatpush.bf16.msra.mxu0 0
        %524 = vmatpush.bf16.msra.mxu0 %v515
        %525 = vmatmul.bf16.gmra.mxu0 %v512
        %v526 = vpop.f32.mrf.mxu0
        %v527 = vadd.f32 0.0, %v526
        %v528 = vpop.f32.mrf.mxu0
        %v529 = vadd.f32 0.0, %v528
        %530 = vdwg.mxu0
        %v531 = vadd.f32 %v495, %v527
        %v532 = vadd.f32 %v496, %v529
        %v534 = vperm.slane %v226, 0
        %v536 = vadd.f32 %v531, %v534
        %v537 = vadd.f32 %v532, %v534
        %v538 = vmax.f32 %v536, 0.0
        %v539 = vmax.f32 %v537, 0.0
        %v540 = vmin.f32 %v538, 6.0
        %v541 = vmin.f32 %v539, 6.0
        %vm542 = vcmask 261120
        %543 = vst.msk [vmem:[%s205] sm:$0xff] %vm542, %v540
        %544 = vst.msk [vmem:[%s205 + $0x8] sm:$0xff] %vm542, %v541
        %v545 = vld [vmem:[%s431] sm:$0xff]
        %v546 = vld [vmem:[%s431 + $0x8] sm:$0xff]
        %v547 = vld [vmem:[%s431 + $0x10] sm:$0x1]
        %v548 = vpack.c.bf16 %v545, %v545
        %v549 = vpack.c.bf16 %v546, %v546
        %v550 = vpack.c.bf16 %v547, %v547
        %v551 = vld [vmem:[%s438] sm:$0xff]
        %v552 = vld [vmem:[%s438 + $0x8] sm:$0xff]
        %v553 = vpack.c.bf16 %v551, %v551
        %v554 = vpack.c.bf16 %v552, %v552
        %v557 = vunpack.c.l.b16 %v553
        %v558 = vunpack.c.l.b16 %v554
        %v559 = vpack.c.b16 %v558, %v557
        %v561 = vsel %vm242, %v559, 0
        %563 = vmatpush.bf16.msra.mxu0 0
        %564 = vmatpush.bf16.msra.mxu0 0
        %565 = vmatpush.bf16.msra.mxu0 0
        %566 = vmatpush.bf16.msra.mxu0 0
        %567 = vmatpush.bf16.msra.mxu0 0
        %568 = vmatpush.bf16.msra.mxu0 0
        %569 = vmatpush.bf16.msra.mxu0 0
        %570 = vmatpush.bf16.msra.mxu0 %v251
        %571 = vmatmul.bf16.gmra.mxu0 %v561
        %v572 = vpop.f32.mrf.mxu0
        %v573 = vadd.f32 0.0, %v572
        %v574 = vpop.f32.mrf.mxu0
        %v575 = vadd.f32 0.0, %v574
        %576 = vdwg.mxu0
        %v579 = vunpack.c.l.b16 %v548
        %v580 = vunpack.c.l.b16 %v549
        %v581 = vpack.c.b16 %v580, %v579
        %v583 = vsel %vm242, %v581, 0
        %585 = vmatpush.bf16.msra.mxu0 0
        %586 = vmatpush.bf16.msra.mxu0 0
        %587 = vmatpush.bf16.msra.mxu0 0
        %588 = vmatpush.bf16.msra.mxu0 0
        %589 = vmatpush.bf16.msra.mxu0 0
        %590 = vmatpush.bf16.msra.mxu0 0
        %591 = vmatpush.bf16.msra.mxu0 0
        %592 = vmatpush.bf16.msra.mxu0 %v276
        %593 = vmatmul.bf16.gmra.mxu0 %v583
        %v594 = vpop.f32.mrf.mxu0
        %v595 = vadd.f32 %v573, %v594
        %v596 = vpop.f32.mrf.mxu0
        %v597 = vadd.f32 %v575, %v596
        %598 = vdwg.mxu0
        %v600 = vunpack.c.l.b16 %v550
        %v601 = vpack.c.b16 %v600, %v600
        %v602 = vshrl.u32 %v581, 16
        %v604 = vshll.u32 %v581, 16
        %v606 = vrot.slane %v604, 1
        %v607 = vor.u32 %v602, %v606
        %v609 = vshll.u32 %v601, 16
        %v611 = vrot.slane %v609, 1
        %v612 = vsel %vm295, %v607, %v611
        %v614 = vsel %vm242, %v612, 0
        %616 = vmatpush.bf16.msra.mxu0 0
        %617 = vmatpush.bf16.msra.mxu0 0
        %618 = vmatpush.bf16.msra.mxu0 0
        %619 = vmatpush.bf16.msra.mxu0 0
        %620 = vmatpush.bf16.msra.mxu0 0
        %621 = vmatpush.bf16.msra.mxu0 0
        %622 = vmatpush.bf16.msra.mxu0 0
        %623 = vmatpush.bf16.msra.mxu0 %v311
        %624 = vmatmul.bf16.gmra.mxu0 %v614
        %v625 = vpop.f32.mrf.mxu0
        %v626 = vadd.f32 0.0, %v625
        %v627 = vpop.f32.mrf.mxu0
        %v628 = vadd.f32 0.0, %v627
        %629 = vdwg.mxu0
        %v630 = vadd.f32 %v595, %v626
        %v631 = vadd.f32 %v597, %v628
        %s632 = scalar_lea.vmem %s210, 72
        %v633 = vld [vmem:[%s632] sm:$0xff]
        %v634 = vld [vmem:[%s632 + $0x8] sm:$0xff]
        %v635 = vld [vmem:[%s632 + $0x10] sm:$0x1]
        %v636 = vpack.c.bf16 %v633, %v633
        %v637 = vpack.c.bf16 %v634, %v634
        %v638 = vpack.c.bf16 %v635, %v635
        %s639 = scalar_lea.vmem %s215, 72
        %v640 = vld [vmem:[%s639] sm:$0xff]
        %v641 = vld [vmem:[%s639 + $0x8] sm:$0xff]
        %v642 = vpack.c.bf16 %v640, %v640
        %v643 = vpack.c.bf16 %v641, %v641
        %v646 = vunpack.c.l.b16 %v636
        %v647 = vunpack.c.l.b16 %v637
        %v648 = vpack.c.b16 %v647, %v646
        %v650 = vsel %vm242, %v648, 0
        %652 = vmatpush.bf16.msra.mxu0 0
        %653 = vmatpush.bf16.msra.mxu0 0
        %654 = vmatpush.bf16.msra.mxu0 0
        %655 = vmatpush.bf16.msra.mxu0 0
        %656 = vmatpush.bf16.msra.mxu0 0
        %657 = vmatpush.bf16.msra.mxu0 0
        %658 = vmatpush.bf16.msra.mxu0 0
        %659 = vmatpush.bf16.msra.mxu0 %v350
        %660 = vmatmul.bf16.gmra.mxu0 %v650
        %v661 = vpop.f32.mrf.mxu0
        %v662 = vadd.f32 0.0, %v661
        %v663 = vpop.f32.mrf.mxu0
        %v664 = vadd.f32 0.0, %v663
        %665 = vdwg.mxu0
        %v666 = vadd.f32 %v630, %v662
        %v667 = vadd.f32 %v631, %v664
        %v670 = vunpack.c.l.b16 %v642
        %v671 = vunpack.c.l.b16 %v643
        %v672 = vpack.c.b16 %v671, %v670
        %v674 = vsel %vm242, %v672, 0
        %676 = vmatpush.bf16.msra.mxu0 0
        %677 = vmatpush.bf16.msra.mxu0 0
        %678 = vmatpush.bf16.msra.mxu0 0
        %679 = vmatpush.bf16.msra.mxu0 0
        %680 = vmatpush.bf16.msra.mxu0 0
        %681 = vmatpush.bf16.msra.mxu0 0
        %682 = vmatpush.bf16.msra.mxu0 0
        %683 = vmatpush.bf16.msra.mxu0 %v377
        %684 = vmatmul.bf16.gmra.mxu0 %v674
        %v685 = vpop.f32.mrf.mxu0
        %v686 = vadd.f32 0.0, %v685
        %v687 = vpop.f32.mrf.mxu0
        %v688 = vadd.f32 0.0, %v687
        %689 = vdwg.mxu0
        %v690 = vadd.f32 %v666, %v686
        %v691 = vadd.f32 %v667, %v688
        %v693 = vunpack.c.l.b16 %v638
        %v694 = vpack.c.b16 %v693, %v693
        %v695 = vshrl.u32 %v648, 16
        %v697 = vshll.u32 %v648, 16
        %v699 = vrot.slane %v697, 1
        %v700 = vor.u32 %v695, %v699
        %v702 = vshll.u32 %v694, 16
        %v704 = vrot.slane %v702, 1
        %v705 = vsel %vm295, %v700, %v704
        %v707 = vsel %vm242, %v705, 0
        %709 = vmatpush.bf16.msra.mxu0 0
        %710 = vmatpush.bf16.msra.mxu0 0
        %711 = vmatpush.bf16.msra.mxu0 0
        %712 = vmatpush.bf16.msra.mxu0 0
        %713 = vmatpush.bf16.msra.mxu0 0
        %714 = vmatpush.bf16.msra.mxu0 0
        %715 = vmatpush.bf16.msra.mxu0 0
        %716 = vmatpush.bf16.msra.mxu0 %v413
        %717 = vmatmul.bf16.gmra.mxu0 %v707
        %v718 = vpop.f32.mrf.mxu0
        %v719 = vadd.f32 0.0, %v718
        %v720 = vpop.f32.mrf.mxu0
        %v721 = vadd.f32 0.0, %v720
        %722 = vdwg.mxu0
        %v723 = vadd.f32 %v690, %v719
        %v724 = vadd.f32 %v691, %v721
        %s725 = scalar_lea.vmem %s210, 96
        %v726 = vld [vmem:[%s725] sm:$0xff]
        %v727 = vld [vmem:[%s725 + $0x8] sm:$0xff]
        %v728 = vld [vmem:[%s725 + $0x10] sm:$0x1]
        %v729 = vpack.c.bf16 %v726, %v726
        %v730 = vpack.c.bf16 %v727, %v727
        %v731 = vpack.c.bf16 %v728, %v728
        %s732 = scalar_lea.vmem %s215, 96
        %v733 = vld [vmem:[%s732] sm:$0xff]
        %v734 = vld [vmem:[%s732 + $0x8] sm:$0xff]
        %v735 = vpack.c.bf16 %v733, %v733
        %v736 = vpack.c.bf16 %v734, %v734
        %v739 = vunpack.c.l.b16 %v729
        %v740 = vunpack.c.l.b16 %v730
        %v741 = vpack.c.b16 %v740, %v739
        %v743 = vsel %vm242, %v741, 0
        %745 = vmatpush.bf16.msra.mxu0 0
        %746 = vmatpush.bf16.msra.mxu0 0
        %747 = vmatpush.bf16.msra.mxu0 0
        %748 = vmatpush.bf16.msra.mxu0 0
        %749 = vmatpush.bf16.msra.mxu0 0
        %750 = vmatpush.bf16.msra.mxu0 0
        %751 = vmatpush.bf16.msra.mxu0 0
        %752 = vmatpush.bf16.msra.mxu0 %v452
        %753 = vmatmul.bf16.gmra.mxu0 %v743
        %v754 = vpop.f32.mrf.mxu0
        %v755 = vadd.f32 0.0, %v754
        %v756 = vpop.f32.mrf.mxu0
        %v757 = vadd.f32 0.0, %v756
        %758 = vdwg.mxu0
        %v759 = vadd.f32 %v723, %v755
        %v760 = vadd.f32 %v724, %v757
        %v763 = vunpack.c.l.b16 %v735
        %v764 = vunpack.c.l.b16 %v736
        %v765 = vpack.c.b16 %v764, %v763
        %v767 = vsel %vm242, %v765, 0
        %769 = vmatpush.bf16.msra.mxu0 0
        %770 = vmatpush.bf16.msra.mxu0 0
        %771 = vmatpush.bf16.msra.mxu0 0
        %772 = vmatpush.bf16.msra.mxu0 0
        %773 = vmatpush.bf16.msra.mxu0 0
        %774 = vmatpush.bf16.msra.mxu0 0
        %775 = vmatpush.bf16.msra.mxu0 0
        %776 = vmatpush.bf16.msra.mxu0 %v479
        %777 = vmatmul.bf16.gmra.mxu0 %v767
        %v778 = vpop.f32.mrf.mxu0
        %v779 = vadd.f32 0.0, %v778
        %v780 = vpop.f32.mrf.mxu0
        %v781 = vadd.f32 0.0, %v780
        %782 = vdwg.mxu0
        %v783 = vadd.f32 %v759, %v779
        %v784 = vadd.f32 %v760, %v781
        %v786 = vunpack.c.l.b16 %v731
        %v787 = vpack.c.b16 %v786, %v786
        %v788 = vshrl.u32 %v741, 16
        %v790 = vshll.u32 %v741, 16
        %v792 = vrot.slane %v790, 1
        %v793 = vor.u32 %v788, %v792
        %v795 = vshll.u32 %v787, 16
        %v797 = vrot.slane %v795, 1
        %v798 = vsel %vm295, %v793, %v797
        %v800 = vsel %vm242, %v798, 0
        %802 = vmatpush.bf16.msra.mxu0 0
        %803 = vmatpush.bf16.msra.mxu0 0
        %804 = vmatpush.bf16.msra.mxu0 0
        %805 = vmatpush.bf16.msra.mxu0 0
        %806 = vmatpush.bf16.msra.mxu0 0
        %807 = vmatpush.bf16.msra.mxu0 0
        %808 = vmatpush.bf16.msra.mxu0 0
        %809 = vmatpush.bf16.msra.mxu0 %v515
        %810 = vmatmul.bf16.gmra.mxu0 %v800
        %v811 = vpop.f32.mrf.mxu0
        %v812 = vadd.f32 0.0, %v811
        %v813 = vpop.f32.mrf.mxu0
        %v814 = vadd.f32 0.0, %v813
        %815 = vdwg.mxu0
        %v816 = vadd.f32 %v783, %v812
        %v817 = vadd.f32 %v784, %v814
        %v818 = vadd.f32 %v816, %v534
        %v819 = vadd.f32 %v817, %v534
        %v820 = vmax.f32 %v818, 0.0
        %v821 = vmax.f32 %v819, 0.0
        %v822 = vmin.f32 %v820, 6.0
        %v823 = vmin.f32 %v821, 6.0
        %s824 = scalar_lea.vmem %s205, 16 [#allocation2]
        %825 = vst.msk [vmem:[%s824] sm:$0xff] %vm542, %v822
        %826 = vst.msk [vmem:[%s824 + $0x8] sm:$0xff] %vm542, %v823
        %v827 = vld [vmem:[%s725] sm:$0xff]
        %v828 = vld [vmem:[%s725 + $0x8] sm:$0xff]
        %v829 = vld [vmem:[%s725 + $0x10] sm:$0x1]
        %v830 = vpack.c.bf16 %v827, %v827
        %v831 = vpack.c.bf16 %v828, %v828
        %v832 = vpack.c.bf16 %v829, %v829
        %v833 = vld [vmem:[%s732] sm:$0xff]
        %v834 = vld [vmem:[%s732 + $0x8] sm:$0xff]
        %v835 = vpack.c.bf16 %v833, %v833
        %v836 = vpack.c.bf16 %v834, %v834
        %v839 = vunpack.c.l.b16 %v835
        %v840 = vunpack.c.l.b16 %v836
        %v841 = vpack.c.b16 %v840, %v839
        %v843 = vsel %vm242, %v841, 0
        %845 = vmatpush.bf16.msra.mxu0 0
        %846 = vmatpush.bf16.msra.mxu0 0
        %847 = vmatpush.bf16.msra.mxu0 0
        %848 = vmatpush.bf16.msra.mxu0 0
        %849 = vmatpush.bf16.msra.mxu0 0
        %850 = vmatpush.bf16.msra.mxu0 0
        %851 = vmatpush.bf16.msra.mxu0 0
        %852 = vmatpush.bf16.msra.mxu0 %v251
        %853 = vmatmul.bf16.gmra.mxu0 %v843
        %v854 = vpop.f32.mrf.mxu0
        %v855 = vadd.f32 0.0, %v854
        %v856 = vpop.f32.mrf.mxu0
        %v857 = vadd.f32 0.0, %v856
        %858 = vdwg.mxu0
        %v861 = vunpack.c.l.b16 %v830
        %v862 = vunpack.c.l.b16 %v831
        %v863 = vpack.c.b16 %v862, %v861
        %v865 = vsel %vm242, %v863, 0
        %867 = vmatpush.bf16.msra.mxu0 0
        %868 = vmatpush.bf16.msra.mxu0 0
        %869 = vmatpush.bf16.msra.mxu0 0
        %870 = vmatpush.bf16.msra.mxu0 0
        %871 = vmatpush.bf16.msra.mxu0 0
        %872 = vmatpush.bf16.msra.mxu0 0
        %873 = vmatpush.bf16.msra.mxu0 0
        %874 = vmatpush.bf16.msra.mxu0 %v276
        %875 = vmatmul.bf16.gmra.mxu0 %v865
        %v876 = vpop.f32.mrf.mxu0
        %v877 = vadd.f32 %v855, %v876
        %v878 = vpop.f32.mrf.mxu0
        %v879 = vadd.f32 %v857, %v878
        %880 = vdwg.mxu0
        %v882 = vunpack.c.l.b16 %v832
        %v883 = vpack.c.b16 %v882, %v882
        %v884 = vshrl.u32 %v863, 16
        %v886 = vshll.u32 %v863, 16
        %v888 = vrot.slane %v886, 1
        %v889 = vor.u32 %v884, %v888
        %v891 = vshll.u32 %v883, 16
        %v893 = vrot.slane %v891, 1
        %v894 = vsel %vm295, %v889, %v893
        %v896 = vsel %vm242, %v894, 0
        %898 = vmatpush.bf16.msra.mxu0 0
        %899 = vmatpush.bf16.msra.mxu0 0
        %900 = vmatpush.bf16.msra.mxu0 0
        %901 = vmatpush.bf16.msra.mxu0 0
        %902 = vmatpush.bf16.msra.mxu0 0
        %903 = vmatpush.bf16.msra.mxu0 0
        %904 = vmatpush.bf16.msra.mxu0 0
        %905 = vmatpush.bf16.msra.mxu0 %v311
        %906 = vmatmul.bf16.gmra.mxu0 %v896
        %v907 = vpop.f32.mrf.mxu0
        %v908 = vadd.f32 0.0, %v907
        %v909 = vpop.f32.mrf.mxu0
        %v910 = vadd.f32 0.0, %v909
        %911 = vdwg.mxu0
        %v912 = vadd.f32 %v877, %v908
        %v913 = vadd.f32 %v879, %v910
        %s914 = scalar_lea.vmem %s210, 120
        %v915 = vld [vmem:[%s914] sm:$0xff]
        %v916 = vld [vmem:[%s914 + $0x8] sm:$0xff]
        %v917 = vld [vmem:[%s914 + $0x10] sm:$0x1]
        %v918 = vpack.c.bf16 %v915, %v915
        %v919 = vpack.c.bf16 %v916, %v916
        %v920 = vpack.c.bf16 %v917, %v917
        %s921 = scalar_lea.vmem %s215, 120
        %v922 = vld [vmem:[%s921] sm:$0xff]
        %v923 = vld [vmem:[%s921 + $0x8] sm:$0xff]
        %v924 = vpack.c.bf16 %v922, %v922
        %v925 = vpack.c.bf16 %v923, %v923
        %v928 = vunpack.c.l.b16 %v918
        %v929 = vunpack.c.l.b16 %v919
        %v930 = vpack.c.b16 %v929, %v928
        %v932 = vsel %vm242, %v930, 0
        %934 = vmatpush.bf16.msra.mxu0 0
        %935 = vmatpush.bf16.msra.mxu0 0
        %936 = vmatpush.bf16.msra.mxu0 0
        %937 = vmatpush.bf16.msra.mxu0 0
        %938 = vmatpush.bf16.msra.mxu0 0
        %939 = vmatpush.bf16.msra.mxu0 0
        %940 = vmatpush.bf16.msra.mxu0 0
        %941 = vmatpush.bf16.msra.mxu0 %v350
        %942 = vmatmul.bf16.gmra.mxu0 %v932
        %v943 = vpop.f32.mrf.mxu0
        %v944 = vadd.f32 0.0, %v943
        %v945 = vpop.f32.mrf.mxu0
        %v946 = vadd.f32 0.0, %v945
        %947 = vdwg.mxu0
        %v948 = vadd.f32 %v912, %v944
        %v949 = vadd.f32 %v913, %v946
        %v952 = vunpack.c.l.b16 %v924
        %v953 = vunpack.c.l.b16 %v925
        %v954 = vpack.c.b16 %v953, %v952
        %v956 = vsel %vm242, %v954, 0
        %958 = vmatpush.bf16.msra.mxu0 0
        %959 = vmatpush.bf16.msra.mxu0 0
        %960 = vmatpush.bf16.msra.mxu0 0
        %961 = vmatpush.bf16.msra.mxu0 0
        %962 = vmatpush.bf16.msra.mxu0 0
        %963 = vmatpush.bf16.msra.mxu0 0
        %964 = vmatpush.bf16.msra.mxu0 0
        %965 = vmatpush.bf16.msra.mxu0 %v377
        %966 = vmatmul.bf16.gmra.mxu0 %v956
        %v967 = vpop.f32.mrf.mxu0
        %v968 = vadd.f32 0.0, %v967
        %v969 = vpop.f32.mrf.mxu0
        %v970 = vadd.f32 0.0, %v969
        %971 = vdwg.mxu0
        %v972 = vadd.f32 %v948, %v968
        %v973 = vadd.f32 %v949, %v970
        %v975 = vunpack.c.l.b16 %v920
        %v976 = vpack.c.b16 %v975, %v975
        %v977 = vshrl.u32 %v930, 16
        %v979 = vshll.u32 %v930, 16
        %v981 = vrot.slane %v979, 1
        %v982 = vor.u32 %v977, %v981
        %v984 = vshll.u32 %v976, 16
        %v986 = vrot.slane %v984, 1
        %v987 = vsel %vm295, %v982, %v986
        %v989 = vsel %vm242, %v987, 0
        %991 = vmatpush.bf16.msra.mxu0 0
        %992 = vmatpush.bf16.msra.mxu0 0
        %993 = vmatpush.bf16.msra.mxu0 0
        %994 = vmatpush.bf16.msra.mxu0 0
        %995 = vmatpush.bf16.msra.mxu0 0
        %996 = vmatpush.bf16.msra.mxu0 0
        %997 = vmatpush.bf16.msra.mxu0 0
        %998 = vmatpush.bf16.msra.mxu0 %v413
        %999 = vmatmul.bf16.gmra.mxu0 %v989
        %v1000 = vpop.f32.mrf.mxu0
        %v1001 = vadd.f32 0.0, %v1000
        %v1002 = vpop.f32.mrf.mxu0
        %v1003 = vadd.f32 0.0, %v1002
        %1004 = vdwg.mxu0
        %v1005 = vadd.f32 %v972, %v1001
        %v1006 = vadd.f32 %v973, %v1003
        %s1007 = scalar_lea.vmem %s210, 144
        %v1008 = vld [vmem:[%s1007] sm:$0xff]
        %v1009 = vld [vmem:[%s1007 + $0x8] sm:$0xff]
        %v1010 = vld [vmem:[%s1007 + $0x10] sm:$0x1]
        %v1011 = vpack.c.bf16 %v1008, %v1008
        %v1012 = vpack.c.bf16 %v1009, %v1009
        %v1013 = vpack.c.bf16 %v1010, %v1010
        %s1014 = scalar_lea.vmem %s215, 144
        %v1015 = vld [vmem:[%s1014] sm:$0xff]
        %v1016 = vld [vmem:[%s1014 + $0x8] sm:$0xff]
        %v1017 = vpack.c.bf16 %v1015, %v1015
        %v1018 = vpack.c.bf16 %v1016, %v1016
        %v1021 = vunpack.c.l.b16 %v1011
        %v1022 = vunpack.c.l.b16 %v1012
        %v1023 = vpack.c.b16 %v1022, %v1021
        %v1025 = vsel %vm242, %v1023, 0
        %1027 = vmatpush.bf16.msra.mxu0 0
        %1028 = vmatpush.bf16.msra.mxu0 0
        %1029 = vmatpush.bf16.msra.mxu0 0
        %1030 = vmatpush.bf16.msra.mxu0 0
        %1031 = vmatpush.bf16.msra.mxu0 0
        %1032 = vmatpush.bf16.msra.mxu0 0
        %1033 = vmatpush.bf16.msra.mxu0 0
        %1034 = vmatpush.bf16.msra.mxu0 %v452
        %1035 = vmatmul.bf16.gmra.mxu0 %v1025
        %v1036 = vpop.f32.mrf.mxu0
        %v1037 = vadd.f32 0.0, %v1036
        %v1038 = vpop.f32.mrf.mxu0
        %v1039 = vadd.f32 0.0, %v1038
        %1040 = vdwg.mxu0
        %v1041 = vadd.f32 %v1005, %v1037
        %v1042 = vadd.f32 %v1006, %v1039
        %v1045 = vunpack.c.l.b16 %v1017
        %v1046 = vunpack.c.l.b16 %v1018
        %v1047 = vpack.c.b16 %v1046, %v1045
        %v1049 = vsel %vm242, %v1047, 0
        %1051 = vmatpush.bf16.msra.mxu0 0
        %1052 = vmatpush.bf16.msra.mxu0 0
        %1053 = vmatpush.bf16.msra.mxu0 0
        %1054 = vmatpush.bf16.msra.mxu0 0
        %1055 = vmatpush.bf16.msra.mxu0 0
        %1056 = vmatpush.bf16.msra.mxu0 0
        %1057 = vmatpush.bf16.msra.mxu0 0
        %1058 = vmatpush.bf16.msra.mxu0 %v479
        %1059 = vmatmul.bf16.gmra.mxu0 %v1049
        %v1060 = vpop.f32.mrf.mxu0
        %v1061 = vadd.f32 0.0, %v1060
        %v1062 = vpop.f32.mrf.mxu0
        %v1063 = vadd.f32 0.0, %v1062
        %1064 = vdwg.mxu0
        %v1065 = vadd.f32 %v1041, %v1061
        %v1066 = vadd.f32 %v1042, %v1063
        %v1068 = vunpack.c.l.b16 %v1013
        %v1069 = vpack.c.b16 %v1068, %v1068
        %v1070 = vshrl.u32 %v1023, 16
        %v1072 = vshll.u32 %v1023, 16
        %v1074 = vrot.slane %v1072, 1
        %v1075 = vor.u32 %v1070, %v1074
        %v1077 = vshll.u32 %v1069, 16
        %v1079 = vrot.slane %v1077, 1
        %v1080 = vsel %vm295, %v1075, %v1079
        %v1082 = vsel %vm242, %v1080, 0
        %1084 = vmatpush.bf16.msra.mxu0 0
        %1085 = vmatpush.bf16.msra.mxu0 0
        %1086 = vmatpush.bf16.msra.mxu0 0
        %1087 = vmatpush.bf16.msra.mxu0 0
        %1088 = vmatpush.bf16.msra.mxu0 0
        %1089 = vmatpush.bf16.msra.mxu0 0
        %1090 = vmatpush.bf16.msra.mxu0 0
        %1091 = vmatpush.bf16.msra.mxu0 %v515
        %1092 = vmatmul.bf16.gmra.mxu0 %v1082
        %v1093 = vpop.f32.mrf.mxu0
        %v1094 = vadd.f32 0.0, %v1093
        %v1095 = vpop.f32.mrf.mxu0
        %v1096 = vadd.f32 0.0, %v1095
        %1097 = vdwg.mxu0
        %v1098 = vadd.f32 %v1065, %v1094
        %v1099 = vadd.f32 %v1066, %v1096
        %v1100 = vadd.f32 %v1098, %v534
        %v1101 = vadd.f32 %v1099, %v534
        %v1102 = vmax.f32 %v1100, 0.0
        %v1103 = vmax.f32 %v1101, 0.0
        %v1104 = vmin.f32 %v1102, 6.0
        %v1105 = vmin.f32 %v1103, 6.0
        %s1106 = scalar_lea.vmem %s205, 32 [#allocation2]
        %1107 = vst.msk [vmem:[%s1106] sm:$0xff] %vm542, %v1104
        %1108 = vst.msk [vmem:[%s1106 + $0x8] sm:$0xff] %vm542, %v1105
        %v1109 = vld [vmem:[%s1007] sm:$0xff]
        %v1110 = vld [vmem:[%s1007 + $0x8] sm:$0xff]
        %v1111 = vld [vmem:[%s1007 + $0x10] sm:$0x1]
        %v1112 = vpack.c.bf16 %v1109, %v1109
        %v1113 = vpack.c.bf16 %v1110, %v1110
        %v1114 = vpack.c.bf16 %v1111, %v1111
        %v1115 = vld [vmem:[%s1014] sm:$0xff]
        %v1116 = vld [vmem:[%s1014 + $0x8] sm:$0xff]
        %v1117 = vpack.c.bf16 %v1115, %v1115
        %v1118 = vpack.c.bf16 %v1116, %v1116
        %v1121 = vunpack.c.l.b16 %v1117
        %v1122 = vunpack.c.l.b16 %v1118
        %v1123 = vpack.c.b16 %v1122, %v1121
        %v1125 = vsel %vm242, %v1123, 0
        %1127 = vmatpush.bf16.msra.mxu0 0
        %1128 = vmatpush.bf16.msra.mxu0 0
        %1129 = vmatpush.bf16.msra.mxu0 0
        %1130 = vmatpush.bf16.msra.mxu0 0
        %1131 = vmatpush.bf16.msra.mxu0 0
        %1132 = vmatpush.bf16.msra.mxu0 0
        %1133 = vmatpush.bf16.msra.mxu0 0
        %1134 = vmatpush.bf16.msra.mxu0 %v251
        %1135 = vmatmul.bf16.gmra.mxu0 %v1125
        %v1136 = vpop.f32.mrf.mxu0
        %v1137 = vadd.f32 0.0, %v1136
        %v1138 = vpop.f32.mrf.mxu0
        %v1139 = vadd.f32 0.0, %v1138
        %1140 = vdwg.mxu0
        %v1143 = vunpack.c.l.b16 %v1112
        %v1144 = vunpack.c.l.b16 %v1113
        %v1145 = vpack.c.b16 %v1144, %v1143
        %v1147 = vsel %vm242, %v1145, 0
        %1149 = vmatpush.bf16.msra.mxu0 0
        %1150 = vmatpush.bf16.msra.mxu0 0
        %1151 = vmatpush.bf16.msra.mxu0 0
        %1152 = vmatpush.bf16.msra.mxu0 0
        %1153 = vmatpush.bf16.msra.mxu0 0
        %1154 = vmatpush.bf16.msra.mxu0 0
        %1155 = vmatpush.bf16.msra.mxu0 0
        %1156 = vmatpush.bf16.msra.mxu0 %v276
        %1157 = vmatmul.bf16.gmra.mxu0 %v1147
        %v1158 = vpop.f32.mrf.mxu0
        %v1159 = vadd.f32 %v1137, %v1158
        %v1160 = vpop.f32.mrf.mxu0
        %v1161 = vadd.f32 %v1139, %v1160
        %1162 = vdwg.mxu0
        %v1164 = vunpack.c.l.b16 %v1114
        %v1165 = vpack.c.b16 %v1164, %v1164
        %v1166 = vshrl.u32 %v1145, 16
        %v1168 = vshll.u32 %v1145, 16
        %v1170 = vrot.slane %v1168, 1
        %v1171 = vor.u32 %v1166, %v1170
        %v1173 = vshll.u32 %v1165, 16
        %v1175 = vrot.slane %v1173, 1
        %v1176 = vsel %vm295, %v1171, %v1175
        %v1178 = vsel %vm242, %v1176, 0
        %1180 = vmatpush.bf16.msra.mxu0 0
        %1181 = vmatpush.bf16.msra.mxu0 0
        %1182 = vmatpush.bf16.msra.mxu0 0
        %1183 = vmatpush.bf16.msra.mxu0 0
        %1184 = vmatpush.bf16.msra.mxu0 0
        %1185 = vmatpush.bf16.msra.mxu0 0
        %1186 = vmatpush.bf16.msra.mxu0 0
        %1187 = vmatpush.bf16.msra.mxu0 %v311
        %1188 = vmatmul.bf16.gmra.mxu0 %v1178
        %v1189 = vpop.f32.mrf.mxu0
        %v1190 = vadd.f32 0.0, %v1189
        %v1191 = vpop.f32.mrf.mxu0
        %v1192 = vadd.f32 0.0, %v1191
        %1193 = vdwg.mxu0
        %v1194 = vadd.f32 %v1159, %v1190
        %v1195 = vadd.f32 %v1161, %v1192
        %s1196 = scalar_lea.vmem %s210, 168
        %v1197 = vld [vmem:[%s1196] sm:$0xff]
        %v1198 = vld [vmem:[%s1196 + $0x8] sm:$0xff]
        %v1199 = vld [vmem:[%s1196 + $0x10] sm:$0x1]
        %v1200 = vpack.c.bf16 %v1197, %v1197
        %v1201 = vpack.c.bf16 %v1198, %v1198
        %v1202 = vpack.c.bf16 %v1199, %v1199
        %s1203 = scalar_lea.vmem %s215, 168
        %v1204 = vld [vmem:[%s1203] sm:$0xff]
        %v1205 = vld [vmem:[%s1203 + $0x8] sm:$0xff]
        %v1206 = vpack.c.bf16 %v1204, %v1204
        %v1207 = vpack.c.bf16 %v1205, %v1205
        %v1210 = vunpack.c.l.b16 %v1200
        %v1211 = vunpack.c.l.b16 %v1201
        %v1212 = vpack.c.b16 %v1211, %v1210
        %v1214 = vsel %vm242, %v1212, 0
        %1216 = vmatpush.bf16.msra.mxu0 0
        %1217 = vmatpush.bf16.msra.mxu0 0
        %1218 = vmatpush.bf16.msra.mxu0 0
        %1219 = vmatpush.bf16.msra.mxu0 0
        %1220 = vmatpush.bf16.msra.mxu0 0
        %1221 = vmatpush.bf16.msra.mxu0 0
        %1222 = vmatpush.bf16.msra.mxu0 0
        %1223 = vmatpush.bf16.msra.mxu0 %v350
        %1224 = vmatmul.bf16.gmra.mxu0 %v1214
        %v1225 = vpop.f32.mrf.mxu0
        %v1226 = vadd.f32 0.0, %v1225
        %v1227 = vpop.f32.mrf.mxu0
        %v1228 = vadd.f32 0.0, %v1227
        %1229 = vdwg.mxu0
        %v1230 = vadd.f32 %v1194, %v1226
        %v1231 = vadd.f32 %v1195, %v1228
        %v1234 = vunpack.c.l.b16 %v1206
        %v1235 = vunpack.c.l.b16 %v1207
        %v1236 = vpack.c.b16 %v1235, %v1234
        %v1238 = vsel %vm242, %v1236, 0
        %1240 = vmatpush.bf16.msra.mxu0 0
        %1241 = vmatpush.bf16.msra.mxu0 0
        %1242 = vmatpush.bf16.msra.mxu0 0
        %1243 = vmatpush.bf16.msra.mxu0 0
        %1244 = vmatpush.bf16.msra.mxu0 0
        %1245 = vmatpush.bf16.msra.mxu0 0
        %1246 = vmatpush.bf16.msra.mxu0 0
        %1247 = vmatpush.bf16.msra.mxu0 %v377
        %1248 = vmatmul.bf16.gmra.mxu0 %v1238
        %v1249 = vpop.f32.mrf.mxu0
        %v1250 = vadd.f32 0.0, %v1249
        %v1251 = vpop.f32.mrf.mxu0
        %v1252 = vadd.f32 0.0, %v1251
        %1253 = vdwg.mxu0
        %v1254 = vadd.f32 %v1230, %v1250
        %v1255 = vadd.f32 %v1231, %v1252
        %v1257 = vunpack.c.l.b16 %v1202
        %v1258 = vpack.c.b16 %v1257, %v1257
        %v1259 = vshrl.u32 %v1212, 16
        %v1261 = vshll.u32 %v1212, 16
        %v1263 = vrot.slane %v1261, 1
        %v1264 = vor.u32 %v1259, %v1263
        %v1266 = vshll.u32 %v1258, 16
        %v1268 = vrot.slane %v1266, 1
        %v1269 = vsel %vm295, %v1264, %v1268
        %v1271 = vsel %vm242, %v1269, 0
        %1273 = vmatpush.bf16.msra.mxu0 0
        %1274 = vmatpush.bf16.msra.mxu0 0
        %1275 = vmatpush.bf16.msra.mxu0 0
        %1276 = vmatpush.bf16.msra.mxu0 0
        %1277 = vmatpush.bf16.msra.mxu0 0
        %1278 = vmatpush.bf16.msra.mxu0 0
        %1279 = vmatpush.bf16.msra.mxu0 0
        %1280 = vmatpush.bf16.msra.mxu0 %v413
        %1281 = vmatmul.bf16.gmra.mxu0 %v1271
        %v1282 = vpop.f32.mrf.mxu0
        %v1283 = vadd.f32 0.0, %v1282
        %v1284 = vpop.f32.mrf.mxu0
        %v1285 = vadd.f32 0.0, %v1284
        %1286 = vdwg.mxu0
        %v1287 = vadd.f32 %v1254, %v1283
        %v1288 = vadd.f32 %v1255, %v1285
        %s1289 = scalar_lea.vmem %s210, 192
        %v1290 = vld [vmem:[%s1289] sm:$0xff]
        %v1291 = vld [vmem:[%s1289 + $0x8] sm:$0xff]
        %v1292 = vld [vmem:[%s1289 + $0x10] sm:$0x1]
        %v1293 = vpack.c.bf16 %v1290, %v1290
        %v1294 = vpack.c.bf16 %v1291, %v1291
        %v1295 = vpack.c.bf16 %v1292, %v1292
        %s1296 = scalar_lea.vmem %s215, 192
        %v1297 = vld [vmem:[%s1296] sm:$0xff]
        %v1298 = vld [vmem:[%s1296 + $0x8] sm:$0xff]
        %v1299 = vpack.c.bf16 %v1297, %v1297
        %v1300 = vpack.c.bf16 %v1298, %v1298
        %v1303 = vunpack.c.l.b16 %v1293
        %v1304 = vunpack.c.l.b16 %v1294
        %v1305 = vpack.c.b16 %v1304, %v1303
        %v1307 = vsel %vm242, %v1305, 0
        %1309 = vmatpush.bf16.msra.mxu0 0
        %1310 = vmatpush.bf16.msra.mxu0 0
        %1311 = vmatpush.bf16.msra.mxu0 0
        %1312 = vmatpush.bf16.msra.mxu0 0
        %1313 = vmatpush.bf16.msra.mxu0 0
        %1314 = vmatpush.bf16.msra.mxu0 0
        %1315 = vmatpush.bf16.msra.mxu0 0
        %1316 = vmatpush.bf16.msra.mxu0 %v452
        %1317 = vmatmul.bf16.gmra.mxu0 %v1307
        %v1318 = vpop.f32.mrf.mxu0
        %v1319 = vadd.f32 0.0, %v1318
        %v1320 = vpop.f32.mrf.mxu0
        %v1321 = vadd.f32 0.0, %v1320
        %1322 = vdwg.mxu0
        %v1323 = vadd.f32 %v1287, %v1319
        %v1324 = vadd.f32 %v1288, %v1321
        %v1327 = vunpack.c.l.b16 %v1299
        %v1328 = vunpack.c.l.b16 %v1300
        %v1329 = vpack.c.b16 %v1328, %v1327
        %v1331 = vsel %vm242, %v1329, 0
        %1333 = vmatpush.bf16.msra.mxu0 0
        %1334 = vmatpush.bf16.msra.mxu0 0
        %1335 = vmatpush.bf16.msra.mxu0 0
        %1336 = vmatpush.bf16.msra.mxu0 0
        %1337 = vmatpush.bf16.msra.mxu0 0
        %1338 = vmatpush.bf16.msra.mxu0 0
        %1339 = vmatpush.bf16.msra.mxu0 0
        %1340 = vmatpush.bf16.msra.mxu0 %v479
        %1341 = vmatmul.bf16.gmra.mxu0 %v1331
        %v1342 = vpop.f32.mrf.mxu0
        %v1343 = vadd.f32 0.0, %v1342
        %v1344 = vpop.f32.mrf.mxu0
        %v1345 = vadd.f32 0.0, %v1344
        %1346 = vdwg.mxu0
        %v1347 = vadd.f32 %v1323, %v1343
        %v1348 = vadd.f32 %v1324, %v1345
        %v1350 = vunpack.c.l.b16 %v1295
        %v1351 = vpack.c.b16 %v1350, %v1350
        %v1352 = vshrl.u32 %v1305, 16
        %v1354 = vshll.u32 %v1305, 16
        %v1356 = vrot.slane %v1354, 1
        %v1357 = vor.u32 %v1352, %v1356
        %v1359 = vshll.u32 %v1351, 16
        %v1361 = vrot.slane %v1359, 1
        %v1362 = vsel %vm295, %v1357, %v1361
        %v1364 = vsel %vm242, %v1362, 0
        %1366 = vmatpush.bf16.msra.mxu0 0
        %1367 = vmatpush.bf16.msra.mxu0 0
        %1368 = vmatpush.bf16.msra.mxu0 0
        %1369 = vmatpush.bf16.msra.mxu0 0
        %1370 = vmatpush.bf16.msra.mxu0 0
        %1371 = vmatpush.bf16.msra.mxu0 0
        %1372 = vmatpush.bf16.msra.mxu0 0
        %1373 = vmatpush.bf16.msra.mxu0 %v515
        %1374 = vmatmul.bf16.gmra.mxu0 %v1364
        %v1375 = vpop.f32.mrf.mxu0
        %v1376 = vadd.f32 0.0, %v1375
        %v1377 = vpop.f32.mrf.mxu0
        %v1378 = vadd.f32 0.0, %v1377
        %1379 = vdwg.mxu0
        %v1380 = vadd.f32 %v1347, %v1376
        %v1381 = vadd.f32 %v1348, %v1378
        %v1382 = vadd.f32 %v1380, %v534
        %v1383 = vadd.f32 %v1381, %v534
        %v1384 = vmax.f32 %v1382, 0.0
        %v1385 = vmax.f32 %v1383, 0.0
        %v1386 = vmin.f32 %v1384, 6.0
        %v1387 = vmin.f32 %v1385, 6.0
        %s1388 = scalar_lea.vmem %s205, 48 [#allocation2]
        %1389 = vst.msk [vmem:[%s1388] sm:$0xff] %vm542, %v1386
        %1390 = vst.msk [vmem:[%s1388 + $0x8] sm:$0xff] %vm542, %v1387
        %v1391 = vld [vmem:[%s1289] sm:$0xff]
        %v1392 = vld [vmem:[%s1289 + $0x8] sm:$0xff]
        %v1393 = vld [vmem:[%s1289 + $0x10] sm:$0x1]
        %v1394 = vpack.c.bf16 %v1391, %v1391
        %v1395 = vpack.c.bf16 %v1392, %v1392
        %v1396 = vpack.c.bf16 %v1393, %v1393
        %v1397 = vld [vmem:[%s1296] sm:$0xff]
        %v1398 = vld [vmem:[%s1296 + $0x8] sm:$0xff]
        %v1399 = vpack.c.bf16 %v1397, %v1397
        %v1400 = vpack.c.bf16 %v1398, %v1398
        %v1403 = vunpack.c.l.b16 %v1399
        %v1404 = vunpack.c.l.b16 %v1400
        %v1405 = vpack.c.b16 %v1404, %v1403
        %v1407 = vsel %vm242, %v1405, 0
        %1409 = vmatpush.bf16.msra.mxu0 0
        %1410 = vmatpush.bf16.msra.mxu0 0
        %1411 = vmatpush.bf16.msra.mxu0 0
        %1412 = vmatpush.bf16.msra.mxu0 0
        %1413 = vmatpush.bf16.msra.mxu0 0
        %1414 = vmatpush.bf16.msra.mxu0 0
        %1415 = vmatpush.bf16.msra.mxu0 0
        %1416 = vmatpush.bf16.msra.mxu0 %v251
        %1417 = vmatmul.bf16.gmra.mxu0 %v1407
        %v1418 = vpop.f32.mrf.mxu0
        %v1419 = vadd.f32 0.0, %v1418
        %v1420 = vpop.f32.mrf.mxu0
        %v1421 = vadd.f32 0.0, %v1420
        %1422 = vdwg.mxu0
        %v1425 = vunpack.c.l.b16 %v1394
        %v1426 = vunpack.c.l.b16 %v1395
        %v1427 = vpack.c.b16 %v1426, %v1425
        %v1429 = vsel %vm242, %v1427, 0
        %1431 = vmatpush.bf16.msra.mxu0 0
        %1432 = vmatpush.bf16.msra.mxu0 0
        %1433 = vmatpush.bf16.msra.mxu0 0
        %1434 = vmatpush.bf16.msra.mxu0 0
        %1435 = vmatpush.bf16.msra.mxu0 0
        %1436 = vmatpush.bf16.msra.mxu0 0
        %1437 = vmatpush.bf16.msra.mxu0 0
        %1438 = vmatpush.bf16.msra.mxu0 %v276
        %1439 = vmatmul.bf16.gmra.mxu0 %v1429
        %v1440 = vpop.f32.mrf.mxu0
        %v1441 = vadd.f32 %v1419, %v1440
        %v1442 = vpop.f32.mrf.mxu0
        %v1443 = vadd.f32 %v1421, %v1442
        %1444 = vdwg.mxu0
        %v1446 = vunpack.c.l.b16 %v1396
        %v1447 = vpack.c.b16 %v1446, %v1446
        %v1448 = vshrl.u32 %v1427, 16
        %v1450 = vshll.u32 %v1427, 16
        %v1452 = vrot.slane %v1450, 1
        %v1453 = vor.u32 %v1448, %v1452
        %v1455 = vshll.u32 %v1447, 16
        %v1457 = vrot.slane %v1455, 1
        %v1458 = vsel %vm295, %v1453, %v1457
        %v1460 = vsel %vm242, %v1458, 0
        %1462 = vmatpush.bf16.msra.mxu0 0
        %1463 = vmatpush.bf16.msra.mxu0 0
        %1464 = vmatpush.bf16.msra.mxu0 0
        %1465 = vmatpush.bf16.msra.mxu0 0
        %1466 = vmatpush.bf16.msra.mxu0 0
        %1467 = vmatpush.bf16.msra.mxu0 0
        %1468 = vmatpush.bf16.msra.mxu0 0
        %1469 = vmatpush.bf16.msra.mxu0 %v311
        %1470 = vmatmul.bf16.gmra.mxu0 %v1460
        %v1471 = vpop.f32.mrf.mxu0
        %v1472 = vadd.f32 0.0, %v1471
        %v1473 = vpop.f32.mrf.mxu0
        %v1474 = vadd.f32 0.0, %v1473
        %1475 = vdwg.mxu0
        %v1476 = vadd.f32 %v1441, %v1472
        %v1477 = vadd.f32 %v1443, %v1474
        %s1478 = scalar_lea.vmem %s210, 216
        %v1479 = vld [vmem:[%s1478] sm:$0xff]
        %v1480 = vld [vmem:[%s1478 + $0x8] sm:$0xff]
        %v1481 = vld [vmem:[%s1478 + $0x10] sm:$0x1]
        %v1482 = vpack.c.bf16 %v1479, %v1479
        %v1483 = vpack.c.bf16 %v1480, %v1480
        %v1484 = vpack.c.bf16 %v1481, %v1481
        %s1485 = scalar_lea.vmem %s215, 216
        %v1486 = vld [vmem:[%s1485] sm:$0xff]
        %v1487 = vld [vmem:[%s1485 + $0x8] sm:$0xff]
        %v1488 = vpack.c.bf16 %v1486, %v1486
        %v1489 = vpack.c.bf16 %v1487, %v1487
        %v1492 = vunpack.c.l.b16 %v1482
        %v1493 = vunpack.c.l.b16 %v1483
        %v1494 = vpack.c.b16 %v1493, %v1492
        %v1496 = vsel %vm242, %v1494, 0
        %1498 = vmatpush.bf16.msra.mxu0 0
        %1499 = vmatpush.bf16.msra.mxu0 0
        %1500 = vmatpush.bf16.msra.mxu0 0
        %1501 = vmatpush.bf16.msra.mxu0 0
        %1502 = vmatpush.bf16.msra.mxu0 0
        %1503 = vmatpush.bf16.msra.mxu0 0
        %1504 = vmatpush.bf16.msra.mxu0 0
        %1505 = vmatpush.bf16.msra.mxu0 %v350
        %1506 = vmatmul.bf16.gmra.mxu0 %v1496
        %v1507 = vpop.f32.mrf.mxu0
        %v1508 = vadd.f32 0.0, %v1507
        %v1509 = vpop.f32.mrf.mxu0
        %v1510 = vadd.f32 0.0, %v1509
        %1511 = vdwg.mxu0
        %v1512 = vadd.f32 %v1476, %v1508
        %v1513 = vadd.f32 %v1477, %v1510
        %v1516 = vunpack.c.l.b16 %v1488
        %v1517 = vunpack.c.l.b16 %v1489
        %v1518 = vpack.c.b16 %v1517, %v1516
        %v1520 = vsel %vm242, %v1518, 0
        %1522 = vmatpush.bf16.msra.mxu0 0
        %1523 = vmatpush.bf16.msra.mxu0 0
        %1524 = vmatpush.bf16.msra.mxu0 0
        %1525 = vmatpush.bf16.msra.mxu0 0
        %1526 = vmatpush.bf16.msra.mxu0 0
        %1527 = vmatpush.bf16.msra.mxu0 0
        %1528 = vmatpush.bf16.msra.mxu0 0
        %1529 = vmatpush.bf16.msra.mxu0 %v377
        %1530 = vmatmul.bf16.gmra.mxu0 %v1520
        %v1531 = vpop.f32.mrf.mxu0
        %v1532 = vadd.f32 0.0, %v1531
        %v1533 = vpop.f32.mrf.mxu0
        %v1534 = vadd.f32 0.0, %v1533
        %1535 = vdwg.mxu0
        %v1536 = vadd.f32 %v1512, %v1532
        %v1537 = vadd.f32 %v1513, %v1534
        %v1539 = vunpack.c.l.b16 %v1484
        %v1540 = vpack.c.b16 %v1539, %v1539
        %v1541 = vshrl.u32 %v1494, 16
        %v1543 = vshll.u32 %v1494, 16
        %v1545 = vrot.slane %v1543, 1
        %v1546 = vor.u32 %v1541, %v1545
        %v1548 = vshll.u32 %v1540, 16
        %v1550 = vrot.slane %v1548, 1
        %v1551 = vsel %vm295, %v1546, %v1550
        %v1553 = vsel %vm242, %v1551, 0
        %1555 = vmatpush.bf16.msra.mxu0 0
        %1556 = vmatpush.bf16.msra.mxu0 0
        %1557 = vmatpush.bf16.msra.mxu0 0
        %1558 = vmatpush.bf16.msra.mxu0 0
        %1559 = vmatpush.bf16.msra.mxu0 0
        %1560 = vmatpush.bf16.msra.mxu0 0
        %1561 = vmatpush.bf16.msra.mxu0 0
        %1562 = vmatpush.bf16.msra.mxu0 %v413
        %1563 = vmatmul.bf16.gmra.mxu0 %v1553
        %v1564 = vpop.f32.mrf.mxu0
        %v1565 = vadd.f32 0.0, %v1564
        %v1566 = vpop.f32.mrf.mxu0
        %v1567 = vadd.f32 0.0, %v1566
        %1568 = vdwg.mxu0
        %v1569 = vadd.f32 %v1536, %v1565
        %v1570 = vadd.f32 %v1537, %v1567
        %s1571 = scalar_lea.vmem %s210, 240
        %v1572 = vld [vmem:[%s1571] sm:$0xff]
        %v1573 = vld [vmem:[%s1571 + $0x8] sm:$0xff]
        %v1574 = vld [vmem:[%s1571 + $0x10] sm:$0x1]
        %v1575 = vpack.c.bf16 %v1572, %v1572
        %v1576 = vpack.c.bf16 %v1573, %v1573
        %v1577 = vpack.c.bf16 %v1574, %v1574
        %s1578 = scalar_lea.vmem %s215, 240
        %v1579 = vld [vmem:[%s1578] sm:$0xff]
        %v1580 = vld [vmem:[%s1578 + $0x8] sm:$0xff]
        %v1581 = vpack.c.bf16 %v1579, %v1579
        %v1582 = vpack.c.bf16 %v1580, %v1580
        %v1585 = vunpack.c.l.b16 %v1575
        %v1586 = vunpack.c.l.b16 %v1576
        %v1587 = vpack.c.b16 %v1586, %v1585
        %v1589 = vsel %vm242, %v1587, 0
        %1591 = vmatpush.bf16.msra.mxu0 0
        %1592 = vmatpush.bf16.msra.mxu0 0
        %1593 = vmatpush.bf16.msra.mxu0 0
        %1594 = vmatpush.bf16.msra.mxu0 0
        %1595 = vmatpush.bf16.msra.mxu0 0
        %1596 = vmatpush.bf16.msra.mxu0 0
        %1597 = vmatpush.bf16.msra.mxu0 0
        %1598 = vmatpush.bf16.msra.mxu0 %v452
        %1599 = vmatmul.bf16.gmra.mxu0 %v1589
        %v1600 = vpop.f32.mrf.mxu0
        %v1601 = vadd.f32 0.0, %v1600
        %v1602 = vpop.f32.mrf.mxu0
        %v1603 = vadd.f32 0.0, %v1602
        %1604 = vdwg.mxu0
        %v1605 = vadd.f32 %v1569, %v1601
        %v1606 = vadd.f32 %v1570, %v1603
        %v1609 = vunpack.c.l.b16 %v1581
        %v1610 = vunpack.c.l.b16 %v1582
        %v1611 = vpack.c.b16 %v1610, %v1609
        %v1613 = vsel %vm242, %v1611, 0
        %1615 = vmatpush.bf16.msra.mxu0 0
        %1616 = vmatpush.bf16.msra.mxu0 0
        %1617 = vmatpush.bf16.msra.mxu0 0
        %1618 = vmatpush.bf16.msra.mxu0 0
        %1619 = vmatpush.bf16.msra.mxu0 0
        %1620 = vmatpush.bf16.msra.mxu0 0
        %1621 = vmatpush.bf16.msra.mxu0 0
        %1622 = vmatpush.bf16.msra.mxu0 %v479
        %1623 = vmatmul.bf16.gmra.mxu0 %v1613
        %v1624 = vpop.f32.mrf.mxu0
        %v1625 = vadd.f32 0.0, %v1624
        %v1626 = vpop.f32.mrf.mxu0
        %v1627 = vadd.f32 0.0, %v1626
        %1628 = vdwg.mxu0
        %v1629 = vadd.f32 %v1605, %v1625
        %v1630 = vadd.f32 %v1606, %v1627
        %v1632 = vunpack.c.l.b16 %v1577
        %v1633 = vpack.c.b16 %v1632, %v1632
        %v1634 = vshrl.u32 %v1587, 16
        %v1636 = vshll.u32 %v1587, 16
        %v1638 = vrot.slane %v1636, 1
        %v1639 = vor.u32 %v1634, %v1638
        %v1641 = vshll.u32 %v1633, 16
        %v1643 = vrot.slane %v1641, 1
        %v1644 = vsel %vm295, %v1639, %v1643
        %v1646 = vsel %vm242, %v1644, 0
        %1648 = vmatpush.bf16.msra.mxu0 0
        %1649 = vmatpush.bf16.msra.mxu0 0
        %1650 = vmatpush.bf16.msra.mxu0 0
        %1651 = vmatpush.bf16.msra.mxu0 0
        %1652 = vmatpush.bf16.msra.mxu0 0
        %1653 = vmatpush.bf16.msra.mxu0 0
        %1654 = vmatpush.bf16.msra.mxu0 0
        %1655 = vmatpush.bf16.msra.mxu0 %v515
        %1656 = vmatmul.bf16.gmra.mxu0 %v1646
        %v1657 = vpop.f32.mrf.mxu0
        %v1658 = vadd.f32 0.0, %v1657
        %v1659 = vpop.f32.mrf.mxu0
        %v1660 = vadd.f32 0.0, %v1659
        %1661 = vdwg.mxu0
        %v1662 = vadd.f32 %v1629, %v1658
        %v1663 = vadd.f32 %v1630, %v1660
        %v1664 = vadd.f32 %v1662, %v534
        %v1665 = vadd.f32 %v1663, %v534
        %v1666 = vmax.f32 %v1664, 0.0
        %v1667 = vmax.f32 %v1665, 0.0
        %v1668 = vmin.f32 %v1666, 6.0
        %v1669 = vmin.f32 %v1667, 6.0
        %s1670 = scalar_lea.vmem %s205, 64 [#allocation2]
        %1671 = vst.msk [vmem:[%s1670] sm:$0xff] %vm542, %v1668
        %1672 = vst.msk [vmem:[%s1670 + $0x8] sm:$0xff] %vm542, %v1669
        %v1673 = vld [vmem:[%s1571] sm:$0xff]
        %v1674 = vld [vmem:[%s1571 + $0x8] sm:$0xff]
        %v1675 = vld [vmem:[%s1571 + $0x10] sm:$0x1]
        %v1676 = vpack.c.bf16 %v1673, %v1673
        %v1677 = vpack.c.bf16 %v1674, %v1674
        %v1678 = vpack.c.bf16 %v1675, %v1675
        %v1679 = vld [vmem:[%s1578] sm:$0xff]
        %v1680 = vld [vmem:[%s1578 + $0x8] sm:$0xff]
        %v1681 = vpack.c.bf16 %v1679, %v1679
        %v1682 = vpack.c.bf16 %v1680, %v1680
        %v1685 = vunpack.c.l.b16 %v1681
        %v1686 = vunpack.c.l.b16 %v1682
        %v1687 = vpack.c.b16 %v1686, %v1685
        %v1689 = vsel %vm242, %v1687, 0
        %1691 = vmatpush.bf16.msra.mxu0 0
        %1692 = vmatpush.bf16.msra.mxu0 0
        %1693 = vmatpush.bf16.msra.mxu0 0
        %1694 = vmatpush.bf16.msra.mxu0 0
        %1695 = vmatpush.bf16.msra.mxu0 0
        %1696 = vmatpush.bf16.msra.mxu0 0
        %1697 = vmatpush.bf16.msra.mxu0 0
        %1698 = vmatpush.bf16.msra.mxu0 %v251
        %1699 = vmatmul.bf16.gmra.mxu0 %v1689
        %v1700 = vpop.f32.mrf.mxu0
        %v1701 = vadd.f32 0.0, %v1700
        %v1702 = vpop.f32.mrf.mxu0
        %v1703 = vadd.f32 0.0, %v1702
        %1704 = vdwg.mxu0
        %v1707 = vunpack.c.l.b16 %v1676
        %v1708 = vunpack.c.l.b16 %v1677
        %v1709 = vpack.c.b16 %v1708, %v1707
        %v1711 = vsel %vm242, %v1709, 0
        %1713 = vmatpush.bf16.msra.mxu0 0
        %1714 = vmatpush.bf16.msra.mxu0 0
        %1715 = vmatpush.bf16.msra.mxu0 0
        %1716 = vmatpush.bf16.msra.mxu0 0
        %1717 = vmatpush.bf16.msra.mxu0 0
        %1718 = vmatpush.bf16.msra.mxu0 0
        %1719 = vmatpush.bf16.msra.mxu0 0
        %1720 = vmatpush.bf16.msra.mxu0 %v276
        %1721 = vmatmul.bf16.gmra.mxu0 %v1711
        %v1722 = vpop.f32.mrf.mxu0
        %v1723 = vadd.f32 %v1701, %v1722
        %v1724 = vpop.f32.mrf.mxu0
        %v1725 = vadd.f32 %v1703, %v1724
        %1726 = vdwg.mxu0
        %v1728 = vunpack.c.l.b16 %v1678
        %v1729 = vpack.c.b16 %v1728, %v1728
        %v1730 = vshrl.u32 %v1709, 16
        %v1732 = vshll.u32 %v1709, 16
        %v1734 = vrot.slane %v1732, 1
        %v1735 = vor.u32 %v1730, %v1734
        %v1737 = vshll.u32 %v1729, 16
        %v1739 = vrot.slane %v1737, 1
        %v1740 = vsel %vm295, %v1735, %v1739
        %v1742 = vsel %vm242, %v1740, 0
        %1744 = vmatpush.bf16.msra.mxu0 0
        %1745 = vmatpush.bf16.msra.mxu0 0
        %1746 = vmatpush.bf16.msra.mxu0 0
        %1747 = vmatpush.bf16.msra.mxu0 0
        %1748 = vmatpush.bf16.msra.mxu0 0
        %1749 = vmatpush.bf16.msra.mxu0 0
        %1750 = vmatpush.bf16.msra.mxu0 0
        %1751 = vmatpush.bf16.msra.mxu0 %v311
        %1752 = vmatmul.bf16.gmra.mxu0 %v1742
        %v1753 = vpop.f32.mrf.mxu0
        %v1754 = vadd.f32 0.0, %v1753
        %v1755 = vpop.f32.mrf.mxu0
        %v1756 = vadd.f32 0.0, %v1755
        %1757 = vdwg.mxu0
        %v1758 = vadd.f32 %v1723, %v1754
        %v1759 = vadd.f32 %v1725, %v1756
        %s1760 = scalar_lea.vmem %s210, 264
        %v1761 = vld [vmem:[%s1760] sm:$0xff]
        %v1762 = vld [vmem:[%s1760 + $0x8] sm:$0xff]
        %v1763 = vld [vmem:[%s1760 + $0x10] sm:$0x1]
        %v1764 = vpack.c.bf16 %v1761, %v1761
        %v1765 = vpack.c.bf16 %v1762, %v1762
        %v1766 = vpack.c.bf16 %v1763, %v1763
        %s1767 = scalar_lea.vmem %s215, 264
        %v1768 = vld [vmem:[%s1767] sm:$0xff]
        %v1769 = vld [vmem:[%s1767 + $0x8] sm:$0xff]
        %v1770 = vpack.c.bf16 %v1768, %v1768
        %v1771 = vpack.c.bf16 %v1769, %v1769
        %v1774 = vunpack.c.l.b16 %v1764
        %v1775 = vunpack.c.l.b16 %v1765
        %v1776 = vpack.c.b16 %v1775, %v1774
        %v1778 = vsel %vm242, %v1776, 0
        %1780 = vmatpush.bf16.msra.mxu0 0
        %1781 = vmatpush.bf16.msra.mxu0 0
        %1782 = vmatpush.bf16.msra.mxu0 0
        %1783 = vmatpush.bf16.msra.mxu0 0
        %1784 = vmatpush.bf16.msra.mxu0 0
        %1785 = vmatpush.bf16.msra.mxu0 0
        %1786 = vmatpush.bf16.msra.mxu0 0
        %1787 = vmatpush.bf16.msra.mxu0 %v350
        %1788 = vmatmul.bf16.gmra.mxu0 %v1778
        %v1789 = vpop.f32.mrf.mxu0
        %v1790 = vadd.f32 0.0, %v1789
        %v1791 = vpop.f32.mrf.mxu0
        %v1792 = vadd.f32 0.0, %v1791
        %1793 = vdwg.mxu0
        %v1794 = vadd.f32 %v1758, %v1790
        %v1795 = vadd.f32 %v1759, %v1792
        %v1798 = vunpack.c.l.b16 %v1770
        %v1799 = vunpack.c.l.b16 %v1771
        %v1800 = vpack.c.b16 %v1799, %v1798
        %v1802 = vsel %vm242, %v1800, 0
        %1804 = vmatpush.bf16.msra.mxu0 0
        %1805 = vmatpush.bf16.msra.mxu0 0
        %1806 = vmatpush.bf16.msra.mxu0 0
        %1807 = vmatpush.bf16.msra.mxu0 0
        %1808 = vmatpush.bf16.msra.mxu0 0
        %1809 = vmatpush.bf16.msra.mxu0 0
        %1810 = vmatpush.bf16.msra.mxu0 0
        %1811 = vmatpush.bf16.msra.mxu0 %v377
        %1812 = vmatmul.bf16.gmra.mxu0 %v1802
        %v1813 = vpop.f32.mrf.mxu0
        %v1814 = vadd.f32 0.0, %v1813
        %v1815 = vpop.f32.mrf.mxu0
        %v1816 = vadd.f32 0.0, %v1815
        %1817 = vdwg.mxu0
        %v1818 = vadd.f32 %v1794, %v1814
        %v1819 = vadd.f32 %v1795, %v1816
        %v1821 = vunpack.c.l.b16 %v1766
        %v1822 = vpack.c.b16 %v1821, %v1821
        %v1823 = vshrl.u32 %v1776, 16
        %v1825 = vshll.u32 %v1776, 16
        %v1827 = vrot.slane %v1825, 1
        %v1828 = vor.u32 %v1823, %v1827
        %v1830 = vshll.u32 %v1822, 16
        %v1832 = vrot.slane %v1830, 1
        %v1833 = vsel %vm295, %v1828, %v1832
        %v1835 = vsel %vm242, %v1833, 0
        %1837 = vmatpush.bf16.msra.mxu0 0
        %1838 = vmatpush.bf16.msra.mxu0 0
        %1839 = vmatpush.bf16.msra.mxu0 0
        %1840 = vmatpush.bf16.msra.mxu0 0
        %1841 = vmatpush.bf16.msra.mxu0 0
        %1842 = vmatpush.bf16.msra.mxu0 0
        %1843 = vmatpush.bf16.msra.mxu0 0
        %1844 = vmatpush.bf16.msra.mxu0 %v413
        %1845 = vmatmul.bf16.gmra.mxu0 %v1835
        %v1846 = vpop.f32.mrf.mxu0
        %v1847 = vadd.f32 0.0, %v1846
        %v1848 = vpop.f32.mrf.mxu0
        %v1849 = vadd.f32 0.0, %v1848
        %1850 = vdwg.mxu0
        %v1851 = vadd.f32 %v1818, %v1847
        %v1852 = vadd.f32 %v1819, %v1849
        %s1853 = scalar_lea.vmem %s210, 288
        %v1854 = vld [vmem:[%s1853] sm:$0xff]
        %v1855 = vld [vmem:[%s1853 + $0x8] sm:$0xff]
        %v1856 = vld [vmem:[%s1853 + $0x10] sm:$0x1]
        %v1857 = vpack.c.bf16 %v1854, %v1854
        %v1858 = vpack.c.bf16 %v1855, %v1855
        %v1859 = vpack.c.bf16 %v1856, %v1856
        %s1860 = scalar_lea.vmem %s215, 288
        %v1861 = vld [vmem:[%s1860] sm:$0xff]
        %v1862 = vld [vmem:[%s1860 + $0x8] sm:$0xff]
        %v1863 = vpack.c.bf16 %v1861, %v1861
        %v1864 = vpack.c.bf16 %v1862, %v1862
        %v1867 = vunpack.c.l.b16 %v1857
        %v1868 = vunpack.c.l.b16 %v1858
        %v1869 = vpack.c.b16 %v1868, %v1867
        %v1871 = vsel %vm242, %v1869, 0
        %1873 = vmatpush.bf16.msra.mxu0 0
        %1874 = vmatpush.bf16.msra.mxu0 0
        %1875 = vmatpush.bf16.msra.mxu0 0
        %1876 = vmatpush.bf16.msra.mxu0 0
        %1877 = vmatpush.bf16.msra.mxu0 0
        %1878 = vmatpush.bf16.msra.mxu0 0
        %1879 = vmatpush.bf16.msra.mxu0 0
        %1880 = vmatpush.bf16.msra.mxu0 %v452
        %1881 = vmatmul.bf16.gmra.mxu0 %v1871
        %v1882 = vpop.f32.mrf.mxu0
        %v1883 = vadd.f32 0.0, %v1882
        %v1884 = vpop.f32.mrf.mxu0
        %v1885 = vadd.f32 0.0, %v1884
        %1886 = vdwg.mxu0
        %v1887 = vadd.f32 %v1851, %v1883
        %v1888 = vadd.f32 %v1852, %v1885
        %v1891 = vunpack.c.l.b16 %v1863
        %v1892 = vunpack.c.l.b16 %v1864
        %v1893 = vpack.c.b16 %v1892, %v1891
        %v1895 = vsel %vm242, %v1893, 0
        %1897 = vmatpush.bf16.msra.mxu0 0
        %1898 = vmatpush.bf16.msra.mxu0 0
        %1899 = vmatpush.bf16.msra.mxu0 0
        %1900 = vmatpush.bf16.msra.mxu0 0
        %1901 = vmatpush.bf16.msra.mxu0 0
        %1902 = vmatpush.bf16.msra.mxu0 0
        %1903 = vmatpush.bf16.msra.mxu0 0
        %1904 = vmatpush.bf16.msra.mxu0 %v479
        %1905 = vmatmul.bf16.gmra.mxu0 %v1895
        %v1906 = vpop.f32.mrf.mxu0
        %v1907 = vadd.f32 0.0, %v1906
        %v1908 = vpop.f32.mrf.mxu0
        %v1909 = vadd.f32 0.0, %v1908
        %1910 = vdwg.mxu0
        %v1911 = vadd.f32 %v1887, %v1907
        %v1912 = vadd.f32 %v1888, %v1909
        %v1914 = vunpack.c.l.b16 %v1859
        %v1915 = vpack.c.b16 %v1914, %v1914
        %v1916 = vshrl.u32 %v1869, 16
        %v1918 = vshll.u32 %v1869, 16
        %v1920 = vrot.slane %v1918, 1
        %v1921 = vor.u32 %v1916, %v1920
        %v1923 = vshll.u32 %v1915, 16
        %v1925 = vrot.slane %v1923, 1
        %v1926 = vsel %vm295, %v1921, %v1925
        %v1928 = vsel %vm242, %v1926, 0
        %1930 = vmatpush.bf16.msra.mxu0 0
        %1931 = vmatpush.bf16.msra.mxu0 0
        %1932 = vmatpush.bf16.msra.mxu0 0
        %1933 = vmatpush.bf16.msra.mxu0 0
        %1934 = vmatpush.bf16.msra.mxu0 0
        %1935 = vmatpush.bf16.msra.mxu0 0
        %1936 = vmatpush.bf16.msra.mxu0 0
        %1937 = vmatpush.bf16.msra.mxu0 %v515
        %1938 = vmatmul.bf16.gmra.mxu0 %v1928
        %v1939 = vpop.f32.mrf.mxu0
        %v1940 = vadd.f32 0.0, %v1939
        %v1941 = vpop.f32.mrf.mxu0
        %v1942 = vadd.f32 0.0, %v1941
        %1943 = vdwg.mxu0
        %v1944 = vadd.f32 %v1911, %v1940
        %v1945 = vadd.f32 %v1912, %v1942
        %v1946 = vadd.f32 %v1944, %v534
        %v1947 = vadd.f32 %v1945, %v534
        %v1948 = vmax.f32 %v1946, 0.0
        %v1949 = vmax.f32 %v1947, 0.0
        %v1950 = vmin.f32 %v1948, 6.0
        %v1951 = vmin.f32 %v1949, 6.0
        %s1952 = scalar_lea.vmem %s205, 80 [#allocation2]
        %1953 = vst.msk [vmem:[%s1952] sm:$0xff] %vm542, %v1950
        %1954 = vst.msk [vmem:[%s1952 + $0x8] sm:$0xff] %vm542, %v1951
        %v1955 = vld [vmem:[%s1853] sm:$0xff]
        %v1956 = vld [vmem:[%s1853 + $0x8] sm:$0xff]
        %v1957 = vld [vmem:[%s1853 + $0x10] sm:$0x1]
        %v1958 = vpack.c.bf16 %v1955, %v1955
        %v1959 = vpack.c.bf16 %v1956, %v1956
        %v1960 = vpack.c.bf16 %v1957, %v1957
        %v1961 = vld [vmem:[%s1860] sm:$0xff]
        %v1962 = vld [vmem:[%s1860 + $0x8] sm:$0xff]
        %v1963 = vpack.c.bf16 %v1961, %v1961
        %v1964 = vpack.c.bf16 %v1962, %v1962
        %v1967 = vunpack.c.l.b16 %v1963
        %v1968 = vunpack.c.l.b16 %v1964
        %v1969 = vpack.c.b16 %v1968, %v1967
        %v1971 = vsel %vm242, %v1969, 0
        %1973 = vmatpush.bf16.msra.mxu0 0
        %1974 = vmatpush.bf16.msra.mxu0 0
        %1975 = vmatpush.bf16.msra.mxu0 0
        %1976 = vmatpush.bf16.msra.mxu0 0
        %1977 = vmatpush.bf16.msra.mxu0 0
        %1978 = vmatpush.bf16.msra.mxu0 0
        %1979 = vmatpush.bf16.msra.mxu0 0
        %1980 = vmatpush.bf16.msra.mxu0 %v251
        %1981 = vmatmul.bf16.gmra.mxu0 %v1971
        %v1982 = vpop.f32.mrf.mxu0
        %v1983 = vadd.f32 0.0, %v1982
        %v1984 = vpop.f32.mrf.mxu0
        %v1985 = vadd.f32 0.0, %v1984
        %1986 = vdwg.mxu0
        %v1989 = vunpack.c.l.b16 %v1958
        %v1990 = vunpack.c.l.b16 %v1959
        %v1991 = vpack.c.b16 %v1990, %v1989
        %v1993 = vsel %vm242, %v1991, 0
        %1995 = vmatpush.bf16.msra.mxu0 0
        %1996 = vmatpush.bf16.msra.mxu0 0
        %1997 = vmatpush.bf16.msra.mxu0 0
        %1998 = vmatpush.bf16.msra.mxu0 0
        %1999 = vmatpush.bf16.msra.mxu0 0
        %2000 = vmatpush.bf16.msra.mxu0 0
        %2001 = vmatpush.bf16.msra.mxu0 0
        %2002 = vmatpush.bf16.msra.mxu0 %v276
        %2003 = vmatmul.bf16.gmra.mxu0 %v1993
        %v2004 = vpop.f32.mrf.mxu0
        %v2005 = vadd.f32 %v1983, %v2004
        %v2006 = vpop.f32.mrf.mxu0
        %v2007 = vadd.f32 %v1985, %v2006
        %2008 = vdwg.mxu0
        %v2010 = vunpack.c.l.b16 %v1960
        %v2011 = vpack.c.b16 %v2010, %v2010
        %v2012 = vshrl.u32 %v1991, 16
        %v2014 = vshll.u32 %v1991, 16
        %v2016 = vrot.slane %v2014, 1
        %v2017 = vor.u32 %v2012, %v2016
        %v2019 = vshll.u32 %v2011, 16
        %v2021 = vrot.slane %v2019, 1
        %v2022 = vsel %vm295, %v2017, %v2021
        %v2024 = vsel %vm242, %v2022, 0
        %2026 = vmatpush.bf16.msra.mxu0 0
        %2027 = vmatpush.bf16.msra.mxu0 0
        %2028 = vmatpush.bf16.msra.mxu0 0
        %2029 = vmatpush.bf16.msra.mxu0 0
        %2030 = vmatpush.bf16.msra.mxu0 0
        %2031 = vmatpush.bf16.msra.mxu0 0
        %2032 = vmatpush.bf16.msra.mxu0 0
        %2033 = vmatpush.bf16.msra.mxu0 %v311
        %2034 = vmatmul.bf16.gmra.mxu0 %v2024
        %v2035 = vpop.f32.mrf.mxu0
        %v2036 = vadd.f32 0.0, %v2035
        %v2037 = vpop.f32.mrf.mxu0
        %v2038 = vadd.f32 0.0, %v2037
        %2039 = vdwg.mxu0
        %v2040 = vadd.f32 %v2005, %v2036
        %v2041 = vadd.f32 %v2007, %v2038
        %s2042 = scalar_lea.vmem %s210, 312
        %v2043 = vld [vmem:[%s2042] sm:$0xff]
        %v2044 = vld [vmem:[%s2042 + $0x8] sm:$0xff]
        %v2045 = vld [vmem:[%s2042 + $0x10] sm:$0x1]
        %v2046 = vpack.c.bf16 %v2043, %v2043
        %v2047 = vpack.c.bf16 %v2044, %v2044
        %v2048 = vpack.c.bf16 %v2045, %v2045
        %s2049 = scalar_lea.vmem %s215, 312
        %v2050 = vld [vmem:[%s2049] sm:$0xff]
        %v2051 = vld [vmem:[%s2049 + $0x8] sm:$0xff]
        %v2052 = vpack.c.bf16 %v2050, %v2050
        %v2053 = vpack.c.bf16 %v2051, %v2051
        %v2056 = vunpack.c.l.b16 %v2046
        %v2057 = vunpack.c.l.b16 %v2047
        %v2058 = vpack.c.b16 %v2057, %v2056
        %v2060 = vsel %vm242, %v2058, 0
        %2062 = vmatpush.bf16.msra.mxu0 0
        %2063 = vmatpush.bf16.msra.mxu0 0
        %2064 = vmatpush.bf16.msra.mxu0 0
        %2065 = vmatpush.bf16.msra.mxu0 0
        %2066 = vmatpush.bf16.msra.mxu0 0
        %2067 = vmatpush.bf16.msra.mxu0 0
        %2068 = vmatpush.bf16.msra.mxu0 0
        %2069 = vmatpush.bf16.msra.mxu0 %v350
        %2070 = vmatmul.bf16.gmra.mxu0 %v2060
        %v2071 = vpop.f32.mrf.mxu0
        %v2072 = vadd.f32 0.0, %v2071
        %v2073 = vpop.f32.mrf.mxu0
        %v2074 = vadd.f32 0.0, %v2073
        %2075 = vdwg.mxu0
        %v2076 = vadd.f32 %v2040, %v2072
        %v2077 = vadd.f32 %v2041, %v2074
        %v2080 = vunpack.c.l.b16 %v2052
        %v2081 = vunpack.c.l.b16 %v2053
        %v2082 = vpack.c.b16 %v2081, %v2080
        %v2084 = vsel %vm242, %v2082, 0
        %2086 = vmatpush.bf16.msra.mxu0 0
        %2087 = vmatpush.bf16.msra.mxu0 0
        %2088 = vmatpush.bf16.msra.mxu0 0
        %2089 = vmatpush.bf16.msra.mxu0 0
        %2090 = vmatpush.bf16.msra.mxu0 0
        %2091 = vmatpush.bf16.msra.mxu0 0
        %2092 = vmatpush.bf16.msra.mxu0 0
        %2093 = vmatpush.bf16.msra.mxu0 %v377
        %2094 = vmatmul.bf16.gmra.mxu0 %v2084
        %v2095 = vpop.f32.mrf.mxu0
        %v2096 = vadd.f32 0.0, %v2095
        %v2097 = vpop.f32.mrf.mxu0
        %v2098 = vadd.f32 0.0, %v2097
        %2099 = vdwg.mxu0
        %v2100 = vadd.f32 %v2076, %v2096
        %v2101 = vadd.f32 %v2077, %v2098
        %v2103 = vunpack.c.l.b16 %v2048
        %v2104 = vpack.c.b16 %v2103, %v2103
        %v2105 = vshrl.u32 %v2058, 16
        %v2107 = vshll.u32 %v2058, 16
        %v2109 = vrot.slane %v2107, 1
        %v2110 = vor.u32 %v2105, %v2109
        %v2112 = vshll.u32 %v2104, 16
        %v2114 = vrot.slane %v2112, 1
        %v2115 = vsel %vm295, %v2110, %v2114
        %v2117 = vsel %vm242, %v2115, 0
        %2119 = vmatpush.bf16.msra.mxu0 0
        %2120 = vmatpush.bf16.msra.mxu0 0
        %2121 = vmatpush.bf16.msra.mxu0 0
        %2122 = vmatpush.bf16.msra.mxu0 0
        %2123 = vmatpush.bf16.msra.mxu0 0
        %2124 = vmatpush.bf16.msra.mxu0 0
        %2125 = vmatpush.bf16.msra.mxu0 0
        %2126 = vmatpush.bf16.msra.mxu0 %v413
        %2127 = vmatmul.bf16.gmra.mxu0 %v2117
        %v2128 = vpop.f32.mrf.mxu0
        %v2129 = vadd.f32 0.0, %v2128
        %v2130 = vpop.f32.mrf.mxu0
        %v2131 = vadd.f32 0.0, %v2130
        %2132 = vdwg.mxu0
        %v2133 = vadd.f32 %v2100, %v2129
        %v2134 = vadd.f32 %v2101, %v2131
        %s2135 = scalar_lea.vmem %s210, 336
        %v2136 = vld [vmem:[%s2135] sm:$0xff]
        %v2137 = vld [vmem:[%s2135 + $0x8] sm:$0xff]
        %v2138 = vld [vmem:[%s2135 + $0x10] sm:$0x1]
        %v2139 = vpack.c.bf16 %v2136, %v2136
        %v2140 = vpack.c.bf16 %v2137, %v2137
        %v2141 = vpack.c.bf16 %v2138, %v2138
        %s2142 = scalar_lea.vmem %s215, 336
        %v2143 = vld [vmem:[%s2142] sm:$0xff]
        %v2144 = vld [vmem:[%s2142 + $0x8] sm:$0xff]
        %v2145 = vpack.c.bf16 %v2143, %v2143
        %v2146 = vpack.c.bf16 %v2144, %v2144
        %v2149 = vunpack.c.l.b16 %v2139
        %v2150 = vunpack.c.l.b16 %v2140
        %v2151 = vpack.c.b16 %v2150, %v2149
        %v2153 = vsel %vm242, %v2151, 0
        %2155 = vmatpush.bf16.msra.mxu0 0
        %2156 = vmatpush.bf16.msra.mxu0 0
        %2157 = vmatpush.bf16.msra.mxu0 0
        %2158 = vmatpush.bf16.msra.mxu0 0
        %2159 = vmatpush.bf16.msra.mxu0 0
        %2160 = vmatpush.bf16.msra.mxu0 0
        %2161 = vmatpush.bf16.msra.mxu0 0
        %2162 = vmatpush.bf16.msra.mxu0 %v452
        %2163 = vmatmul.bf16.gmra.mxu0 %v2153
        %v2164 = vpop.f32.mrf.mxu0
        %v2165 = vadd.f32 0.0, %v2164
        %v2166 = vpop.f32.mrf.mxu0
        %v2167 = vadd.f32 0.0, %v2166
        %2168 = vdwg.mxu0
        %v2169 = vadd.f32 %v2133, %v2165
        %v2170 = vadd.f32 %v2134, %v2167
        %v2173 = vunpack.c.l.b16 %v2145
        %v2174 = vunpack.c.l.b16 %v2146
        %v2175 = vpack.c.b16 %v2174, %v2173
        %v2177 = vsel %vm242, %v2175, 0
        %2179 = vmatpush.bf16.msra.mxu0 0
        %2180 = vmatpush.bf16.msra.mxu0 0
        %2181 = vmatpush.bf16.msra.mxu0 0
        %2182 = vmatpush.bf16.msra.mxu0 0
        %2183 = vmatpush.bf16.msra.mxu0 0
        %2184 = vmatpush.bf16.msra.mxu0 0
        %2185 = vmatpush.bf16.msra.mxu0 0
        %2186 = vmatpush.bf16.msra.mxu0 %v479
        %2187 = vmatmul.bf16.gmra.mxu0 %v2177
        %v2188 = vpop.f32.mrf.mxu0
        %v2189 = vadd.f32 0.0, %v2188
        %v2190 = vpop.f32.mrf.mxu0
        %v2191 = vadd.f32 0.0, %v2190
        %2192 = vdwg.mxu0
        %v2193 = vadd.f32 %v2169, %v2189
        %v2194 = vadd.f32 %v2170, %v2191
        %v2196 = vunpack.c.l.b16 %v2141
        %v2197 = vpack.c.b16 %v2196, %v2196
        %v2198 = vshrl.u32 %v2151, 16
        %v2200 = vshll.u32 %v2151, 16
        %v2202 = vrot.slane %v2200, 1
        %v2203 = vor.u32 %v2198, %v2202
        %v2205 = vshll.u32 %v2197, 16
        %v2207 = vrot.slane %v2205, 1
        %v2208 = vsel %vm295, %v2203, %v2207
        %v2210 = vsel %vm242, %v2208, 0
        %2212 = vmatpush.bf16.msra.mxu0 0
        %2213 = vmatpush.bf16.msra.mxu0 0
        %2214 = vmatpush.bf16.msra.mxu0 0
        %2215 = vmatpush.bf16.msra.mxu0 0
        %2216 = vmatpush.bf16.msra.mxu0 0
        %2217 = vmatpush.bf16.msra.mxu0 0
        %2218 = vmatpush.bf16.msra.mxu0 0
        %2219 = vmatpush.bf16.msra.mxu0 %v515
        %2220 = vmatmul.bf16.gmra.mxu0 %v2210
        %v2221 = vpop.f32.mrf.mxu0
        %v2222 = vadd.f32 0.0, %v2221
        %v2223 = vpop.f32.mrf.mxu0
        %v2224 = vadd.f32 0.0, %v2223
        %2225 = vdwg.mxu0
        %v2226 = vadd.f32 %v2193, %v2222
        %v2227 = vadd.f32 %v2194, %v2224
        %v2228 = vadd.f32 %v2226, %v534
        %v2229 = vadd.f32 %v2227, %v534
        %v2230 = vmax.f32 %v2228, 0.0
        %v2231 = vmax.f32 %v2229, 0.0
        %v2232 = vmin.f32 %v2230, 6.0
        %v2233 = vmin.f32 %v2231, 6.0
        %s2234 = scalar_lea.vmem %s205, 96 [#allocation2]
        %2235 = vst.msk [vmem:[%s2234] sm:$0xff] %vm542, %v2232
        %2236 = vst.msk [vmem:[%s2234 + $0x8] sm:$0xff] %vm542, %v2233
        %v2237 = vld [vmem:[%s2135] sm:$0xff]
        %v2238 = vld [vmem:[%s2135 + $0x8] sm:$0xff]
        %v2239 = vld [vmem:[%s2135 + $0x10] sm:$0x1]
        %v2240 = vpack.c.bf16 %v2237, %v2237
        %v2241 = vpack.c.bf16 %v2238, %v2238
        %v2242 = vpack.c.bf16 %v2239, %v2239
        %v2243 = vld [vmem:[%s2142] sm:$0xff]
        %v2244 = vld [vmem:[%s2142 + $0x8] sm:$0xff]
        %v2245 = vpack.c.bf16 %v2243, %v2243
        %v2246 = vpack.c.bf16 %v2244, %v2244
        %v2249 = vunpack.c.l.b16 %v2245
        %v2250 = vunpack.c.l.b16 %v2246
        %v2251 = vpack.c.b16 %v2250, %v2249
        %v2253 = vsel %vm242, %v2251, 0
        %2255 = vmatpush.bf16.msra.mxu0 0
        %2256 = vmatpush.bf16.msra.mxu0 0
        %2257 = vmatpush.bf16.msra.mxu0 0
        %2258 = vmatpush.bf16.msra.mxu0 0
        %2259 = vmatpush.bf16.msra.mxu0 0
        %2260 = vmatpush.bf16.msra.mxu0 0
        %2261 = vmatpush.bf16.msra.mxu0 0
        %2262 = vmatpush.bf16.msra.mxu0 %v251
        %2263 = vmatmul.bf16.gmra.mxu0 %v2253
        %v2264 = vpop.f32.mrf.mxu0
        %v2265 = vadd.f32 0.0, %v2264
        %v2266 = vpop.f32.mrf.mxu0
        %v2267 = vadd.f32 0.0, %v2266
        %2268 = vdwg.mxu0
        %v2271 = vunpack.c.l.b16 %v2240
        %v2272 = vunpack.c.l.b16 %v2241
        %v2273 = vpack.c.b16 %v2272, %v2271
        %v2275 = vsel %vm242, %v2273, 0
        %2277 = vmatpush.bf16.msra.mxu0 0
        %2278 = vmatpush.bf16.msra.mxu0 0
        %2279 = vmatpush.bf16.msra.mxu0 0
        %2280 = vmatpush.bf16.msra.mxu0 0
        %2281 = vmatpush.bf16.msra.mxu0 0
        %2282 = vmatpush.bf16.msra.mxu0 0
        %2283 = vmatpush.bf16.msra.mxu0 0
        %2284 = vmatpush.bf16.msra.mxu0 %v276
        %2285 = vmatmul.bf16.gmra.mxu0 %v2275
        %v2286 = vpop.f32.mrf.mxu0
        %v2287 = vadd.f32 %v2265, %v2286
        %v2288 = vpop.f32.mrf.mxu0
        %v2289 = vadd.f32 %v2267, %v2288
        %2290 = vdwg.mxu0
        %v2292 = vunpack.c.l.b16 %v2242
        %v2293 = vpack.c.b16 %v2292, %v2292
        %v2294 = vshrl.u32 %v2273, 16
        %v2296 = vshll.u32 %v2273, 16
        %v2298 = vrot.slane %v2296, 1
        %v2299 = vor.u32 %v2294, %v2298
        %v2301 = vshll.u32 %v2293, 16
        %v2303 = vrot.slane %v2301, 1
        %v2304 = vsel %vm295, %v2299, %v2303
        %v2306 = vsel %vm242, %v2304, 0
        %2308 = vmatpush.bf16.msra.mxu0 0
        %2309 = vmatpush.bf16.msra.mxu0 0
        %2310 = vmatpush.bf16.msra.mxu0 0
        %2311 = vmatpush.bf16.msra.mxu0 0
        %2312 = vmatpush.bf16.msra.mxu0 0
        %2313 = vmatpush.bf16.msra.mxu0 0
        %2314 = vmatpush.bf16.msra.mxu0 0
        %2315 = vmatpush.bf16.msra.mxu0 %v311
        %2316 = vmatmul.bf16.gmra.mxu0 %v2306
        %v2317 = vpop.f32.mrf.mxu0
        %v2318 = vadd.f32 0.0, %v2317
        %v2319 = vpop.f32.mrf.mxu0
        %v2320 = vadd.f32 0.0, %v2319
        %2321 = vdwg.mxu0
        %v2322 = vadd.f32 %v2287, %v2318
        %v2323 = vadd.f32 %v2289, %v2320
        %s2324 = scalar_lea.vmem %s210, 360
        %v2325 = vld [vmem:[%s2324] sm:$0xff]
        %v2326 = vld [vmem:[%s2324 + $0x8] sm:$0xff]
        %v2327 = vld [vmem:[%s2324 + $0x10] sm:$0x1]
        %v2328 = vpack.c.bf16 %v2325, %v2325
        %v2329 = vpack.c.bf16 %v2326, %v2326
        %v2330 = vpack.c.bf16 %v2327, %v2327
        %s2331 = scalar_lea.vmem %s215, 360
        %v2332 = vld [vmem:[%s2331] sm:$0xff]
        %v2333 = vld [vmem:[%s2331 + $0x8] sm:$0xff]
        %v2334 = vpack.c.bf16 %v2332, %v2332
        %v2335 = vpack.c.bf16 %v2333, %v2333
        %v2338 = vunpack.c.l.b16 %v2328
        %v2339 = vunpack.c.l.b16 %v2329
        %v2340 = vpack.c.b16 %v2339, %v2338
        %v2342 = vsel %vm242, %v2340, 0
        %2344 = vmatpush.bf16.msra.mxu0 0
        %2345 = vmatpush.bf16.msra.mxu0 0
        %2346 = vmatpush.bf16.msra.mxu0 0
        %2347 = vmatpush.bf16.msra.mxu0 0
        %2348 = vmatpush.bf16.msra.mxu0 0
        %2349 = vmatpush.bf16.msra.mxu0 0
        %2350 = vmatpush.bf16.msra.mxu0 0
        %2351 = vmatpush.bf16.msra.mxu0 %v350
        %2352 = vmatmul.bf16.gmra.mxu0 %v2342
        %v2353 = vpop.f32.mrf.mxu0
        %v2354 = vadd.f32 0.0, %v2353
        %v2355 = vpop.f32.mrf.mxu0
        %v2356 = vadd.f32 0.0, %v2355
        %2357 = vdwg.mxu0
        %v2358 = vadd.f32 %v2322, %v2354
        %v2359 = vadd.f32 %v2323, %v2356
        %v2362 = vunpack.c.l.b16 %v2334
        %v2363 = vunpack.c.l.b16 %v2335
        %v2364 = vpack.c.b16 %v2363, %v2362
        %v2366 = vsel %vm242, %v2364, 0
        %2368 = vmatpush.bf16.msra.mxu0 0
        %2369 = vmatpush.bf16.msra.mxu0 0
        %2370 = vmatpush.bf16.msra.mxu0 0
        %2371 = vmatpush.bf16.msra.mxu0 0
        %2372 = vmatpush.bf16.msra.mxu0 0
        %2373 = vmatpush.bf16.msra.mxu0 0
        %2374 = vmatpush.bf16.msra.mxu0 0
        %2375 = vmatpush.bf16.msra.mxu0 %v377
        %2376 = vmatmul.bf16.gmra.mxu0 %v2366
        %v2377 = vpop.f32.mrf.mxu0
        %v2378 = vadd.f32 0.0, %v2377
        %v2379 = vpop.f32.mrf.mxu0
        %v2380 = vadd.f32 0.0, %v2379
        %2381 = vdwg.mxu0
        %v2382 = vadd.f32 %v2358, %v2378
        %v2383 = vadd.f32 %v2359, %v2380
        %v2385 = vunpack.c.l.b16 %v2330
        %v2386 = vpack.c.b16 %v2385, %v2385
        %v2387 = vshrl.u32 %v2340, 16
        %v2389 = vshll.u32 %v2340, 16
        %v2391 = vrot.slane %v2389, 1
        %v2392 = vor.u32 %v2387, %v2391
        %v2394 = vshll.u32 %v2386, 16
        %v2396 = vrot.slane %v2394, 1
        %v2397 = vsel %vm295, %v2392, %v2396
        %v2399 = vsel %vm242, %v2397, 0
        %2401 = vmatpush.bf16.msra.mxu0 0
        %2402 = vmatpush.bf16.msra.mxu0 0
        %2403 = vmatpush.bf16.msra.mxu0 0
        %2404 = vmatpush.bf16.msra.mxu0 0
        %2405 = vmatpush.bf16.msra.mxu0 0
        %2406 = vmatpush.bf16.msra.mxu0 0
        %2407 = vmatpush.bf16.msra.mxu0 0
        %2408 = vmatpush.bf16.msra.mxu0 %v413
        %2409 = vmatmul.bf16.gmra.mxu0 %v2399
        %v2410 = vpop.f32.mrf.mxu0
        %v2411 = vadd.f32 0.0, %v2410
        %v2412 = vpop.f32.mrf.mxu0
        %v2413 = vadd.f32 0.0, %v2412
        %2414 = vdwg.mxu0
        %v2415 = vadd.f32 %v2382, %v2411
        %v2416 = vadd.f32 %v2383, %v2413
        %s2417 = scalar_lea.vmem %s210, 384
        %v2418 = vld [vmem:[%s2417] sm:$0xff]
        %v2419 = vld [vmem:[%s2417 + $0x8] sm:$0xff]
        %v2420 = vld [vmem:[%s2417 + $0x10] sm:$0x1]
        %v2421 = vpack.c.bf16 %v2418, %v2418
        %v2422 = vpack.c.bf16 %v2419, %v2419
        %v2423 = vpack.c.bf16 %v2420, %v2420
        %s2424 = scalar_lea.vmem %s215, 384
        %v2425 = vld [vmem:[%s2424] sm:$0xff]
        %v2426 = vld [vmem:[%s2424 + $0x8] sm:$0xff]
        %v2427 = vpack.c.bf16 %v2425, %v2425
        %v2428 = vpack.c.bf16 %v2426, %v2426
        %v2431 = vunpack.c.l.b16 %v2421
        %v2432 = vunpack.c.l.b16 %v2422
        %v2433 = vpack.c.b16 %v2432, %v2431
        %v2435 = vsel %vm242, %v2433, 0
        %2437 = vmatpush.bf16.msra.mxu0 0
        %2438 = vmatpush.bf16.msra.mxu0 0
        %2439 = vmatpush.bf16.msra.mxu0 0
        %2440 = vmatpush.bf16.msra.mxu0 0
        %2441 = vmatpush.bf16.msra.mxu0 0
        %2442 = vmatpush.bf16.msra.mxu0 0
        %2443 = vmatpush.bf16.msra.mxu0 0
        %2444 = vmatpush.bf16.msra.mxu0 %v452
        %2445 = vmatmul.bf16.gmra.mxu0 %v2435
        %v2446 = vpop.f32.mrf.mxu0
        %v2447 = vadd.f32 0.0, %v2446
        %v2448 = vpop.f32.mrf.mxu0
        %v2449 = vadd.f32 0.0, %v2448
        %2450 = vdwg.mxu0
        %v2451 = vadd.f32 %v2415, %v2447
        %v2452 = vadd.f32 %v2416, %v2449
        %v2455 = vunpack.c.l.b16 %v2427
        %v2456 = vunpack.c.l.b16 %v2428
        %v2457 = vpack.c.b16 %v2456, %v2455
        %v2459 = vsel %vm242, %v2457, 0
        %2461 = vmatpush.bf16.msra.mxu0 0
        %2462 = vmatpush.bf16.msra.mxu0 0
        %2463 = vmatpush.bf16.msra.mxu0 0
        %2464 = vmatpush.bf16.msra.mxu0 0
        %2465 = vmatpush.bf16.msra.mxu0 0
        %2466 = vmatpush.bf16.msra.mxu0 0
        %2467 = vmatpush.bf16.msra.mxu0 0
        %2468 = vmatpush.bf16.msra.mxu0 %v479
        %2469 = vmatmul.bf16.gmra.mxu0 %v2459
        %v2470 = vpop.f32.mrf.mxu0
        %v2471 = vadd.f32 0.0, %v2470
        %v2472 = vpop.f32.mrf.mxu0
        %v2473 = vadd.f32 0.0, %v2472
        %2474 = vdwg.mxu0
        %v2475 = vadd.f32 %v2451, %v2471
        %v2476 = vadd.f32 %v2452, %v2473
        %v2478 = vunpack.c.l.b16 %v2423
        %v2479 = vpack.c.b16 %v2478, %v2478
        %v2480 = vshrl.u32 %v2433, 16
        %v2482 = vshll.u32 %v2433, 16
        %v2484 = vrot.slane %v2482, 1
        %v2485 = vor.u32 %v2480, %v2484
        %v2487 = vshll.u32 %v2479, 16
        %v2489 = vrot.slane %v2487, 1
        %v2490 = vsel %vm295, %v2485, %v2489
        %v2492 = vsel %vm242, %v2490, 0
        %2494 = vmatpush.bf16.msra.mxu0 0
        %2495 = vmatpush.bf16.msra.mxu0 0
        %2496 = vmatpush.bf16.msra.mxu0 0
        %2497 = vmatpush.bf16.msra.mxu0 0
        %2498 = vmatpush.bf16.msra.mxu0 0
        %2499 = vmatpush.bf16.msra.mxu0 0
        %2500 = vmatpush.bf16.msra.mxu0 0
        %2501 = vmatpush.bf16.msra.mxu0 %v515
        %2502 = vmatmul.bf16.gmra.mxu0 %v2492
        %v2503 = vpop.f32.mrf.mxu0
        %v2504 = vadd.f32 0.0, %v2503
        %v2505 = vpop.f32.mrf.mxu0
        %v2506 = vadd.f32 0.0, %v2505
        %2507 = vdwg.mxu0
        %v2508 = vadd.f32 %v2475, %v2504
        %v2509 = vadd.f32 %v2476, %v2506
        %v2510 = vadd.f32 %v2508, %v534
        %v2511 = vadd.f32 %v2509, %v534
        %v2512 = vmax.f32 %v2510, 0.0
        %v2513 = vmax.f32 %v2511, 0.0
        %v2514 = vmin.f32 %v2512, 6.0
        %v2515 = vmin.f32 %v2513, 6.0
        %s2516 = scalar_lea.vmem %s205, 112 [#allocation2]
        %2517 = vst.msk [vmem:[%s2516] sm:$0xff] %vm542, %v2514
        %2518 = vst.msk [vmem:[%s2516 + $0x8] sm:$0xff] %vm542, %v2515
        %v2519 = vld [vmem:[%s2417] sm:$0xff]
        %v2520 = vld [vmem:[%s2417 + $0x8] sm:$0xff]
        %v2521 = vld [vmem:[%s2417 + $0x10] sm:$0x1]
        %v2522 = vpack.c.bf16 %v2519, %v2519
        %v2523 = vpack.c.bf16 %v2520, %v2520
        %v2524 = vpack.c.bf16 %v2521, %v2521
        %v2525 = vld [vmem:[%s2424] sm:$0xff]
        %v2526 = vld [vmem:[%s2424 + $0x8] sm:$0xff]
        %v2527 = vpack.c.bf16 %v2525, %v2525
        %v2528 = vpack.c.bf16 %v2526, %v2526
        %v2531 = vunpack.c.l.b16 %v2527
        %v2532 = vunpack.c.l.b16 %v2528
        %v2533 = vpack.c.b16 %v2532, %v2531
        %v2535 = vsel %vm242, %v2533, 0
        %2537 = vmatpush.bf16.msra.mxu0 0
        %2538 = vmatpush.bf16.msra.mxu0 0
        %2539 = vmatpush.bf16.msra.mxu0 0
        %2540 = vmatpush.bf16.msra.mxu0 0
        %2541 = vmatpush.bf16.msra.mxu0 0
        %2542 = vmatpush.bf16.msra.mxu0 0
        %2543 = vmatpush.bf16.msra.mxu0 0
        %2544 = vmatpush.bf16.msra.mxu0 %v251
        %2545 = vmatmul.bf16.gmra.mxu0 %v2535
        %v2546 = vpop.f32.mrf.mxu0
        %v2547 = vadd.f32 0.0, %v2546
        %v2548 = vpop.f32.mrf.mxu0
        %v2549 = vadd.f32 0.0, %v2548
        %2550 = vdwg.mxu0
        %v2553 = vunpack.c.l.b16 %v2522
        %v2554 = vunpack.c.l.b16 %v2523
        %v2555 = vpack.c.b16 %v2554, %v2553
        %v2557 = vsel %vm242, %v2555, 0
        %2559 = vmatpush.bf16.msra.mxu0 0
        %2560 = vmatpush.bf16.msra.mxu0 0
        %2561 = vmatpush.bf16.msra.mxu0 0
        %2562 = vmatpush.bf16.msra.mxu0 0
        %2563 = vmatpush.bf16.msra.mxu0 0
        %2564 = vmatpush.bf16.msra.mxu0 0
        %2565 = vmatpush.bf16.msra.mxu0 0
        %2566 = vmatpush.bf16.msra.mxu0 %v276
        %2567 = vmatmul.bf16.gmra.mxu0 %v2557
        %v2568 = vpop.f32.mrf.mxu0
        %v2569 = vadd.f32 %v2547, %v2568
        %v2570 = vpop.f32.mrf.mxu0
        %v2571 = vadd.f32 %v2549, %v2570
        %2572 = vdwg.mxu0
        %v2574 = vunpack.c.l.b16 %v2524
        %v2575 = vpack.c.b16 %v2574, %v2574
        %v2576 = vshrl.u32 %v2555, 16
        %v2578 = vshll.u32 %v2555, 16
        %v2580 = vrot.slane %v2578, 1
        %v2581 = vor.u32 %v2576, %v2580
        %v2583 = vshll.u32 %v2575, 16
        %v2585 = vrot.slane %v2583, 1
        %v2586 = vsel %vm295, %v2581, %v2585
        %v2588 = vsel %vm242, %v2586, 0
        %2590 = vmatpush.bf16.msra.mxu0 0
        %2591 = vmatpush.bf16.msra.mxu0 0
        %2592 = vmatpush.bf16.msra.mxu0 0
        %2593 = vmatpush.bf16.msra.mxu0 0
        %2594 = vmatpush.bf16.msra.mxu0 0
        %2595 = vmatpush.bf16.msra.mxu0 0
        %2596 = vmatpush.bf16.msra.mxu0 0
        %2597 = vmatpush.bf16.msra.mxu0 %v311
        %2598 = vmatmul.bf16.gmra.mxu0 %v2588
        %v2599 = vpop.f32.mrf.mxu0
        %v2600 = vadd.f32 0.0, %v2599
        %v2601 = vpop.f32.mrf.mxu0
        %v2602 = vadd.f32 0.0, %v2601
        %2603 = vdwg.mxu0
        %v2604 = vadd.f32 %v2569, %v2600
        %v2605 = vadd.f32 %v2571, %v2602
        %s2606 = scalar_lea.vmem %s210, 408
        %v2607 = vld [vmem:[%s2606] sm:$0xff]
        %v2608 = vld [vmem:[%s2606 + $0x8] sm:$0xff]
        %v2609 = vld [vmem:[%s2606 + $0x10] sm:$0x1]
        %v2610 = vpack.c.bf16 %v2607, %v2607
        %v2611 = vpack.c.bf16 %v2608, %v2608
        %v2612 = vpack.c.bf16 %v2609, %v2609
        %s2613 = scalar_lea.vmem %s215, 408
        %v2614 = vld [vmem:[%s2613] sm:$0xff]
        %v2615 = vld [vmem:[%s2613 + $0x8] sm:$0xff]
        %v2616 = vpack.c.bf16 %v2614, %v2614
        %v2617 = vpack.c.bf16 %v2615, %v2615
        %v2620 = vunpack.c.l.b16 %v2610
        %v2621 = vunpack.c.l.b16 %v2611
        %v2622 = vpack.c.b16 %v2621, %v2620
        %v2624 = vsel %vm242, %v2622, 0
        %2626 = vmatpush.bf16.msra.mxu0 0
        %2627 = vmatpush.bf16.msra.mxu0 0
        %2628 = vmatpush.bf16.msra.mxu0 0
        %2629 = vmatpush.bf16.msra.mxu0 0
        %2630 = vmatpush.bf16.msra.mxu0 0
        %2631 = vmatpush.bf16.msra.mxu0 0
        %2632 = vmatpush.bf16.msra.mxu0 0
        %2633 = vmatpush.bf16.msra.mxu0 %v350
        %2634 = vmatmul.bf16.gmra.mxu0 %v2624
        %v2635 = vpop.f32.mrf.mxu0
        %v2636 = vadd.f32 0.0, %v2635
        %v2637 = vpop.f32.mrf.mxu0
        %v2638 = vadd.f32 0.0, %v2637
        %2639 = vdwg.mxu0
        %v2640 = vadd.f32 %v2604, %v2636
        %v2641 = vadd.f32 %v2605, %v2638
        %v2644 = vunpack.c.l.b16 %v2616
        %v2645 = vunpack.c.l.b16 %v2617
        %v2646 = vpack.c.b16 %v2645, %v2644
        %v2648 = vsel %vm242, %v2646, 0
        %2650 = vmatpush.bf16.msra.mxu0 0
        %2651 = vmatpush.bf16.msra.mxu0 0
        %2652 = vmatpush.bf16.msra.mxu0 0
        %2653 = vmatpush.bf16.msra.mxu0 0
        %2654 = vmatpush.bf16.msra.mxu0 0
        %2655 = vmatpush.bf16.msra.mxu0 0
        %2656 = vmatpush.bf16.msra.mxu0 0
        %2657 = vmatpush.bf16.msra.mxu0 %v377
        %2658 = vmatmul.bf16.gmra.mxu0 %v2648
        %v2659 = vpop.f32.mrf.mxu0
        %v2660 = vadd.f32 0.0, %v2659
        %v2661 = vpop.f32.mrf.mxu0
        %v2662 = vadd.f32 0.0, %v2661
        %2663 = vdwg.mxu0
        %v2664 = vadd.f32 %v2640, %v2660
        %v2665 = vadd.f32 %v2641, %v2662
        %v2667 = vunpack.c.l.b16 %v2612
        %v2668 = vpack.c.b16 %v2667, %v2667
        %v2669 = vshrl.u32 %v2622, 16
        %v2671 = vshll.u32 %v2622, 16
        %v2673 = vrot.slane %v2671, 1
        %v2674 = vor.u32 %v2669, %v2673
        %v2676 = vshll.u32 %v2668, 16
        %v2678 = vrot.slane %v2676, 1
        %v2679 = vsel %vm295, %v2674, %v2678
        %v2681 = vsel %vm242, %v2679, 0
        %2683 = vmatpush.bf16.msra.mxu0 0
        %2684 = vmatpush.bf16.msra.mxu0 0
        %2685 = vmatpush.bf16.msra.mxu0 0
        %2686 = vmatpush.bf16.msra.mxu0 0
        %2687 = vmatpush.bf16.msra.mxu0 0
        %2688 = vmatpush.bf16.msra.mxu0 0
        %2689 = vmatpush.bf16.msra.mxu0 0
        %2690 = vmatpush.bf16.msra.mxu0 %v413
        %2691 = vmatmul.bf16.gmra.mxu0 %v2681
        %v2692 = vpop.f32.mrf.mxu0
        %v2693 = vadd.f32 0.0, %v2692
        %v2694 = vpop.f32.mrf.mxu0
        %v2695 = vadd.f32 0.0, %v2694
        %2696 = vdwg.mxu0
        %v2697 = vadd.f32 %v2664, %v2693
        %v2698 = vadd.f32 %v2665, %v2695
        %s2699 = scalar_lea.vmem %s210, 432
        %v2700 = vld [vmem:[%s2699] sm:$0xff]
        %v2701 = vld [vmem:[%s2699 + $0x8] sm:$0xff]
        %v2702 = vld [vmem:[%s2699 + $0x10] sm:$0x1]
        %v2703 = vpack.c.bf16 %v2700, %v2700
        %v2704 = vpack.c.bf16 %v2701, %v2701
        %v2705 = vpack.c.bf16 %v2702, %v2702
        %s2706 = scalar_lea.vmem %s215, 432
        %v2707 = vld [vmem:[%s2706] sm:$0xff]
        %v2708 = vld [vmem:[%s2706 + $0x8] sm:$0xff]
        %v2709 = vpack.c.bf16 %v2707, %v2707
        %v2710 = vpack.c.bf16 %v2708, %v2708
        %v2713 = vunpack.c.l.b16 %v2703
        %v2714 = vunpack.c.l.b16 %v2704
        %v2715 = vpack.c.b16 %v2714, %v2713
        %v2717 = vsel %vm242, %v2715, 0
        %2719 = vmatpush.bf16.msra.mxu0 0
        %2720 = vmatpush.bf16.msra.mxu0 0
        %2721 = vmatpush.bf16.msra.mxu0 0
        %2722 = vmatpush.bf16.msra.mxu0 0
        %2723 = vmatpush.bf16.msra.mxu0 0
        %2724 = vmatpush.bf16.msra.mxu0 0
        %2725 = vmatpush.bf16.msra.mxu0 0
        %2726 = vmatpush.bf16.msra.mxu0 %v452
        %2727 = vmatmul.bf16.gmra.mxu0 %v2717
        %v2728 = vpop.f32.mrf.mxu0
        %v2729 = vadd.f32 0.0, %v2728
        %v2730 = vpop.f32.mrf.mxu0
        %v2731 = vadd.f32 0.0, %v2730
        %2732 = vdwg.mxu0
        %v2733 = vadd.f32 %v2697, %v2729
        %v2734 = vadd.f32 %v2698, %v2731
        %v2737 = vunpack.c.l.b16 %v2709
        %v2738 = vunpack.c.l.b16 %v2710
        %v2739 = vpack.c.b16 %v2738, %v2737
        %v2741 = vsel %vm242, %v2739, 0
        %2743 = vmatpush.bf16.msra.mxu0 0
        %2744 = vmatpush.bf16.msra.mxu0 0
        %2745 = vmatpush.bf16.msra.mxu0 0
        %2746 = vmatpush.bf16.msra.mxu0 0
        %2747 = vmatpush.bf16.msra.mxu0 0
        %2748 = vmatpush.bf16.msra.mxu0 0
        %2749 = vmatpush.bf16.msra.mxu0 0
        %2750 = vmatpush.bf16.msra.mxu0 %v479
        %2751 = vmatmul.bf16.gmra.mxu0 %v2741
        %v2752 = vpop.f32.mrf.mxu0
        %v2753 = vadd.f32 0.0, %v2752
        %v2754 = vpop.f32.mrf.mxu0
        %v2755 = vadd.f32 0.0, %v2754
        %2756 = vdwg.mxu0
        %v2757 = vadd.f32 %v2733, %v2753
        %v2758 = vadd.f32 %v2734, %v2755
        %v2760 = vunpack.c.l.b16 %v2705
        %v2761 = vpack.c.b16 %v2760, %v2760
        %v2762 = vshrl.u32 %v2715, 16
        %v2764 = vshll.u32 %v2715, 16
        %v2766 = vrot.slane %v2764, 1
        %v2767 = vor.u32 %v2762, %v2766
        %v2769 = vshll.u32 %v2761, 16
        %v2771 = vrot.slane %v2769, 1
        %v2772 = vsel %vm295, %v2767, %v2771
        %v2774 = vsel %vm242, %v2772, 0
        %2776 = vmatpush.bf16.msra.mxu0 0
        %2777 = vmatpush.bf16.msra.mxu0 0
        %2778 = vmatpush.bf16.msra.mxu0 0
        %2779 = vmatpush.bf16.msra.mxu0 0
        %2780 = vmatpush.bf16.msra.mxu0 0
        %2781 = vmatpush.bf16.msra.mxu0 0
        %2782 = vmatpush.bf16.msra.mxu0 0
        %2783 = vmatpush.bf16.msra.mxu0 %v515
        %2784 = vmatmul.bf16.gmra.mxu0 %v2774
        %v2785 = vpop.f32.mrf.mxu0
        %v2786 = vadd.f32 0.0, %v2785
        %v2787 = vpop.f32.mrf.mxu0
        %v2788 = vadd.f32 0.0, %v2787
        %2789 = vdwg.mxu0
        %v2790 = vadd.f32 %v2757, %v2786
        %v2791 = vadd.f32 %v2758, %v2788
        %v2792 = vadd.f32 %v2790, %v534
        %v2793 = vadd.f32 %v2791, %v534
        %v2794 = vmax.f32 %v2792, 0.0
        %v2795 = vmax.f32 %v2793, 0.0
        %v2796 = vmin.f32 %v2794, 6.0
        %v2797 = vmin.f32 %v2795, 6.0
        %s2798 = scalar_lea.vmem %s205, 128 [#allocation2]
        %2799 = vst.msk [vmem:[%s2798] sm:$0xff] %vm542, %v2796
        %2800 = vst.msk [vmem:[%s2798 + $0x8] sm:$0xff] %vm542, %v2797
        %v2801 = vld [vmem:[%s2699] sm:$0xff]
        %v2802 = vld [vmem:[%s2699 + $0x8] sm:$0xff]
        %v2803 = vld [vmem:[%s2699 + $0x10] sm:$0x1]
        %v2804 = vpack.c.bf16 %v2801, %v2801
        %v2805 = vpack.c.bf16 %v2802, %v2802
        %v2806 = vpack.c.bf16 %v2803, %v2803
        %v2807 = vld [vmem:[%s2706] sm:$0xff]
        %v2808 = vld [vmem:[%s2706 + $0x8] sm:$0xff]
        %v2809 = vpack.c.bf16 %v2807, %v2807
        %v2810 = vpack.c.bf16 %v2808, %v2808
        %v2813 = vunpack.c.l.b16 %v2809
        %v2814 = vunpack.c.l.b16 %v2810
        %v2815 = vpack.c.b16 %v2814, %v2813
        %v2817 = vsel %vm242, %v2815, 0
        %2819 = vmatpush.bf16.msra.mxu0 0
        %2820 = vmatpush.bf16.msra.mxu0 0
        %2821 = vmatpush.bf16.msra.mxu0 0
        %2822 = vmatpush.bf16.msra.mxu0 0
        %2823 = vmatpush.bf16.msra.mxu0 0
        %2824 = vmatpush.bf16.msra.mxu0 0
        %2825 = vmatpush.bf16.msra.mxu0 0
        %2826 = vmatpush.bf16.msra.mxu0 %v251
        %2827 = vmatmul.bf16.gmra.mxu0 %v2817
        %v2828 = vpop.f32.mrf.mxu0
        %v2829 = vadd.f32 0.0, %v2828
        %v2830 = vpop.f32.mrf.mxu0
        %v2831 = vadd.f32 0.0, %v2830
        %2832 = vdwg.mxu0
        %v2835 = vunpack.c.l.b16 %v2804
        %v2836 = vunpack.c.l.b16 %v2805
        %v2837 = vpack.c.b16 %v2836, %v2835
        %v2839 = vsel %vm242, %v2837, 0
        %2841 = vmatpush.bf16.msra.mxu0 0
        %2842 = vmatpush.bf16.msra.mxu0 0
        %2843 = vmatpush.bf16.msra.mxu0 0
        %2844 = vmatpush.bf16.msra.mxu0 0
        %2845 = vmatpush.bf16.msra.mxu0 0
        %2846 = vmatpush.bf16.msra.mxu0 0
        %2847 = vmatpush.bf16.msra.mxu0 0
        %2848 = vmatpush.bf16.msra.mxu0 %v276
        %2849 = vmatmul.bf16.gmra.mxu0 %v2839
        %v2850 = vpop.f32.mrf.mxu0
        %v2851 = vadd.f32 %v2829, %v2850
        %v2852 = vpop.f32.mrf.mxu0
        %v2853 = vadd.f32 %v2831, %v2852
        %2854 = vdwg.mxu0
        %v2856 = vunpack.c.l.b16 %v2806
        %v2857 = vpack.c.b16 %v2856, %v2856
        %v2858 = vshrl.u32 %v2837, 16
        %v2860 = vshll.u32 %v2837, 16
        %v2862 = vrot.slane %v2860, 1
        %v2863 = vor.u32 %v2858, %v2862
        %v2865 = vshll.u32 %v2857, 16
        %v2867 = vrot.slane %v2865, 1
        %v2868 = vsel %vm295, %v2863, %v2867
        %v2870 = vsel %vm242, %v2868, 0
        %2872 = vmatpush.bf16.msra.mxu0 0
        %2873 = vmatpush.bf16.msra.mxu0 0
        %2874 = vmatpush.bf16.msra.mxu0 0
        %2875 = vmatpush.bf16.msra.mxu0 0
        %2876 = vmatpush.bf16.msra.mxu0 0
        %2877 = vmatpush.bf16.msra.mxu0 0
        %2878 = vmatpush.bf16.msra.mxu0 0
        %2879 = vmatpush.bf16.msra.mxu0 %v311
        %2880 = vmatmul.bf16.gmra.mxu0 %v2870
        %v2881 = vpop.f32.mrf.mxu0
        %v2882 = vadd.f32 0.0, %v2881
        %v2883 = vpop.f32.mrf.mxu0
        %v2884 = vadd.f32 0.0, %v2883
        %2885 = vdwg.mxu0
        %v2886 = vadd.f32 %v2851, %v2882
        %v2887 = vadd.f32 %v2853, %v2884
        %s2888 = scalar_lea.vmem %s210, 456
        %v2889 = vld [vmem:[%s2888] sm:$0xff]
        %v2890 = vld [vmem:[%s2888 + $0x8] sm:$0xff]
        %v2891 = vld [vmem:[%s2888 + $0x10] sm:$0x1]
        %v2892 = vpack.c.bf16 %v2889, %v2889
        %v2893 = vpack.c.bf16 %v2890, %v2890
        %v2894 = vpack.c.bf16 %v2891, %v2891
        %s2895 = scalar_lea.vmem %s215, 456
        %v2896 = vld [vmem:[%s2895] sm:$0xff]
        %v2897 = vld [vmem:[%s2895 + $0x8] sm:$0xff]
        %v2898 = vpack.c.bf16 %v2896, %v2896
        %v2899 = vpack.c.bf16 %v2897, %v2897
        %v2902 = vunpack.c.l.b16 %v2892
        %v2903 = vunpack.c.l.b16 %v2893
        %v2904 = vpack.c.b16 %v2903, %v2902
        %v2906 = vsel %vm242, %v2904, 0
        %2908 = vmatpush.bf16.msra.mxu0 0
        %2909 = vmatpush.bf16.msra.mxu0 0
        %2910 = vmatpush.bf16.msra.mxu0 0
        %2911 = vmatpush.bf16.msra.mxu0 0
        %2912 = vmatpush.bf16.msra.mxu0 0
        %2913 = vmatpush.bf16.msra.mxu0 0
        %2914 = vmatpush.bf16.msra.mxu0 0
        %2915 = vmatpush.bf16.msra.mxu0 %v350
        %2916 = vmatmul.bf16.gmra.mxu0 %v2906
        %v2917 = vpop.f32.mrf.mxu0
        %v2918 = vadd.f32 0.0, %v2917
        %v2919 = vpop.f32.mrf.mxu0
        %v2920 = vadd.f32 0.0, %v2919
        %2921 = vdwg.mxu0
        %v2922 = vadd.f32 %v2886, %v2918
        %v2923 = vadd.f32 %v2887, %v2920
        %v2926 = vunpack.c.l.b16 %v2898
        %v2927 = vunpack.c.l.b16 %v2899
        %v2928 = vpack.c.b16 %v2927, %v2926
        %v2930 = vsel %vm242, %v2928, 0
        %2932 = vmatpush.bf16.msra.mxu0 0
        %2933 = vmatpush.bf16.msra.mxu0 0
        %2934 = vmatpush.bf16.msra.mxu0 0
        %2935 = vmatpush.bf16.msra.mxu0 0
        %2936 = vmatpush.bf16.msra.mxu0 0
        %2937 = vmatpush.bf16.msra.mxu0 0
        %2938 = vmatpush.bf16.msra.mxu0 0
        %2939 = vmatpush.bf16.msra.mxu0 %v377
        %2940 = vmatmul.bf16.gmra.mxu0 %v2930
        %v2941 = vpop.f32.mrf.mxu0
        %v2942 = vadd.f32 0.0, %v2941
        %v2943 = vpop.f32.mrf.mxu0
        %v2944 = vadd.f32 0.0, %v2943
        %2945 = vdwg.mxu0
        %v2946 = vadd.f32 %v2922, %v2942
        %v2947 = vadd.f32 %v2923, %v2944
        %v2949 = vunpack.c.l.b16 %v2894
        %v2950 = vpack.c.b16 %v2949, %v2949
        %v2951 = vshrl.u32 %v2904, 16
        %v2953 = vshll.u32 %v2904, 16
        %v2955 = vrot.slane %v2953, 1
        %v2956 = vor.u32 %v2951, %v2955
        %v2958 = vshll.u32 %v2950, 16
        %v2960 = vrot.slane %v2958, 1
        %v2961 = vsel %vm295, %v2956, %v2960
        %v2963 = vsel %vm242, %v2961, 0
        %2965 = vmatpush.bf16.msra.mxu0 0
        %2966 = vmatpush.bf16.msra.mxu0 0
        %2967 = vmatpush.bf16.msra.mxu0 0
        %2968 = vmatpush.bf16.msra.mxu0 0
        %2969 = vmatpush.bf16.msra.mxu0 0
        %2970 = vmatpush.bf16.msra.mxu0 0
        %2971 = vmatpush.bf16.msra.mxu0 0
        %2972 = vmatpush.bf16.msra.mxu0 %v413
        %2973 = vmatmul.bf16.gmra.mxu0 %v2963
        %v2974 = vpop.f32.mrf.mxu0
        %v2975 = vadd.f32 0.0, %v2974
        %v2976 = vpop.f32.mrf.mxu0
        %v2977 = vadd.f32 0.0, %v2976
        %2978 = vdwg.mxu0
        %v2979 = vadd.f32 %v2946, %v2975
        %v2980 = vadd.f32 %v2947, %v2977
        %s2981 = scalar_lea.vmem %s210, 480
        %v2982 = vld [vmem:[%s2981] sm:$0xff]
        %v2983 = vld [vmem:[%s2981 + $0x8] sm:$0xff]
        %v2984 = vld [vmem:[%s2981 + $0x10] sm:$0x1]
        %v2985 = vpack.c.bf16 %v2982, %v2982
        %v2986 = vpack.c.bf16 %v2983, %v2983
        %v2987 = vpack.c.bf16 %v2984, %v2984
        %s2988 = scalar_lea.vmem %s215, 480
        %v2989 = vld [vmem:[%s2988] sm:$0xff]
        %v2990 = vld [vmem:[%s2988 + $0x8] sm:$0xff]
        %v2991 = vpack.c.bf16 %v2989, %v2989
        %v2992 = vpack.c.bf16 %v2990, %v2990
        %v2995 = vunpack.c.l.b16 %v2985
        %v2996 = vunpack.c.l.b16 %v2986
        %v2997 = vpack.c.b16 %v2996, %v2995
        %v2999 = vsel %vm242, %v2997, 0
        %3001 = vmatpush.bf16.msra.mxu0 0
        %3002 = vmatpush.bf16.msra.mxu0 0
        %3003 = vmatpush.bf16.msra.mxu0 0
        %3004 = vmatpush.bf16.msra.mxu0 0
        %3005 = vmatpush.bf16.msra.mxu0 0
        %3006 = vmatpush.bf16.msra.mxu0 0
        %3007 = vmatpush.bf16.msra.mxu0 0
        %3008 = vmatpush.bf16.msra.mxu0 %v452
        %3009 = vmatmul.bf16.gmra.mxu0 %v2999
        %v3010 = vpop.f32.mrf.mxu0
        %v3011 = vadd.f32 0.0, %v3010
        %v3012 = vpop.f32.mrf.mxu0
        %v3013 = vadd.f32 0.0, %v3012
        %3014 = vdwg.mxu0
        %v3015 = vadd.f32 %v2979, %v3011
        %v3016 = vadd.f32 %v2980, %v3013
        %v3019 = vunpack.c.l.b16 %v2991
        %v3020 = vunpack.c.l.b16 %v2992
        %v3021 = vpack.c.b16 %v3020, %v3019
        %v3023 = vsel %vm242, %v3021, 0
        %3025 = vmatpush.bf16.msra.mxu0 0
        %3026 = vmatpush.bf16.msra.mxu0 0
        %3027 = vmatpush.bf16.msra.mxu0 0
        %3028 = vmatpush.bf16.msra.mxu0 0
        %3029 = vmatpush.bf16.msra.mxu0 0
        %3030 = vmatpush.bf16.msra.mxu0 0
        %3031 = vmatpush.bf16.msra.mxu0 0
        %3032 = vmatpush.bf16.msra.mxu0 %v479
        %3033 = vmatmul.bf16.gmra.mxu0 %v3023
        %v3034 = vpop.f32.mrf.mxu0
        %v3035 = vadd.f32 0.0, %v3034
        %v3036 = vpop.f32.mrf.mxu0
        %v3037 = vadd.f32 0.0, %v3036
        %3038 = vdwg.mxu0
        %v3039 = vadd.f32 %v3015, %v3035
        %v3040 = vadd.f32 %v3016, %v3037
        %v3042 = vunpack.c.l.b16 %v2987
        %v3043 = vpack.c.b16 %v3042, %v3042
        %v3044 = vshrl.u32 %v2997, 16
        %v3046 = vshll.u32 %v2997, 16
        %v3048 = vrot.slane %v3046, 1
        %v3049 = vor.u32 %v3044, %v3048
        %v3051 = vshll.u32 %v3043, 16
        %v3053 = vrot.slane %v3051, 1
        %v3054 = vsel %vm295, %v3049, %v3053
        %v3056 = vsel %vm242, %v3054, 0
        %3058 = vmatpush.bf16.msra.mxu0 0
        %3059 = vmatpush.bf16.msra.mxu0 0
        %3060 = vmatpush.bf16.msra.mxu0 0
        %3061 = vmatpush.bf16.msra.mxu0 0
        %3062 = vmatpush.bf16.msra.mxu0 0
        %3063 = vmatpush.bf16.msra.mxu0 0
        %3064 = vmatpush.bf16.msra.mxu0 0
        %3065 = vmatpush.bf16.msra.mxu0 %v515
        %3066 = vmatmul.bf16.gmra.mxu0 %v3056
        %v3067 = vpop.f32.mrf.mxu0
        %v3068 = vadd.f32 0.0, %v3067
        %v3069 = vpop.f32.mrf.mxu0
        %v3070 = vadd.f32 0.0, %v3069
        %3071 = vdwg.mxu0
        %v3072 = vadd.f32 %v3039, %v3068
        %v3073 = vadd.f32 %v3040, %v3070
        %v3074 = vadd.f32 %v3072, %v534
        %v3075 = vadd.f32 %v3073, %v534
        %v3076 = vmax.f32 %v3074, 0.0
        %v3077 = vmax.f32 %v3075, 0.0
        %v3078 = vmin.f32 %v3076, 6.0
        %v3079 = vmin.f32 %v3077, 6.0
        %s3080 = scalar_lea.vmem %s205, 144 [#allocation2]
        %3081 = vst.msk [vmem:[%s3080] sm:$0xff] %vm542, %v3078
        %3082 = vst.msk [vmem:[%s3080 + $0x8] sm:$0xff] %vm542, %v3079
        %v3083 = vld [vmem:[%s2981] sm:$0xff]
        %v3084 = vld [vmem:[%s2981 + $0x8] sm:$0xff]
        %v3085 = vld [vmem:[%s2981 + $0x10] sm:$0x1]
        %v3086 = vpack.c.bf16 %v3083, %v3083
        %v3087 = vpack.c.bf16 %v3084, %v3084
        %v3088 = vpack.c.bf16 %v3085, %v3085
        %v3089 = vld [vmem:[%s2988] sm:$0xff]
        %v3090 = vld [vmem:[%s2988 + $0x8] sm:$0xff]
        %v3091 = vpack.c.bf16 %v3089, %v3089
        %v3092 = vpack.c.bf16 %v3090, %v3090
        %v3095 = vunpack.c.l.b16 %v3091
        %v3096 = vunpack.c.l.b16 %v3092
        %v3097 = vpack.c.b16 %v3096, %v3095
        %v3099 = vsel %vm242, %v3097, 0
        %3101 = vmatpush.bf16.msra.mxu0 0
        %3102 = vmatpush.bf16.msra.mxu0 0
        %3103 = vmatpush.bf16.msra.mxu0 0
        %3104 = vmatpush.bf16.msra.mxu0 0
        %3105 = vmatpush.bf16.msra.mxu0 0
        %3106 = vmatpush.bf16.msra.mxu0 0
        %3107 = vmatpush.bf16.msra.mxu0 0
        %3108 = vmatpush.bf16.msra.mxu0 %v251
        %3109 = vmatmul.bf16.gmra.mxu0 %v3099
        %v3110 = vpop.f32.mrf.mxu0
        %v3111 = vadd.f32 0.0, %v3110
        %v3112 = vpop.f32.mrf.mxu0
        %v3113 = vadd.f32 0.0, %v3112
        %3114 = vdwg.mxu0
        %v3117 = vunpack.c.l.b16 %v3086
        %v3118 = vunpack.c.l.b16 %v3087
        %v3119 = vpack.c.b16 %v3118, %v3117
        %v3121 = vsel %vm242, %v3119, 0
        %3123 = vmatpush.bf16.msra.mxu0 0
        %3124 = vmatpush.bf16.msra.mxu0 0
        %3125 = vmatpush.bf16.msra.mxu0 0
        %3126 = vmatpush.bf16.msra.mxu0 0
        %3127 = vmatpush.bf16.msra.mxu0 0
        %3128 = vmatpush.bf16.msra.mxu0 0
        %3129 = vmatpush.bf16.msra.mxu0 0
        %3130 = vmatpush.bf16.msra.mxu0 %v276
        %3131 = vmatmul.bf16.gmra.mxu0 %v3121
        %v3132 = vpop.f32.mrf.mxu0
        %v3133 = vadd.f32 %v3111, %v3132
        %v3134 = vpop.f32.mrf.mxu0
        %v3135 = vadd.f32 %v3113, %v3134
        %3136 = vdwg.mxu0
        %v3138 = vunpack.c.l.b16 %v3088
        %v3139 = vpack.c.b16 %v3138, %v3138
        %v3140 = vshrl.u32 %v3119, 16
        %v3142 = vshll.u32 %v3119, 16
        %v3144 = vrot.slane %v3142, 1
        %v3145 = vor.u32 %v3140, %v3144
        %v3147 = vshll.u32 %v3139, 16
        %v3149 = vrot.slane %v3147, 1
        %v3150 = vsel %vm295, %v3145, %v3149
        %v3152 = vsel %vm242, %v3150, 0
        %3154 = vmatpush.bf16.msra.mxu0 0
        %3155 = vmatpush.bf16.msra.mxu0 0
        %3156 = vmatpush.bf16.msra.mxu0 0
        %3157 = vmatpush.bf16.msra.mxu0 0
        %3158 = vmatpush.bf16.msra.mxu0 0
        %3159 = vmatpush.bf16.msra.mxu0 0
        %3160 = vmatpush.bf16.msra.mxu0 0
        %3161 = vmatpush.bf16.msra.mxu0 %v311
        %3162 = vmatmul.bf16.gmra.mxu0 %v3152
        %v3163 = vpop.f32.mrf.mxu0
        %v3164 = vadd.f32 0.0, %v3163
        %v3165 = vpop.f32.mrf.mxu0
        %v3166 = vadd.f32 0.0, %v3165
        %3167 = vdwg.mxu0
        %v3168 = vadd.f32 %v3133, %v3164
        %v3169 = vadd.f32 %v3135, %v3166
        %s3170 = scalar_lea.vmem %s210, 504
        %v3171 = vld [vmem:[%s3170] sm:$0xff]
        %v3172 = vld [vmem:[%s3170 + $0x8] sm:$0xff]
        %v3173 = vld [vmem:[%s3170 + $0x10] sm:$0x1]
        %v3174 = vpack.c.bf16 %v3171, %v3171
        %v3175 = vpack.c.bf16 %v3172, %v3172
        %v3176 = vpack.c.bf16 %v3173, %v3173
        %s3177 = scalar_lea.vmem %s215, 504
        %v3178 = vld [vmem:[%s3177] sm:$0xff]
        %v3179 = vld [vmem:[%s3177 + $0x8] sm:$0xff]
        %v3180 = vpack.c.bf16 %v3178, %v3178
        %v3181 = vpack.c.bf16 %v3179, %v3179
        %v3184 = vunpack.c.l.b16 %v3174
        %v3185 = vunpack.c.l.b16 %v3175
        %v3186 = vpack.c.b16 %v3185, %v3184
        %v3188 = vsel %vm242, %v3186, 0
        %3190 = vmatpush.bf16.msra.mxu0 0
        %3191 = vmatpush.bf16.msra.mxu0 0
        %3192 = vmatpush.bf16.msra.mxu0 0
        %3193 = vmatpush.bf16.msra.mxu0 0
        %3194 = vmatpush.bf16.msra.mxu0 0
        %3195 = vmatpush.bf16.msra.mxu0 0
        %3196 = vmatpush.bf16.msra.mxu0 0
        %3197 = vmatpush.bf16.msra.mxu0 %v350
        %3198 = vmatmul.bf16.gmra.mxu0 %v3188
        %v3199 = vpop.f32.mrf.mxu0
        %v3200 = vadd.f32 0.0, %v3199
        %v3201 = vpop.f32.mrf.mxu0
        %v3202 = vadd.f32 0.0, %v3201
        %3203 = vdwg.mxu0
        %v3204 = vadd.f32 %v3168, %v3200
        %v3205 = vadd.f32 %v3169, %v3202
        %v3208 = vunpack.c.l.b16 %v3180
        %v3209 = vunpack.c.l.b16 %v3181
        %v3210 = vpack.c.b16 %v3209, %v3208
        %v3212 = vsel %vm242, %v3210, 0
        %3214 = vmatpush.bf16.msra.mxu0 0
        %3215 = vmatpush.bf16.msra.mxu0 0
        %3216 = vmatpush.bf16.msra.mxu0 0
        %3217 = vmatpush.bf16.msra.mxu0 0
        %3218 = vmatpush.bf16.msra.mxu0 0
        %3219 = vmatpush.bf16.msra.mxu0 0
        %3220 = vmatpush.bf16.msra.mxu0 0
        %3221 = vmatpush.bf16.msra.mxu0 %v377
        %3222 = vmatmul.bf16.gmra.mxu0 %v3212
        %v3223 = vpop.f32.mrf.mxu0
        %v3224 = vadd.f32 0.0, %v3223
        %v3225 = vpop.f32.mrf.mxu0
        %v3226 = vadd.f32 0.0, %v3225
        %3227 = vdwg.mxu0
        %v3228 = vadd.f32 %v3204, %v3224
        %v3229 = vadd.f32 %v3205, %v3226
        %v3231 = vunpack.c.l.b16 %v3176
        %v3232 = vpack.c.b16 %v3231, %v3231
        %v3233 = vshrl.u32 %v3186, 16
        %v3235 = vshll.u32 %v3186, 16
        %v3237 = vrot.slane %v3235, 1
        %v3238 = vor.u32 %v3233, %v3237
        %v3240 = vshll.u32 %v3232, 16
        %v3242 = vrot.slane %v3240, 1
        %v3243 = vsel %vm295, %v3238, %v3242
        %v3245 = vsel %vm242, %v3243, 0
        %3247 = vmatpush.bf16.msra.mxu0 0
        %3248 = vmatpush.bf16.msra.mxu0 0
        %3249 = vmatpush.bf16.msra.mxu0 0
        %3250 = vmatpush.bf16.msra.mxu0 0
        %3251 = vmatpush.bf16.msra.mxu0 0
        %3252 = vmatpush.bf16.msra.mxu0 0
        %3253 = vmatpush.bf16.msra.mxu0 0
        %3254 = vmatpush.bf16.msra.mxu0 %v413
        %3255 = vmatmul.bf16.gmra.mxu0 %v3245
        %v3256 = vpop.f32.mrf.mxu0
        %v3257 = vadd.f32 0.0, %v3256
        %v3258 = vpop.f32.mrf.mxu0
        %v3259 = vadd.f32 0.0, %v3258
        %3260 = vdwg.mxu0
        %v3261 = vadd.f32 %v3228, %v3257
        %v3262 = vadd.f32 %v3229, %v3259
        %s3263 = scalar_lea.vmem %s210, 528
        %v3264 = vld [vmem:[%s3263] sm:$0xff]
        %v3265 = vld [vmem:[%s3263 + $0x8] sm:$0xff]
        %v3266 = vld [vmem:[%s3263 + $0x10] sm:$0x1]
        %v3267 = vpack.c.bf16 %v3264, %v3264
        %v3268 = vpack.c.bf16 %v3265, %v3265
        %v3269 = vpack.c.bf16 %v3266, %v3266
        %s3270 = scalar_lea.vmem %s215, 528
        %v3271 = vld [vmem:[%s3270] sm:$0xff]
        %v3272 = vld [vmem:[%s3270 + $0x8] sm:$0xff]
        %v3273 = vpack.c.bf16 %v3271, %v3271
        %v3274 = vpack.c.bf16 %v3272, %v3272
        %v3277 = vunpack.c.l.b16 %v3267
        %v3278 = vunpack.c.l.b16 %v3268
        %v3279 = vpack.c.b16 %v3278, %v3277
        %v3281 = vsel %vm242, %v3279, 0
        %3283 = vmatpush.bf16.msra.mxu0 0
        %3284 = vmatpush.bf16.msra.mxu0 0
        %3285 = vmatpush.bf16.msra.mxu0 0
        %3286 = vmatpush.bf16.msra.mxu0 0
        %3287 = vmatpush.bf16.msra.mxu0 0
        %3288 = vmatpush.bf16.msra.mxu0 0
        %3289 = vmatpush.bf16.msra.mxu0 0
        %3290 = vmatpush.bf16.msra.mxu0 %v452
        %3291 = vmatmul.bf16.gmra.mxu0 %v3281
        %v3292 = vpop.f32.mrf.mxu0
        %v3293 = vadd.f32 0.0, %v3292
        %v3294 = vpop.f32.mrf.mxu0
        %v3295 = vadd.f32 0.0, %v3294
        %3296 = vdwg.mxu0
        %v3297 = vadd.f32 %v3261, %v3293
        %v3298 = vadd.f32 %v3262, %v3295
        %v3301 = vunpack.c.l.b16 %v3273
        %v3302 = vunpack.c.l.b16 %v3274
        %v3303 = vpack.c.b16 %v3302, %v3301
        %v3305 = vsel %vm242, %v3303, 0
        %3307 = vmatpush.bf16.msra.mxu0 0
        %3308 = vmatpush.bf16.msra.mxu0 0
        %3309 = vmatpush.bf16.msra.mxu0 0
        %3310 = vmatpush.bf16.msra.mxu0 0
        %3311 = vmatpush.bf16.msra.mxu0 0
        %3312 = vmatpush.bf16.msra.mxu0 0
        %3313 = vmatpush.bf16.msra.mxu0 0
        %3314 = vmatpush.bf16.msra.mxu0 %v479
        %3315 = vmatmul.bf16.gmra.mxu0 %v3305
        %v3316 = vpop.f32.mrf.mxu0
        %v3317 = vadd.f32 0.0, %v3316
        %v3318 = vpop.f32.mrf.mxu0
        %v3319 = vadd.f32 0.0, %v3318
        %3320 = vdwg.mxu0
        %v3321 = vadd.f32 %v3297, %v3317
        %v3322 = vadd.f32 %v3298, %v3319
        %v3324 = vunpack.c.l.b16 %v3269
        %v3325 = vpack.c.b16 %v3324, %v3324
        %v3326 = vshrl.u32 %v3279, 16
        %v3328 = vshll.u32 %v3279, 16
        %v3330 = vrot.slane %v3328, 1
        %v3331 = vor.u32 %v3326, %v3330
        %v3333 = vshll.u32 %v3325, 16
        %v3335 = vrot.slane %v3333, 1
        %v3336 = vsel %vm295, %v3331, %v3335
        %v3338 = vsel %vm242, %v3336, 0
        %3340 = vmatpush.bf16.msra.mxu0 0
        %3341 = vmatpush.bf16.msra.mxu0 0
        %3342 = vmatpush.bf16.msra.mxu0 0
        %3343 = vmatpush.bf16.msra.mxu0 0
        %3344 = vmatpush.bf16.msra.mxu0 0
        %3345 = vmatpush.bf16.msra.mxu0 0
        %3346 = vmatpush.bf16.msra.mxu0 0
        %3347 = vmatpush.bf16.msra.mxu0 %v515
        %3348 = vmatmul.bf16.gmra.mxu0 %v3338
        %v3349 = vpop.f32.mrf.mxu0
        %v3350 = vadd.f32 0.0, %v3349
        %v3351 = vpop.f32.mrf.mxu0
        %v3352 = vadd.f32 0.0, %v3351
        %3353 = vdwg.mxu0
        %v3354 = vadd.f32 %v3321, %v3350
        %v3355 = vadd.f32 %v3322, %v3352
        %v3356 = vadd.f32 %v3354, %v534
        %v3357 = vadd.f32 %v3355, %v534
        %v3358 = vmax.f32 %v3356, 0.0
        %v3359 = vmax.f32 %v3357, 0.0
        %v3360 = vmin.f32 %v3358, 6.0
        %v3361 = vmin.f32 %v3359, 6.0
        %s3362 = scalar_lea.vmem %s205, 160 [#allocation2]
        %3363 = vst.msk [vmem:[%s3362] sm:$0xff] %vm542, %v3360
        %3364 = vst.msk [vmem:[%s3362 + $0x8] sm:$0xff] %vm542, %v3361
        %v3365 = vld [vmem:[%s3263] sm:$0xff]
        %v3366 = vld [vmem:[%s3263 + $0x8] sm:$0xff]
        %v3367 = vld [vmem:[%s3263 + $0x10] sm:$0x1]
        %v3368 = vpack.c.bf16 %v3365, %v3365
        %v3369 = vpack.c.bf16 %v3366, %v3366
        %v3370 = vpack.c.bf16 %v3367, %v3367
        %v3371 = vld [vmem:[%s3270] sm:$0xff]
        %v3372 = vld [vmem:[%s3270 + $0x8] sm:$0xff]
        %v3373 = vpack.c.bf16 %v3371, %v3371
        %v3374 = vpack.c.bf16 %v3372, %v3372
        %v3377 = vunpack.c.l.b16 %v3373
        %v3378 = vunpack.c.l.b16 %v3374
        %v3379 = vpack.c.b16 %v3378, %v3377
        %v3381 = vsel %vm242, %v3379, 0
        %3383 = vmatpush.bf16.msra.mxu0 0
        %3384 = vmatpush.bf16.msra.mxu0 0
        %3385 = vmatpush.bf16.msra.mxu0 0
        %3386 = vmatpush.bf16.msra.mxu0 0
        %3387 = vmatpush.bf16.msra.mxu0 0
        %3388 = vmatpush.bf16.msra.mxu0 0
        %3389 = vmatpush.bf16.msra.mxu0 0
        %3390 = vmatpush.bf16.msra.mxu0 %v251
        %3391 = vmatmul.bf16.gmra.mxu0 %v3381
        %v3392 = vpop.f32.mrf.mxu0
        %v3393 = vadd.f32 0.0, %v3392
        %v3394 = vpop.f32.mrf.mxu0
        %v3395 = vadd.f32 0.0, %v3394
        %3396 = vdwg.mxu0
        %v3399 = vunpack.c.l.b16 %v3368
        %v3400 = vunpack.c.l.b16 %v3369
        %v3401 = vpack.c.b16 %v3400, %v3399
        %v3403 = vsel %vm242, %v3401, 0
        %3405 = vmatpush.bf16.msra.mxu0 0
        %3406 = vmatpush.bf16.msra.mxu0 0
        %3407 = vmatpush.bf16.msra.mxu0 0
        %3408 = vmatpush.bf16.msra.mxu0 0
        %3409 = vmatpush.bf16.msra.mxu0 0
        %3410 = vmatpush.bf16.msra.mxu0 0
        %3411 = vmatpush.bf16.msra.mxu0 0
        %3412 = vmatpush.bf16.msra.mxu0 %v276
        %3413 = vmatmul.bf16.gmra.mxu0 %v3403
        %v3414 = vpop.f32.mrf.mxu0
        %v3415 = vadd.f32 %v3393, %v3414
        %v3416 = vpop.f32.mrf.mxu0
        %v3417 = vadd.f32 %v3395, %v3416
        %3418 = vdwg.mxu0
        %v3420 = vunpack.c.l.b16 %v3370
        %v3421 = vpack.c.b16 %v3420, %v3420
        %v3422 = vshrl.u32 %v3401, 16
        %v3424 = vshll.u32 %v3401, 16
        %v3426 = vrot.slane %v3424, 1
        %v3427 = vor.u32 %v3422, %v3426
        %v3429 = vshll.u32 %v3421, 16
        %v3431 = vrot.slane %v3429, 1
        %v3432 = vsel %vm295, %v3427, %v3431
        %v3434 = vsel %vm242, %v3432, 0
        %3436 = vmatpush.bf16.msra.mxu0 0
        %3437 = vmatpush.bf16.msra.mxu0 0
        %3438 = vmatpush.bf16.msra.mxu0 0
        %3439 = vmatpush.bf16.msra.mxu0 0
        %3440 = vmatpush.bf16.msra.mxu0 0
        %3441 = vmatpush.bf16.msra.mxu0 0
        %3442 = vmatpush.bf16.msra.mxu0 0
        %3443 = vmatpush.bf16.msra.mxu0 %v311
        %3444 = vmatmul.bf16.gmra.mxu0 %v3434
        %v3445 = vpop.f32.mrf.mxu0
        %v3446 = vadd.f32 0.0, %v3445
        %v3447 = vpop.f32.mrf.mxu0
        %v3448 = vadd.f32 0.0, %v3447
        %3449 = vdwg.mxu0
        %v3450 = vadd.f32 %v3415, %v3446
        %v3451 = vadd.f32 %v3417, %v3448
        %s3452 = scalar_lea.vmem %s210, 552
        %v3453 = vld [vmem:[%s3452] sm:$0xff]
        %v3454 = vld [vmem:[%s3452 + $0x8] sm:$0xff]
        %v3455 = vld [vmem:[%s3452 + $0x10] sm:$0x1]
        %v3456 = vpack.c.bf16 %v3453, %v3453
        %v3457 = vpack.c.bf16 %v3454, %v3454
        %v3458 = vpack.c.bf16 %v3455, %v3455
        %s3459 = scalar_lea.vmem %s215, 552
        %v3460 = vld [vmem:[%s3459] sm:$0xff]
        %v3461 = vld [vmem:[%s3459 + $0x8] sm:$0xff]
        %v3462 = vpack.c.bf16 %v3460, %v3460
        %v3463 = vpack.c.bf16 %v3461, %v3461
        %v3466 = vunpack.c.l.b16 %v3456
        %v3467 = vunpack.c.l.b16 %v3457
        %v3468 = vpack.c.b16 %v3467, %v3466
        %v3470 = vsel %vm242, %v3468, 0
        %3472 = vmatpush.bf16.msra.mxu0 0
        %3473 = vmatpush.bf16.msra.mxu0 0
        %3474 = vmatpush.bf16.msra.mxu0 0
        %3475 = vmatpush.bf16.msra.mxu0 0
        %3476 = vmatpush.bf16.msra.mxu0 0
        %3477 = vmatpush.bf16.msra.mxu0 0
        %3478 = vmatpush.bf16.msra.mxu0 0
        %3479 = vmatpush.bf16.msra.mxu0 %v350
        %3480 = vmatmul.bf16.gmra.mxu0 %v3470
        %v3481 = vpop.f32.mrf.mxu0
        %v3482 = vadd.f32 0.0, %v3481
        %v3483 = vpop.f32.mrf.mxu0
        %v3484 = vadd.f32 0.0, %v3483
        %3485 = vdwg.mxu0
        %v3486 = vadd.f32 %v3450, %v3482
        %v3487 = vadd.f32 %v3451, %v3484
        %v3490 = vunpack.c.l.b16 %v3462
        %v3491 = vunpack.c.l.b16 %v3463
        %v3492 = vpack.c.b16 %v3491, %v3490
        %v3494 = vsel %vm242, %v3492, 0
        %3496 = vmatpush.bf16.msra.mxu0 0
        %3497 = vmatpush.bf16.msra.mxu0 0
        %3498 = vmatpush.bf16.msra.mxu0 0
        %3499 = vmatpush.bf16.msra.mxu0 0
        %3500 = vmatpush.bf16.msra.mxu0 0
        %3501 = vmatpush.bf16.msra.mxu0 0
        %3502 = vmatpush.bf16.msra.mxu0 0
        %3503 = vmatpush.bf16.msra.mxu0 %v377
        %3504 = vmatmul.bf16.gmra.mxu0 %v3494
        %v3505 = vpop.f32.mrf.mxu0
        %v3506 = vadd.f32 0.0, %v3505
        %v3507 = vpop.f32.mrf.mxu0
        %v3508 = vadd.f32 0.0, %v3507
        %3509 = vdwg.mxu0
        %v3510 = vadd.f32 %v3486, %v3506
        %v3511 = vadd.f32 %v3487, %v3508
        %v3513 = vunpack.c.l.b16 %v3458
        %v3514 = vpack.c.b16 %v3513, %v3513
        %v3515 = vshrl.u32 %v3468, 16
        %v3517 = vshll.u32 %v3468, 16
        %v3519 = vrot.slane %v3517, 1
        %v3520 = vor.u32 %v3515, %v3519
        %v3522 = vshll.u32 %v3514, 16
        %v3524 = vrot.slane %v3522, 1
        %v3525 = vsel %vm295, %v3520, %v3524
        %v3527 = vsel %vm242, %v3525, 0
        %3529 = vmatpush.bf16.msra.mxu0 0
        %3530 = vmatpush.bf16.msra.mxu0 0
        %3531 = vmatpush.bf16.msra.mxu0 0
        %3532 = vmatpush.bf16.msra.mxu0 0
        %3533 = vmatpush.bf16.msra.mxu0 0
        %3534 = vmatpush.bf16.msra.mxu0 0
        %3535 = vmatpush.bf16.msra.mxu0 0
        %3536 = vmatpush.bf16.msra.mxu0 %v413
        %3537 = vmatmul.bf16.gmra.mxu0 %v3527
        %v3538 = vpop.f32.mrf.mxu0
        %v3539 = vadd.f32 0.0, %v3538
        %v3540 = vpop.f32.mrf.mxu0
        %v3541 = vadd.f32 0.0, %v3540
        %3542 = vdwg.mxu0
        %v3543 = vadd.f32 %v3510, %v3539
        %v3544 = vadd.f32 %v3511, %v3541
        %s3545 = scalar_lea.vmem %s210, 576
        %v3546 = vld [vmem:[%s3545] sm:$0xff]
        %v3547 = vld [vmem:[%s3545 + $0x8] sm:$0xff]
        %v3548 = vld [vmem:[%s3545 + $0x10] sm:$0x1]
        %v3549 = vpack.c.bf16 %v3546, %v3546
        %v3550 = vpack.c.bf16 %v3547, %v3547
        %v3551 = vpack.c.bf16 %v3548, %v3548
        %s3552 = scalar_lea.vmem %s215, 576
        %v3553 = vld [vmem:[%s3552] sm:$0xff]
        %v3554 = vld [vmem:[%s3552 + $0x8] sm:$0xff]
        %v3555 = vpack.c.bf16 %v3553, %v3553
        %v3556 = vpack.c.bf16 %v3554, %v3554
        %v3559 = vunpack.c.l.b16 %v3549
        %v3560 = vunpack.c.l.b16 %v3550
        %v3561 = vpack.c.b16 %v3560, %v3559
        %v3563 = vsel %vm242, %v3561, 0
        %3565 = vmatpush.bf16.msra.mxu0 0
        %3566 = vmatpush.bf16.msra.mxu0 0
        %3567 = vmatpush.bf16.msra.mxu0 0
        %3568 = vmatpush.bf16.msra.mxu0 0
        %3569 = vmatpush.bf16.msra.mxu0 0
        %3570 = vmatpush.bf16.msra.mxu0 0
        %3571 = vmatpush.bf16.msra.mxu0 0
        %3572 = vmatpush.bf16.msra.mxu0 %v452
        %3573 = vmatmul.bf16.gmra.mxu0 %v3563
        %v3574 = vpop.f32.mrf.mxu0
        %v3575 = vadd.f32 0.0, %v3574
        %v3576 = vpop.f32.mrf.mxu0
        %v3577 = vadd.f32 0.0, %v3576
        %3578 = vdwg.mxu0
        %v3579 = vadd.f32 %v3543, %v3575
        %v3580 = vadd.f32 %v3544, %v3577
        %v3583 = vunpack.c.l.b16 %v3555
        %v3584 = vunpack.c.l.b16 %v3556
        %v3585 = vpack.c.b16 %v3584, %v3583
        %v3587 = vsel %vm242, %v3585, 0
        %3589 = vmatpush.bf16.msra.mxu0 0
        %3590 = vmatpush.bf16.msra.mxu0 0
        %3591 = vmatpush.bf16.msra.mxu0 0
        %3592 = vmatpush.bf16.msra.mxu0 0
        %3593 = vmatpush.bf16.msra.mxu0 0
        %3594 = vmatpush.bf16.msra.mxu0 0
        %3595 = vmatpush.bf16.msra.mxu0 0
        %3596 = vmatpush.bf16.msra.mxu0 %v479
        %3597 = vmatmul.bf16.gmra.mxu0 %v3587
        %v3598 = vpop.f32.mrf.mxu0
        %v3599 = vadd.f32 0.0, %v3598
        %v3600 = vpop.f32.mrf.mxu0
        %v3601 = vadd.f32 0.0, %v3600
        %3602 = vdwg.mxu0
        %v3603 = vadd.f32 %v3579, %v3599
        %v3604 = vadd.f32 %v3580, %v3601
        %v3606 = vunpack.c.l.b16 %v3551
        %v3607 = vpack.c.b16 %v3606, %v3606
        %v3608 = vshrl.u32 %v3561, 16
        %v3610 = vshll.u32 %v3561, 16
        %v3612 = vrot.slane %v3610, 1
        %v3613 = vor.u32 %v3608, %v3612
        %v3615 = vshll.u32 %v3607, 16
        %v3617 = vrot.slane %v3615, 1
        %v3618 = vsel %vm295, %v3613, %v3617
        %v3620 = vsel %vm242, %v3618, 0
        %3622 = vmatpush.bf16.msra.mxu0 0
        %3623 = vmatpush.bf16.msra.mxu0 0
        %3624 = vmatpush.bf16.msra.mxu0 0
        %3625 = vmatpush.bf16.msra.mxu0 0
        %3626 = vmatpush.bf16.msra.mxu0 0
        %3627 = vmatpush.bf16.msra.mxu0 0
        %3628 = vmatpush.bf16.msra.mxu0 0
        %3629 = vmatpush.bf16.msra.mxu0 %v515
        %3630 = vmatmul.bf16.gmra.mxu0 %v3620
        %v3631 = vpop.f32.mrf.mxu0
        %v3632 = vadd.f32 0.0, %v3631
        %v3633 = vpop.f32.mrf.mxu0
        %v3634 = vadd.f32 0.0, %v3633
        %3635 = vdwg.mxu0
        %v3636 = vadd.f32 %v3603, %v3632
        %v3637 = vadd.f32 %v3604, %v3634
        %v3638 = vadd.f32 %v3636, %v534
        %v3639 = vadd.f32 %v3637, %v534
        %v3640 = vmax.f32 %v3638, 0.0
        %v3641 = vmax.f32 %v3639, 0.0
        %v3642 = vmin.f32 %v3640, 6.0
        %v3643 = vmin.f32 %v3641, 6.0
        %s3644 = scalar_lea.vmem %s205, 176 [#allocation2]
        %3645 = vst.msk [vmem:[%s3644] sm:$0xff] %vm542, %v3642
        %3646 = vst.msk [vmem:[%s3644 + $0x8] sm:$0xff] %vm542, %v3643
        %v3647 = vld [vmem:[%s3545] sm:$0xff]
        %v3648 = vld [vmem:[%s3545 + $0x8] sm:$0xff]
        %v3649 = vld [vmem:[%s3545 + $0x10] sm:$0x1]
        %v3650 = vpack.c.bf16 %v3647, %v3647
        %v3651 = vpack.c.bf16 %v3648, %v3648
        %v3652 = vpack.c.bf16 %v3649, %v3649
        %v3653 = vld [vmem:[%s3552] sm:$0xff]
        %v3654 = vld [vmem:[%s3552 + $0x8] sm:$0xff]
        %v3655 = vpack.c.bf16 %v3653, %v3653
        %v3656 = vpack.c.bf16 %v3654, %v3654
        %v3659 = vunpack.c.l.b16 %v3655
        %v3660 = vunpack.c.l.b16 %v3656
        %v3661 = vpack.c.b16 %v3660, %v3659
        %v3663 = vsel %vm242, %v3661, 0
        %3665 = vmatpush.bf16.msra.mxu0 0
        %3666 = vmatpush.bf16.msra.mxu0 0
        %3667 = vmatpush.bf16.msra.mxu0 0
        %3668 = vmatpush.bf16.msra.mxu0 0
        %3669 = vmatpush.bf16.msra.mxu0 0
        %3670 = vmatpush.bf16.msra.mxu0 0
        %3671 = vmatpush.bf16.msra.mxu0 0
        %3672 = vmatpush.bf16.msra.mxu0 %v251
        %3673 = vmatmul.bf16.gmra.mxu0 %v3663
        %v3674 = vpop.f32.mrf.mxu0
        %v3675 = vadd.f32 0.0, %v3674
        %v3676 = vpop.f32.mrf.mxu0
        %v3677 = vadd.f32 0.0, %v3676
        %3678 = vdwg.mxu0
        %v3681 = vunpack.c.l.b16 %v3650
        %v3682 = vunpack.c.l.b16 %v3651
        %v3683 = vpack.c.b16 %v3682, %v3681
        %v3685 = vsel %vm242, %v3683, 0
        %3687 = vmatpush.bf16.msra.mxu0 0
        %3688 = vmatpush.bf16.msra.mxu0 0
        %3689 = vmatpush.bf16.msra.mxu0 0
        %3690 = vmatpush.bf16.msra.mxu0 0
        %3691 = vmatpush.bf16.msra.mxu0 0
        %3692 = vmatpush.bf16.msra.mxu0 0
        %3693 = vmatpush.bf16.msra.mxu0 0
        %3694 = vmatpush.bf16.msra.mxu0 %v276
        %3695 = vmatmul.bf16.gmra.mxu0 %v3685
        %v3696 = vpop.f32.mrf.mxu0
        %v3697 = vadd.f32 %v3675, %v3696
        %v3698 = vpop.f32.mrf.mxu0
        %v3699 = vadd.f32 %v3677, %v3698
        %3700 = vdwg.mxu0
        %v3702 = vunpack.c.l.b16 %v3652
        %v3703 = vpack.c.b16 %v3702, %v3702
        %v3704 = vshrl.u32 %v3683, 16
        %v3706 = vshll.u32 %v3683, 16
        %v3708 = vrot.slane %v3706, 1
        %v3709 = vor.u32 %v3704, %v3708
        %v3711 = vshll.u32 %v3703, 16
        %v3713 = vrot.slane %v3711, 1
        %v3714 = vsel %vm295, %v3709, %v3713
        %v3716 = vsel %vm242, %v3714, 0
        %3718 = vmatpush.bf16.msra.mxu0 0
        %3719 = vmatpush.bf16.msra.mxu0 0
        %3720 = vmatpush.bf16.msra.mxu0 0
        %3721 = vmatpush.bf16.msra.mxu0 0
        %3722 = vmatpush.bf16.msra.mxu0 0
        %3723 = vmatpush.bf16.msra.mxu0 0
        %3724 = vmatpush.bf16.msra.mxu0 0
        %3725 = vmatpush.bf16.msra.mxu0 %v311
        %3726 = vmatmul.bf16.gmra.mxu0 %v3716
        %v3727 = vpop.f32.mrf.mxu0
        %v3728 = vadd.f32 0.0, %v3727
        %v3729 = vpop.f32.mrf.mxu0
        %v3730 = vadd.f32 0.0, %v3729
        %3731 = vdwg.mxu0
        %v3732 = vadd.f32 %v3697, %v3728
        %v3733 = vadd.f32 %v3699, %v3730
        %s3734 = scalar_lea.vmem %s210, 600
        %v3735 = vld [vmem:[%s3734] sm:$0xff]
        %v3736 = vld [vmem:[%s3734 + $0x8] sm:$0xff]
        %v3737 = vld [vmem:[%s3734 + $0x10] sm:$0x1]
        %v3738 = vpack.c.bf16 %v3735, %v3735
        %v3739 = vpack.c.bf16 %v3736, %v3736
        %v3740 = vpack.c.bf16 %v3737, %v3737
        %s3741 = scalar_lea.vmem %s215, 600
        %v3742 = vld [vmem:[%s3741] sm:$0xff]
        %v3743 = vld [vmem:[%s3741 + $0x8] sm:$0xff]
        %v3744 = vpack.c.bf16 %v3742, %v3742
        %v3745 = vpack.c.bf16 %v3743, %v3743
        %v3748 = vunpack.c.l.b16 %v3738
        %v3749 = vunpack.c.l.b16 %v3739
        %v3750 = vpack.c.b16 %v3749, %v3748
        %v3752 = vsel %vm242, %v3750, 0
        %3754 = vmatpush.bf16.msra.mxu0 0
        %3755 = vmatpush.bf16.msra.mxu0 0
        %3756 = vmatpush.bf16.msra.mxu0 0
        %3757 = vmatpush.bf16.msra.mxu0 0
        %3758 = vmatpush.bf16.msra.mxu0 0
        %3759 = vmatpush.bf16.msra.mxu0 0
        %3760 = vmatpush.bf16.msra.mxu0 0
        %3761 = vmatpush.bf16.msra.mxu0 %v350
        %3762 = vmatmul.bf16.gmra.mxu0 %v3752
        %v3763 = vpop.f32.mrf.mxu0
        %v3764 = vadd.f32 0.0, %v3763
        %v3765 = vpop.f32.mrf.mxu0
        %v3766 = vadd.f32 0.0, %v3765
        %3767 = vdwg.mxu0
        %v3768 = vadd.f32 %v3732, %v3764
        %v3769 = vadd.f32 %v3733, %v3766
        %v3772 = vunpack.c.l.b16 %v3744
        %v3773 = vunpack.c.l.b16 %v3745
        %v3774 = vpack.c.b16 %v3773, %v3772
        %v3776 = vsel %vm242, %v3774, 0
        %3778 = vmatpush.bf16.msra.mxu0 0
        %3779 = vmatpush.bf16.msra.mxu0 0
        %3780 = vmatpush.bf16.msra.mxu0 0
        %3781 = vmatpush.bf16.msra.mxu0 0
        %3782 = vmatpush.bf16.msra.mxu0 0
        %3783 = vmatpush.bf16.msra.mxu0 0
        %3784 = vmatpush.bf16.msra.mxu0 0
        %3785 = vmatpush.bf16.msra.mxu0 %v377
        %3786 = vmatmul.bf16.gmra.mxu0 %v3776
        %v3787 = vpop.f32.mrf.mxu0
        %v3788 = vadd.f32 0.0, %v3787
        %v3789 = vpop.f32.mrf.mxu0
        %v3790 = vadd.f32 0.0, %v3789
        %3791 = vdwg.mxu0
        %v3792 = vadd.f32 %v3768, %v3788
        %v3793 = vadd.f32 %v3769, %v3790
        %v3795 = vunpack.c.l.b16 %v3740
        %v3796 = vpack.c.b16 %v3795, %v3795
        %v3797 = vshrl.u32 %v3750, 16
        %v3799 = vshll.u32 %v3750, 16
        %v3801 = vrot.slane %v3799, 1
        %v3802 = vor.u32 %v3797, %v3801
        %v3804 = vshll.u32 %v3796, 16
        %v3806 = vrot.slane %v3804, 1
        %v3807 = vsel %vm295, %v3802, %v3806
        %v3809 = vsel %vm242, %v3807, 0
        %3811 = vmatpush.bf16.msra.mxu0 0
        %3812 = vmatpush.bf16.msra.mxu0 0
        %3813 = vmatpush.bf16.msra.mxu0 0
        %3814 = vmatpush.bf16.msra.mxu0 0
        %3815 = vmatpush.bf16.msra.mxu0 0
        %3816 = vmatpush.bf16.msra.mxu0 0
        %3817 = vmatpush.bf16.msra.mxu0 0
        %3818 = vmatpush.bf16.msra.mxu0 %v413
        %3819 = vmatmul.bf16.gmra.mxu0 %v3809
        %v3820 = vpop.f32.mrf.mxu0
        %v3821 = vadd.f32 0.0, %v3820
        %v3822 = vpop.f32.mrf.mxu0
        %v3823 = vadd.f32 0.0, %v3822
        %3824 = vdwg.mxu0
        %v3825 = vadd.f32 %v3792, %v3821
        %v3826 = vadd.f32 %v3793, %v3823
        %s3827 = scalar_lea.vmem %s210, 624
        %v3828 = vld [vmem:[%s3827] sm:$0xff]
        %v3829 = vld [vmem:[%s3827 + $0x8] sm:$0xff]
        %v3830 = vld [vmem:[%s3827 + $0x10] sm:$0x1]
        %v3831 = vpack.c.bf16 %v3828, %v3828
        %v3832 = vpack.c.bf16 %v3829, %v3829
        %v3833 = vpack.c.bf16 %v3830, %v3830
        %s3834 = scalar_lea.vmem %s215, 624
        %v3835 = vld [vmem:[%s3834] sm:$0xff]
        %v3836 = vld [vmem:[%s3834 + $0x8] sm:$0xff]
        %v3837 = vpack.c.bf16 %v3835, %v3835
        %v3838 = vpack.c.bf16 %v3836, %v3836
        %v3841 = vunpack.c.l.b16 %v3831
        %v3842 = vunpack.c.l.b16 %v3832
        %v3843 = vpack.c.b16 %v3842, %v3841
        %v3845 = vsel %vm242, %v3843, 0
        %3847 = vmatpush.bf16.msra.mxu0 0
        %3848 = vmatpush.bf16.msra.mxu0 0
        %3849 = vmatpush.bf16.msra.mxu0 0
        %3850 = vmatpush.bf16.msra.mxu0 0
        %3851 = vmatpush.bf16.msra.mxu0 0
        %3852 = vmatpush.bf16.msra.mxu0 0
        %3853 = vmatpush.bf16.msra.mxu0 0
        %3854 = vmatpush.bf16.msra.mxu0 %v452
        %3855 = vmatmul.bf16.gmra.mxu0 %v3845
        %v3856 = vpop.f32.mrf.mxu0
        %v3857 = vadd.f32 0.0, %v3856
        %v3858 = vpop.f32.mrf.mxu0
        %v3859 = vadd.f32 0.0, %v3858
        %3860 = vdwg.mxu0
        %v3861 = vadd.f32 %v3825, %v3857
        %v3862 = vadd.f32 %v3826, %v3859
        %v3865 = vunpack.c.l.b16 %v3837
        %v3866 = vunpack.c.l.b16 %v3838
        %v3867 = vpack.c.b16 %v3866, %v3865
        %v3869 = vsel %vm242, %v3867, 0
        %3871 = vmatpush.bf16.msra.mxu0 0
        %3872 = vmatpush.bf16.msra.mxu0 0
        %3873 = vmatpush.bf16.msra.mxu0 0
        %3874 = vmatpush.bf16.msra.mxu0 0
        %3875 = vmatpush.bf16.msra.mxu0 0
        %3876 = vmatpush.bf16.msra.mxu0 0
        %3877 = vmatpush.bf16.msra.mxu0 0
        %3878 = vmatpush.bf16.msra.mxu0 %v479
        %3879 = vmatmul.bf16.gmra.mxu0 %v3869
        %v3880 = vpop.f32.mrf.mxu0
        %v3881 = vadd.f32 0.0, %v3880
        %v3882 = vpop.f32.mrf.mxu0
        %v3883 = vadd.f32 0.0, %v3882
        %3884 = vdwg.mxu0
        %v3885 = vadd.f32 %v3861, %v3881
        %v3886 = vadd.f32 %v3862, %v3883
        %v3888 = vunpack.c.l.b16 %v3833
        %v3889 = vpack.c.b16 %v3888, %v3888
        %v3890 = vshrl.u32 %v3843, 16
        %v3892 = vshll.u32 %v3843, 16
        %v3894 = vrot.slane %v3892, 1
        %v3895 = vor.u32 %v3890, %v3894
        %v3897 = vshll.u32 %v3889, 16
        %v3899 = vrot.slane %v3897, 1
        %v3900 = vsel %vm295, %v3895, %v3899
        %v3902 = vsel %vm242, %v3900, 0
        %3904 = vmatpush.bf16.msra.mxu0 0
        %3905 = vmatpush.bf16.msra.mxu0 0
        %3906 = vmatpush.bf16.msra.mxu0 0
        %3907 = vmatpush.bf16.msra.mxu0 0
        %3908 = vmatpush.bf16.msra.mxu0 0
        %3909 = vmatpush.bf16.msra.mxu0 0
        %3910 = vmatpush.bf16.msra.mxu0 0
        %3911 = vmatpush.bf16.msra.mxu0 %v515
        %3912 = vmatmul.bf16.gmra.mxu0 %v3902
        %v3913 = vpop.f32.mrf.mxu0
        %v3914 = vadd.f32 0.0, %v3913
        %v3915 = vpop.f32.mrf.mxu0
        %v3916 = vadd.f32 0.0, %v3915
        %3917 = vdwg.mxu0
        %v3918 = vadd.f32 %v3885, %v3914
        %v3919 = vadd.f32 %v3886, %v3916
        %v3920 = vadd.f32 %v3918, %v534
        %v3921 = vadd.f32 %v3919, %v534
        %v3922 = vmax.f32 %v3920, 0.0
        %v3923 = vmax.f32 %v3921, 0.0
        %v3924 = vmin.f32 %v3922, 6.0
        %v3925 = vmin.f32 %v3923, 6.0
        %s3926 = scalar_lea.vmem %s205, 192 [#allocation2]
        %3927 = vst.msk [vmem:[%s3926] sm:$0xff] %vm542, %v3924
        %3928 = vst.msk [vmem:[%s3926 + $0x8] sm:$0xff] %vm542, %v3925
        %v3929 = vld [vmem:[%s3827] sm:$0xff]
        %v3930 = vld [vmem:[%s3827 + $0x8] sm:$0xff]
        %v3931 = vld [vmem:[%s3827 + $0x10] sm:$0x1]
        %v3932 = vpack.c.bf16 %v3929, %v3929
        %v3933 = vpack.c.bf16 %v3930, %v3930
        %v3934 = vpack.c.bf16 %v3931, %v3931
        %v3935 = vld [vmem:[%s3834] sm:$0xff]
        %v3936 = vld [vmem:[%s3834 + $0x8] sm:$0xff]
        %v3937 = vpack.c.bf16 %v3935, %v3935
        %v3938 = vpack.c.bf16 %v3936, %v3936
        %v3941 = vunpack.c.l.b16 %v3937
        %v3942 = vunpack.c.l.b16 %v3938
        %v3943 = vpack.c.b16 %v3942, %v3941
        %v3945 = vsel %vm242, %v3943, 0
        %3947 = vmatpush.bf16.msra.mxu0 0
        %3948 = vmatpush.bf16.msra.mxu0 0
        %3949 = vmatpush.bf16.msra.mxu0 0
        %3950 = vmatpush.bf16.msra.mxu0 0
        %3951 = vmatpush.bf16.msra.mxu0 0
        %3952 = vmatpush.bf16.msra.mxu0 0
        %3953 = vmatpush.bf16.msra.mxu0 0
        %3954 = vmatpush.bf16.msra.mxu0 %v251
        %3955 = vmatmul.bf16.gmra.mxu0 %v3945
        %v3956 = vpop.f32.mrf.mxu0
        %v3957 = vadd.f32 0.0, %v3956
        %v3958 = vpop.f32.mrf.mxu0
        %v3959 = vadd.f32 0.0, %v3958
        %3960 = vdwg.mxu0
        %v3963 = vunpack.c.l.b16 %v3932
        %v3964 = vunpack.c.l.b16 %v3933
        %v3965 = vpack.c.b16 %v3964, %v3963
        %v3967 = vsel %vm242, %v3965, 0
        %3969 = vmatpush.bf16.msra.mxu0 0
        %3970 = vmatpush.bf16.msra.mxu0 0
        %3971 = vmatpush.bf16.msra.mxu0 0
        %3972 = vmatpush.bf16.msra.mxu0 0
        %3973 = vmatpush.bf16.msra.mxu0 0
        %3974 = vmatpush.bf16.msra.mxu0 0
        %3975 = vmatpush.bf16.msra.mxu0 0
        %3976 = vmatpush.bf16.msra.mxu0 %v276
        %3977 = vmatmul.bf16.gmra.mxu0 %v3967
        %v3978 = vpop.f32.mrf.mxu0
        %v3979 = vadd.f32 %v3957, %v3978
        %v3980 = vpop.f32.mrf.mxu0
        %v3981 = vadd.f32 %v3959, %v3980
        %3982 = vdwg.mxu0
        %v3984 = vunpack.c.l.b16 %v3934
        %v3985 = vpack.c.b16 %v3984, %v3984
        %v3986 = vshrl.u32 %v3965, 16
        %v3988 = vshll.u32 %v3965, 16
        %v3990 = vrot.slane %v3988, 1
        %v3991 = vor.u32 %v3986, %v3990
        %v3993 = vshll.u32 %v3985, 16
        %v3995 = vrot.slane %v3993, 1
        %v3996 = vsel %vm295, %v3991, %v3995
        %v3998 = vsel %vm242, %v3996, 0
        %4000 = vmatpush.bf16.msra.mxu0 0
        %4001 = vmatpush.bf16.msra.mxu0 0
        %4002 = vmatpush.bf16.msra.mxu0 0
        %4003 = vmatpush.bf16.msra.mxu0 0
        %4004 = vmatpush.bf16.msra.mxu0 0
        %4005 = vmatpush.bf16.msra.mxu0 0
        %4006 = vmatpush.bf16.msra.mxu0 0
        %4007 = vmatpush.bf16.msra.mxu0 %v311
        %4008 = vmatmul.bf16.gmra.mxu0 %v3998
        %v4009 = vpop.f32.mrf.mxu0
        %v4010 = vadd.f32 0.0, %v4009
        %v4011 = vpop.f32.mrf.mxu0
        %v4012 = vadd.f32 0.0, %v4011
        %4013 = vdwg.mxu0
        %v4014 = vadd.f32 %v3979, %v4010
        %v4015 = vadd.f32 %v3981, %v4012
        %s4016 = scalar_lea.vmem %s210, 648
        %v4017 = vld [vmem:[%s4016] sm:$0xff]
        %v4018 = vld [vmem:[%s4016 + $0x8] sm:$0xff]
        %v4019 = vld [vmem:[%s4016 + $0x10] sm:$0x1]
        %v4020 = vpack.c.bf16 %v4017, %v4017
        %v4021 = vpack.c.bf16 %v4018, %v4018
        %v4022 = vpack.c.bf16 %v4019, %v4019
        %s4023 = scalar_lea.vmem %s215, 648
        %v4024 = vld [vmem:[%s4023] sm:$0xff]
        %v4025 = vld [vmem:[%s4023 + $0x8] sm:$0xff]
        %v4026 = vpack.c.bf16 %v4024, %v4024
        %v4027 = vpack.c.bf16 %v4025, %v4025
        %v4030 = vunpack.c.l.b16 %v4020
        %v4031 = vunpack.c.l.b16 %v4021
        %v4032 = vpack.c.b16 %v4031, %v4030
        %v4034 = vsel %vm242, %v4032, 0
        %4036 = vmatpush.bf16.msra.mxu0 0
        %4037 = vmatpush.bf16.msra.mxu0 0
        %4038 = vmatpush.bf16.msra.mxu0 0
        %4039 = vmatpush.bf16.msra.mxu0 0
        %4040 = vmatpush.bf16.msra.mxu0 0
        %4041 = vmatpush.bf16.msra.mxu0 0
        %4042 = vmatpush.bf16.msra.mxu0 0
        %4043 = vmatpush.bf16.msra.mxu0 %v350
        %4044 = vmatmul.bf16.gmra.mxu0 %v4034
        %v4045 = vpop.f32.mrf.mxu0
        %v4046 = vadd.f32 0.0, %v4045
        %v4047 = vpop.f32.mrf.mxu0
        %v4048 = vadd.f32 0.0, %v4047
        %4049 = vdwg.mxu0
        %v4050 = vadd.f32 %v4014, %v4046
        %v4051 = vadd.f32 %v4015, %v4048
        %v4054 = vunpack.c.l.b16 %v4026
        %v4055 = vunpack.c.l.b16 %v4027
        %v4056 = vpack.c.b16 %v4055, %v4054
        %v4058 = vsel %vm242, %v4056, 0
        %4060 = vmatpush.bf16.msra.mxu0 0
        %4061 = vmatpush.bf16.msra.mxu0 0
        %4062 = vmatpush.bf16.msra.mxu0 0
        %4063 = vmatpush.bf16.msra.mxu0 0
        %4064 = vmatpush.bf16.msra.mxu0 0
        %4065 = vmatpush.bf16.msra.mxu0 0
        %4066 = vmatpush.bf16.msra.mxu0 0
        %4067 = vmatpush.bf16.msra.mxu0 %v377
        %4068 = vmatmul.bf16.gmra.mxu0 %v4058
        %v4069 = vpop.f32.mrf.mxu0
        %v4070 = vadd.f32 0.0, %v4069
        %v4071 = vpop.f32.mrf.mxu0
        %v4072 = vadd.f32 0.0, %v4071
        %4073 = vdwg.mxu0
        %v4074 = vadd.f32 %v4050, %v4070
        %v4075 = vadd.f32 %v4051, %v4072
        %v4077 = vunpack.c.l.b16 %v4022
        %v4078 = vpack.c.b16 %v4077, %v4077
        %v4079 = vshrl.u32 %v4032, 16
        %v4081 = vshll.u32 %v4032, 16
        %v4083 = vrot.slane %v4081, 1
        %v4084 = vor.u32 %v4079, %v4083
        %v4086 = vshll.u32 %v4078, 16
        %v4088 = vrot.slane %v4086, 1
        %v4089 = vsel %vm295, %v4084, %v4088
        %v4091 = vsel %vm242, %v4089, 0
        %4093 = vmatpush.bf16.msra.mxu0 0
        %4094 = vmatpush.bf16.msra.mxu0 0
        %4095 = vmatpush.bf16.msra.mxu0 0
        %4096 = vmatpush.bf16.msra.mxu0 0
        %4097 = vmatpush.bf16.msra.mxu0 0
        %4098 = vmatpush.bf16.msra.mxu0 0
        %4099 = vmatpush.bf16.msra.mxu0 0
        %4100 = vmatpush.bf16.msra.mxu0 %v413
        %4101 = vmatmul.bf16.gmra.mxu0 %v4091
        %v4102 = vpop.f32.mrf.mxu0
        %v4103 = vadd.f32 0.0, %v4102
        %v4104 = vpop.f32.mrf.mxu0
        %v4105 = vadd.f32 0.0, %v4104
        %4106 = vdwg.mxu0
        %v4107 = vadd.f32 %v4074, %v4103
        %v4108 = vadd.f32 %v4075, %v4105
        %s4109 = scalar_lea.vmem %s210, 672
        %v4110 = vld [vmem:[%s4109] sm:$0xff]
        %v4111 = vld [vmem:[%s4109 + $0x8] sm:$0xff]
        %v4112 = vld [vmem:[%s4109 + $0x10] sm:$0x1]
        %v4113 = vpack.c.bf16 %v4110, %v4110
        %v4114 = vpack.c.bf16 %v4111, %v4111
        %v4115 = vpack.c.bf16 %v4112, %v4112
        %s4116 = scalar_lea.vmem %s215, 672
        %v4117 = vld [vmem:[%s4116] sm:$0xff]
        %v4118 = vld [vmem:[%s4116 + $0x8] sm:$0xff]
        %v4119 = vpack.c.bf16 %v4117, %v4117
        %v4120 = vpack.c.bf16 %v4118, %v4118
        %v4123 = vunpack.c.l.b16 %v4113
        %v4124 = vunpack.c.l.b16 %v4114
        %v4125 = vpack.c.b16 %v4124, %v4123
        %v4127 = vsel %vm242, %v4125, 0
        %4129 = vmatpush.bf16.msra.mxu0 0
        %4130 = vmatpush.bf16.msra.mxu0 0
        %4131 = vmatpush.bf16.msra.mxu0 0
        %4132 = vmatpush.bf16.msra.mxu0 0
        %4133 = vmatpush.bf16.msra.mxu0 0
        %4134 = vmatpush.bf16.msra.mxu0 0
        %4135 = vmatpush.bf16.msra.mxu0 0
        %4136 = vmatpush.bf16.msra.mxu0 %v452
        %4137 = vmatmul.bf16.gmra.mxu0 %v4127
        %v4138 = vpop.f32.mrf.mxu0
        %v4139 = vadd.f32 0.0, %v4138
        %v4140 = vpop.f32.mrf.mxu0
        %v4141 = vadd.f32 0.0, %v4140
        %4142 = vdwg.mxu0
        %v4143 = vadd.f32 %v4107, %v4139
        %v4144 = vadd.f32 %v4108, %v4141
        %v4147 = vunpack.c.l.b16 %v4119
        %v4148 = vunpack.c.l.b16 %v4120
        %v4149 = vpack.c.b16 %v4148, %v4147
        %v4151 = vsel %vm242, %v4149, 0
        %4153 = vmatpush.bf16.msra.mxu0 0
        %4154 = vmatpush.bf16.msra.mxu0 0
        %4155 = vmatpush.bf16.msra.mxu0 0
        %4156 = vmatpush.bf16.msra.mxu0 0
        %4157 = vmatpush.bf16.msra.mxu0 0
        %4158 = vmatpush.bf16.msra.mxu0 0
        %4159 = vmatpush.bf16.msra.mxu0 0
        %4160 = vmatpush.bf16.msra.mxu0 %v479
        %4161 = vmatmul.bf16.gmra.mxu0 %v4151
        %v4162 = vpop.f32.mrf.mxu0
        %v4163 = vadd.f32 0.0, %v4162
        %v4164 = vpop.f32.mrf.mxu0
        %v4165 = vadd.f32 0.0, %v4164
        %4166 = vdwg.mxu0
        %v4167 = vadd.f32 %v4143, %v4163
        %v4168 = vadd.f32 %v4144, %v4165
        %v4170 = vunpack.c.l.b16 %v4115
        %v4171 = vpack.c.b16 %v4170, %v4170
        %v4172 = vshrl.u32 %v4125, 16
        %v4174 = vshll.u32 %v4125, 16
        %v4176 = vrot.slane %v4174, 1
        %v4177 = vor.u32 %v4172, %v4176
        %v4179 = vshll.u32 %v4171, 16
        %v4181 = vrot.slane %v4179, 1
        %v4182 = vsel %vm295, %v4177, %v4181
        %v4184 = vsel %vm242, %v4182, 0
        %4186 = vmatpush.bf16.msra.mxu0 0
        %4187 = vmatpush.bf16.msra.mxu0 0
        %4188 = vmatpush.bf16.msra.mxu0 0
        %4189 = vmatpush.bf16.msra.mxu0 0
        %4190 = vmatpush.bf16.msra.mxu0 0
        %4191 = vmatpush.bf16.msra.mxu0 0
        %4192 = vmatpush.bf16.msra.mxu0 0
        %4193 = vmatpush.bf16.msra.mxu0 %v515
        %4194 = vmatmul.bf16.gmra.mxu0 %v4184
        %v4195 = vpop.f32.mrf.mxu0
        %v4196 = vadd.f32 0.0, %v4195
        %v4197 = vpop.f32.mrf.mxu0
        %v4198 = vadd.f32 0.0, %v4197
        %4199 = vdwg.mxu0
        %v4200 = vadd.f32 %v4167, %v4196
        %v4201 = vadd.f32 %v4168, %v4198
        %v4202 = vadd.f32 %v4200, %v534
        %v4203 = vadd.f32 %v4201, %v534
        %v4204 = vmax.f32 %v4202, 0.0
        %v4205 = vmax.f32 %v4203, 0.0
        %v4206 = vmin.f32 %v4204, 6.0
        %v4207 = vmin.f32 %v4205, 6.0
        %s4208 = scalar_lea.vmem %s205, 208 [#allocation2]
        %4209 = vst.msk [vmem:[%s4208] sm:$0xff] %vm542, %v4206
        %4210 = vst.msk [vmem:[%s4208 + $0x8] sm:$0xff] %vm542, %v4207
        %v4211 = vld [vmem:[%s4109] sm:$0xff]
        %v4212 = vld [vmem:[%s4109 + $0x8] sm:$0xff]
        %v4213 = vld [vmem:[%s4109 + $0x10] sm:$0x1]
        %v4214 = vpack.c.bf16 %v4211, %v4211
        %v4215 = vpack.c.bf16 %v4212, %v4212
        %v4216 = vpack.c.bf16 %v4213, %v4213
        %v4217 = vld [vmem:[%s4116] sm:$0xff]
        %v4218 = vld [vmem:[%s4116 + $0x8] sm:$0xff]
        %v4219 = vpack.c.bf16 %v4217, %v4217
        %v4220 = vpack.c.bf16 %v4218, %v4218
        %v4223 = vunpack.c.l.b16 %v4219
        %v4224 = vunpack.c.l.b16 %v4220
        %v4225 = vpack.c.b16 %v4224, %v4223
        %v4227 = vsel %vm242, %v4225, 0
        %4229 = vmatpush.bf16.msra.mxu0 0
        %4230 = vmatpush.bf16.msra.mxu0 0
        %4231 = vmatpush.bf16.msra.mxu0 0
        %4232 = vmatpush.bf16.msra.mxu0 0
        %4233 = vmatpush.bf16.msra.mxu0 0
        %4234 = vmatpush.bf16.msra.mxu0 0
        %4235 = vmatpush.bf16.msra.mxu0 0
        %4236 = vmatpush.bf16.msra.mxu0 %v251
        %4237 = vmatmul.bf16.gmra.mxu0 %v4227
        %v4238 = vpop.f32.mrf.mxu0
        %v4239 = vadd.f32 0.0, %v4238
        %v4240 = vpop.f32.mrf.mxu0
        %v4241 = vadd.f32 0.0, %v4240
        %4242 = vdwg.mxu0
        %v4245 = vunpack.c.l.b16 %v4214
        %v4246 = vunpack.c.l.b16 %v4215
        %v4247 = vpack.c.b16 %v4246, %v4245
        %v4249 = vsel %vm242, %v4247, 0
        %4251 = vmatpush.bf16.msra.mxu0 0
        %4252 = vmatpush.bf16.msra.mxu0 0
        %4253 = vmatpush.bf16.msra.mxu0 0
        %4254 = vmatpush.bf16.msra.mxu0 0
        %4255 = vmatpush.bf16.msra.mxu0 0
        %4256 = vmatpush.bf16.msra.mxu0 0
        %4257 = vmatpush.bf16.msra.mxu0 0
        %4258 = vmatpush.bf16.msra.mxu0 %v276
        %4259 = vmatmul.bf16.gmra.mxu0 %v4249
        %v4260 = vpop.f32.mrf.mxu0
        %v4261 = vadd.f32 %v4239, %v4260
        %v4262 = vpop.f32.mrf.mxu0
        %v4263 = vadd.f32 %v4241, %v4262
        %4264 = vdwg.mxu0
        %v4266 = vunpack.c.l.b16 %v4216
        %v4267 = vpack.c.b16 %v4266, %v4266
        %v4268 = vshrl.u32 %v4247, 16
        %v4270 = vshll.u32 %v4247, 16
        %v4272 = vrot.slane %v4270, 1
        %v4273 = vor.u32 %v4268, %v4272
        %v4275 = vshll.u32 %v4267, 16
        %v4277 = vrot.slane %v4275, 1
        %v4278 = vsel %vm295, %v4273, %v4277
        %v4280 = vsel %vm242, %v4278, 0
        %4282 = vmatpush.bf16.msra.mxu0 0
        %4283 = vmatpush.bf16.msra.mxu0 0
        %4284 = vmatpush.bf16.msra.mxu0 0
        %4285 = vmatpush.bf16.msra.mxu0 0
        %4286 = vmatpush.bf16.msra.mxu0 0
        %4287 = vmatpush.bf16.msra.mxu0 0
        %4288 = vmatpush.bf16.msra.mxu0 0
        %4289 = vmatpush.bf16.msra.mxu0 %v311
        %4290 = vmatmul.bf16.gmra.mxu0 %v4280
        %v4291 = vpop.f32.mrf.mxu0
        %v4292 = vadd.f32 0.0, %v4291
        %v4293 = vpop.f32.mrf.mxu0
        %v4294 = vadd.f32 0.0, %v4293
        %4295 = vdwg.mxu0
        %v4296 = vadd.f32 %v4261, %v4292
        %v4297 = vadd.f32 %v4263, %v4294
        %s4298 = scalar_lea.vmem %s210, 696
        %v4299 = vld [vmem:[%s4298] sm:$0xff]
        %v4300 = vld [vmem:[%s4298 + $0x8] sm:$0xff]
        %v4301 = vld [vmem:[%s4298 + $0x10] sm:$0x1]
        %v4302 = vpack.c.bf16 %v4299, %v4299
        %v4303 = vpack.c.bf16 %v4300, %v4300
        %v4304 = vpack.c.bf16 %v4301, %v4301
        %s4305 = scalar_lea.vmem %s215, 696
        %v4306 = vld [vmem:[%s4305] sm:$0xff]
        %v4307 = vld [vmem:[%s4305 + $0x8] sm:$0xff]
        %v4308 = vpack.c.bf16 %v4306, %v4306
        %v4309 = vpack.c.bf16 %v4307, %v4307
        %v4312 = vunpack.c.l.b16 %v4302
        %v4313 = vunpack.c.l.b16 %v4303
        %v4314 = vpack.c.b16 %v4313, %v4312
        %v4316 = vsel %vm242, %v4314, 0
        %4318 = vmatpush.bf16.msra.mxu0 0
        %4319 = vmatpush.bf16.msra.mxu0 0
        %4320 = vmatpush.bf16.msra.mxu0 0
        %4321 = vmatpush.bf16.msra.mxu0 0
        %4322 = vmatpush.bf16.msra.mxu0 0
        %4323 = vmatpush.bf16.msra.mxu0 0
        %4324 = vmatpush.bf16.msra.mxu0 0
        %4325 = vmatpush.bf16.msra.mxu0 %v350
        %4326 = vmatmul.bf16.gmra.mxu0 %v4316
        %v4327 = vpop.f32.mrf.mxu0
        %v4328 = vadd.f32 0.0, %v4327
        %v4329 = vpop.f32.mrf.mxu0
        %v4330 = vadd.f32 0.0, %v4329
        %4331 = vdwg.mxu0
        %v4332 = vadd.f32 %v4296, %v4328
        %v4333 = vadd.f32 %v4297, %v4330
        %v4336 = vunpack.c.l.b16 %v4308
        %v4337 = vunpack.c.l.b16 %v4309
        %v4338 = vpack.c.b16 %v4337, %v4336
        %v4340 = vsel %vm242, %v4338, 0
        %4342 = vmatpush.bf16.msra.mxu0 0
        %4343 = vmatpush.bf16.msra.mxu0 0
        %4344 = vmatpush.bf16.msra.mxu0 0
        %4345 = vmatpush.bf16.msra.mxu0 0
        %4346 = vmatpush.bf16.msra.mxu0 0
        %4347 = vmatpush.bf16.msra.mxu0 0
        %4348 = vmatpush.bf16.msra.mxu0 0
        %4349 = vmatpush.bf16.msra.mxu0 %v377
        %4350 = vmatmul.bf16.gmra.mxu0 %v4340
        %v4351 = vpop.f32.mrf.mxu0
        %v4352 = vadd.f32 0.0, %v4351
        %v4353 = vpop.f32.mrf.mxu0
        %v4354 = vadd.f32 0.0, %v4353
        %4355 = vdwg.mxu0
        %v4356 = vadd.f32 %v4332, %v4352
        %v4357 = vadd.f32 %v4333, %v4354
        %v4359 = vunpack.c.l.b16 %v4304
        %v4360 = vpack.c.b16 %v4359, %v4359
        %v4361 = vshrl.u32 %v4314, 16
        %v4363 = vshll.u32 %v4314, 16
        %v4365 = vrot.slane %v4363, 1
        %v4366 = vor.u32 %v4361, %v4365
        %v4368 = vshll.u32 %v4360, 16
        %v4370 = vrot.slane %v4368, 1
        %v4371 = vsel %vm295, %v4366, %v4370
        %v4373 = vsel %vm242, %v4371, 0
        %4375 = vmatpush.bf16.msra.mxu0 0
        %4376 = vmatpush.bf16.msra.mxu0 0
        %4377 = vmatpush.bf16.msra.mxu0 0
        %4378 = vmatpush.bf16.msra.mxu0 0
        %4379 = vmatpush.bf16.msra.mxu0 0
        %4380 = vmatpush.bf16.msra.mxu0 0
        %4381 = vmatpush.bf16.msra.mxu0 0
        %4382 = vmatpush.bf16.msra.mxu0 %v413
        %4383 = vmatmul.bf16.gmra.mxu0 %v4373
        %v4384 = vpop.f32.mrf.mxu0
        %v4385 = vadd.f32 0.0, %v4384
        %v4386 = vpop.f32.mrf.mxu0
        %v4387 = vadd.f32 0.0, %v4386
        %4388 = vdwg.mxu0
        %v4389 = vadd.f32 %v4356, %v4385
        %v4390 = vadd.f32 %v4357, %v4387
        %s4391 = scalar_lea.vmem %s210, 720
        %v4392 = vld [vmem:[%s4391] sm:$0xff]
        %v4393 = vld [vmem:[%s4391 + $0x8] sm:$0xff]
        %v4394 = vld [vmem:[%s4391 + $0x10] sm:$0x1]
        %v4395 = vpack.c.bf16 %v4392, %v4392
        %v4396 = vpack.c.bf16 %v4393, %v4393
        %v4397 = vpack.c.bf16 %v4394, %v4394
        %s4398 = scalar_lea.vmem %s215, 720
        %v4399 = vld [vmem:[%s4398] sm:$0xff]
        %v4400 = vld [vmem:[%s4398 + $0x8] sm:$0xff]
        %v4401 = vpack.c.bf16 %v4399, %v4399
        %v4402 = vpack.c.bf16 %v4400, %v4400
        %v4405 = vunpack.c.l.b16 %v4395
        %v4406 = vunpack.c.l.b16 %v4396
        %v4407 = vpack.c.b16 %v4406, %v4405
        %v4409 = vsel %vm242, %v4407, 0
        %4411 = vmatpush.bf16.msra.mxu0 0
        %4412 = vmatpush.bf16.msra.mxu0 0
        %4413 = vmatpush.bf16.msra.mxu0 0
        %4414 = vmatpush.bf16.msra.mxu0 0
        %4415 = vmatpush.bf16.msra.mxu0 0
        %4416 = vmatpush.bf16.msra.mxu0 0
        %4417 = vmatpush.bf16.msra.mxu0 0
        %4418 = vmatpush.bf16.msra.mxu0 %v452
        %4419 = vmatmul.bf16.gmra.mxu0 %v4409
        %v4420 = vpop.f32.mrf.mxu0
        %v4421 = vadd.f32 0.0, %v4420
        %v4422 = vpop.f32.mrf.mxu0
        %v4423 = vadd.f32 0.0, %v4422
        %4424 = vdwg.mxu0
        %v4425 = vadd.f32 %v4389, %v4421
        %v4426 = vadd.f32 %v4390, %v4423
        %v4429 = vunpack.c.l.b16 %v4401
        %v4430 = vunpack.c.l.b16 %v4402
        %v4431 = vpack.c.b16 %v4430, %v4429
        %v4433 = vsel %vm242, %v4431, 0
        %4435 = vmatpush.bf16.msra.mxu0 0
        %4436 = vmatpush.bf16.msra.mxu0 0
        %4437 = vmatpush.bf16.msra.mxu0 0
        %4438 = vmatpush.bf16.msra.mxu0 0
        %4439 = vmatpush.bf16.msra.mxu0 0
        %4440 = vmatpush.bf16.msra.mxu0 0
        %4441 = vmatpush.bf16.msra.mxu0 0
        %4442 = vmatpush.bf16.msra.mxu0 %v479
        %4443 = vmatmul.bf16.gmra.mxu0 %v4433
        %v4444 = vpop.f32.mrf.mxu0
        %v4445 = vadd.f32 0.0, %v4444
        %v4446 = vpop.f32.mrf.mxu0
        %v4447 = vadd.f32 0.0, %v4446
        %4448 = vdwg.mxu0
        %v4449 = vadd.f32 %v4425, %v4445
        %v4450 = vadd.f32 %v4426, %v4447
        %v4452 = vunpack.c.l.b16 %v4397
        %v4453 = vpack.c.b16 %v4452, %v4452
        %v4454 = vshrl.u32 %v4407, 16
        %v4456 = vshll.u32 %v4407, 16
        %v4458 = vrot.slane %v4456, 1
        %v4459 = vor.u32 %v4454, %v4458
        %v4461 = vshll.u32 %v4453, 16
        %v4463 = vrot.slane %v4461, 1
        %v4464 = vsel %vm295, %v4459, %v4463
        %v4466 = vsel %vm242, %v4464, 0
        %4468 = vmatpush.bf16.msra.mxu0 0
        %4469 = vmatpush.bf16.msra.mxu0 0
        %4470 = vmatpush.bf16.msra.mxu0 0
        %4471 = vmatpush.bf16.msra.mxu0 0
        %4472 = vmatpush.bf16.msra.mxu0 0
        %4473 = vmatpush.bf16.msra.mxu0 0
        %4474 = vmatpush.bf16.msra.mxu0 0
        %4475 = vmatpush.bf16.msra.mxu0 %v515
        %4476 = vmatmul.bf16.gmra.mxu0 %v4466
        %v4477 = vpop.f32.mrf.mxu0
        %v4478 = vadd.f32 0.0, %v4477
        %v4479 = vpop.f32.mrf.mxu0
        %v4480 = vadd.f32 0.0, %v4479
        %4481 = vdwg.mxu0
        %v4482 = vadd.f32 %v4449, %v4478
        %v4483 = vadd.f32 %v4450, %v4480
        %v4484 = vadd.f32 %v4482, %v534
        %v4485 = vadd.f32 %v4483, %v534
        %v4486 = vmax.f32 %v4484, 0.0
        %v4487 = vmax.f32 %v4485, 0.0
        %v4488 = vmin.f32 %v4486, 6.0
        %v4489 = vmin.f32 %v4487, 6.0
        %s4490 = scalar_lea.vmem %s205, 224 [#allocation2]
        %4491 = vst.msk [vmem:[%s4490] sm:$0xff] %vm542, %v4488
        %4492 = vst.msk [vmem:[%s4490 + $0x8] sm:$0xff] %vm542, %v4489
        %v4493 = vld [vmem:[%s4391] sm:$0xff]
        %v4494 = vld [vmem:[%s4391 + $0x8] sm:$0xff]
        %v4495 = vld [vmem:[%s4391 + $0x10] sm:$0x1]
        %v4496 = vpack.c.bf16 %v4493, %v4493
        %v4497 = vpack.c.bf16 %v4494, %v4494
        %v4498 = vpack.c.bf16 %v4495, %v4495
        %v4499 = vld [vmem:[%s4398] sm:$0xff]
        %v4500 = vld [vmem:[%s4398 + $0x8] sm:$0xff]
        %v4501 = vpack.c.bf16 %v4499, %v4499
        %v4502 = vpack.c.bf16 %v4500, %v4500
        %v4505 = vunpack.c.l.b16 %v4501
        %v4506 = vunpack.c.l.b16 %v4502
        %v4507 = vpack.c.b16 %v4506, %v4505
        %v4509 = vsel %vm242, %v4507, 0
        %4511 = vmatpush.bf16.msra.mxu0 0
        %4512 = vmatpush.bf16.msra.mxu0 0
        %4513 = vmatpush.bf16.msra.mxu0 0
        %4514 = vmatpush.bf16.msra.mxu0 0
        %4515 = vmatpush.bf16.msra.mxu0 0
        %4516 = vmatpush.bf16.msra.mxu0 0
        %4517 = vmatpush.bf16.msra.mxu0 0
        %4518 = vmatpush.bf16.msra.mxu0 %v251
        %4519 = vmatmul.bf16.gmra.mxu0 %v4509
        %v4520 = vpop.f32.mrf.mxu0
        %v4521 = vadd.f32 0.0, %v4520
        %v4522 = vpop.f32.mrf.mxu0
        %v4523 = vadd.f32 0.0, %v4522
        %4524 = vdwg.mxu0
        %v4527 = vunpack.c.l.b16 %v4496
        %v4528 = vunpack.c.l.b16 %v4497
        %v4529 = vpack.c.b16 %v4528, %v4527
        %v4531 = vsel %vm242, %v4529, 0
        %4533 = vmatpush.bf16.msra.mxu0 0
        %4534 = vmatpush.bf16.msra.mxu0 0
        %4535 = vmatpush.bf16.msra.mxu0 0
        %4536 = vmatpush.bf16.msra.mxu0 0
        %4537 = vmatpush.bf16.msra.mxu0 0
        %4538 = vmatpush.bf16.msra.mxu0 0
        %4539 = vmatpush.bf16.msra.mxu0 0
        %4540 = vmatpush.bf16.msra.mxu0 %v276
        %4541 = vmatmul.bf16.gmra.mxu0 %v4531
        %v4542 = vpop.f32.mrf.mxu0
        %v4543 = vadd.f32 %v4521, %v4542
        %v4544 = vpop.f32.mrf.mxu0
        %v4545 = vadd.f32 %v4523, %v4544
        %4546 = vdwg.mxu0
        %v4548 = vunpack.c.l.b16 %v4498
        %v4549 = vpack.c.b16 %v4548, %v4548
        %v4550 = vshrl.u32 %v4529, 16
        %v4552 = vshll.u32 %v4529, 16
        %v4554 = vrot.slane %v4552, 1
        %v4555 = vor.u32 %v4550, %v4554
        %v4557 = vshll.u32 %v4549, 16
        %v4559 = vrot.slane %v4557, 1
        %v4560 = vsel %vm295, %v4555, %v4559
        %v4562 = vsel %vm242, %v4560, 0
        %4564 = vmatpush.bf16.msra.mxu0 0
        %4565 = vmatpush.bf16.msra.mxu0 0
        %4566 = vmatpush.bf16.msra.mxu0 0
        %4567 = vmatpush.bf16.msra.mxu0 0
        %4568 = vmatpush.bf16.msra.mxu0 0
        %4569 = vmatpush.bf16.msra.mxu0 0
        %4570 = vmatpush.bf16.msra.mxu0 0
        %4571 = vmatpush.bf16.msra.mxu0 %v311
        %4572 = vmatmul.bf16.gmra.mxu0 %v4562
        %v4573 = vpop.f32.mrf.mxu0
        %v4574 = vadd.f32 0.0, %v4573
        %v4575 = vpop.f32.mrf.mxu0
        %v4576 = vadd.f32 0.0, %v4575
        %4577 = vdwg.mxu0
        %v4578 = vadd.f32 %v4543, %v4574
        %v4579 = vadd.f32 %v4545, %v4576
        %s4580 = scalar_lea.vmem %s210, 744
        %v4581 = vld [vmem:[%s4580] sm:$0xff]
        %v4582 = vld [vmem:[%s4580 + $0x8] sm:$0xff]
        %v4583 = vld [vmem:[%s4580 + $0x10] sm:$0x1]
        %v4584 = vpack.c.bf16 %v4581, %v4581
        %v4585 = vpack.c.bf16 %v4582, %v4582
        %v4586 = vpack.c.bf16 %v4583, %v4583
        %s4587 = scalar_lea.vmem %s215, 744
        %v4588 = vld [vmem:[%s4587] sm:$0xff]
        %v4589 = vld [vmem:[%s4587 + $0x8] sm:$0xff]
        %v4590 = vpack.c.bf16 %v4588, %v4588
        %v4591 = vpack.c.bf16 %v4589, %v4589
        %v4594 = vunpack.c.l.b16 %v4584
        %v4595 = vunpack.c.l.b16 %v4585
        %v4596 = vpack.c.b16 %v4595, %v4594
        %v4598 = vsel %vm242, %v4596, 0
        %4600 = vmatpush.bf16.msra.mxu0 0
        %4601 = vmatpush.bf16.msra.mxu0 0
        %4602 = vmatpush.bf16.msra.mxu0 0
        %4603 = vmatpush.bf16.msra.mxu0 0
        %4604 = vmatpush.bf16.msra.mxu0 0
        %4605 = vmatpush.bf16.msra.mxu0 0
        %4606 = vmatpush.bf16.msra.mxu0 0
        %4607 = vmatpush.bf16.msra.mxu0 %v350
        %4608 = vmatmul.bf16.gmra.mxu0 %v4598
        %v4609 = vpop.f32.mrf.mxu0
        %v4610 = vadd.f32 0.0, %v4609
        %v4611 = vpop.f32.mrf.mxu0
        %v4612 = vadd.f32 0.0, %v4611
        %4613 = vdwg.mxu0
        %v4614 = vadd.f32 %v4578, %v4610
        %v4615 = vadd.f32 %v4579, %v4612
        %v4618 = vunpack.c.l.b16 %v4590
        %v4619 = vunpack.c.l.b16 %v4591
        %v4620 = vpack.c.b16 %v4619, %v4618
        %v4622 = vsel %vm242, %v4620, 0
        %4624 = vmatpush.bf16.msra.mxu0 0
        %4625 = vmatpush.bf16.msra.mxu0 0
        %4626 = vmatpush.bf16.msra.mxu0 0
        %4627 = vmatpush.bf16.msra.mxu0 0
        %4628 = vmatpush.bf16.msra.mxu0 0
        %4629 = vmatpush.bf16.msra.mxu0 0
        %4630 = vmatpush.bf16.msra.mxu0 0
        %4631 = vmatpush.bf16.msra.mxu0 %v377
        %4632 = vmatmul.bf16.gmra.mxu0 %v4622
        %v4633 = vpop.f32.mrf.mxu0
        %v4634 = vadd.f32 0.0, %v4633
        %v4635 = vpop.f32.mrf.mxu0
        %v4636 = vadd.f32 0.0, %v4635
        %4637 = vdwg.mxu0
        %v4638 = vadd.f32 %v4614, %v4634
        %v4639 = vadd.f32 %v4615, %v4636
        %v4641 = vunpack.c.l.b16 %v4586
        %v4642 = vpack.c.b16 %v4641, %v4641
        %v4643 = vshrl.u32 %v4596, 16
        %v4645 = vshll.u32 %v4596, 16
        %v4647 = vrot.slane %v4645, 1
        %v4648 = vor.u32 %v4643, %v4647
        %v4650 = vshll.u32 %v4642, 16
        %v4652 = vrot.slane %v4650, 1
        %v4653 = vsel %vm295, %v4648, %v4652
        %v4655 = vsel %vm242, %v4653, 0
        %4657 = vmatpush.bf16.msra.mxu0 0
        %4658 = vmatpush.bf16.msra.mxu0 0
        %4659 = vmatpush.bf16.msra.mxu0 0
        %4660 = vmatpush.bf16.msra.mxu0 0
        %4661 = vmatpush.bf16.msra.mxu0 0
        %4662 = vmatpush.bf16.msra.mxu0 0
        %4663 = vmatpush.bf16.msra.mxu0 0
        %4664 = vmatpush.bf16.msra.mxu0 %v413
        %4665 = vmatmul.bf16.gmra.mxu0 %v4655
        %v4666 = vpop.f32.mrf.mxu0
        %v4667 = vadd.f32 0.0, %v4666
        %v4668 = vpop.f32.mrf.mxu0
        %v4669 = vadd.f32 0.0, %v4668
        %4670 = vdwg.mxu0
        %v4671 = vadd.f32 %v4638, %v4667
        %v4672 = vadd.f32 %v4639, %v4669
        %s4673 = scalar_lea.vmem %s210, 768
        %v4674 = vld [vmem:[%s4673] sm:$0xff]
        %v4675 = vld [vmem:[%s4673 + $0x8] sm:$0xff]
        %v4676 = vld [vmem:[%s4673 + $0x10] sm:$0x1]
        %v4677 = vpack.c.bf16 %v4674, %v4674
        %v4678 = vpack.c.bf16 %v4675, %v4675
        %v4679 = vpack.c.bf16 %v4676, %v4676
        %s4680 = scalar_lea.vmem %s215, 768
        %v4681 = vld [vmem:[%s4680] sm:$0xff]
        %v4682 = vld [vmem:[%s4680 + $0x8] sm:$0xff]
        %v4683 = vpack.c.bf16 %v4681, %v4681
        %v4684 = vpack.c.bf16 %v4682, %v4682
        %v4687 = vunpack.c.l.b16 %v4677
        %v4688 = vunpack.c.l.b16 %v4678
        %v4689 = vpack.c.b16 %v4688, %v4687
        %v4691 = vsel %vm242, %v4689, 0
        %4693 = vmatpush.bf16.msra.mxu0 0
        %4694 = vmatpush.bf16.msra.mxu0 0
        %4695 = vmatpush.bf16.msra.mxu0 0
        %4696 = vmatpush.bf16.msra.mxu0 0
        %4697 = vmatpush.bf16.msra.mxu0 0
        %4698 = vmatpush.bf16.msra.mxu0 0
        %4699 = vmatpush.bf16.msra.mxu0 0
        %4700 = vmatpush.bf16.msra.mxu0 %v452
        %4701 = vmatmul.bf16.gmra.mxu0 %v4691
        %v4702 = vpop.f32.mrf.mxu0
        %v4703 = vadd.f32 0.0, %v4702
        %v4704 = vpop.f32.mrf.mxu0
        %v4705 = vadd.f32 0.0, %v4704
        %4706 = vdwg.mxu0
        %v4707 = vadd.f32 %v4671, %v4703
        %v4708 = vadd.f32 %v4672, %v4705
        %v4711 = vunpack.c.l.b16 %v4683
        %v4712 = vunpack.c.l.b16 %v4684
        %v4713 = vpack.c.b16 %v4712, %v4711
        %v4715 = vsel %vm242, %v4713, 0
        %4717 = vmatpush.bf16.msra.mxu0 0
        %4718 = vmatpush.bf16.msra.mxu0 0
        %4719 = vmatpush.bf16.msra.mxu0 0
        %4720 = vmatpush.bf16.msra.mxu0 0
        %4721 = vmatpush.bf16.msra.mxu0 0
        %4722 = vmatpush.bf16.msra.mxu0 0
        %4723 = vmatpush.bf16.msra.mxu0 0
        %4724 = vmatpush.bf16.msra.mxu0 %v479
        %4725 = vmatmul.bf16.gmra.mxu0 %v4715
        %v4726 = vpop.f32.mrf.mxu0
        %v4727 = vadd.f32 0.0, %v4726
        %v4728 = vpop.f32.mrf.mxu0
        %v4729 = vadd.f32 0.0, %v4728
        %4730 = vdwg.mxu0
        %v4731 = vadd.f32 %v4707, %v4727
        %v4732 = vadd.f32 %v4708, %v4729
        %v4734 = vunpack.c.l.b16 %v4679
        %v4735 = vpack.c.b16 %v4734, %v4734
        %v4736 = vshrl.u32 %v4689, 16
        %v4738 = vshll.u32 %v4689, 16
        %v4740 = vrot.slane %v4738, 1
        %v4741 = vor.u32 %v4736, %v4740
        %v4743 = vshll.u32 %v4735, 16
        %v4745 = vrot.slane %v4743, 1
        %v4746 = vsel %vm295, %v4741, %v4745
        %v4748 = vsel %vm242, %v4746, 0
        %4750 = vmatpush.bf16.msra.mxu0 0
        %4751 = vmatpush.bf16.msra.mxu0 0
        %4752 = vmatpush.bf16.msra.mxu0 0
        %4753 = vmatpush.bf16.msra.mxu0 0
        %4754 = vmatpush.bf16.msra.mxu0 0
        %4755 = vmatpush.bf16.msra.mxu0 0
        %4756 = vmatpush.bf16.msra.mxu0 0
        %4757 = vmatpush.bf16.msra.mxu0 %v515
        %4758 = vmatmul.bf16.gmra.mxu0 %v4748
        %v4759 = vpop.f32.mrf.mxu0
        %v4760 = vadd.f32 0.0, %v4759
        %v4761 = vpop.f32.mrf.mxu0
        %v4762 = vadd.f32 0.0, %v4761
        %4763 = vdwg.mxu0
        %v4764 = vadd.f32 %v4731, %v4760
        %v4765 = vadd.f32 %v4732, %v4762
        %v4766 = vadd.f32 %v4764, %v534
        %v4767 = vadd.f32 %v4765, %v534
        %v4768 = vmax.f32 %v4766, 0.0
        %v4769 = vmax.f32 %v4767, 0.0
        %v4770 = vmin.f32 %v4768, 6.0
        %v4771 = vmin.f32 %v4769, 6.0
        %s4772 = scalar_lea.vmem %s205, 240 [#allocation2]
        %4773 = vst.msk [vmem:[%s4772] sm:$0xff] %vm542, %v4770
        %4774 = vst.msk [vmem:[%s4772 + $0x8] sm:$0xff] %vm542, %v4771
        %s4775 = sand.u32 %s120, 1
        %s4776 = scalar_lea.sflag [#allocation3], %s4775
        %s4777 = sand.u32 %s120, 1
        %s4778 = smul.addr %s4777, 256
        %s4779 = scalar_lea.vmem [#allocation2], %s4778
        // Predicated region
        $region37: #{tpu_custom_call.1} parent=35 // pred_check
          %p4780 = pneg %p130
        $region38: #{tpu_custom_call.1} parent=35 // pred_check_branch
          %4782 = sbr.rel (%p4780) target = $region40
        $region39: #{tpu_custom_call.1} parent=35 // pred_region
          %4784 = vsyncadd %s4776, 0
          %s4785 = smul.addr %s18, 32
          %s4786 = smul.addr %s4785, 8
          %s4787 = scalar_lea.hbm %s4, %s4786
          %s4788 = sshll.u32 %s4779, 4
          %s4789 = int_to_ptr.vmem [resolvable:$true] %s4788
          %s4790 = sshll.u32 %s4787, 4
          %s4791 = int_to_ptr.hbm [resolvable:$true] %s4790
          %4796 = dma.vmem_to_hbm [thread:$0]  %s4789, 4096, %s4791, %s4776, 128, 128, 8
        $region40: #{tpu_custom_call.1} parent=35 // pred_fallthru
          _
      $region36: #{tpu_custom_call.1} parent=5 // pred_fallthru
        _
      %p4797 = scmp.le.s32.totalorder 2, %s13
      // Predicated region
      $region41: #{tpu_custom_call.1} parent=5 // pred_check
        %p4798 = pneg %p4797
      $region42: #{tpu_custom_call.1} parent=5 // pred_check_branch
        %4800 = sbr.rel (%p4798) target = $region44
      $region43: #{tpu_custom_call.1} parent=5 // pred_region
        %s4801 = ssub.s32 %s13, 2
        // Predicated region
        $region45: #{tpu_custom_call.1} parent=43 // pred_check
          %p4802 = pneg %p136
        $region46: #{tpu_custom_call.1} parent=43 // pred_check_branch
          %4804 = sbr.rel (%p4802) target = $region48
        $region47: #{tpu_custom_call.1} parent=43 // pred_region
          %s4805 = sand.u32 %s121, 1
          %s4806 = scalar_lea.sflag [#allocation3], %s4805
          %s4807 = sand.u32 %s121, 1
          %s4808 = smul.addr %s4807, 256
          %s4809 = scalar_lea.vmem [#allocation2], %s4808
          %4811 = dma.done %s4806, 4096
        $region48: #{tpu_custom_call.1} parent=43 // pred_fallthru
          _
      $region44: #{tpu_custom_call.1} parent=5 // pred_fallthru
        _
    $region6: #{tpu_custom_call.1} parent=1 // loop_footer
      %s17 = sadd.s32 1, %s13
    $region7: #{tpu_custom_call.1} parent=1 // loop_footer_branch
      %12 = sbr.rel target = $region3
    $region8: #{tpu_custom_call.1} parent=1 // loop_exit
      _
    %4812 = vsyncpa [#allocation3], 1
    %s4813 = scalar_lea.sflag [#allocation3], 1
    %4814 = vsyncpa %s4813, 1

</llo_original>
